<compile_context>
chip_gen: v7x
topology: tpu7x:2x2x1
jax: 0.10.0
libtpu: 0.0.40
codegen_flags: <defaults>
</compile_context>

<pallas_src>
import functools

import jax
import jax.numpy as jnp
from jax import lax
from jax.experimental import pallas as pl
from jax.experimental.pallas import tpu as pltpu

MID = 64          # module hard-codes 64 mid channels
CP = 128          # lane-dense padded channel width


# ----------------------------------------------------------------------------
# Fused FAM kernel
# ----------------------------------------------------------------------------
def _fam_kernel(stem_ref, wstem_ref, wd12_ref, w3_ref, aff_ref,
                o_ref, scr_ref, *, H, W):
    # stem_ref : (1, HW, Kstem) bf16   im2col'd [left|down|right] stem taps
    # wstem_ref: (Kstem, 3*CP)  bf16   block-diagonal stem weights -> [l|d|r]
    # wd12_ref : (9*2*CP, 2*CP) bf16   fused conv_d1 / conv_d2 weights
    # w3_ref   : (9*3*CP, CP)   bf16   conv3 weights, K ordered (tap, {l,d1,d2}, cin)
    # aff_ref  : (8, 3*CP)      f32    packed scales / shifts (folded BN / bias)
    # o_ref    : (1, HW, CP)    f32
    # scr_ref  : (HW + 2*W, 9*CP) bf16 zero-halo tap scratch
    HW = H * W
    S1 = 2 * CP                    # [d | r] source width (conv_d1 + conv_d2 fused)
    S2 = 3 * CP                    # [l | d1 | d2] source width (conv3)
    LANES = scr_ref.shape[1]       # == 3 * S2

    aff = aff_ref[...]
    sc_stem = aff[0:1, :]          # (1, 3*CP) folded BN scales of the 3 stems
    sh_stem = aff[1:2, :]          # (1, 3*CP) folded BN shifts
    sh_d12 = aff[2:3, 0:S1]        # (1, 2*CP) conv_d1 / conv_d2 biases
    sc3 = aff[3:4, 0:CP]           # (1, CP)   folded BN3 scale
    sh3 = aff[4:5, 0:CP]           # (1, CP)   folded BN3 shift

    # Hoisted bf16 multiplicative column masks (zero taps that would wrap a row).
    col = lax.broadcasted_iota(jnp.int32, (HW, 1), 0) % W
    mask_m = (col > 0).astype(jnp.bfloat16)        # valid pixels for dx = -1 taps
    mask_p = (col < W - 1).astype(jnp.bfloat16)    # valid pixels for dx = +1 taps

    # Zero-halo scratch: W zero rows above and below the image.  Zeroed once;
    # the in-image rows are fully rewritten before every read in each pass.
    scr_ref[0:W, :] = jnp.zeros((W, LANES), jnp.bfloat16)
    scr_ref[W + HW:2 * W + HW, :] = jnp.zeros((W, LANES), jnp.bfloat16)

    def taps(S):
        # Caller has already written the bf16 source into the center lane block
        # scr[W:W+HW, S:2S].  Build the dx = -1 / +1 variants with one shifted
        # read each straight out of the zero-halo scratch (rows W-1 / W+HW are
        # halo zeros) plus one mask multiply, then expose all 9 taps as three
        # overlapping (dy = -1/0/+1) row slices lane-concatenated into a single
        # (HW, 9*S) block feeding ONE long-K MXU matmul.
        scr_ref[W:W + HW, 0:S] = scr_ref[W - 1:W - 1 + HW, S:2 * S] * mask_m
        scr_ref[W:W + HW, 2 * S:3 * S] = scr_ref[W + 1:W + 1 + HW, S:2 * S] * mask_p
        return jnp.concatenate(
            [scr_ref[0:HW, 0:3 * S],
             scr_ref[W:W + HW, 0:3 * S],
             scr_ref[2 * W:2 * W + HW, 0:3 * S]], axis=-1)

    # ---- stems (conv0/1/2 + BN + ReLU): one block-diagonal matmul ----
    pre = jnp.dot(stem_ref[0], wstem_ref[...], preferred_element_type=jnp.float32)
    ldr = jnp.maximum(pre * sc_stem + sh_stem, 0.0).astype(jnp.bfloat16)  # (HW,3CP)=[l|d|r]

    # ---- conv_d1(d) and conv_d2(r): one fused K = 9*S1 matmul (+ bias) ----
    scr_ref[W:W + HW, S1:2 * S1] = ldr[:, CP:3 * CP]            # center = [d | r]
    d12 = (jnp.dot(taps(S1), wd12_ref[...], preferred_element_type=jnp.float32)
           + sh_d12).astype(jnp.bfloat16)                        # (HW, 2*CP) = [d1 | d2]

    # ---- conv3(cat[l, d1, d2]) + BN + ReLU: one K = 9*S2 matmul ----
    scr_ref[W:W + HW, S2:S2 + CP] = ldr[:, 0:CP]                 # l
    scr_ref[W:W + HW, S2 + CP:2 * S2] = d12                      # [d1 | d2]
    out = jnp.dot(taps(S2), w3_ref[...], preferred_element_type=jnp.float32)
    o_ref[0] = jnp.maximum(out * sc3 + sh3, 0.0).astype(o_ref.dtype)


# ----------------------------------------------------------------------------
# Wrapper: packing + pallas_call
# ----------------------------------------------------------------------------
def _im2col_taps(x):
    """(N,H,W,Cin) -> (N, H*W, 9*Cin), tap order (ky, kx, cin)."""
    n, h, w, cin = x.shape
    xp = jnp.pad(x, ((0, 0), (1, 1), (1, 1), (0, 0)))
    taps = jnp.concatenate(
        [xp[:, ky:ky + h, kx:kx + w, :] for ky in range(3) for kx in range(3)],
        axis=-1)
    return taps.reshape(n, h * w, 9 * cin)


def _pad_vec(v, n, fill=0.0):
    v = v.astype(jnp.float32)
    return jnp.concatenate([v, jnp.full((n - v.shape[0],), fill, jnp.float32)])


def _pack_stem_weight(w0, w1, w2, k_pad):
    """Block-diagonal (k_pad, 3*CP) bf16: each stem's K segment -> its 128-lane block."""
    wmat = jnp.zeros((k_pad, 3 * CP), jnp.float32)
    off = 0
    for b, w in enumerate((w0, w1, w2)):
        kb = 9 * w.shape[2]
        wmat = wmat.at[off:off + kb, b * CP:b * CP + MID].set(w.reshape(kb, MID))
        off += kb
    return wmat.astype(jnp.bfloat16)


def _pack_d12_weight(wd1, wd2):
    """(9*2*CP, 2*CP) bf16: K = (tap, {d,r}, cin), N = [conv_d1 out | conv_d2 out]."""
    wm = jnp.zeros((9, 2, CP, 2, CP), jnp.float32)
    wm = wm.at[:, 0, :MID, 0, :MID].set(wd1.reshape(9, MID, MID))
    wm = wm.at[:, 1, :MID, 1, :MID].set(wd2.reshape(9, MID, MID))
    return wm.reshape(9 * 2 * CP, 2 * CP).astype(jnp.bfloat16)


def _pack_w3_weight(w3):
    """(9*3*CP, CP) bf16: K = (tap, {l,d1,d2}, cin) matching the lane-concat order."""
    w9 = w3.reshape(9, 3 * MID, MID)
    wm = jnp.zeros((9, 3, CP, CP), jnp.float32)
    for b in range(3):
        wm = wm.at[:, b, :MID, :MID].set(w9[:, b * MID:(b + 1) * MID, :])
    return wm.reshape(9 * 3 * CP, CP).astype(jnp.bfloat16)


def _pack_affine(p):
    aff = jnp.zeros((8, 3 * CP), jnp.float32)
    aff = aff.at[0].set(jnp.concatenate([_pad_vec(p["s0"], CP, 1.0),
                                         _pad_vec(p["s1"], CP, 1.0),
                                         _pad_vec(p["s2"], CP, 1.0)]))
    aff = aff.at[1].set(jnp.concatenate([_pad_vec(p["b0"], CP),
                                         _pad_vec(p["b1"], CP),
                                         _pad_vec(p["b2"], CP)]))
    aff = aff.at[2, 0:2 * CP].set(jnp.concatenate([_pad_vec(p["bd1"], CP),
                                                   _pad_vec(p["bd2"], CP)]))
    aff = aff.at[3, 0:CP].set(_pad_vec(p["s3"], CP, 1.0))
    aff = aff.at[4, 0:CP].set(_pad_vec(p["b3"], CP))
    return aff


def _fam_fused(params, left, down, right):
    n, h, w, _ = left.shape
    hw = h * w

    # TODO(synk): at production H*W the stem im2col should be generated in-kernel
    # from the raw (N,H,W,Cin) inputs with the same halo-scratch trick (avoids the
    # 9x HBM read amplification), and HW should be tiled with a 1-row halo to fit
    # v7x's 64 MiB VMEM; negligible / unnecessary at 16x16.
    st = jnp.concatenate([_im2col_taps(left), _im2col_taps(down),
                          _im2col_taps(right)], axis=-1)
    k_raw = st.shape[-1]
    k_pad = ((k_raw + CP - 1) // CP) * CP
    st = jnp.pad(st, ((0, 0), (0, 0), (0, k_pad - k_raw))).astype(jnp.bfloat16)

    wstem = _pack_stem_weight(params["w0"], params["w1"], params["w2"], k_pad)
    wd12 = _pack_d12_weight(params["wd1"], params["wd2"])
    w3p = _pack_w3_weight(params["w3"])
    aff = _pack_affine(params)

    kernel = functools.partial(_fam_kernel, H=h, W=w)
    # NOTE: the weight/affine operands have constant index maps; default
    # double-buffering costs ~2.3 MiB VMEM here (noise), so pl.Buffered(1) is
    # intentionally not used at these sizes.
    out = pl.pallas_call(
        kernel,
        out_shape=jax.ShapeDtypeStruct((n, hw, CP), jnp.float32),
        grid=(n,),
        in_specs=[
            pl.BlockSpec((1, hw, k_pad), lambda i: (i, 0, 0)),
            pl.BlockSpec(wstem.shape, lambda i: (0, 0)),
            pl.BlockSpec(wd12.shape, lambda i: (0, 0)),
            pl.BlockSpec(w3p.shape, lambda i: (0, 0)),
            pl.BlockSpec(aff.shape, lambda i: (0, 0)),
        ],
        out_specs=pl.BlockSpec((1, hw, CP), lambda i: (i, 0, 0)),
        scratch_shapes=[pltpu.VMEM((hw + 2 * w, 9 * CP), jnp.bfloat16)],
        compiler_params=pltpu.CompilerParams(
            dimension_semantics=("parallel",)),
    )(st, wstem, wd12, w3p, aff)

    # TODO(synk): the channel slice + reshape below is a separate XLA copy over
    # HBM; fold it into the consumer (or emit the padded layout) at real sizes.
    return out[:, :, :MID].reshape(n, h, w, MID)


# ----------------------------------------------------------------------------
# Pure-JAX reference (also the fallback for the spatial-mismatch branch)
# ----------------------------------------------------------------------------
def _conv3x3_ref(x, w):
    return lax.conv_general_dilated(
        x.astype(jnp.bfloat16), w.astype(jnp.bfloat16),
        window_strides=(1, 1), padding=((1, 1), (1, 1)),
        dimension_numbers=("NHWC", "HWIO", "NHWC"),
        preferred_element_type=jnp.float32)


def fam_reference(params, left, down, right):
    def cbr(x, w, s, b):
        return jnp.maximum(_conv3x3_ref(x, w) * s + b, 0.0)

    l = cbr(left, params["w0"], params["s0"], params["b0"])
    d = cbr(down, params["w1"], params["s1"], params["b1"])
    r = cbr(right, params["w2"], params["s2"], params["b2"])

    d1 = _conv3x3_ref(d, params["wd1"]) + params["bd1"]
    if d1.shape[1:3] != l.shape[1:3]:
        d1 = jax.image.resize(
            d1, (d1.shape[0],) + l.shape[1:3] + (d1.shape[3],), "bilinear")
    d2 = _conv3x3_ref(r, params["wd2"]) + params["bd2"]
    if d2.shape[1:3] != l.shape[1:3]:
        d2 = jax.image.resize(
            d2, (d2.shape[0],) + l.shape[1:3] + (d2.shape[3],), "bilinear")

    cat = jnp.concatenate([l, d1, d2], axis=-1)
    y = _conv3x3_ref(cat, params["w3"])
    return jnp.maximum(y * params["s3"] + params["b3"], 0.0)


@jax.jit
def fam_forward(params, left, down, right):
    if left.shape[1:3] == down.shape[1:3] == right.shape[1:3]:
        return _fam_fused(params, left, down, right)
    # TODO(synk): spatial-mismatch branch (F.interpolate bilinear) uses the plain
    # JAX path instead of the fused Pallas kernel; not exercised at these shapes.
    return fam_reference(params, left, down, right)


# ----------------------------------------------------------------------------
# Parameter construction (mirrors the module's __init__ + weight_init, eval mode)
# ----------------------------------------------------------------------------
def _kaiming_conv(key, cin, cout):
    # kaiming_normal_, mode='fan_in', nonlinearity='relu' -> std = sqrt(2/fan_in)
    fan_in = cin * 3 * 3
    std = (2.0 / fan_in) ** 0.5
    return jax.random.normal(key, (3, 3, cin, cout), jnp.float32) * std


def _fold_bn(conv_bias, gamma, beta, running_mean, running_var, eps=1e-5):
    inv = gamma / jnp.sqrt(running_var + eps)
    return inv, (conv_bias - running_mean) * inv + beta


def make_fam_params(key, in_channel_left, in_channel_down, in_channel_right):
    ks = jax.random.split(key, 8)
    zeros = jnp.zeros((MID,), jnp.float32)
    ones = jnp.ones((MID,), jnp.float32)

    def bn_fold(conv_bias):
        # fresh BN in eval(): gamma=1, beta=0, running_mean=0, running_var=1
        return _fold_bn(conv_bias, ones, zeros, zeros, ones)

    s0, b0 = bn_fold(zeros)
    s1, b1 = bn_fold(zeros)
    s2, b2 = bn_fold(zeros)
    s3, b3 = bn_fold(zeros)

    return {
        "w0": _kaiming_conv(ks[0], in_channel_left, MID), "s0": s0, "b0": b0,
        "w1": _kaiming_conv(ks[1], in_channel_down, MID), "s1": s1, "b1": b1,
        "w2": _kaiming_conv(ks[2], in_channel_right, MID), "s2": s2, "b2": b2,
        # conv_d1 / conv_d2: plain conv, bias=0, no BN, no ReLU
        "wd1": _kaiming_conv(ks[3], MID, MID), "bd1": zeros,
        "wd2": _kaiming_conv(ks[4], MID, MID), "bd2": zeros,
        # conv_l exists in __init__ but is unused in forward (kept for parity)
        "wl": _kaiming_conv(ks[5], MID, MID), "bl": zeros,
        "w3": _kaiming_conv(ks[6], MID * 3, MID), "s3": s3, "b3": b3,
    }


# ----------------------------------------------------------------------------
# Main
# ----------------------------------------------------------------------------
if __name__ == "__main__":
    key = jax.random.PRNGKey(0)
    k_param, k_l, k_d, k_r = jax.random.split(key, 4)

    in_channel_left, in_channel_down, in_channel_right = 4, 6, 8
    n, h, w = 2, 16, 16

    params = make_fam_params(k_param, in_channel_left, in_channel_down,
                             in_channel_right)

    # NHWC inputs (NCHW equivalents: (2,4,16,16), (2,6,16,16), (2,8,16,16))
    left = jax.random.normal(k_l, (n, h, w, in_channel_left), jnp.float32)
    down = jax.random.normal(k_d, (n, h, w, in_channel_down), jnp.float32)
    right = jax.random.normal(k_r, (n, h, w, in_channel_right), jnp.float32)

    out = jax.block_until_ready(fam_forward(params, left, down, right))

    assert out.shape == (n, h, w, MID), out.shape
    assert bool(jnp.all(out >= 0.0)), "final ReLU violated"

    # Correctness check against an XLA conv reference (same bf16/f32 numerics).
    ref = jax.block_until_ready(fam_reference(params, left, down, right))
    err = float(jnp.max(jnp.abs(out - ref)))
    assert err < 5e-2, f"max abs error vs reference too large: {err}"

    print("KERNEL_OK")
</pallas_src>

<mosaic_0001>
module attributes {stable_mosaic.version = 11 : i64} {
  func.func @_fam_kernel(%arg0: i32, %arg1: memref<1x256x256xbf16, #tpu.memory_space<vmem>>, %arg2: memref<256x384xbf16, #tpu.memory_space<vmem>>, %arg3: memref<2304x256xbf16, #tpu.memory_space<vmem>>, %arg4: memref<3456x128xbf16, #tpu.memory_space<vmem>>, %arg5: memref<8x384xf32, #tpu.memory_space<vmem>>, %arg6: memref<1x256x128xf32, #tpu.memory_space<vmem>>, %arg7: memref<288x1152xbf16, #tpu.memory_space<vmem>>) attributes {dimension_semantics = [#tpu.dimension_semantics<parallel>], iteration_bounds = array<i64: 2>, scalar_prefetch = 0 : i64, scratch_operands = 1 : i64, tpu.core_type = #tpu.core_type<tc>, window_params = [{transform_indices = @transform_0, window_bounds = array<i64: 1, 256, 256>}, {pipeline_mode = #tpu.pipeline_mode<synchronous>, transform_indices = @transform_1, window_bounds = array<i64: 256, 384>}, {pipeline_mode = #tpu.pipeline_mode<synchronous>, transform_indices = @transform_2, window_bounds = array<i64: 2304, 256>}, {pipeline_mode = #tpu.pipeline_mode<synchronous>, transform_indices = @transform_3, window_bounds = array<i64: 3456, 128>}, {pipeline_mode = #tpu.pipeline_mode<synchronous>, transform_indices = @transform_4, window_bounds = array<i64: 8, 384>}, {transform_indices = @transform_5, window_bounds = array<i64: 1, 256, 128>}]} {
    %c0 = arith.constant 0 : index
    %c0_0 = arith.constant 0 : index
    %0 = vector.load %arg5[%c0, %c0_0] : memref<8x384xf32, #tpu.memory_space<vmem>>, vector<8x384xf32>
    %1 = vector.extract_strided_slice %0 {offsets = [0, 0], sizes = [1, 384], strides = [1, 1]} : vector<8x384xf32> to vector<1x384xf32>
    %2 = vector.extract_strided_slice %0 {offsets = [1, 0], sizes = [1, 384], strides = [1, 1]} : vector<8x384xf32> to vector<1x384xf32>
    %3 = vector.extract_strided_slice %0 {offsets = [2, 0], sizes = [1, 256], strides = [1, 1]} : vector<8x384xf32> to vector<1x256xf32>
    %4 = vector.extract_strided_slice %0 {offsets = [3, 0], sizes = [1, 128], strides = [1, 1]} : vector<8x384xf32> to vector<1x128xf32>
    %5 = vector.extract_strided_slice %0 {offsets = [4, 0], sizes = [1, 128], strides = [1, 1]} : vector<8x384xf32> to vector<1x128xf32>
    %6 = tpu.iota {dimensions = array<i32: 0>} : vector<256x1xi32>
    %c16_i32 = arith.constant 16 : i32
    %c0_i32 = arith.constant 0 : i32
    %7 = arith.cmpi eq, %c16_i32, %c0_i32 : i32
    %c1_i32 = arith.constant 1 : i32
    %8 = arith.select %7, %c1_i32, %c16_i32 : i32
    %9 = vector.broadcast %8 : i32 to vector<256x1xi32>
    %10 = arith.remsi %6, %9 : vector<256x1xi32>
    %c0_i32_1 = arith.constant 0 : i32
    %11 = vector.broadcast %c0_i32_1 : i32 to vector<256x1xi32>
    %12 = arith.cmpi ne, %10, %11 : vector<256x1xi32>
    %c0_i32_2 = arith.constant 0 : i32
    %13 = vector.broadcast %c0_i32_2 : i32 to vector<256x1xi32>
    %14 = arith.cmpi slt, %10, %13 : vector<256x1xi32>
    %c0_i32_3 = arith.constant 0 : i32
    %15 = arith.cmpi slt, %8, %c0_i32_3 : i32
    %16 = vector.broadcast %15 : i1 to vector<256x1xi1>
    %17 = vector.broadcast %16 : vector<256x1xi1> to vector<256x1xi1>
    %18 = arith.xori %14, %17 : vector<256x1xi1>
    %19 = arith.andi %18, %12 : vector<256x1xi1>
    %20 = vector.broadcast %8 : i32 to vector<256x1xi32>
    %21 = arith.addi %10, %20 : vector<256x1xi32>
    %22 = arith.select %19, %21, %10 : vector<256x1xi1>, vector<256x1xi32>
    %c0_i32_4 = arith.constant 0 : i32
    %23 = vector.broadcast %c0_i32_4 : i32 to vector<256x1xi32>
    %24 = arith.cmpi sgt, %22, %23 : vector<256x1xi32>
    %25 = arith.extui %24 : vector<256x1xi1> to vector<256x1xi32>
    %26 = arith.sitofp %25 : vector<256x1xi32> to vector<256x1xf32>
    %27 = arith.truncf %26 : vector<256x1xf32> to vector<256x1xbf16>
    %c15_i32 = arith.constant 15 : i32
    %28 = vector.broadcast %c15_i32 : i32 to vector<256x1xi32>
    %29 = arith.cmpi slt, %22, %28 : vector<256x1xi32>
    %30 = arith.extui %29 : vector<256x1xi1> to vector<256x1xi32>
    %31 = arith.sitofp %30 : vector<256x1xi32> to vector<256x1xf32>
    %32 = arith.truncf %31 : vector<256x1xf32> to vector<256x1xbf16>
    %cst = arith.constant 0.000000e+00 : bf16
    %33 = vector.broadcast %cst : bf16 to vector<16x1152xbf16>
    %c0_5 = arith.constant 0 : index
    %c0_6 = arith.constant 0 : index
    %34 = vector.load %arg7[%c0_5, %c0_6] : memref<288x1152xbf16, #tpu.memory_space<vmem>>, vector<16x1152xbf16>
    tpu.vector_store %arg7[%c0_5, %c0_6], %33 {strides = array<i32>} : memref<288x1152xbf16, #tpu.memory_space<vmem>>, vector<16x1152xbf16>,
    %cst_7 = arith.constant 0.000000e+00 : bf16
    %35 = vector.broadcast %cst_7 : bf16 to vector<16x1152xbf16>
    %c272 = arith.constant 272 : index
    %c0_8 = arith.constant 0 : index
    %36 = vector.load %arg7[%c272, %c0_8] : memref<288x1152xbf16, #tpu.memory_space<vmem>>, vector<16x1152xbf16>
    tpu.vector_store %arg7[%c272, %c0_8], %35 {strides = array<i32>} : memref<288x1152xbf16, #tpu.memory_space<vmem>>, vector<16x1152xbf16>,
    %c0_9 = arith.constant 0 : index
    %c0_10 = arith.constant 0 : index
    %c0_11 = arith.constant 0 : index
    %37 = vector.load %arg1[%c0_9, %c0_10, %c0_11] : memref<1x256x256xbf16, #tpu.memory_space<vmem>>, vector<1x256x256xbf16>
    %38 = vector.shape_cast %37 : vector<1x256x256xbf16> to vector<256x256xbf16>
    %c0_12 = arith.constant 0 : index
    %c0_13 = arith.constant 0 : index
    %39 = vector.load %arg2[%c0_12, %c0_13] : memref<256x384xbf16, #tpu.memory_space<vmem>>, vector<256x384xbf16>
    %cst_14 = arith.constant dense<0.000000e+00> : vector<256x384xf32>
    %40 = tpu.matmul %38, %39, %cst_14 {dimension_numbers = #tpu.dot_dimension_numbers<[1], [0], [0], [1], [0, 0, 1, 1], [], []>} : vector<256x256xbf16>, vector<256x384xbf16>, vector<256x384xf32> -> vector<256x384xf32>
    %41 = vector.broadcast %1 : vector<1x384xf32> to vector<256x384xf32>
    %42 = arith.mulf %40, %41 : vector<256x384xf32>
    %43 = vector.broadcast %2 : vector<1x384xf32> to vector<256x384xf32>
    %44 = arith.addf %42, %43 : vector<256x384xf32>
    %cst_15 = arith.constant 0.000000e+00 : f32
    %45 = vector.broadcast %cst_15 : f32 to vector<256x384xf32>
    %46 = arith.maximumf %44, %45 : vector<256x384xf32>
    %47 = arith.truncf %46 : vector<256x384xf32> to vector<256x384xbf16>
    %48 = vector.extract_strided_slice %47 {offsets = [0, 128], sizes = [256, 256], strides = [1, 1]} : vector<256x384xbf16> to vector<256x256xbf16>
    %c16 = arith.constant 16 : index
    %c256 = arith.constant 256 : index
    %49 = vector.load %arg7[%c16, %c256] : memref<288x1152xbf16, #tpu.memory_space<vmem>>, vector<256x256xbf16>
    tpu.vector_store %arg7[%c16, %c256], %48 {strides = array<i32>} : memref<288x1152xbf16, #tpu.memory_space<vmem>>, vector<256x256xbf16>,
    %c15 = arith.constant 15 : index
    %c256_16 = arith.constant 256 : index
    %50 = vector.load %arg7[%c15, %c256_16] : memref<288x1152xbf16, #tpu.memory_space<vmem>>, vector<256x256xbf16>
    %51 = vector.broadcast %27 : vector<256x1xbf16> to vector<256x256xbf16>
    %52 = arith.mulf %50, %51 : vector<256x256xbf16>
    %c16_17 = arith.constant 16 : index
    %c0_18 = arith.constant 0 : index
    %53 = vector.load %arg7[%c16_17, %c0_18] : memref<288x1152xbf16, #tpu.memory_space<vmem>>, vector<256x256xbf16>
    tpu.vector_store %arg7[%c16_17, %c0_18], %52 {strides = array<i32>} : memref<288x1152xbf16, #tpu.memory_space<vmem>>, vector<256x256xbf16>,
    %c17 = arith.constant 17 : index
    %c256_19 = arith.constant 256 : index
    %54 = vector.load %arg7[%c17, %c256_19] : memref<288x1152xbf16, #tpu.memory_space<vmem>>, vector<256x256xbf16>
    %55 = vector.broadcast %32 : vector<256x1xbf16> to vector<256x256xbf16>
    %56 = arith.mulf %54, %55 : vector<256x256xbf16>
    %c16_20 = arith.constant 16 : index
    %c512 = arith.constant 512 : index
    %57 = vector.load %arg7[%c16_20, %c512] : memref<288x1152xbf16, #tpu.memory_space<vmem>>, vector<256x256xbf16>
    tpu.vector_store %arg7[%c16_20, %c512], %56 {strides = array<i32>} : memref<288x1152xbf16, #tpu.memory_space<vmem>>, vector<256x256xbf16>,
    %c0_21 = arith.constant 0 : index
    %c0_22 = arith.constant 0 : index
    %58 = vector.load %arg7[%c0_21, %c0_22] : memref<288x1152xbf16, #tpu.memory_space<vmem>>, vector<256x768xbf16>
    %c16_23 = arith.constant 16 : index
    %c0_24 = arith.constant 0 : index
    %59 = vector.load %arg7[%c16_23, %c0_24] : memref<288x1152xbf16, #tpu.memory_space<vmem>>, vector<256x768xbf16>
    %c32 = arith.constant 32 : index
    %c0_25 = arith.constant 0 : index
    %60 = vector.load %arg7[%c32, %c0_25] : memref<288x1152xbf16, #tpu.memory_space<vmem>>, vector<256x768xbf16>
    %61 = tpu.concatenate %58, %59, %60 in 1 : vector<256x768xbf16>, vector<256x768xbf16>, vector<256x768xbf16> -> vector<256x2304xbf16>
    %c0_26 = arith.constant 0 : index
    %c0_27 = arith.constant 0 : index
    %62 = vector.load %arg3[%c0_26, %c0_27] : memref<2304x256xbf16, #tpu.memory_space<vmem>>, vector<2304x256xbf16>
    %cst_28 = arith.constant dense<0.000000e+00> : vector<256x256xf32>
    %63 = tpu.matmul %61, %62, %cst_28 {dimension_numbers = #tpu.dot_dimension_numbers<[1], [0], [0], [1], [0, 0, 1, 1], [], []>} : vector<256x2304xbf16>, vector<2304x256xbf16>, vector<256x256xf32> -> vector<256x256xf32>
    %64 = vector.broadcast %3 : vector<1x256xf32> to vector<256x256xf32>
    %65 = arith.addf %63, %64 : vector<256x256xf32>
    %66 = arith.truncf %65 : vector<256x256xf32> to vector<256x256xbf16>
    %67 = vector.extract_strided_slice %47 {offsets = [0, 0], sizes = [256, 128], strides = [1, 1]} : vector<256x384xbf16> to vector<256x128xbf16>
    %c16_29 = arith.constant 16 : index
    %c384 = arith.constant 384 : index
    %68 = vector.load %arg7[%c16_29, %c384] : memref<288x1152xbf16, #tpu.memory_space<vmem>>, vector<256x128xbf16>
    tpu.vector_store %arg7[%c16_29, %c384], %67 {strides = array<i32>} : memref<288x1152xbf16, #tpu.memory_space<vmem>>, vector<256x128xbf16>,
    %c16_30 = arith.constant 16 : index
    %c512_31 = arith.constant 512 : index
    %69 = vector.load %arg7[%c16_30, %c512_31] : memref<288x1152xbf16, #tpu.memory_space<vmem>>, vector<256x256xbf16>
    tpu.vector_store %arg7[%c16_30, %c512_31], %66 {strides = array<i32>} : memref<288x1152xbf16, #tpu.memory_space<vmem>>, vector<256x256xbf16>,
    %c15_32 = arith.constant 15 : index
    %c384_33 = arith.constant 384 : index
    %70 = vector.load %arg7[%c15_32, %c384_33] : memref<288x1152xbf16, #tpu.memory_space<vmem>>, vector<256x384xbf16>
    %71 = vector.broadcast %27 : vector<256x1xbf16> to vector<256x384xbf16>
    %72 = arith.mulf %70, %71 : vector<256x384xbf16>
    %c16_34 = arith.constant 16 : index
    %c0_35 = arith.constant 0 : index
    %73 = vector.load %arg7[%c16_34, %c0_35] : memref<288x1152xbf16, #tpu.memory_space<vmem>>, vector<256x384xbf16>
    tpu.vector_store %arg7[%c16_34, %c0_35], %72 {strides = array<i32>} : memref<288x1152xbf16, #tpu.memory_space<vmem>>, vector<256x384xbf16>,
    %c17_36 = arith.constant 17 : index
    %c384_37 = arith.constant 384 : index
    %74 = vector.load %arg7[%c17_36, %c384_37] : memref<288x1152xbf16, #tpu.memory_space<vmem>>, vector<256x384xbf16>
    %75 = vector.broadcast %32 : vector<256x1xbf16> to vector<256x384xbf16>
    %76 = arith.mulf %74, %75 : vector<256x384xbf16>
    %c16_38 = arith.constant 16 : index
    %c768 = arith.constant 768 : index
    %77 = vector.load %arg7[%c16_38, %c768] : memref<288x1152xbf16, #tpu.memory_space<vmem>>, vector<256x384xbf16>
    tpu.vector_store %arg7[%c16_38, %c768], %76 {strides = array<i32>} : memref<288x1152xbf16, #tpu.memory_space<vmem>>, vector<256x384xbf16>,
    %c0_39 = arith.constant 0 : index
    %c0_40 = arith.constant 0 : index
    %78 = vector.load %arg7[%c0_39, %c0_40] : memref<288x1152xbf16, #tpu.memory_space<vmem>>, vector<256x1152xbf16>
    %c16_41 = arith.constant 16 : index
    %c0_42 = arith.constant 0 : index
    %79 = vector.load %arg7[%c16_41, %c0_42] : memref<288x1152xbf16, #tpu.memory_space<vmem>>, vector<256x1152xbf16>
    %c32_43 = arith.constant 32 : index
    %c0_44 = arith.constant 0 : index
    %80 = vector.load %arg7[%c32_43, %c0_44] : memref<288x1152xbf16, #tpu.memory_space<vmem>>, vector<256x1152xbf16>
    %81 = tpu.concatenate %78, %79, %80 in 1 : vector<256x1152xbf16>, vector<256x1152xbf16>, vector<256x1152xbf16> -> vector<256x3456xbf16>
    %c0_45 = arith.constant 0 : index
    %c0_46 = arith.constant 0 : index
    %82 = vector.load %arg4[%c0_45, %c0_46] : memref<3456x128xbf16, #tpu.memory_space<vmem>>, vector<3456x128xbf16>
    %cst_47 = arith.constant dense<0.000000e+00> : vector<256x128xf32>
    %83 = tpu.matmul %81, %82, %cst_47 {dimension_numbers = #tpu.dot_dimension_numbers<[1], [0], [0], [1], [0, 0, 1, 1], [], []>} : vector<256x3456xbf16>, vector<3456x128xbf16>, vector<256x128xf32> -> vector<256x128xf32>
    %84 = vector.broadcast %4 : vector<1x128xf32> to vector<256x128xf32>
    %85 = arith.mulf %83, %84 : vector<256x128xf32>
    %86 = vector.broadcast %5 : vector<1x128xf32> to vector<256x128xf32>
    %87 = arith.addf %85, %86 : vector<256x128xf32>
    %cst_48 = arith.constant 0.000000e+00 : f32
    %88 = vector.broadcast %cst_48 : f32 to vector<256x128xf32>
    %89 = arith.maximumf %87, %88 : vector<256x128xf32>
    %c0_49 = arith.constant 0 : index
    %c0_50 = arith.constant 0 : index
    %c0_51 = arith.constant 0 : index
    %90 = vector.load %arg6[%c0_49, %c0_50, %c0_51] : memref<1x256x128xf32, #tpu.memory_space<vmem>>, vector<1x256x128xf32>
    %91 = vector.shape_cast %90 : vector<1x256x128xf32> to vector<256x128xf32>
    %92 = vector.shape_cast %89 : vector<256x128xf32> to vector<1x256x128xf32>
    tpu.vector_store %arg6[%c0_49, %c0_50, %c0_51], %92 {strides = array<i32>} : memref<1x256x128xf32, #tpu.memory_space<vmem>>, vector<1x256x128xf32>,
    return
  }
  func.func @transform_0(%arg0: i32) -> (i32, i32, i32) {
    %c0_i32 = arith.constant 0 : i32
    %c0_i32_0 = arith.constant 0 : i32
    %c0_i32_1 = arith.constant 0 : i32
    return %arg0, %c0_i32, %c0_i32_0 : i32, i32, i32
  }
  func.func @transform_1(%arg0: i32) -> (i32, i32) {
    %c0_i32 = arith.constant 0 : i32
    %c0_i32_0 = arith.constant 0 : i32
    %c0_i32_1 = arith.constant 0 : i32
    return %c0_i32, %c0_i32_0 : i32, i32
  }
  func.func @transform_2(%arg0: i32) -> (i32, i32) {
    %c0_i32 = arith.constant 0 : i32
    %c0_i32_0 = arith.constant 0 : i32
    %c0_i32_1 = arith.constant 0 : i32
    return %c0_i32, %c0_i32_0 : i32, i32
  }
  func.func @transform_3(%arg0: i32) -> (i32, i32) {
    %c0_i32 = arith.constant 0 : i32
    %c0_i32_0 = arith.constant 0 : i32
    %c0_i32_1 = arith.constant 0 : i32
    return %c0_i32, %c0_i32_0 : i32, i32
  }
  func.func @transform_4(%arg0: i32) -> (i32, i32) {
    %c0_i32 = arith.constant 0 : i32
    %c0_i32_0 = arith.constant 0 : i32
    %c0_i32_1 = arith.constant 0 : i32
    return %c0_i32, %c0_i32_0 : i32, i32
  }
  func.func @transform_5(%arg0: i32) -> (i32, i32, i32) {
    %c0_i32 = arith.constant 0 : i32
    %c0_i32_0 = arith.constant 0 : i32
    %c0_i32_1 = arith.constant 0 : i32
    return %arg0, %c0_i32, %c0_i32_0 : i32, i32, i32
  }
}

</mosaic_0001>

<llo_original>
// kernel: fam_forward.1
$region0: #{fam_forward.1}
  #allocation0 [shape = 'u32[]', space=smem, size = 0x4, offset = 0x4, fixed_abs, tag = 'smem constant byte address 0x4 - core index']
  #allocation1 [shape = 'u32[144,128]{1,0:T(1,128)}', space=vmem, size = 0x12000, scoped, tag = 'internal scratch']
  #allocation2 [shape = 'bf16[288,1152]{1,0:T(16,128)(2,1)}', space=vmem, size = 0xa2000, scoped, tag = 'scratch operand']
  %s0 = inlined_call_operand.vmem [shape: bf16[2,256,256], index: 0, kind: input, shape index: {}]
  %s1 = inlined_call_operand.vmem [shape: bf16[256,384], index: 1, kind: input, shape index: {}]
  %s2 = inlined_call_operand.vmem [shape: bf16[2304,256], index: 2, kind: input, shape index: {}]
  %s3 = inlined_call_operand.vmem [shape: bf16[3456,128], index: 3, kind: input, shape index: {}]
  %s4 = inlined_call_operand.vmem [shape: f32[8,384], index: 4, kind: input, shape index: {}]
  %s5 = inlined_call_operand.hbm [shape: f32[2,256,128], index: 5, kind: output, shape index: {}]
  %s6 = sld [smem:[#allocation0]]
  $region53: #{fam_forward.1} parent=0
    _
  %s8 = ssub.s32 1, %s6
  %s9 = scalar_select 0, %s8, %s6
  $region1: #{fam_forward.1} parent=0
    #allocation3 [shape = 'u8[262144]{0}', space=vmem, size = 0x40000, scoped, tag = 'output window, operand 0']
    #allocation4 [shape = 's32[2]{0}', space=sflag, size = 0x8, scoped, tag = 'scoped memory for fam_forward.1']
    %10 = vsyncpa [#allocation4], 0
    %s11 = scalar_lea.sflag [#allocation4], 1
    %12 = vsyncpa %s11, 0
    loop: start=0, step=1, limit=4
    $region2: #{fam_forward.1} parent=1 // loop_pre_header
      _
    $region3: #{fam_forward.1} parent=1 // loop_header
      %s14 = sphi 0, %s18
      %p15 = scmp.ge.s32.totalorder %s14, 4
      %s24 = sphi 0, %s26
      %s27 = sphi 0, %s24
      %s28 = sphi 0, %s27
      %s44 = sphi 0, %s28
      %s48 = sphi 0, %s48
      %s50 = sphi 0, %s48
      %s51 = sphi 0, %s50
      %s65 = sphi 0, %s51
      %s69 = sphi 0, %s69
      %s71 = sphi 0, %s69
      %s72 = sphi 0, %s71
      %s86 = sphi 0, %s72
      %s90 = sphi 0, %s90
      %s92 = sphi 0, %s90
      %s93 = sphi 0, %s92
      %s107 = sphi 0, %s93
      %s111 = sphi 0, %s111
      %s113 = sphi 0, %s111
      %s114 = sphi 0, %s113
      %s128 = sphi 0, %s114
      %s134 = sphi 0, %s136
      %s137 = sphi 0, %s134
      %s138 = sphi 0, %s137
      %s154 = sphi 0, %s138
    $region4: #{fam_forward.1} parent=1 // loop_header_branch
      %17 = sbr.rel (%p15) target = $region8
    $region5: #{fam_forward.1} parent=1 // loop_body
      %s19 = ssub.s32 %s14, 1
      %s20 = ssub.s32 %s14, 2
      %s21 = sadd.s32 %s14, 1
      %s22 = ssub.s32 %s14, %s21
      %p23 = scmp.eq.s32.totalorder %s22, 0
      %s25 = sadd.s32 %s24, 1
      %s26 = scalar_select %p23, %s24, %s25
      %p29 = pneg %p23
      %p30 = scmp.eq.s32.totalorder %s14, 1
      %p31 = por %p29, %p30
      %p32 = scmp.ne.s32.totalorder %s24, %s27
      %p33 = scmp.eq.s32.totalorder %s14, 0
      %p34 = por %p32, %p33
      %p35 = scmp.ne.s32.totalorder %s24, %s27
      %p36 = scmp.eq.s32.totalorder %s19, 1
      %p37 = por %p35, %p36
      %p38 = scmp.ne.s32.totalorder %s27, %s28
      %p39 = scmp.eq.s32.totalorder %s19, 0
      %p40 = por %p38, %p39
      %p41 = scmp.ne.s32.totalorder %s27, %s28
      %p42 = scmp.eq.s32.totalorder %s20, 1
      %p43 = por %p41, %p42
      %p45 = scmp.ne.s32.totalorder %s28, %s44
      %p46 = scmp.eq.s32.totalorder %s20, 0
      %p47 = por %p45, %p46
      %s49 = sadd.s32 %s48, 1
      %p52 = scmp.eq.s32.totalorder %s14, 1
      %p53 = scmp.ne.s32.totalorder %s48, %s50
      %p54 = scmp.eq.s32.totalorder %s14, 0
      %p55 = por %p53, %p54
      %p56 = scmp.ne.s32.totalorder %s48, %s50
      %p57 = scmp.eq.s32.totalorder %s19, 1
      %p58 = por %p56, %p57
      %p59 = scmp.ne.s32.totalorder %s50, %s51
      %p60 = scmp.eq.s32.totalorder %s19, 0
      %p61 = por %p59, %p60
      %p62 = scmp.ne.s32.totalorder %s50, %s51
      %p63 = scmp.eq.s32.totalorder %s20, 1
      %p64 = por %p62, %p63
      %p66 = scmp.ne.s32.totalorder %s51, %s65
      %p67 = scmp.eq.s32.totalorder %s20, 0
      %p68 = por %p66, %p67
      %s70 = sadd.s32 %s69, 1
      %p73 = scmp.eq.s32.totalorder %s14, 1
      %p74 = scmp.ne.s32.totalorder %s69, %s71
      %p75 = scmp.eq.s32.totalorder %s14, 0
      %p76 = por %p74, %p75
      %p77 = scmp.ne.s32.totalorder %s69, %s71
      %p78 = scmp.eq.s32.totalorder %s19, 1
      %p79 = por %p77, %p78
      %p80 = scmp.ne.s32.totalorder %s71, %s72
      %p81 = scmp.eq.s32.totalorder %s19, 0
      %p82 = por %p80, %p81
      %p83 = scmp.ne.s32.totalorder %s71, %s72
      %p84 = scmp.eq.s32.totalorder %s20, 1
      %p85 = por %p83, %p84
      %p87 = scmp.ne.s32.totalorder %s72, %s86
      %p88 = scmp.eq.s32.totalorder %s20, 0
      %p89 = por %p87, %p88
      %s91 = sadd.s32 %s90, 1
      %p94 = scmp.eq.s32.totalorder %s14, 1
      %p95 = scmp.ne.s32.totalorder %s90, %s92
      %p96 = scmp.eq.s32.totalorder %s14, 0
      %p97 = por %p95, %p96
      %p98 = scmp.ne.s32.totalorder %s90, %s92
      %p99 = scmp.eq.s32.totalorder %s19, 1
      %p100 = por %p98, %p99
      %p101 = scmp.ne.s32.totalorder %s92, %s93
      %p102 = scmp.eq.s32.totalorder %s19, 0
      %p103 = por %p101, %p102
      %p104 = scmp.ne.s32.totalorder %s92, %s93
      %p105 = scmp.eq.s32.totalorder %s20, 1
      %p106 = por %p104, %p105
      %p108 = scmp.ne.s32.totalorder %s93, %s107
      %p109 = scmp.eq.s32.totalorder %s20, 0
      %p110 = por %p108, %p109
      %s112 = sadd.s32 %s111, 1
      %p115 = scmp.eq.s32.totalorder %s14, 1
      %p116 = scmp.ne.s32.totalorder %s111, %s113
      %p117 = scmp.eq.s32.totalorder %s14, 0
      %p118 = por %p116, %p117
      %p119 = scmp.ne.s32.totalorder %s111, %s113
      %p120 = scmp.eq.s32.totalorder %s19, 1
      %p121 = por %p119, %p120
      %p122 = scmp.ne.s32.totalorder %s113, %s114
      %p123 = scmp.eq.s32.totalorder %s19, 0
      %p124 = por %p122, %p123
      %p125 = scmp.ne.s32.totalorder %s113, %s114
      %p126 = scmp.eq.s32.totalorder %s20, 1
      %p127 = por %p125, %p126
      %p129 = scmp.ne.s32.totalorder %s114, %s128
      %p130 = scmp.eq.s32.totalorder %s20, 0
      %p131 = por %p129, %p130
      %s132 = ssub.s32 %s14, %s21
      %p133 = scmp.eq.s32.totalorder %s132, 0
      %s135 = sadd.s32 %s134, 1
      %s136 = scalar_select %p133, %s134, %s135
      %p139 = pneg %p133
      %p140 = scmp.eq.s32.totalorder %s14, 1
      %p141 = por %p139, %p140
      %p142 = scmp.ne.s32.totalorder %s134, %s137
      %p143 = scmp.eq.s32.totalorder %s14, 0
      %p144 = por %p142, %p143
      %p145 = scmp.ne.s32.totalorder %s134, %s137
      %p146 = scmp.eq.s32.totalorder %s19, 1
      %p147 = por %p145, %p146
      %p148 = scmp.ne.s32.totalorder %s137, %s138
      %p149 = scmp.eq.s32.totalorder %s19, 0
      %p150 = por %p148, %p149
      %p151 = scmp.ne.s32.totalorder %s137, %s138
      %p152 = scmp.eq.s32.totalorder %s20, 1
      %p153 = por %p151, %p152
      %p155 = scmp.ne.s32.totalorder %s138, %s154
      %p156 = scmp.eq.s32.totalorder %s20, 0
      %p157 = por %p155, %p156
      %p158 = scmp.le.s32.totalorder 1, %s14
      %p159 = scmp.lt.s32.totalorder %s14, 3
      %p160 = pnand %p158, %p159
      %p161 = pneg %p160
      // Predicated region
      $region9: #{fam_forward.1} parent=5 // pred_check
        _
      $region10: #{fam_forward.1} parent=5 // pred_check_branch
        %163 = sbr.rel (%p160) target = $region12
      $region11: #{fam_forward.1} parent=5 // pred_region
        %s164 = ssub.s32 %s14, 1
        // Predicated region
        $region13: #{fam_forward.1} parent=11 // pred_check
          %p165 = pneg %p61
        $region14: #{fam_forward.1} parent=11 // pred_check_branch
          %167 = sbr.rel (%p165) target = $region16
        $region15: #{fam_forward.1} parent=11 // pred_region
          _
        $region16: #{fam_forward.1} parent=11 // pred_fallthru
          _
        // Predicated region
        $region17: #{fam_forward.1} parent=11 // pred_check
          %p168 = pneg %p82
        $region18: #{fam_forward.1} parent=11 // pred_check_branch
          %170 = sbr.rel (%p168) target = $region20
        $region19: #{fam_forward.1} parent=11 // pred_region
          _
        $region20: #{fam_forward.1} parent=11 // pred_fallthru
          _
        // Predicated region
        $region21: #{fam_forward.1} parent=11 // pred_check
          %p171 = pneg %p103
        $region22: #{fam_forward.1} parent=11 // pred_check_branch
          %173 = sbr.rel (%p171) target = $region24
        $region23: #{fam_forward.1} parent=11 // pred_region
          _
        $region24: #{fam_forward.1} parent=11 // pred_fallthru
          _
        // Predicated region
        $region25: #{fam_forward.1} parent=11 // pred_check
          %p174 = pneg %p124
        $region26: #{fam_forward.1} parent=11 // pred_check_branch
          %176 = sbr.rel (%p174) target = $region28
        $region27: #{fam_forward.1} parent=11 // pred_region
          _
        $region28: #{fam_forward.1} parent=11 // pred_fallthru
          _
      $region12: #{fam_forward.1} parent=5 // pred_fallthru
        _
      %p177 = scmp.lt.s32.totalorder %s14, 2
      // Predicated region
      $region29: #{fam_forward.1} parent=5 // pred_check
        %p178 = pneg %p177
      $region30: #{fam_forward.1} parent=5 // pred_check_branch
        %180 = sbr.rel (%p178) target = $region32
      $region31: #{fam_forward.1} parent=5 // pred_region
        // Predicated region
        $region33: #{fam_forward.1} parent=31 // pred_check
          %p181 = pneg %p34
        $region34: #{fam_forward.1} parent=31 // pred_check_branch
          %183 = sbr.rel (%p181) target = $region36
        $region35: #{fam_forward.1} parent=31 // pred_region
          %p184 = scmp.lt.s32.totalorder %s14, 1
          %s185 = scalar_select %p184, %s14, 1
          %s186 = smul.addr %s185, 64
          %s187 = smul.addr %s186, 4
          %s188 = scalar_lea.vmem %s0, %s187
        $region36: #{fam_forward.1} parent=31 // pred_fallthru
          _
      $region32: #{fam_forward.1} parent=5 // pred_fallthru
        _
      %p189 = scmp.le.s32.totalorder 1, %s14
      %p190 = scmp.lt.s32.totalorder %s14, 3
      %p191 = pnand %p189, %p190
      %p192 = pneg %p191
      // Predicated region
      $region37: #{fam_forward.1} parent=5 // pred_check
        _
      $region38: #{fam_forward.1} parent=5 // pred_check_branch
        %194 = sbr.rel (%p191) target = $region40
      $region39: #{fam_forward.1} parent=5 // pred_region
        %s195 = ssub.s32 %s14, 1
        %p196 = scmp.lt.s32.totalorder %s19, 1
        %s197 = scalar_select %p196, %s19, 1
        %s198 = smul.addr %s197, 64
        %s199 = smul.addr %s198, 4
        %s200 = scalar_lea.vmem %s0, %s199
        %p201 = pneg %p40
        %p202 = pneg %p37
        %p203 = pneg %p61
        %p204 = pneg %p58
        %p205 = pneg %p82
        %p206 = pneg %p79
        %p207 = pneg %p103
        %p208 = pneg %p100
        %p209 = pneg %p124
        %p210 = pneg %p121
        %p211 = pneg %p150
        %p212 = pneg %p147
        %s213 = sand.u32 %s137, 1
        %s214 = scalar_lea.sflag [#allocation4], %s213
        %s215 = sand.u32 %s137, 1
        %s216 = smul.addr %s215, 256
        %s217 = scalar_lea.vmem [#allocation3], %s216
        %p218 = scmp.lt.s32.totalorder %s19, 1
        %s219 = scalar_select %p218, %s19, 1
        %s220 = smul.addr %s219, 64
        %s221 = smul.addr %s220, 4
        %s222 = scalar_lea.vmem %s0, %s221
        %v224 = vld [vmem:[%s4] sm:$0xff]
        %v225 = vld [vmem:[%s4 + $0x8] sm:$0xff]
        %v226 = vld [vmem:[%s4 + $0x10] sm:$0xff]
        %v227 = vlaneseq
        %v228 = vshrl.u32 %v227, 7
        %v229 = vadd.s32 %v228, 8
        %v230 = vadd.s32 %v228, 16
        %v231 = vadd.s32 %v228, 24
        %v232 = vadd.s32 %v228, 32
        %v233 = vadd.s32 %v228, 40
        %v234 = vadd.s32 %v228, 48
        %v235 = vadd.s32 %v228, 56
        %v236 = vadd.s32 %v228, 64
        %v237 = vadd.s32 %v228, 72
        %v238 = vadd.s32 %v228, 80
        %v239 = vadd.s32 %v228, 88
        %v240 = vadd.s32 %v228, 96
        %v241 = vadd.s32 %v228, 104
        %v242 = vadd.s32 %v228, 112
        %v243 = vadd.s32 %v228, 120
        %v244 = vadd.s32 %v228, 128
        %v245 = vadd.s32 %v228, 136
        %v246 = vadd.s32 %v228, 144
        %v247 = vadd.s32 %v228, 152
        %v248 = vadd.s32 %v228, 160
        %v249 = vadd.s32 %v228, 168
        %v250 = vadd.s32 %v228, 176
        %v251 = vadd.s32 %v228, 184
        %v252 = vadd.s32 %v228, 192
        %v253 = vadd.s32 %v228, 200
        %v254 = vadd.s32 %v228, 208
        %v255 = vadd.s32 %v228, 216
        %v256 = vadd.s32 %v228, 224
        %v257 = vadd.s32 %v228, 232
        %v258 = vadd.s32 %v228, 240
        %v259 = vadd.s32 %v228, 248
        %vm260 = vcmp.lt.s32.totalorder %v228, 0
        %v261 = vsub.s32 0, %v228
        %v262 = vsel %vm260, %v261, %v228
        %v263 = vshrl.u32 %v262, 4
        %v264 = vand.u32 %v262, 15
        %v265 = vsub.s32 0, %v264
        %v266 = vsel %vm260, %v265, %v264
        %vm267 = vcmp.lt.s32.totalorder %v229, 0
        %v268 = vsub.s32 0, %v229
        %v269 = vsel %vm267, %v268, %v229
        %v270 = vshrl.u32 %v269, 4
        %v271 = vand.u32 %v269, 15
        %v272 = vsub.s32 0, %v271
        %v273 = vsel %vm267, %v272, %v271
        %vm274 = vcmp.lt.s32.totalorder %v230, 0
        %v275 = vsub.s32 0, %v230
        %v276 = vsel %vm274, %v275, %v230
        %v277 = vshrl.u32 %v276, 4
        %v278 = vand.u32 %v276, 15
        %v279 = vsub.s32 0, %v278
        %v280 = vsel %vm274, %v279, %v278
        %vm281 = vcmp.lt.s32.totalorder %v231, 0
        %v282 = vsub.s32 0, %v231
        %v283 = vsel %vm281, %v282, %v231
        %v284 = vshrl.u32 %v283, 4
        %v285 = vand.u32 %v283, 15
        %v286 = vsub.s32 0, %v285
        %v287 = vsel %vm281, %v286, %v285
        %vm288 = vcmp.lt.s32.totalorder %v232, 0
        %v289 = vsub.s32 0, %v232
        %v290 = vsel %vm288, %v289, %v232
        %v291 = vshrl.u32 %v290, 4
        %v292 = vand.u32 %v290, 15
        %v293 = vsub.s32 0, %v292
        %v294 = vsel %vm288, %v293, %v292
        %vm295 = vcmp.lt.s32.totalorder %v233, 0
        %v296 = vsub.s32 0, %v233
        %v297 = vsel %vm295, %v296, %v233
        %v298 = vshrl.u32 %v297, 4
        %v299 = vand.u32 %v297, 15
        %v300 = vsub.s32 0, %v299
        %v301 = vsel %vm295, %v300, %v299
        %vm302 = vcmp.lt.s32.totalorder %v234, 0
        %v303 = vsub.s32 0, %v234
        %v304 = vsel %vm302, %v303, %v234
        %v305 = vshrl.u32 %v304, 4
        %v306 = vand.u32 %v304, 15
        %v307 = vsub.s32 0, %v306
        %v308 = vsel %vm302, %v307, %v306
        %vm309 = vcmp.lt.s32.totalorder %v235, 0
        %v310 = vsub.s32 0, %v235
        %v311 = vsel %vm309, %v310, %v235
        %v312 = vshrl.u32 %v311, 4
        %v313 = vand.u32 %v311, 15
        %v314 = vsub.s32 0, %v313
        %v315 = vsel %vm309, %v314, %v313
        %vm316 = vcmp.lt.s32.totalorder %v236, 0
        %v317 = vsub.s32 0, %v236
        %v318 = vsel %vm316, %v317, %v236
        %v319 = vshrl.u32 %v318, 4
        %v320 = vand.u32 %v318, 15
        %v321 = vsub.s32 0, %v320
        %v322 = vsel %vm316, %v321, %v320
        %vm323 = vcmp.lt.s32.totalorder %v237, 0
        %v324 = vsub.s32 0, %v237
        %v325 = vsel %vm323, %v324, %v237
        %v326 = vshrl.u32 %v325, 4
        %v327 = vand.u32 %v325, 15
        %v328 = vsub.s32 0, %v327
        %v329 = vsel %vm323, %v328, %v327
        %vm330 = vcmp.lt.s32.totalorder %v238, 0
        %v331 = vsub.s32 0, %v238
        %v332 = vsel %vm330, %v331, %v238
        %v333 = vshrl.u32 %v332, 4
        %v334 = vand.u32 %v332, 15
        %v335 = vsub.s32 0, %v334
        %v336 = vsel %vm330, %v335, %v334
        %vm337 = vcmp.lt.s32.totalorder %v239, 0
        %v338 = vsub.s32 0, %v239
        %v339 = vsel %vm337, %v338, %v239
        %v340 = vshrl.u32 %v339, 4
        %v341 = vand.u32 %v339, 15
        %v342 = vsub.s32 0, %v341
        %v343 = vsel %vm337, %v342, %v341
        %vm344 = vcmp.lt.s32.totalorder %v240, 0
        %v345 = vsub.s32 0, %v240
        %v346 = vsel %vm344, %v345, %v240
        %v347 = vshrl.u32 %v346, 4
        %v348 = vand.u32 %v346, 15
        %v349 = vsub.s32 0, %v348
        %v350 = vsel %vm344, %v349, %v348
        %vm351 = vcmp.lt.s32.totalorder %v241, 0
        %v352 = vsub.s32 0, %v241
        %v353 = vsel %vm351, %v352, %v241
        %v354 = vshrl.u32 %v353, 4
        %v355 = vand.u32 %v353, 15
        %v356 = vsub.s32 0, %v355
        %v357 = vsel %vm351, %v356, %v355
        %vm358 = vcmp.lt.s32.totalorder %v242, 0
        %v359 = vsub.s32 0, %v242
        %v360 = vsel %vm358, %v359, %v242
        %v361 = vshrl.u32 %v360, 4
        %v362 = vand.u32 %v360, 15
        %v363 = vsub.s32 0, %v362
        %v364 = vsel %vm358, %v363, %v362
        %vm365 = vcmp.lt.s32.totalorder %v243, 0
        %v366 = vsub.s32 0, %v243
        %v367 = vsel %vm365, %v366, %v243
        %v368 = vshrl.u32 %v367, 4
        %v369 = vand.u32 %v367, 15
        %v370 = vsub.s32 0, %v369
        %v371 = vsel %vm365, %v370, %v369
        %vm372 = vcmp.lt.s32.totalorder %v244, 0
        %v373 = vsub.s32 0, %v244
        %v374 = vsel %vm372, %v373, %v244
        %v375 = vshrl.u32 %v374, 4
        %v376 = vand.u32 %v374, 15
        %v377 = vsub.s32 0, %v376
        %v378 = vsel %vm372, %v377, %v376
        %vm379 = vcmp.lt.s32.totalorder %v245, 0
        %v380 = vsub.s32 0, %v245
        %v381 = vsel %vm379, %v380, %v245
        %v382 = vshrl.u32 %v381, 4
        %v383 = vand.u32 %v381, 15
        %v384 = vsub.s32 0, %v383
        %v385 = vsel %vm379, %v384, %v383
        %vm386 = vcmp.lt.s32.totalorder %v246, 0
        %v387 = vsub.s32 0, %v246
        %v388 = vsel %vm386, %v387, %v246
        %v389 = vshrl.u32 %v388, 4
        %v390 = vand.u32 %v388, 15
        %v391 = vsub.s32 0, %v390
        %v392 = vsel %vm386, %v391, %v390
        %vm393 = vcmp.lt.s32.totalorder %v247, 0
        %v394 = vsub.s32 0, %v247
        %v395 = vsel %vm393, %v394, %v247
        %v396 = vshrl.u32 %v395, 4
        %v397 = vand.u32 %v395, 15
        %v398 = vsub.s32 0, %v397
        %v399 = vsel %vm393, %v398, %v397
        %vm400 = vcmp.lt.s32.totalorder %v248, 0
        %v401 = vsub.s32 0, %v248
        %v402 = vsel %vm400, %v401, %v248
        %v403 = vshrl.u32 %v402, 4
        %v404 = vand.u32 %v402, 15
        %v405 = vsub.s32 0, %v404
        %v406 = vsel %vm400, %v405, %v404
        %vm407 = vcmp.lt.s32.totalorder %v249, 0
        %v408 = vsub.s32 0, %v249
        %v409 = vsel %vm407, %v408, %v249
        %v410 = vshrl.u32 %v409, 4
        %v411 = vand.u32 %v409, 15
        %v412 = vsub.s32 0, %v411
        %v413 = vsel %vm407, %v412, %v411
        %vm414 = vcmp.lt.s32.totalorder %v250, 0
        %v415 = vsub.s32 0, %v250
        %v416 = vsel %vm414, %v415, %v250
        %v417 = vshrl.u32 %v416, 4
        %v418 = vand.u32 %v416, 15
        %v419 = vsub.s32 0, %v418
        %v420 = vsel %vm414, %v419, %v418
        %vm421 = vcmp.lt.s32.totalorder %v251, 0
        %v422 = vsub.s32 0, %v251
        %v423 = vsel %vm421, %v422, %v251
        %v424 = vshrl.u32 %v423, 4
        %v425 = vand.u32 %v423, 15
        %v426 = vsub.s32 0, %v425
        %v427 = vsel %vm421, %v426, %v425
        %vm428 = vcmp.lt.s32.totalorder %v252, 0
        %v429 = vsub.s32 0, %v252
        %v430 = vsel %vm428, %v429, %v252
        %v431 = vshrl.u32 %v430, 4
        %v432 = vand.u32 %v430, 15
        %v433 = vsub.s32 0, %v432
        %v434 = vsel %vm428, %v433, %v432
        %vm435 = vcmp.lt.s32.totalorder %v253, 0
        %v436 = vsub.s32 0, %v253
        %v437 = vsel %vm435, %v436, %v253
        %v438 = vshrl.u32 %v437, 4
        %v439 = vand.u32 %v437, 15
        %v440 = vsub.s32 0, %v439
        %v441 = vsel %vm435, %v440, %v439
        %vm442 = vcmp.lt.s32.totalorder %v254, 0
        %v443 = vsub.s32 0, %v254
        %v444 = vsel %vm442, %v443, %v254
        %v445 = vshrl.u32 %v444, 4
        %v446 = vand.u32 %v444, 15
        %v447 = vsub.s32 0, %v446
        %v448 = vsel %vm442, %v447, %v446
        %vm449 = vcmp.lt.s32.totalorder %v255, 0
        %v450 = vsub.s32 0, %v255
        %v451 = vsel %vm449, %v450, %v255
        %v452 = vshrl.u32 %v451, 4
        %v453 = vand.u32 %v451, 15
        %v454 = vsub.s32 0, %v453
        %v455 = vsel %vm449, %v454, %v453
        %vm456 = vcmp.lt.s32.totalorder %v256, 0
        %v457 = vsub.s32 0, %v256
        %v458 = vsel %vm456, %v457, %v256
        %v459 = vshrl.u32 %v458, 4
        %v460 = vand.u32 %v458, 15
        %v461 = vsub.s32 0, %v460
        %v462 = vsel %vm456, %v461, %v460
        %vm463 = vcmp.lt.s32.totalorder %v257, 0
        %v464 = vsub.s32 0, %v257
        %v465 = vsel %vm463, %v464, %v257
        %v466 = vshrl.u32 %v465, 4
        %v467 = vand.u32 %v465, 15
        %v468 = vsub.s32 0, %v467
        %v469 = vsel %vm463, %v468, %v467
        %vm470 = vcmp.lt.s32.totalorder %v258, 0
        %v471 = vsub.s32 0, %v258
        %v472 = vsel %vm470, %v471, %v258
        %v473 = vshrl.u32 %v472, 4
        %v474 = vand.u32 %v472, 15
        %v475 = vsub.s32 0, %v474
        %v476 = vsel %vm470, %v475, %v474
        %vm477 = vcmp.lt.s32.totalorder %v259, 0
        %v478 = vsub.s32 0, %v259
        %v479 = vsel %vm477, %v478, %v259
        %v480 = vshrl.u32 %v479, 4
        %v481 = vand.u32 %v479, 15
        %v482 = vsub.s32 0, %v481
        %v483 = vsel %vm477, %v482, %v481
        %vm484 = vcmp.ne.s32.totalorder %v266, 0
        %vm485 = vcmp.ne.s32.totalorder %v273, 0
        %vm486 = vcmp.ne.s32.totalorder %v280, 0
        %vm487 = vcmp.ne.s32.totalorder %v287, 0
        %vm488 = vcmp.ne.s32.totalorder %v294, 0
        %vm489 = vcmp.ne.s32.totalorder %v301, 0
        %vm490 = vcmp.ne.s32.totalorder %v308, 0
        %vm491 = vcmp.ne.s32.totalorder %v315, 0
        %vm492 = vcmp.ne.s32.totalorder %v322, 0
        %vm493 = vcmp.ne.s32.totalorder %v329, 0
        %vm494 = vcmp.ne.s32.totalorder %v336, 0
        %vm495 = vcmp.ne.s32.totalorder %v343, 0
        %vm496 = vcmp.ne.s32.totalorder %v350, 0
        %vm497 = vcmp.ne.s32.totalorder %v357, 0
        %vm498 = vcmp.ne.s32.totalorder %v364, 0
        %vm499 = vcmp.ne.s32.totalorder %v371, 0
        %vm500 = vcmp.ne.s32.totalorder %v378, 0
        %vm501 = vcmp.ne.s32.totalorder %v385, 0
        %vm502 = vcmp.ne.s32.totalorder %v392, 0
        %vm503 = vcmp.ne.s32.totalorder %v399, 0
        %vm504 = vcmp.ne.s32.totalorder %v406, 0
        %vm505 = vcmp.ne.s32.totalorder %v413, 0
        %vm506 = vcmp.ne.s32.totalorder %v420, 0
        %vm507 = vcmp.ne.s32.totalorder %v427, 0
        %vm508 = vcmp.ne.s32.totalorder %v434, 0
        %vm509 = vcmp.ne.s32.totalorder %v441, 0
        %vm510 = vcmp.ne.s32.totalorder %v448, 0
        %vm511 = vcmp.ne.s32.totalorder %v455, 0
        %vm512 = vcmp.ne.s32.totalorder %v462, 0
        %vm513 = vcmp.ne.s32.totalorder %v469, 0
        %vm514 = vcmp.ne.s32.totalorder %v476, 0
        %vm515 = vcmp.ne.s32.totalorder %v483, 0
        %vm516 = vcmp.lt.s32.totalorder %v266, 0
        %vm517 = vcmp.lt.s32.totalorder %v273, 0
        %vm518 = vcmp.lt.s32.totalorder %v280, 0
        %vm519 = vcmp.lt.s32.totalorder %v287, 0
        %vm520 = vcmp.lt.s32.totalorder %v294, 0
        %vm521 = vcmp.lt.s32.totalorder %v301, 0
        %vm522 = vcmp.lt.s32.totalorder %v308, 0
        %vm523 = vcmp.lt.s32.totalorder %v315, 0
        %vm524 = vcmp.lt.s32.totalorder %v322, 0
        %vm525 = vcmp.lt.s32.totalorder %v329, 0
        %vm526 = vcmp.lt.s32.totalorder %v336, 0
        %vm527 = vcmp.lt.s32.totalorder %v343, 0
        %vm528 = vcmp.lt.s32.totalorder %v350, 0
        %vm529 = vcmp.lt.s32.totalorder %v357, 0
        %vm530 = vcmp.lt.s32.totalorder %v364, 0
        %vm531 = vcmp.lt.s32.totalorder %v371, 0
        %vm532 = vcmp.lt.s32.totalorder %v378, 0
        %vm533 = vcmp.lt.s32.totalorder %v385, 0
        %vm534 = vcmp.lt.s32.totalorder %v392, 0
        %vm535 = vcmp.lt.s32.totalorder %v399, 0
        %vm536 = vcmp.lt.s32.totalorder %v406, 0
        %vm537 = vcmp.lt.s32.totalorder %v413, 0
        %vm538 = vcmp.lt.s32.totalorder %v420, 0
        %vm539 = vcmp.lt.s32.totalorder %v427, 0
        %vm540 = vcmp.lt.s32.totalorder %v434, 0
        %vm541 = vcmp.lt.s32.totalorder %v441, 0
        %vm542 = vcmp.lt.s32.totalorder %v448, 0
        %vm543 = vcmp.lt.s32.totalorder %v455, 0
        %vm544 = vcmp.lt.s32.totalorder %v462, 0
        %vm545 = vcmp.lt.s32.totalorder %v469, 0
        %vm546 = vcmp.lt.s32.totalorder %v476, 0
        %vm547 = vcmp.lt.s32.totalorder %v483, 0
        %vm548 = vmand %vm516, %vm484
        %vm549 = vmand %vm517, %vm485
        %vm550 = vmand %vm518, %vm486
        %vm551 = vmand %vm519, %vm487
        %vm552 = vmand %vm520, %vm488
        %vm553 = vmand %vm521, %vm489
        %vm554 = vmand %vm522, %vm490
        %vm555 = vmand %vm523, %vm491
        %vm556 = vmand %vm524, %vm492
        %vm557 = vmand %vm525, %vm493
        %vm558 = vmand %vm526, %vm494
        %vm559 = vmand %vm527, %vm495
        %vm560 = vmand %vm528, %vm496
        %vm561 = vmand %vm529, %vm497
        %vm562 = vmand %vm530, %vm498
        %vm563 = vmand %vm531, %vm499
        %vm564 = vmand %vm532, %vm500
        %vm565 = vmand %vm533, %vm501
        %vm566 = vmand %vm534, %vm502
        %vm567 = vmand %vm535, %vm503
        %vm568 = vmand %vm536, %vm504
        %vm569 = vmand %vm537, %vm505
        %vm570 = vmand %vm538, %vm506
        %vm571 = vmand %vm539, %vm507
        %vm572 = vmand %vm540, %vm508
        %vm573 = vmand %vm541, %vm509
        %vm574 = vmand %vm542, %vm510
        %vm575 = vmand %vm543, %vm511
        %vm576 = vmand %vm544, %vm512
        %vm577 = vmand %vm545, %vm513
        %vm578 = vmand %vm546, %vm514
        %vm579 = vmand %vm547, %vm515
        %v580 = vadd.s32 %v266, 16
        %v581 = vadd.s32 %v273, 16
        %v582 = vadd.s32 %v280, 16
        %v583 = vadd.s32 %v287, 16
        %v584 = vadd.s32 %v294, 16
        %v585 = vadd.s32 %v301, 16
        %v586 = vadd.s32 %v308, 16
        %v587 = vadd.s32 %v315, 16
        %v588 = vadd.s32 %v322, 16
        %v589 = vadd.s32 %v329, 16
        %v590 = vadd.s32 %v336, 16
        %v591 = vadd.s32 %v343, 16
        %v592 = vadd.s32 %v350, 16
        %v593 = vadd.s32 %v357, 16
        %v594 = vadd.s32 %v364, 16
        %v595 = vadd.s32 %v371, 16
        %v596 = vadd.s32 %v378, 16
        %v597 = vadd.s32 %v385, 16
        %v598 = vadd.s32 %v392, 16
        %v599 = vadd.s32 %v399, 16
        %v600 = vadd.s32 %v406, 16
        %v601 = vadd.s32 %v413, 16
        %v602 = vadd.s32 %v420, 16
        %v603 = vadd.s32 %v427, 16
        %v604 = vadd.s32 %v434, 16
        %v605 = vadd.s32 %v441, 16
        %v606 = vadd.s32 %v448, 16
        %v607 = vadd.s32 %v455, 16
        %v608 = vadd.s32 %v462, 16
        %v609 = vadd.s32 %v469, 16
        %v610 = vadd.s32 %v476, 16
        %v611 = vadd.s32 %v483, 16
        %v612 = vsel %vm548, %v580, %v266
        %v613 = vsel %vm549, %v581, %v273
        %v614 = vsel %vm550, %v582, %v280
        %v615 = vsel %vm551, %v583, %v287
        %v616 = vsel %vm552, %v584, %v294
        %v617 = vsel %vm553, %v585, %v301
        %v618 = vsel %vm554, %v586, %v308
        %v619 = vsel %vm555, %v587, %v315
        %v620 = vsel %vm556, %v588, %v322
        %v621 = vsel %vm557, %v589, %v329
        %v622 = vsel %vm558, %v590, %v336
        %v623 = vsel %vm559, %v591, %v343
        %v624 = vsel %vm560, %v592, %v350
        %v625 = vsel %vm561, %v593, %v357
        %v626 = vsel %vm562, %v594, %v364
        %v627 = vsel %vm563, %v595, %v371
        %v628 = vsel %vm564, %v596, %v378
        %v629 = vsel %vm565, %v597, %v385
        %v630 = vsel %vm566, %v598, %v392
        %v631 = vsel %vm567, %v599, %v399
        %v632 = vsel %vm568, %v600, %v406
        %v633 = vsel %vm569, %v601, %v413
        %v634 = vsel %vm570, %v602, %v420
        %v635 = vsel %vm571, %v603, %v427
        %v636 = vsel %vm572, %v604, %v434
        %v637 = vsel %vm573, %v605, %v441
        %v638 = vsel %vm574, %v606, %v448
        %v639 = vsel %vm575, %v607, %v455
        %v640 = vsel %vm576, %v608, %v462
        %v641 = vsel %vm577, %v609, %v469
        %v642 = vsel %vm578, %v610, %v476
        %v643 = vsel %vm579, %v611, %v483
        %vm644 = vcmp.gt.s32.totalorder %v612, 0
        %vm645 = vcmp.gt.s32.totalorder %v613, 0
        %vm646 = vcmp.gt.s32.totalorder %v614, 0
        %vm647 = vcmp.gt.s32.totalorder %v615, 0
        %vm648 = vcmp.gt.s32.totalorder %v616, 0
        %vm649 = vcmp.gt.s32.totalorder %v617, 0
        %vm650 = vcmp.gt.s32.totalorder %v618, 0
        %vm651 = vcmp.gt.s32.totalorder %v619, 0
        %vm652 = vcmp.gt.s32.totalorder %v620, 0
        %vm653 = vcmp.gt.s32.totalorder %v621, 0
        %vm654 = vcmp.gt.s32.totalorder %v622, 0
        %vm655 = vcmp.gt.s32.totalorder %v623, 0
        %vm656 = vcmp.gt.s32.totalorder %v624, 0
        %vm657 = vcmp.gt.s32.totalorder %v625, 0
        %vm658 = vcmp.gt.s32.totalorder %v626, 0
        %vm659 = vcmp.gt.s32.totalorder %v627, 0
        %vm660 = vcmp.gt.s32.totalorder %v628, 0
        %vm661 = vcmp.gt.s32.totalorder %v629, 0
        %vm662 = vcmp.gt.s32.totalorder %v630, 0
        %vm663 = vcmp.gt.s32.totalorder %v631, 0
        %vm664 = vcmp.gt.s32.totalorder %v632, 0
        %vm665 = vcmp.gt.s32.totalorder %v633, 0
        %vm666 = vcmp.gt.s32.totalorder %v634, 0
        %vm667 = vcmp.gt.s32.totalorder %v635, 0
        %vm668 = vcmp.gt.s32.totalorder %v636, 0
        %vm669 = vcmp.gt.s32.totalorder %v637, 0
        %vm670 = vcmp.gt.s32.totalorder %v638, 0
        %vm671 = vcmp.gt.s32.totalorder %v639, 0
        %vm672 = vcmp.gt.s32.totalorder %v640, 0
        %vm673 = vcmp.gt.s32.totalorder %v641, 0
        %vm674 = vcmp.gt.s32.totalorder %v642, 0
        %vm675 = vcmp.gt.s32.totalorder %v643, 0
        %v676 = vsel %vm644, 1, 0
        %v677 = vsel %vm645, 1, 0
        %v678 = vsel %vm646, 1, 0
        %v679 = vsel %vm647, 1, 0
        %v680 = vsel %vm648, 1, 0
        %v681 = vsel %vm649, 1, 0
        %v682 = vsel %vm650, 1, 0
        %v683 = vsel %vm651, 1, 0
        %v684 = vsel %vm652, 1, 0
        %v685 = vsel %vm653, 1, 0
        %v686 = vsel %vm654, 1, 0
        %v687 = vsel %vm655, 1, 0
        %v688 = vsel %vm656, 1, 0
        %v689 = vsel %vm657, 1, 0
        %v690 = vsel %vm658, 1, 0
        %v691 = vsel %vm659, 1, 0
        %v692 = vsel %vm660, 1, 0
        %v693 = vsel %vm661, 1, 0
        %v694 = vsel %vm662, 1, 0
        %v695 = vsel %vm663, 1, 0
        %v696 = vsel %vm664, 1, 0
        %v697 = vsel %vm665, 1, 0
        %v698 = vsel %vm666, 1, 0
        %v699 = vsel %vm667, 1, 0
        %v700 = vsel %vm668, 1, 0
        %v701 = vsel %vm669, 1, 0
        %v702 = vsel %vm670, 1, 0
        %v703 = vsel %vm671, 1, 0
        %v704 = vsel %vm672, 1, 0
        %v705 = vsel %vm673, 1, 0
        %v706 = vsel %vm674, 1, 0
        %v707 = vsel %vm675, 1, 0
        %v708 = vcvt.s32.f32 %v676
        %v709 = vcvt.s32.f32 %v677
        %v710 = vcvt.s32.f32 %v678
        %v711 = vcvt.s32.f32 %v679
        %v712 = vcvt.s32.f32 %v680
        %v713 = vcvt.s32.f32 %v681
        %v714 = vcvt.s32.f32 %v682
        %v715 = vcvt.s32.f32 %v683
        %v716 = vcvt.s32.f32 %v684
        %v717 = vcvt.s32.f32 %v685
        %v718 = vcvt.s32.f32 %v686
        %v719 = vcvt.s32.f32 %v687
        %v720 = vcvt.s32.f32 %v688
        %v721 = vcvt.s32.f32 %v689
        %v722 = vcvt.s32.f32 %v690
        %v723 = vcvt.s32.f32 %v691
        %v724 = vcvt.s32.f32 %v692
        %v725 = vcvt.s32.f32 %v693
        %v726 = vcvt.s32.f32 %v694
        %v727 = vcvt.s32.f32 %v695
        %v728 = vcvt.s32.f32 %v696
        %v729 = vcvt.s32.f32 %v697
        %v730 = vcvt.s32.f32 %v698
        %v731 = vcvt.s32.f32 %v699
        %v732 = vcvt.s32.f32 %v700
        %v733 = vcvt.s32.f32 %v701
        %v734 = vcvt.s32.f32 %v702
        %v735 = vcvt.s32.f32 %v703
        %v736 = vcvt.s32.f32 %v704
        %v737 = vcvt.s32.f32 %v705
        %v738 = vcvt.s32.f32 %v706
        %v739 = vcvt.s32.f32 %v707
        %v740 = vpack.c.bf16 %v709, %v708
        %v741 = vpack.c.bf16 %v711, %v710
        %v742 = vpack.c.bf16 %v713, %v712
        %v743 = vpack.c.bf16 %v715, %v714
        %v744 = vpack.c.bf16 %v717, %v716
        %v745 = vpack.c.bf16 %v719, %v718
        %v746 = vpack.c.bf16 %v721, %v720
        %v747 = vpack.c.bf16 %v723, %v722
        %v748 = vpack.c.bf16 %v725, %v724
        %v749 = vpack.c.bf16 %v727, %v726
        %v750 = vpack.c.bf16 %v729, %v728
        %v751 = vpack.c.bf16 %v731, %v730
        %v752 = vpack.c.bf16 %v733, %v732
        %v753 = vpack.c.bf16 %v735, %v734
        %v754 = vpack.c.bf16 %v737, %v736
        %v755 = vpack.c.bf16 %v739, %v738
        %vm756 = vcmp.lt.s32.totalorder %v612, 15
        %vm757 = vcmp.lt.s32.totalorder %v613, 15
        %vm758 = vcmp.lt.s32.totalorder %v614, 15
        %vm759 = vcmp.lt.s32.totalorder %v615, 15
        %vm760 = vcmp.lt.s32.totalorder %v616, 15
        %vm761 = vcmp.lt.s32.totalorder %v617, 15
        %vm762 = vcmp.lt.s32.totalorder %v618, 15
        %vm763 = vcmp.lt.s32.totalorder %v619, 15
        %vm764 = vcmp.lt.s32.totalorder %v620, 15
        %vm765 = vcmp.lt.s32.totalorder %v621, 15
        %vm766 = vcmp.lt.s32.totalorder %v622, 15
        %vm767 = vcmp.lt.s32.totalorder %v623, 15
        %vm768 = vcmp.lt.s32.totalorder %v624, 15
        %vm769 = vcmp.lt.s32.totalorder %v625, 15
        %vm770 = vcmp.lt.s32.totalorder %v626, 15
        %vm771 = vcmp.lt.s32.totalorder %v627, 15
        %vm772 = vcmp.lt.s32.totalorder %v628, 15
        %vm773 = vcmp.lt.s32.totalorder %v629, 15
        %vm774 = vcmp.lt.s32.totalorder %v630, 15
        %vm775 = vcmp.lt.s32.totalorder %v631, 15
        %vm776 = vcmp.lt.s32.totalorder %v632, 15
        %vm777 = vcmp.lt.s32.totalorder %v633, 15
        %vm778 = vcmp.lt.s32.totalorder %v634, 15
        %vm779 = vcmp.lt.s32.totalorder %v635, 15
        %vm780 = vcmp.lt.s32.totalorder %v636, 15
        %vm781 = vcmp.lt.s32.totalorder %v637, 15
        %vm782 = vcmp.lt.s32.totalorder %v638, 15
        %vm783 = vcmp.lt.s32.totalorder %v639, 15
        %vm784 = vcmp.lt.s32.totalorder %v640, 15
        %vm785 = vcmp.lt.s32.totalorder %v641, 15
        %vm786 = vcmp.lt.s32.totalorder %v642, 15
        %vm787 = vcmp.lt.s32.totalorder %v643, 15
        %v788 = vsel %vm756, 1, 0
        %v789 = vsel %vm757, 1, 0
        %v790 = vsel %vm758, 1, 0
        %v791 = vsel %vm759, 1, 0
        %v792 = vsel %vm760, 1, 0
        %v793 = vsel %vm761, 1, 0
        %v794 = vsel %vm762, 1, 0
        %v795 = vsel %vm763, 1, 0
        %v796 = vsel %vm764, 1, 0
        %v797 = vsel %vm765, 1, 0
        %v798 = vsel %vm766, 1, 0
        %v799 = vsel %vm767, 1, 0
        %v800 = vsel %vm768, 1, 0
        %v801 = vsel %vm769, 1, 0
        %v802 = vsel %vm770, 1, 0
        %v803 = vsel %vm771, 1, 0
        %v804 = vsel %vm772, 1, 0
        %v805 = vsel %vm773, 1, 0
        %v806 = vsel %vm774, 1, 0
        %v807 = vsel %vm775, 1, 0
        %v808 = vsel %vm776, 1, 0
        %v809 = vsel %vm777, 1, 0
        %v810 = vsel %vm778, 1, 0
        %v811 = vsel %vm779, 1, 0
        %v812 = vsel %vm780, 1, 0
        %v813 = vsel %vm781, 1, 0
        %v814 = vsel %vm782, 1, 0
        %v815 = vsel %vm783, 1, 0
        %v816 = vsel %vm784, 1, 0
        %v817 = vsel %vm785, 1, 0
        %v818 = vsel %vm786, 1, 0
        %v819 = vsel %vm787, 1, 0
        %v820 = vcvt.s32.f32 %v788
        %v821 = vcvt.s32.f32 %v789
        %v822 = vcvt.s32.f32 %v790
        %v823 = vcvt.s32.f32 %v791
        %v824 = vcvt.s32.f32 %v792
        %v825 = vcvt.s32.f32 %v793
        %v826 = vcvt.s32.f32 %v794
        %v827 = vcvt.s32.f32 %v795
        %v828 = vcvt.s32.f32 %v796
        %v829 = vcvt.s32.f32 %v797
        %v830 = vcvt.s32.f32 %v798
        %v831 = vcvt.s32.f32 %v799
        %v832 = vcvt.s32.f32 %v800
        %v833 = vcvt.s32.f32 %v801
        %v834 = vcvt.s32.f32 %v802
        %v835 = vcvt.s32.f32 %v803
        %v836 = vcvt.s32.f32 %v804
        %v837 = vcvt.s32.f32 %v805
        %v838 = vcvt.s32.f32 %v806
        %v839 = vcvt.s32.f32 %v807
        %v840 = vcvt.s32.f32 %v808
        %v841 = vcvt.s32.f32 %v809
        %v842 = vcvt.s32.f32 %v810
        %v843 = vcvt.s32.f32 %v811
        %v844 = vcvt.s32.f32 %v812
        %v845 = vcvt.s32.f32 %v813
        %v846 = vcvt.s32.f32 %v814
        %v847 = vcvt.s32.f32 %v815
        %v848 = vcvt.s32.f32 %v816
        %v849 = vcvt.s32.f32 %v817
        %v850 = vcvt.s32.f32 %v818
        %v851 = vcvt.s32.f32 %v819
        %v852 = vpack.c.bf16 %v821, %v820
        %v853 = vpack.c.bf16 %v823, %v822
        %v854 = vpack.c.bf16 %v825, %v824
        %v855 = vpack.c.bf16 %v827, %v826
        %v856 = vpack.c.bf16 %v829, %v828
        %v857 = vpack.c.bf16 %v831, %v830
        %v858 = vpack.c.bf16 %v833, %v832
        %v859 = vpack.c.bf16 %v835, %v834
        %v860 = vpack.c.bf16 %v837, %v836
        %v861 = vpack.c.bf16 %v839, %v838
        %v862 = vpack.c.bf16 %v841, %v840
        %v863 = vpack.c.bf16 %v843, %v842
        %v864 = vpack.c.bf16 %v845, %v844
        %v865 = vpack.c.bf16 %v847, %v846
        %v866 = vpack.c.bf16 %v849, %v848
        %v867 = vpack.c.bf16 %v851, %v850
        %868 = vst [vmem:[#allocation2] sm:$0xff] 0
        %869 = vst [vmem:[#allocation2 + $0x8] sm:$0xff] 0
        %870 = vst [vmem:[#allocation2 + $0x10] sm:$0xff] 0
        %871 = vst [vmem:[#allocation2 + $0x18] sm:$0xff] 0
        %872 = vst [vmem:[#allocation2 + $0x20] sm:$0xff] 0
        %873 = vst [vmem:[#allocation2 + $0x28] sm:$0xff] 0
        %874 = vst [vmem:[#allocation2 + $0x30] sm:$0xff] 0
        %875 = vst [vmem:[#allocation2 + $0x38] sm:$0xff] 0
        %876 = vst [vmem:[#allocation2 + $0x40] sm:$0xff] 0
        %877 = vst [vmem:[#allocation2 + $0x4c8] sm:$0xff] 0
        %878 = vst [vmem:[#allocation2 + $0x4d0] sm:$0xff] 0
        %879 = vst [vmem:[#allocation2 + $0x4d8] sm:$0xff] 0
        %880 = vst [vmem:[#allocation2 + $0x4e0] sm:$0xff] 0
        %881 = vst [vmem:[#allocation2 + $0x4e8] sm:$0xff] 0
        %882 = vst [vmem:[#allocation2 + $0x4f0] sm:$0xff] 0
        %883 = vst [vmem:[#allocation2 + $0x4f8] sm:$0xff] 0
        %884 = vst [vmem:[#allocation2 + $0x500] sm:$0xff] 0
        %885 = vst [vmem:[#allocation2 + $0x508] sm:$0xff] 0
        %v886 = vld [vmem:[%s222] sm:$0xff]
        %v887 = vld [vmem:[%s222 + $0x8] sm:$0xff]
        %v888 = vld [vmem:[%s222 + $0x10] sm:$0xff]
        %v889 = vld [vmem:[%s222 + $0x18] sm:$0xff]
        %v890 = vld [vmem:[%s222 + $0x20] sm:$0xff]
        %v891 = vld [vmem:[%s222 + $0x28] sm:$0xff]
        %v892 = vld [vmem:[%s222 + $0x30] sm:$0xff]
        %v893 = vld [vmem:[%s222 + $0x38] sm:$0xff]
        %v894 = vld [vmem:[%s222 + $0x40] sm:$0xff]
        %v895 = vld [vmem:[%s222 + $0x48] sm:$0xff]
        %v896 = vld [vmem:[%s222 + $0x50] sm:$0xff]
        %v897 = vld [vmem:[%s222 + $0x58] sm:$0xff]
        %v898 = vld [vmem:[%s222 + $0x60] sm:$0xff]
        %v899 = vld [vmem:[%s222 + $0x68] sm:$0xff]
        %v900 = vld [vmem:[%s222 + $0x70] sm:$0xff]
        %v901 = vld [vmem:[%s222 + $0x78] sm:$0xff]
        %v902 = vld [vmem:[%s222 + $0x80] sm:$0xff]
        %v903 = vld [vmem:[%s222 + $0x88] sm:$0xff]
        %v904 = vld [vmem:[%s222 + $0x90] sm:$0xff]
        %v905 = vld [vmem:[%s222 + $0x98] sm:$0xff]
        %v906 = vld [vmem:[%s222 + $0xa0] sm:$0xff]
        %v907 = vld [vmem:[%s222 + $0xa8] sm:$0xff]
        %v908 = vld [vmem:[%s222 + $0xb0] sm:$0xff]
        %v909 = vld [vmem:[%s222 + $0xb8] sm:$0xff]
        %v910 = vld [vmem:[%s222 + $0xc0] sm:$0xff]
        %v911 = vld [vmem:[%s222 + $0xc8] sm:$0xff]
        %v912 = vld [vmem:[%s222 + $0xd0] sm:$0xff]
        %v913 = vld [vmem:[%s222 + $0xd8] sm:$0xff]
        %v914 = vld [vmem:[%s222 + $0xe0] sm:$0xff]
        %v915 = vld [vmem:[%s222 + $0xe8] sm:$0xff]
        %v916 = vld [vmem:[%s222 + $0xf0] sm:$0xff]
        %v917 = vld [vmem:[%s222 + $0xf8] sm:$0xff]
        %v918 = vld [vmem:[%s1] sm:$0xff]
        %v919 = vld [vmem:[%s1 + $0x8] sm:$0xf]
        %v920 = vld [vmem:[%s1 + $0xc] sm:$0xff]
        %v921 = vld [vmem:[%s1 + $0x14] sm:$0xf]
        %v922 = vld [vmem:[%s1 + $0x18] sm:$0xff]
        %v923 = vld [vmem:[%s1 + $0x20] sm:$0xf]
        %v924 = vld [vmem:[%s1 + $0x24] sm:$0xff]
        %v925 = vld [vmem:[%s1 + $0x2c] sm:$0xf]
        %v926 = vld [vmem:[%s1 + $0x30] sm:$0xff]
        %v927 = vld [vmem:[%s1 + $0x38] sm:$0xf]
        %v928 = vld [vmem:[%s1 + $0x3c] sm:$0xff]
        %v929 = vld [vmem:[%s1 + $0x44] sm:$0xf]
        %v930 = vld [vmem:[%s1 + $0x48] sm:$0xff]
        %v931 = vld [vmem:[%s1 + $0x50] sm:$0xf]
        %v932 = vld [vmem:[%s1 + $0x54] sm:$0xff]
        %v933 = vld [vmem:[%s1 + $0x5c] sm:$0xf]
        %v934 = vld [vmem:[%s1 + $0x60] sm:$0xff]
        %v935 = vld [vmem:[%s1 + $0x68] sm:$0xf]
        %v936 = vld [vmem:[%s1 + $0x6c] sm:$0xff]
        %v937 = vld [vmem:[%s1 + $0x74] sm:$0xf]
        %v938 = vld [vmem:[%s1 + $0x78] sm:$0xff]
        %v939 = vld [vmem:[%s1 + $0x80] sm:$0xf]
        %v940 = vld [vmem:[%s1 + $0x84] sm:$0xff]
        %v941 = vld [vmem:[%s1 + $0x8c] sm:$0xf]
        %v942 = vld [vmem:[%s1 + $0x90] sm:$0xff]
        %v943 = vld [vmem:[%s1 + $0x98] sm:$0xf]
        %v944 = vld [vmem:[%s1 + $0x9c] sm:$0xff]
        %v945 = vld [vmem:[%s1 + $0xa4] sm:$0xf]
        %v946 = vld [vmem:[%s1 + $0xa8] sm:$0xff]
        %v947 = vld [vmem:[%s1 + $0xb0] sm:$0xf]
        %v948 = vld [vmem:[%s1 + $0xb4] sm:$0xff]
        %v949 = vld [vmem:[%s1 + $0xbc] sm:$0xf]
        %v950 = vld [vmem:[%s1 + $0xc0] sm:$0xff]
        %v951 = vld [vmem:[%s1 + $0xc8] sm:$0xf]
        %v952 = vld [vmem:[%s1 + $0xcc] sm:$0xff]
        %v953 = vld [vmem:[%s1 + $0xd4] sm:$0xf]
        %v954 = vld [vmem:[%s1 + $0xd8] sm:$0xff]
        %v955 = vld [vmem:[%s1 + $0xe0] sm:$0xf]
        %v956 = vld [vmem:[%s1 + $0xe4] sm:$0xff]
        %v957 = vld [vmem:[%s1 + $0xec] sm:$0xf]
        %v958 = vld [vmem:[%s1 + $0xf0] sm:$0xff]
        %v959 = vld [vmem:[%s1 + $0xf8] sm:$0xf]
        %v960 = vld [vmem:[%s1 + $0xfc] sm:$0xff]
        %v961 = vld [vmem:[%s1 + $0x104] sm:$0xf]
        %v962 = vld [vmem:[%s1 + $0x108] sm:$0xff]
        %v963 = vld [vmem:[%s1 + $0x110] sm:$0xf]
        %v964 = vld [vmem:[%s1 + $0x114] sm:$0xff]
        %v965 = vld [vmem:[%s1 + $0x11c] sm:$0xf]
        %v966 = vld [vmem:[%s1 + $0x120] sm:$0xff]
        %v967 = vld [vmem:[%s1 + $0x128] sm:$0xf]
        %v968 = vld [vmem:[%s1 + $0x12c] sm:$0xff]
        %v969 = vld [vmem:[%s1 + $0x134] sm:$0xf]
        %v970 = vld [vmem:[%s1 + $0x138] sm:$0xff]
        %v971 = vld [vmem:[%s1 + $0x140] sm:$0xf]
        %v972 = vld [vmem:[%s1 + $0x144] sm:$0xff]
        %v973 = vld [vmem:[%s1 + $0x14c] sm:$0xf]
        %v974 = vld [vmem:[%s1 + $0x150] sm:$0xff]
        %v975 = vld [vmem:[%s1 + $0x158] sm:$0xf]
        %v976 = vld [vmem:[%s1 + $0x15c] sm:$0xff]
        %v977 = vld [vmem:[%s1 + $0x164] sm:$0xf]
        %v978 = vld [vmem:[%s1 + $0x168] sm:$0xff]
        %v979 = vld [vmem:[%s1 + $0x170] sm:$0xf]
        %v980 = vld [vmem:[%s1 + $0x174] sm:$0xff]
        %v981 = vld [vmem:[%s1 + $0x17c] sm:$0xf]
        %v1014 = vunpack.c.l.b16 %v886
        %v1015 = vunpack.c.h.b16 %v886
        %v1016 = vunpack.c.l.b16 %v887
        %v1017 = vunpack.c.h.b16 %v887
        %v1018 = vunpack.c.l.b16 %v888
        %v1019 = vunpack.c.h.b16 %v888
        %v1020 = vunpack.c.l.b16 %v889
        %v1021 = vunpack.c.h.b16 %v889
        %v1022 = vunpack.c.l.b16 %v890
        %v1023 = vunpack.c.h.b16 %v890
        %v1024 = vunpack.c.l.b16 %v891
        %v1025 = vunpack.c.h.b16 %v891
        %v1026 = vunpack.c.l.b16 %v892
        %v1027 = vunpack.c.h.b16 %v892
        %v1028 = vunpack.c.l.b16 %v893
        %v1029 = vunpack.c.h.b16 %v893
        %v1030 = vunpack.c.l.b16 %v894
        %v1031 = vunpack.c.h.b16 %v894
        %v1032 = vunpack.c.l.b16 %v895
        %v1033 = vunpack.c.h.b16 %v895
        %v1034 = vunpack.c.l.b16 %v896
        %v1035 = vunpack.c.h.b16 %v896
        %v1036 = vunpack.c.l.b16 %v897
        %v1037 = vunpack.c.h.b16 %v897
        %v1038 = vunpack.c.l.b16 %v898
        %v1039 = vunpack.c.h.b16 %v898
        %v1040 = vunpack.c.l.b16 %v899
        %v1041 = vunpack.c.h.b16 %v899
        %v1042 = vunpack.c.l.b16 %v900
        %v1043 = vunpack.c.h.b16 %v900
        %v1044 = vunpack.c.l.b16 %v901
        %v1045 = vunpack.c.h.b16 %v901
        %v1046 = vunpack.c.l.b16 %v902
        %v1047 = vunpack.c.h.b16 %v902
        %v1048 = vunpack.c.l.b16 %v903
        %v1049 = vunpack.c.h.b16 %v903
        %v1050 = vunpack.c.l.b16 %v904
        %v1051 = vunpack.c.h.b16 %v904
        %v1052 = vunpack.c.l.b16 %v905
        %v1053 = vunpack.c.h.b16 %v905
        %v1054 = vunpack.c.l.b16 %v906
        %v1055 = vunpack.c.h.b16 %v906
        %v1056 = vunpack.c.l.b16 %v907
        %v1057 = vunpack.c.h.b16 %v907
        %v1058 = vunpack.c.l.b16 %v908
        %v1059 = vunpack.c.h.b16 %v908
        %v1060 = vunpack.c.l.b16 %v909
        %v1061 = vunpack.c.h.b16 %v909
        %v1062 = vunpack.c.l.b16 %v910
        %v1063 = vunpack.c.h.b16 %v910
        %v1064 = vunpack.c.l.b16 %v911
        %v1065 = vunpack.c.h.b16 %v911
        %v1066 = vunpack.c.l.b16 %v912
        %v1067 = vunpack.c.h.b16 %v912
        %v1068 = vunpack.c.l.b16 %v913
        %v1069 = vunpack.c.h.b16 %v913
        %v1070 = vunpack.c.l.b16 %v914
        %v1071 = vunpack.c.h.b16 %v914
        %v1072 = vunpack.c.l.b16 %v915
        %v1073 = vunpack.c.h.b16 %v915
        %v1074 = vunpack.c.l.b16 %v916
        %v1075 = vunpack.c.h.b16 %v916
        %v1076 = vunpack.c.l.b16 %v917
        %v1077 = vunpack.c.h.b16 %v917
        %v1078 = vpack.c.b16 %v1016, %v1014
        %v1079 = vpack.c.b16 %v1017, %v1015
        %v1080 = vpack.c.b16 %v1020, %v1018
        %v1081 = vpack.c.b16 %v1021, %v1019
        %v1082 = vpack.c.b16 %v1024, %v1022
        %v1083 = vpack.c.b16 %v1025, %v1023
        %v1084 = vpack.c.b16 %v1028, %v1026
        %v1085 = vpack.c.b16 %v1029, %v1027
        %v1086 = vpack.c.b16 %v1032, %v1030
        %v1087 = vpack.c.b16 %v1033, %v1031
        %v1088 = vpack.c.b16 %v1036, %v1034
        %v1089 = vpack.c.b16 %v1037, %v1035
        %v1090 = vpack.c.b16 %v1040, %v1038
        %v1091 = vpack.c.b16 %v1041, %v1039
        %v1092 = vpack.c.b16 %v1044, %v1042
        %v1093 = vpack.c.b16 %v1045, %v1043
        %v1094 = vpack.c.b16 %v1048, %v1046
        %v1095 = vpack.c.b16 %v1049, %v1047
        %v1096 = vpack.c.b16 %v1052, %v1050
        %v1097 = vpack.c.b16 %v1053, %v1051
        %v1098 = vpack.c.b16 %v1056, %v1054
        %v1099 = vpack.c.b16 %v1057, %v1055
        %v1100 = vpack.c.b16 %v1060, %v1058
        %v1101 = vpack.c.b16 %v1061, %v1059
        %v1102 = vpack.c.b16 %v1064, %v1062
        %v1103 = vpack.c.b16 %v1065, %v1063
        %v1104 = vpack.c.b16 %v1068, %v1066
        %v1105 = vpack.c.b16 %v1069, %v1067
        %v1106 = vpack.c.b16 %v1072, %v1070
        %v1107 = vpack.c.b16 %v1073, %v1071
        %v1108 = vpack.c.b16 %v1076, %v1074
        %v1109 = vpack.c.b16 %v1077, %v1075
        %v1206 = vunpack.c.l.b16 %v918
        %v1207 = vunpack.c.h.b16 %v918
        %v1208 = vunpack.c.l.b16 %v919
        %v1209 = vunpack.c.l.b16 %v920
        %v1210 = vunpack.c.h.b16 %v920
        %v1211 = vunpack.c.l.b16 %v921
        %v1212 = vunpack.c.l.b16 %v922
        %v1213 = vunpack.c.h.b16 %v922
        %v1214 = vunpack.c.l.b16 %v923
        %v1215 = vunpack.c.l.b16 %v924
        %v1216 = vunpack.c.h.b16 %v924
        %v1217 = vunpack.c.l.b16 %v925
        %v1218 = vunpack.c.l.b16 %v926
        %v1219 = vunpack.c.h.b16 %v926
        %v1220 = vunpack.c.l.b16 %v927
        %v1221 = vunpack.c.l.b16 %v928
        %v1222 = vunpack.c.h.b16 %v928
        %v1223 = vunpack.c.l.b16 %v929
        %v1224 = vunpack.c.l.b16 %v930
        %v1225 = vunpack.c.h.b16 %v930
        %v1226 = vunpack.c.l.b16 %v931
        %v1227 = vunpack.c.l.b16 %v932
        %v1228 = vunpack.c.h.b16 %v932
        %v1229 = vunpack.c.l.b16 %v933
        %v1230 = vunpack.c.l.b16 %v934
        %v1231 = vunpack.c.h.b16 %v934
        %v1232 = vunpack.c.l.b16 %v935
        %v1233 = vunpack.c.l.b16 %v936
        %v1234 = vunpack.c.h.b16 %v936
        %v1235 = vunpack.c.l.b16 %v937
        %v1236 = vunpack.c.l.b16 %v938
        %v1237 = vunpack.c.h.b16 %v938
        %v1238 = vunpack.c.l.b16 %v939
        %v1239 = vunpack.c.l.b16 %v940
        %v1240 = vunpack.c.h.b16 %v940
        %v1241 = vunpack.c.l.b16 %v941
        %v1242 = vunpack.c.l.b16 %v942
        %v1243 = vunpack.c.h.b16 %v942
        %v1244 = vunpack.c.l.b16 %v943
        %v1245 = vunpack.c.l.b16 %v944
        %v1246 = vunpack.c.h.b16 %v944
        %v1247 = vunpack.c.l.b16 %v945
        %v1248 = vunpack.c.l.b16 %v946
        %v1249 = vunpack.c.h.b16 %v946
        %v1250 = vunpack.c.l.b16 %v947
        %v1251 = vunpack.c.l.b16 %v948
        %v1252 = vunpack.c.h.b16 %v948
        %v1253 = vunpack.c.l.b16 %v949
        %v1254 = vunpack.c.l.b16 %v950
        %v1255 = vunpack.c.h.b16 %v950
        %v1256 = vunpack.c.l.b16 %v951
        %v1257 = vunpack.c.l.b16 %v952
        %v1258 = vunpack.c.h.b16 %v952
        %v1259 = vunpack.c.l.b16 %v953
        %v1260 = vunpack.c.l.b16 %v954
        %v1261 = vunpack.c.h.b16 %v954
        %v1262 = vunpack.c.l.b16 %v955
        %v1263 = vunpack.c.l.b16 %v956
        %v1264 = vunpack.c.h.b16 %v956
        %v1265 = vunpack.c.l.b16 %v957
        %v1266 = vunpack.c.l.b16 %v958
        %v1267 = vunpack.c.h.b16 %v958
        %v1268 = vunpack.c.l.b16 %v959
        %v1269 = vunpack.c.l.b16 %v960
        %v1270 = vunpack.c.h.b16 %v960
        %v1271 = vunpack.c.l.b16 %v961
        %v1272 = vunpack.c.l.b16 %v962
        %v1273 = vunpack.c.h.b16 %v962
        %v1274 = vunpack.c.l.b16 %v963
        %v1275 = vunpack.c.l.b16 %v964
        %v1276 = vunpack.c.h.b16 %v964
        %v1277 = vunpack.c.l.b16 %v965
        %v1278 = vunpack.c.l.b16 %v966
        %v1279 = vunpack.c.h.b16 %v966
        %v1280 = vunpack.c.l.b16 %v967
        %v1281 = vunpack.c.l.b16 %v968
        %v1282 = vunpack.c.h.b16 %v968
        %v1283 = vunpack.c.l.b16 %v969
        %v1284 = vunpack.c.l.b16 %v970
        %v1285 = vunpack.c.h.b16 %v970
        %v1286 = vunpack.c.l.b16 %v971
        %v1287 = vunpack.c.l.b16 %v972
        %v1288 = vunpack.c.h.b16 %v972
        %v1289 = vunpack.c.l.b16 %v973
        %v1290 = vunpack.c.l.b16 %v974
        %v1291 = vunpack.c.h.b16 %v974
        %v1292 = vunpack.c.l.b16 %v975
        %v1293 = vunpack.c.l.b16 %v976
        %v1294 = vunpack.c.h.b16 %v976
        %v1295 = vunpack.c.l.b16 %v977
        %v1296 = vunpack.c.l.b16 %v978
        %v1297 = vunpack.c.h.b16 %v978
        %v1298 = vunpack.c.l.b16 %v979
        %v1299 = vunpack.c.l.b16 %v980
        %v1300 = vunpack.c.h.b16 %v980
        %v1301 = vunpack.c.l.b16 %v981
        %v1302 = vpack.c.b16 %v1209, %v1206
        %v1303 = vpack.c.b16 %v1210, %v1207
        %v1304 = vpack.c.b16 %v1211, %v1208
        %v1305 = vpack.c.b16 %v1215, %v1212
        %v1306 = vpack.c.b16 %v1216, %v1213
        %v1307 = vpack.c.b16 %v1217, %v1214
        %v1308 = vpack.c.b16 %v1221, %v1218
        %v1309 = vpack.c.b16 %v1222, %v1219
        %v1310 = vpack.c.b16 %v1223, %v1220
        %v1311 = vpack.c.b16 %v1227, %v1224
        %v1312 = vpack.c.b16 %v1228, %v1225
        %v1313 = vpack.c.b16 %v1229, %v1226
        %v1314 = vpack.c.b16 %v1233, %v1230
        %v1315 = vpack.c.b16 %v1234, %v1231
        %v1316 = vpack.c.b16 %v1235, %v1232
        %v1317 = vpack.c.b16 %v1239, %v1236
        %v1318 = vpack.c.b16 %v1240, %v1237
        %v1319 = vpack.c.b16 %v1241, %v1238
        %v1320 = vpack.c.b16 %v1245, %v1242
        %v1321 = vpack.c.b16 %v1246, %v1243
        %v1322 = vpack.c.b16 %v1247, %v1244
        %v1323 = vpack.c.b16 %v1251, %v1248
        %v1324 = vpack.c.b16 %v1252, %v1249
        %v1325 = vpack.c.b16 %v1253, %v1250
        %v1326 = vpack.c.b16 %v1257, %v1254
        %v1327 = vpack.c.b16 %v1258, %v1255
        %v1328 = vpack.c.b16 %v1259, %v1256
        %v1329 = vpack.c.b16 %v1263, %v1260
        %v1330 = vpack.c.b16 %v1264, %v1261
        %v1331 = vpack.c.b16 %v1265, %v1262
        %v1332 = vpack.c.b16 %v1269, %v1266
        %v1333 = vpack.c.b16 %v1270, %v1267
        %v1334 = vpack.c.b16 %v1271, %v1268
        %v1335 = vpack.c.b16 %v1275, %v1272
        %v1336 = vpack.c.b16 %v1276, %v1273
        %v1337 = vpack.c.b16 %v1277, %v1274
        %v1338 = vpack.c.b16 %v1281, %v1278
        %v1339 = vpack.c.b16 %v1282, %v1279
        %v1340 = vpack.c.b16 %v1283, %v1280
        %v1341 = vpack.c.b16 %v1287, %v1284
        %v1342 = vpack.c.b16 %v1288, %v1285
        %v1343 = vpack.c.b16 %v1289, %v1286
        %v1344 = vpack.c.b16 %v1293, %v1290
        %v1345 = vpack.c.b16 %v1294, %v1291
        %v1346 = vpack.c.b16 %v1295, %v1292
        %v1347 = vpack.c.b16 %v1299, %v1296
        %v1348 = vpack.c.b16 %v1300, %v1297
        %v1349 = vpack.c.b16 %v1301, %v1298
        %1398 = vmatprep.subr.bf16.mxu0 %v1303
        %1399 = vmatpush1.bf16.msra.mxu0 %v1302
        %1400 = vmatprep.subr.bf16.mxu0 %v1306
        %1401 = vmatpush1.bf16.msra.mxu0 %v1305
        %1402 = vmatprep.subr.bf16.mxu0 %v1309
        %1403 = vmatpush1.bf16.msra.mxu0 %v1308
        %1404 = vmatprep.subr.bf16.mxu0 %v1312
        %1405 = vmatpush1.bf16.msra.mxu0 %v1311
        %1406 = vmatprep.subr.bf16.mxu0 %v1315
        %1407 = vmatpush1.bf16.msra.mxu0 %v1314
        %1408 = vmatprep.subr.bf16.mxu0 %v1318
        %1409 = vmatpush1.bf16.msra.mxu0 %v1317
        %1410 = vmatprep.subr.bf16.mxu0 %v1321
        %1411 = vmatpush1.bf16.msra.mxu0 %v1320
        %1412 = vmatprep.subr.bf16.mxu0 %v1324
        %1413 = vmatpush1.bf16.msra.mxu0 %v1323
        %1414 = vmatprep.subr.bf16.mxu0 %v1327
        %1415 = vmatpush1.bf16.msra.mxu0 %v1326
        %1416 = vmatprep.subr.bf16.mxu0 %v1330
        %1417 = vmatpush1.bf16.msra.mxu0 %v1329
        %1418 = vmatprep.subr.bf16.mxu0 %v1333
        %1419 = vmatpush1.bf16.msra.mxu0 %v1332
        %1420 = vmatprep.subr.bf16.mxu0 %v1336
        %1421 = vmatpush1.bf16.msra.mxu0 %v1335
        %1422 = vmatprep.subr.bf16.mxu0 %v1339
        %1423 = vmatpush1.bf16.msra.mxu0 %v1338
        %1424 = vmatprep.subr.bf16.mxu0 %v1342
        %1425 = vmatpush1.bf16.msra.mxu0 %v1341
        %1426 = vmatprep.subr.bf16.mxu0 %v1345
        %1427 = vmatpush1.bf16.msra.mxu0 %v1344
        %1428 = vmatprep.subr.bf16.mxu0 %v1348
        %1429 = vmatpush1.bf16.msra.mxu0 %v1347
        %1430 = vmatprep.mubr.bf16.mxu0 %v1079
        %1431 = vmatmul.mubr.bf16.gmra.mrb[0].mxu0 %v1078
        %v1432 = vpop.f32.mrb[0].mxu0
        %v1433 = vadd.f32 0.0, %v1432
        %v1434 = vpop.f32.mrb[0].mxu0
        %v1435 = vadd.f32 0.0, %v1434
        %v1436 = vpop.f32.mrb[0].mxu0
        %v1437 = vadd.f32 0.0, %v1436
        %v1438 = vpop.f32.mrb[0].mxu0
        %v1439 = vadd.f32 0.0, %v1438
        %1440 = vmatprep.mubr.bf16.mxu0 %v1081
        %1441 = vmatmul.mubr.bf16.gmra.mrb[0].mxu0 %v1080
        %v1442 = vpop.f32.mrb[0].mxu0
        %v1443 = vadd.f32 0.0, %v1442
        %v1444 = vpop.f32.mrb[0].mxu0
        %v1445 = vadd.f32 0.0, %v1444
        %v1446 = vpop.f32.mrb[0].mxu0
        %v1447 = vadd.f32 0.0, %v1446
        %v1448 = vpop.f32.mrb[0].mxu0
        %v1449 = vadd.f32 0.0, %v1448
        %1450 = vmatprep.mubr.bf16.mxu0 %v1083
        %1451 = vmatmul.mubr.bf16.gmra.mrb[0].mxu0 %v1082
        %v1452 = vpop.f32.mrb[0].mxu0
        %v1453 = vadd.f32 0.0, %v1452
        %v1454 = vpop.f32.mrb[0].mxu0
        %v1455 = vadd.f32 0.0, %v1454
        %v1456 = vpop.f32.mrb[0].mxu0
        %v1457 = vadd.f32 0.0, %v1456
        %v1458 = vpop.f32.mrb[0].mxu0
        %v1459 = vadd.f32 0.0, %v1458
        %1460 = vmatprep.mubr.bf16.mxu0 %v1085
        %1461 = vmatmul.mubr.bf16.gmra.mrb[0].mxu0 %v1084
        %v1462 = vpop.f32.mrb[0].mxu0
        %v1463 = vadd.f32 0.0, %v1462
        %v1464 = vpop.f32.mrb[0].mxu0
        %v1465 = vadd.f32 0.0, %v1464
        %v1466 = vpop.f32.mrb[0].mxu0
        %v1467 = vadd.f32 0.0, %v1466
        %v1468 = vpop.f32.mrb[0].mxu0
        %v1469 = vadd.f32 0.0, %v1468
        %1470 = vmatprep.mubr.bf16.mxu0 %v1087
        %1471 = vmatmul.mubr.bf16.gmra.mrb[0].mxu0 %v1086
        %v1472 = vpop.f32.mrb[0].mxu0
        %v1473 = vadd.f32 0.0, %v1472
        %v1474 = vpop.f32.mrb[0].mxu0
        %v1475 = vadd.f32 0.0, %v1474
        %v1476 = vpop.f32.mrb[0].mxu0
        %v1477 = vadd.f32 0.0, %v1476
        %v1478 = vpop.f32.mrb[0].mxu0
        %v1479 = vadd.f32 0.0, %v1478
        %1480 = vmatprep.mubr.bf16.mxu0 %v1089
        %1481 = vmatmul.mubr.bf16.gmra.mrb[0].mxu0 %v1088
        %v1482 = vpop.f32.mrb[0].mxu0
        %v1483 = vadd.f32 0.0, %v1482
        %v1484 = vpop.f32.mrb[0].mxu0
        %v1485 = vadd.f32 0.0, %v1484
        %v1486 = vpop.f32.mrb[0].mxu0
        %v1487 = vadd.f32 0.0, %v1486
        %v1488 = vpop.f32.mrb[0].mxu0
        %v1489 = vadd.f32 0.0, %v1488
        %1490 = vmatprep.mubr.bf16.mxu0 %v1091
        %1491 = vmatmul.mubr.bf16.gmra.mrb[0].mxu0 %v1090
        %v1492 = vpop.f32.mrb[0].mxu0
        %v1493 = vadd.f32 0.0, %v1492
        %v1494 = vpop.f32.mrb[0].mxu0
        %v1495 = vadd.f32 0.0, %v1494
        %v1496 = vpop.f32.mrb[0].mxu0
        %v1497 = vadd.f32 0.0, %v1496
        %v1498 = vpop.f32.mrb[0].mxu0
        %v1499 = vadd.f32 0.0, %v1498
        %1500 = vmatprep.mubr.bf16.mxu0 %v1093
        %1501 = vmatmul.mubr.bf16.gmra.mrb[0].mxu0 %v1092
        %v1502 = vpop.f32.mrb[0].mxu0
        %v1503 = vadd.f32 0.0, %v1502
        %v1504 = vpop.f32.mrb[0].mxu0
        %v1505 = vadd.f32 0.0, %v1504
        %v1506 = vpop.f32.mrb[0].mxu0
        %v1507 = vadd.f32 0.0, %v1506
        %v1508 = vpop.f32.mrb[0].mxu0
        %v1509 = vadd.f32 0.0, %v1508
        %1510 = vmatprep.mubr.bf16.mxu0 %v1095
        %1511 = vmatmul.mubr.bf16.gmra.mrb[0].mxu0 %v1094
        %v1512 = vpop.f32.mrb[0].mxu0
        %v1513 = vadd.f32 0.0, %v1512
        %v1514 = vpop.f32.mrb[0].mxu0
        %v1515 = vadd.f32 0.0, %v1514
        %v1516 = vpop.f32.mrb[0].mxu0
        %v1517 = vadd.f32 0.0, %v1516
        %v1518 = vpop.f32.mrb[0].mxu0
        %v1519 = vadd.f32 0.0, %v1518
        %1520 = vmatprep.mubr.bf16.mxu0 %v1097
        %1521 = vmatmul.mubr.bf16.gmra.mrb[0].mxu0 %v1096
        %v1522 = vpop.f32.mrb[0].mxu0
        %v1523 = vadd.f32 0.0, %v1522
        %v1524 = vpop.f32.mrb[0].mxu0
        %v1525 = vadd.f32 0.0, %v1524
        %v1526 = vpop.f32.mrb[0].mxu0
        %v1527 = vadd.f32 0.0, %v1526
        %v1528 = vpop.f32.mrb[0].mxu0
        %v1529 = vadd.f32 0.0, %v1528
        %1530 = vmatprep.mubr.bf16.mxu0 %v1099
        %1531 = vmatmul.mubr.bf16.gmra.mrb[0].mxu0 %v1098
        %v1532 = vpop.f32.mrb[0].mxu0
        %v1533 = vadd.f32 0.0, %v1532
        %v1534 = vpop.f32.mrb[0].mxu0
        %v1535 = vadd.f32 0.0, %v1534
        %v1536 = vpop.f32.mrb[0].mxu0
        %v1537 = vadd.f32 0.0, %v1536
        %v1538 = vpop.f32.mrb[0].mxu0
        %v1539 = vadd.f32 0.0, %v1538
        %1540 = vmatprep.mubr.bf16.mxu0 %v1101
        %1541 = vmatmul.mubr.bf16.gmra.mrb[0].mxu0 %v1100
        %v1542 = vpop.f32.mrb[0].mxu0
        %v1543 = vadd.f32 0.0, %v1542
        %v1544 = vpop.f32.mrb[0].mxu0
        %v1545 = vadd.f32 0.0, %v1544
        %v1546 = vpop.f32.mrb[0].mxu0
        %v1547 = vadd.f32 0.0, %v1546
        %v1548 = vpop.f32.mrb[0].mxu0
        %v1549 = vadd.f32 0.0, %v1548
        %1550 = vmatprep.mubr.bf16.mxu0 %v1103
        %1551 = vmatmul.mubr.bf16.gmra.mrb[0].mxu0 %v1102
        %v1552 = vpop.f32.mrb[0].mxu0
        %v1553 = vadd.f32 0.0, %v1552
        %v1554 = vpop.f32.mrb[0].mxu0
        %v1555 = vadd.f32 0.0, %v1554
        %v1556 = vpop.f32.mrb[0].mxu0
        %v1557 = vadd.f32 0.0, %v1556
        %v1558 = vpop.f32.mrb[0].mxu0
        %v1559 = vadd.f32 0.0, %v1558
        %1560 = vmatprep.mubr.bf16.mxu0 %v1105
        %1561 = vmatmul.mubr.bf16.gmra.mrb[0].mxu0 %v1104
        %v1562 = vpop.f32.mrb[0].mxu0
        %v1563 = vadd.f32 0.0, %v1562
        %v1564 = vpop.f32.mrb[0].mxu0
        %v1565 = vadd.f32 0.0, %v1564
        %v1566 = vpop.f32.mrb[0].mxu0
        %v1567 = vadd.f32 0.0, %v1566
        %v1568 = vpop.f32.mrb[0].mxu0
        %v1569 = vadd.f32 0.0, %v1568
        %1570 = vmatprep.mubr.bf16.mxu0 %v1107
        %1571 = vmatmul.mubr.bf16.gmra.mrb[0].mxu0 %v1106
        %v1572 = vpop.f32.mrb[0].mxu0
        %v1573 = vadd.f32 0.0, %v1572
        %v1574 = vpop.f32.mrb[0].mxu0
        %v1575 = vadd.f32 0.0, %v1574
        %v1576 = vpop.f32.mrb[0].mxu0
        %v1577 = vadd.f32 0.0, %v1576
        %v1578 = vpop.f32.mrb[0].mxu0
        %v1579 = vadd.f32 0.0, %v1578
        %1580 = vmatprep.mubr.bf16.mxu0 %v1109
        %1581 = vmatmul.mubr.bf16.gmra.mrb[0].mxu0 %v1108
        %v1582 = vpop.f32.mrb[0].mxu0
        %v1583 = vadd.f32 0.0, %v1582
        %v1584 = vpop.f32.mrb[0].mxu0
        %v1585 = vadd.f32 0.0, %v1584
        %v1586 = vpop.f32.mrb[0].mxu0
        %v1587 = vadd.f32 0.0, %v1586
        %v1588 = vpop.f32.mrb[0].mxu0
        %v1589 = vadd.f32 0.0, %v1588
        %1590 = vdwg.mxu0
        %1591 = vmatprep.subr.bf16.mxu0 0
        %1592 = vmatpush1.bf16.msra.mxu0 %v1304
        %1593 = vmatprep.subr.bf16.mxu0 0
        %1594 = vmatpush1.bf16.msra.mxu0 %v1307
        %1595 = vmatprep.subr.bf16.mxu0 0
        %1596 = vmatpush1.bf16.msra.mxu0 %v1310
        %1597 = vmatprep.subr.bf16.mxu0 0
        %1598 = vmatpush1.bf16.msra.mxu0 %v1313
        %1599 = vmatprep.subr.bf16.mxu0 0
        %1600 = vmatpush1.bf16.msra.mxu0 %v1316
        %1601 = vmatprep.subr.bf16.mxu0 0
        %1602 = vmatpush1.bf16.msra.mxu0 %v1319
        %1603 = vmatprep.subr.bf16.mxu0 0
        %1604 = vmatpush1.bf16.msra.mxu0 %v1322
        %1605 = vmatprep.subr.bf16.mxu0 0
        %1606 = vmatpush1.bf16.msra.mxu0 %v1325
        %1607 = vmatprep.subr.bf16.mxu0 0
        %1608 = vmatpush1.bf16.msra.mxu0 %v1328
        %1609 = vmatprep.subr.bf16.mxu0 0
        %1610 = vmatpush1.bf16.msra.mxu0 %v1331
        %1611 = vmatprep.subr.bf16.mxu0 0
        %1612 = vmatpush1.bf16.msra.mxu0 %v1334
        %1613 = vmatprep.subr.bf16.mxu0 0
        %1614 = vmatpush1.bf16.msra.mxu0 %v1337
        %1615 = vmatprep.subr.bf16.mxu0 0
        %1616 = vmatpush1.bf16.msra.mxu0 %v1340
        %1617 = vmatprep.subr.bf16.mxu0 0
        %1618 = vmatpush1.bf16.msra.mxu0 %v1343
        %1619 = vmatprep.subr.bf16.mxu0 0
        %1620 = vmatpush1.bf16.msra.mxu0 %v1346
        %1621 = vmatprep.subr.bf16.mxu0 0
        %1622 = vmatpush1.bf16.msra.mxu0 %v1349
        %1623 = vmatprep.mubr.bf16.mxu0 %v1079
        %1624 = vmatmul.mubr.bf16.gmra.mrb[0].mxu0 %v1078
        %v1625 = vpop.f32.mrb[0].mxu0
        %v1626 = vadd.f32 0.0, %v1625
        %v1627 = vpop.f32.mrb[0].mxu0
        %v1628 = vpop.f32.mrb[0].mxu0
        %v1629 = vadd.f32 0.0, %v1628
        %v1630 = vpop.f32.mrb[0].mxu0
        %1631 = vmatprep.mubr.bf16.mxu0 %v1081
        %1632 = vmatmul.mubr.bf16.gmra.mrb[0].mxu0 %v1080
        %v1633 = vpop.f32.mrb[0].mxu0
        %v1634 = vadd.f32 0.0, %v1633
        %v1635 = vpop.f32.mrb[0].mxu0
        %v1636 = vpop.f32.mrb[0].mxu0
        %v1637 = vadd.f32 0.0, %v1636
        %v1638 = vpop.f32.mrb[0].mxu0
        %1639 = vmatprep.mubr.bf16.mxu0 %v1083
        %1640 = vmatmul.mubr.bf16.gmra.mrb[0].mxu0 %v1082
        %v1641 = vpop.f32.mrb[0].mxu0
        %v1642 = vadd.f32 0.0, %v1641
        %v1643 = vpop.f32.mrb[0].mxu0
        %v1644 = vpop.f32.mrb[0].mxu0
        %v1645 = vadd.f32 0.0, %v1644
        %v1646 = vpop.f32.mrb[0].mxu0
        %1647 = vmatprep.mubr.bf16.mxu0 %v1085
        %1648 = vmatmul.mubr.bf16.gmra.mrb[0].mxu0 %v1084
        %v1649 = vpop.f32.mrb[0].mxu0
        %v1650 = vadd.f32 0.0, %v1649
        %v1651 = vpop.f32.mrb[0].mxu0
        %v1652 = vpop.f32.mrb[0].mxu0
        %v1653 = vadd.f32 0.0, %v1652
        %v1654 = vpop.f32.mrb[0].mxu0
        %1655 = vmatprep.mubr.bf16.mxu0 %v1087
        %1656 = vmatmul.mubr.bf16.gmra.mrb[0].mxu0 %v1086
        %v1657 = vpop.f32.mrb[0].mxu0
        %v1658 = vadd.f32 0.0, %v1657
        %v1659 = vpop.f32.mrb[0].mxu0
        %v1660 = vpop.f32.mrb[0].mxu0
        %v1661 = vadd.f32 0.0, %v1660
        %v1662 = vpop.f32.mrb[0].mxu0
        %1663 = vmatprep.mubr.bf16.mxu0 %v1089
        %1664 = vmatmul.mubr.bf16.gmra.mrb[0].mxu0 %v1088
        %v1665 = vpop.f32.mrb[0].mxu0
        %v1666 = vadd.f32 0.0, %v1665
        %v1667 = vpop.f32.mrb[0].mxu0
        %v1668 = vpop.f32.mrb[0].mxu0
        %v1669 = vadd.f32 0.0, %v1668
        %v1670 = vpop.f32.mrb[0].mxu0
        %1671 = vmatprep.mubr.bf16.mxu0 %v1091
        %1672 = vmatmul.mubr.bf16.gmra.mrb[0].mxu0 %v1090
        %v1673 = vpop.f32.mrb[0].mxu0
        %v1674 = vadd.f32 0.0, %v1673
        %v1675 = vpop.f32.mrb[0].mxu0
        %v1676 = vpop.f32.mrb[0].mxu0
        %v1677 = vadd.f32 0.0, %v1676
        %v1678 = vpop.f32.mrb[0].mxu0
        %1679 = vmatprep.mubr.bf16.mxu0 %v1093
        %1680 = vmatmul.mubr.bf16.gmra.mrb[0].mxu0 %v1092
        %v1681 = vpop.f32.mrb[0].mxu0
        %v1682 = vadd.f32 0.0, %v1681
        %v1683 = vpop.f32.mrb[0].mxu0
        %v1684 = vpop.f32.mrb[0].mxu0
        %v1685 = vadd.f32 0.0, %v1684
        %v1686 = vpop.f32.mrb[0].mxu0
        %1687 = vmatprep.mubr.bf16.mxu0 %v1095
        %1688 = vmatmul.mubr.bf16.gmra.mrb[0].mxu0 %v1094
        %v1689 = vpop.f32.mrb[0].mxu0
        %v1690 = vadd.f32 0.0, %v1689
        %v1691 = vpop.f32.mrb[0].mxu0
        %v1692 = vpop.f32.mrb[0].mxu0
        %v1693 = vadd.f32 0.0, %v1692
        %v1694 = vpop.f32.mrb[0].mxu0
        %1695 = vmatprep.mubr.bf16.mxu0 %v1097
        %1696 = vmatmul.mubr.bf16.gmra.mrb[0].mxu0 %v1096
        %v1697 = vpop.f32.mrb[0].mxu0
        %v1698 = vadd.f32 0.0, %v1697
        %v1699 = vpop.f32.mrb[0].mxu0
        %v1700 = vpop.f32.mrb[0].mxu0
        %v1701 = vadd.f32 0.0, %v1700
        %v1702 = vpop.f32.mrb[0].mxu0
        %1703 = vmatprep.mubr.bf16.mxu0 %v1099
        %1704 = vmatmul.mubr.bf16.gmra.mrb[0].mxu0 %v1098
        %v1705 = vpop.f32.mrb[0].mxu0
        %v1706 = vadd.f32 0.0, %v1705
        %v1707 = vpop.f32.mrb[0].mxu0
        %v1708 = vpop.f32.mrb[0].mxu0
        %v1709 = vadd.f32 0.0, %v1708
        %v1710 = vpop.f32.mrb[0].mxu0
        %1711 = vmatprep.mubr.bf16.mxu0 %v1101
        %1712 = vmatmul.mubr.bf16.gmra.mrb[0].mxu0 %v1100
        %v1713 = vpop.f32.mrb[0].mxu0
        %v1714 = vadd.f32 0.0, %v1713
        %v1715 = vpop.f32.mrb[0].mxu0
        %v1716 = vpop.f32.mrb[0].mxu0
        %v1717 = vadd.f32 0.0, %v1716
        %v1718 = vpop.f32.mrb[0].mxu0
        %1719 = vmatprep.mubr.bf16.mxu0 %v1103
        %1720 = vmatmul.mubr.bf16.gmra.mrb[0].mxu0 %v1102
        %v1721 = vpop.f32.mrb[0].mxu0
        %v1722 = vadd.f32 0.0, %v1721
        %v1723 = vpop.f32.mrb[0].mxu0
        %v1724 = vpop.f32.mrb[0].mxu0
        %v1725 = vadd.f32 0.0, %v1724
        %v1726 = vpop.f32.mrb[0].mxu0
        %1727 = vmatprep.mubr.bf16.mxu0 %v1105
        %1728 = vmatmul.mubr.bf16.gmra.mrb[0].mxu0 %v1104
        %v1729 = vpop.f32.mrb[0].mxu0
        %v1730 = vadd.f32 0.0, %v1729
        %v1731 = vpop.f32.mrb[0].mxu0
        %v1732 = vpop.f32.mrb[0].mxu0
        %v1733 = vadd.f32 0.0, %v1732
        %v1734 = vpop.f32.mrb[0].mxu0
        %1735 = vmatprep.mubr.bf16.mxu0 %v1107
        %1736 = vmatmul.mubr.bf16.gmra.mrb[0].mxu0 %v1106
        %v1737 = vpop.f32.mrb[0].mxu0
        %v1738 = vadd.f32 0.0, %v1737
        %v1739 = vpop.f32.mrb[0].mxu0
        %v1740 = vpop.f32.mrb[0].mxu0
        %v1741 = vadd.f32 0.0, %v1740
        %v1742 = vpop.f32.mrb[0].mxu0
        %1743 = vmatprep.mubr.bf16.mxu0 %v1109
        %1744 = vmatmul.mubr.bf16.gmra.mrb[0].mxu0 %v1108
        %v1745 = vpop.f32.mrb[0].mxu0
        %v1746 = vadd.f32 0.0, %v1745
        %v1747 = vpop.f32.mrb[0].mxu0
        %v1748 = vpop.f32.mrb[0].mxu0
        %v1749 = vadd.f32 0.0, %v1748
        %v1750 = vpop.f32.mrb[0].mxu0
        %1751 = vdwg.mxu0
        %v1752 = vlaneseq
        %v1753 = vshrl.u32 %v1752, 7
        %v1754 = vsub.s32 0, %v1753
        %v1755 = vrot.slane %v224, %v1754
        %v1756 = vlaneseq
        %v1757 = vshrl.u32 %v1756, 7
        %v1758 = vsub.s32 0, %v1757
        %v1759 = vrot.slane %v225, %v1758
        %v1760 = vlaneseq
        %v1761 = vshrl.u32 %v1760, 7
        %v1762 = vsub.s32 0, %v1761
        %v1763 = vrot.slane %v226, %v1762
        %v1764 = vmul.f32 %v1433, %v1755
        %v1765 = vmul.f32 %v1435, %v1759
        %v1766 = vmul.f32 %v1626, %v1763
        %v1767 = vmul.f32 %v1437, %v1755
        %v1768 = vmul.f32 %v1439, %v1759
        %v1769 = vmul.f32 %v1629, %v1763
        %v1770 = vmul.f32 %v1443, %v1755
        %v1771 = vmul.f32 %v1445, %v1759
        %v1772 = vmul.f32 %v1634, %v1763
        %v1773 = vmul.f32 %v1447, %v1755
        %v1774 = vmul.f32 %v1449, %v1759
        %v1775 = vmul.f32 %v1637, %v1763
        %v1776 = vmul.f32 %v1453, %v1755
        %v1777 = vmul.f32 %v1455, %v1759
        %v1778 = vmul.f32 %v1642, %v1763
        %v1779 = vmul.f32 %v1457, %v1755
        %v1780 = vmul.f32 %v1459, %v1759
        %v1781 = vmul.f32 %v1645, %v1763
        %v1782 = vmul.f32 %v1463, %v1755
        %v1783 = vmul.f32 %v1465, %v1759
        %v1784 = vmul.f32 %v1650, %v1763
        %v1785 = vmul.f32 %v1467, %v1755
        %v1786 = vmul.f32 %v1469, %v1759
        %v1787 = vmul.f32 %v1653, %v1763
        %v1788 = vmul.f32 %v1473, %v1755
        %v1789 = vmul.f32 %v1475, %v1759
        %v1790 = vmul.f32 %v1658, %v1763
        %v1791 = vmul.f32 %v1477, %v1755
        %v1792 = vmul.f32 %v1479, %v1759
        %v1793 = vmul.f32 %v1661, %v1763
        %v1794 = vmul.f32 %v1483, %v1755
        %v1795 = vmul.f32 %v1485, %v1759
        %v1796 = vmul.f32 %v1666, %v1763
        %v1797 = vmul.f32 %v1487, %v1755
        %v1798 = vmul.f32 %v1489, %v1759
        %v1799 = vmul.f32 %v1669, %v1763
        %v1800 = vmul.f32 %v1493, %v1755
        %v1801 = vmul.f32 %v1495, %v1759
        %v1802 = vmul.f32 %v1674, %v1763
        %v1803 = vmul.f32 %v1497, %v1755
        %v1804 = vmul.f32 %v1499, %v1759
        %v1805 = vmul.f32 %v1677, %v1763
        %v1806 = vmul.f32 %v1503, %v1755
        %v1807 = vmul.f32 %v1505, %v1759
        %v1808 = vmul.f32 %v1682, %v1763
        %v1809 = vmul.f32 %v1507, %v1755
        %v1810 = vmul.f32 %v1509, %v1759
        %v1811 = vmul.f32 %v1685, %v1763
        %v1812 = vmul.f32 %v1513, %v1755
        %v1813 = vmul.f32 %v1515, %v1759
        %v1814 = vmul.f32 %v1690, %v1763
        %v1815 = vmul.f32 %v1517, %v1755
        %v1816 = vmul.f32 %v1519, %v1759
        %v1817 = vmul.f32 %v1693, %v1763
        %v1818 = vmul.f32 %v1523, %v1755
        %v1819 = vmul.f32 %v1525, %v1759
        %v1820 = vmul.f32 %v1698, %v1763
        %v1821 = vmul.f32 %v1527, %v1755
        %v1822 = vmul.f32 %v1529, %v1759
        %v1823 = vmul.f32 %v1701, %v1763
        %v1824 = vmul.f32 %v1533, %v1755
        %v1825 = vmul.f32 %v1535, %v1759
        %v1826 = vmul.f32 %v1706, %v1763
        %v1827 = vmul.f32 %v1537, %v1755
        %v1828 = vmul.f32 %v1539, %v1759
        %v1829 = vmul.f32 %v1709, %v1763
        %v1830 = vmul.f32 %v1543, %v1755
        %v1831 = vmul.f32 %v1545, %v1759
        %v1832 = vmul.f32 %v1714, %v1763
        %v1833 = vmul.f32 %v1547, %v1755
        %v1834 = vmul.f32 %v1549, %v1759
        %v1835 = vmul.f32 %v1717, %v1763
        %v1836 = vmul.f32 %v1553, %v1755
        %v1837 = vmul.f32 %v1555, %v1759
        %v1838 = vmul.f32 %v1722, %v1763
        %v1839 = vmul.f32 %v1557, %v1755
        %v1840 = vmul.f32 %v1559, %v1759
        %v1841 = vmul.f32 %v1725, %v1763
        %v1842 = vmul.f32 %v1563, %v1755
        %v1843 = vmul.f32 %v1565, %v1759
        %v1844 = vmul.f32 %v1730, %v1763
        %v1845 = vmul.f32 %v1567, %v1755
        %v1846 = vmul.f32 %v1569, %v1759
        %v1847 = vmul.f32 %v1733, %v1763
        %v1848 = vmul.f32 %v1573, %v1755
        %v1849 = vmul.f32 %v1575, %v1759
        %v1850 = vmul.f32 %v1738, %v1763
        %v1851 = vmul.f32 %v1577, %v1755
        %v1852 = vmul.f32 %v1579, %v1759
        %v1853 = vmul.f32 %v1741, %v1763
        %v1854 = vmul.f32 %v1583, %v1755
        %v1855 = vmul.f32 %v1585, %v1759
        %v1856 = vmul.f32 %v1746, %v1763
        %v1857 = vmul.f32 %v1587, %v1755
        %v1858 = vmul.f32 %v1589, %v1759
        %v1859 = vmul.f32 %v1749, %v1763
        %v1860 = vlaneseq
        %v1861 = vshrl.u32 %v1860, 7
        %v1862 = vsub.s32 1, %v1861
        %v1863 = vrot.slane %v224, %v1862
        %v1864 = vlaneseq
        %v1865 = vshrl.u32 %v1864, 7
        %v1866 = vsub.s32 1, %v1865
        %v1867 = vrot.slane %v225, %v1866
        %v1868 = vlaneseq
        %v1869 = vshrl.u32 %v1868, 7
        %v1870 = vsub.s32 1, %v1869
        %v1871 = vrot.slane %v226, %v1870
        %v1872 = vadd.f32 %v1764, %v1863
        %v1873 = vadd.f32 %v1765, %v1867
        %v1874 = vadd.f32 %v1766, %v1871
        %v1875 = vadd.f32 %v1767, %v1863
        %v1876 = vadd.f32 %v1768, %v1867
        %v1877 = vadd.f32 %v1769, %v1871
        %v1878 = vadd.f32 %v1770, %v1863
        %v1879 = vadd.f32 %v1771, %v1867
        %v1880 = vadd.f32 %v1772, %v1871
        %v1881 = vadd.f32 %v1773, %v1863
        %v1882 = vadd.f32 %v1774, %v1867
        %v1883 = vadd.f32 %v1775, %v1871
        %v1884 = vadd.f32 %v1776, %v1863
        %v1885 = vadd.f32 %v1777, %v1867
        %v1886 = vadd.f32 %v1778, %v1871
        %v1887 = vadd.f32 %v1779, %v1863
        %v1888 = vadd.f32 %v1780, %v1867
        %v1889 = vadd.f32 %v1781, %v1871
        %v1890 = vadd.f32 %v1782, %v1863
        %v1891 = vadd.f32 %v1783, %v1867
        %v1892 = vadd.f32 %v1784, %v1871
        %v1893 = vadd.f32 %v1785, %v1863
        %v1894 = vadd.f32 %v1786, %v1867
        %v1895 = vadd.f32 %v1787, %v1871
        %v1896 = vadd.f32 %v1788, %v1863
        %v1897 = vadd.f32 %v1789, %v1867
        %v1898 = vadd.f32 %v1790, %v1871
        %v1899 = vadd.f32 %v1791, %v1863
        %v1900 = vadd.f32 %v1792, %v1867
        %v1901 = vadd.f32 %v1793, %v1871
        %v1902 = vadd.f32 %v1794, %v1863
        %v1903 = vadd.f32 %v1795, %v1867
        %v1904 = vadd.f32 %v1796, %v1871
        %v1905 = vadd.f32 %v1797, %v1863
        %v1906 = vadd.f32 %v1798, %v1867
        %v1907 = vadd.f32 %v1799, %v1871
        %v1908 = vadd.f32 %v1800, %v1863
        %v1909 = vadd.f32 %v1801, %v1867
        %v1910 = vadd.f32 %v1802, %v1871
        %v1911 = vadd.f32 %v1803, %v1863
        %v1912 = vadd.f32 %v1804, %v1867
        %v1913 = vadd.f32 %v1805, %v1871
        %v1914 = vadd.f32 %v1806, %v1863
        %v1915 = vadd.f32 %v1807, %v1867
        %v1916 = vadd.f32 %v1808, %v1871
        %v1917 = vadd.f32 %v1809, %v1863
        %v1918 = vadd.f32 %v1810, %v1867
        %v1919 = vadd.f32 %v1811, %v1871
        %v1920 = vadd.f32 %v1812, %v1863
        %v1921 = vadd.f32 %v1813, %v1867
        %v1922 = vadd.f32 %v1814, %v1871
        %v1923 = vadd.f32 %v1815, %v1863
        %v1924 = vadd.f32 %v1816, %v1867
        %v1925 = vadd.f32 %v1817, %v1871
        %v1926 = vadd.f32 %v1818, %v1863
        %v1927 = vadd.f32 %v1819, %v1867
        %v1928 = vadd.f32 %v1820, %v1871
        %v1929 = vadd.f32 %v1821, %v1863
        %v1930 = vadd.f32 %v1822, %v1867
        %v1931 = vadd.f32 %v1823, %v1871
        %v1932 = vadd.f32 %v1824, %v1863
        %v1933 = vadd.f32 %v1825, %v1867
        %v1934 = vadd.f32 %v1826, %v1871
        %v1935 = vadd.f32 %v1827, %v1863
        %v1936 = vadd.f32 %v1828, %v1867
        %v1937 = vadd.f32 %v1829, %v1871
        %v1938 = vadd.f32 %v1830, %v1863
        %v1939 = vadd.f32 %v1831, %v1867
        %v1940 = vadd.f32 %v1832, %v1871
        %v1941 = vadd.f32 %v1833, %v1863
        %v1942 = vadd.f32 %v1834, %v1867
        %v1943 = vadd.f32 %v1835, %v1871
        %v1944 = vadd.f32 %v1836, %v1863
        %v1945 = vadd.f32 %v1837, %v1867
        %v1946 = vadd.f32 %v1838, %v1871
        %v1947 = vadd.f32 %v1839, %v1863
        %v1948 = vadd.f32 %v1840, %v1867
        %v1949 = vadd.f32 %v1841, %v1871
        %v1950 = vadd.f32 %v1842, %v1863
        %v1951 = vadd.f32 %v1843, %v1867
        %v1952 = vadd.f32 %v1844, %v1871
        %v1953 = vadd.f32 %v1845, %v1863
        %v1954 = vadd.f32 %v1846, %v1867
        %v1955 = vadd.f32 %v1847, %v1871
        %v1956 = vadd.f32 %v1848, %v1863
        %v1957 = vadd.f32 %v1849, %v1867
        %v1958 = vadd.f32 %v1850, %v1871
        %v1959 = vadd.f32 %v1851, %v1863
        %v1960 = vadd.f32 %v1852, %v1867
        %v1961 = vadd.f32 %v1853, %v1871
        %v1962 = vadd.f32 %v1854, %v1863
        %v1963 = vadd.f32 %v1855, %v1867
        %v1964 = vadd.f32 %v1856, %v1871
        %v1965 = vadd.f32 %v1857, %v1863
        %v1966 = vadd.f32 %v1858, %v1867
        %v1967 = vadd.f32 %v1859, %v1871
        %v1968 = vmax.f32 %v1872, 0.0
        %v1969 = vmax.f32 %v1873, 0.0
        %v1970 = vmax.f32 %v1874, 0.0
        %v1971 = vmax.f32 %v1875, 0.0
        %v1972 = vmax.f32 %v1876, 0.0
        %v1973 = vmax.f32 %v1877, 0.0
        %v1974 = vmax.f32 %v1878, 0.0
        %v1975 = vmax.f32 %v1879, 0.0
        %v1976 = vmax.f32 %v1880, 0.0
        %v1977 = vmax.f32 %v1881, 0.0
        %v1978 = vmax.f32 %v1882, 0.0
        %v1979 = vmax.f32 %v1883, 0.0
        %v1980 = vmax.f32 %v1884, 0.0
        %v1981 = vmax.f32 %v1885, 0.0
        %v1982 = vmax.f32 %v1886, 0.0
        %v1983 = vmax.f32 %v1887, 0.0
        %v1984 = vmax.f32 %v1888, 0.0
        %v1985 = vmax.f32 %v1889, 0.0
        %v1986 = vmax.f32 %v1890, 0.0
        %v1987 = vmax.f32 %v1891, 0.0
        %v1988 = vmax.f32 %v1892, 0.0
        %v1989 = vmax.f32 %v1893, 0.0
        %v1990 = vmax.f32 %v1894, 0.0
        %v1991 = vmax.f32 %v1895, 0.0
        %v1992 = vmax.f32 %v1896, 0.0
        %v1993 = vmax.f32 %v1897, 0.0
        %v1994 = vmax.f32 %v1898, 0.0
        %v1995 = vmax.f32 %v1899, 0.0
        %v1996 = vmax.f32 %v1900, 0.0
        %v1997 = vmax.f32 %v1901, 0.0
        %v1998 = vmax.f32 %v1902, 0.0
        %v1999 = vmax.f32 %v1903, 0.0
        %v2000 = vmax.f32 %v1904, 0.0
        %v2001 = vmax.f32 %v1905, 0.0
        %v2002 = vmax.f32 %v1906, 0.0
        %v2003 = vmax.f32 %v1907, 0.0
        %v2004 = vmax.f32 %v1908, 0.0
        %v2005 = vmax.f32 %v1909, 0.0
        %v2006 = vmax.f32 %v1910, 0.0
        %v2007 = vmax.f32 %v1911, 0.0
        %v2008 = vmax.f32 %v1912, 0.0
        %v2009 = vmax.f32 %v1913, 0.0
        %v2010 = vmax.f32 %v1914, 0.0
        %v2011 = vmax.f32 %v1915, 0.0
        %v2012 = vmax.f32 %v1916, 0.0
        %v2013 = vmax.f32 %v1917, 0.0
        %v2014 = vmax.f32 %v1918, 0.0
        %v2015 = vmax.f32 %v1919, 0.0
        %v2016 = vmax.f32 %v1920, 0.0
        %v2017 = vmax.f32 %v1921, 0.0
        %v2018 = vmax.f32 %v1922, 0.0
        %v2019 = vmax.f32 %v1923, 0.0
        %v2020 = vmax.f32 %v1924, 0.0
        %v2021 = vmax.f32 %v1925, 0.0
        %v2022 = vmax.f32 %v1926, 0.0
        %v2023 = vmax.f32 %v1927, 0.0
        %v2024 = vmax.f32 %v1928, 0.0
        %v2025 = vmax.f32 %v1929, 0.0
        %v2026 = vmax.f32 %v1930, 0.0
        %v2027 = vmax.f32 %v1931, 0.0
        %v2028 = vmax.f32 %v1932, 0.0
        %v2029 = vmax.f32 %v1933, 0.0
        %v2030 = vmax.f32 %v1934, 0.0
        %v2031 = vmax.f32 %v1935, 0.0
        %v2032 = vmax.f32 %v1936, 0.0
        %v2033 = vmax.f32 %v1937, 0.0
        %v2034 = vmax.f32 %v1938, 0.0
        %v2035 = vmax.f32 %v1939, 0.0
        %v2036 = vmax.f32 %v1940, 0.0
        %v2037 = vmax.f32 %v1941, 0.0
        %v2038 = vmax.f32 %v1942, 0.0
        %v2039 = vmax.f32 %v1943, 0.0
        %v2040 = vmax.f32 %v1944, 0.0
        %v2041 = vmax.f32 %v1945, 0.0
        %v2042 = vmax.f32 %v1946, 0.0
        %v2043 = vmax.f32 %v1947, 0.0
        %v2044 = vmax.f32 %v1948, 0.0
        %v2045 = vmax.f32 %v1949, 0.0
        %v2046 = vmax.f32 %v1950, 0.0
        %v2047 = vmax.f32 %v1951, 0.0
        %v2048 = vmax.f32 %v1952, 0.0
        %v2049 = vmax.f32 %v1953, 0.0
        %v2050 = vmax.f32 %v1954, 0.0
        %v2051 = vmax.f32 %v1955, 0.0
        %v2052 = vmax.f32 %v1956, 0.0
        %v2053 = vmax.f32 %v1957, 0.0
        %v2054 = vmax.f32 %v1958, 0.0
        %v2055 = vmax.f32 %v1959, 0.0
        %v2056 = vmax.f32 %v1960, 0.0
        %v2057 = vmax.f32 %v1961, 0.0
        %v2058 = vmax.f32 %v1962, 0.0
        %v2059 = vmax.f32 %v1963, 0.0
        %v2060 = vmax.f32 %v1964, 0.0
        %v2061 = vmax.f32 %v1965, 0.0
        %v2062 = vmax.f32 %v1966, 0.0
        %v2063 = vmax.f32 %v1967, 0.0
        %v2064 = vpack.c.bf16 %v1971, %v1968
        %v2065 = vpack.c.bf16 %v1972, %v1969
        %v2066 = vpack.c.bf16 %v1973, %v1970
        %v2067 = vpack.c.bf16 %v1977, %v1974
        %v2068 = vpack.c.bf16 %v1978, %v1975
        %v2069 = vpack.c.bf16 %v1979, %v1976
        %v2070 = vpack.c.bf16 %v1983, %v1980
        %v2071 = vpack.c.bf16 %v1984, %v1981
        %v2072 = vpack.c.bf16 %v1985, %v1982
        %v2073 = vpack.c.bf16 %v1989, %v1986
        %v2074 = vpack.c.bf16 %v1990, %v1987
        %v2075 = vpack.c.bf16 %v1991, %v1988
        %v2076 = vpack.c.bf16 %v1995, %v1992
        %v2077 = vpack.c.bf16 %v1996, %v1993
        %v2078 = vpack.c.bf16 %v1997, %v1994
        %v2079 = vpack.c.bf16 %v2001, %v1998
        %v2080 = vpack.c.bf16 %v2002, %v1999
        %v2081 = vpack.c.bf16 %v2003, %v2000
        %v2082 = vpack.c.bf16 %v2007, %v2004
        %v2083 = vpack.c.bf16 %v2008, %v2005
        %v2084 = vpack.c.bf16 %v2009, %v2006
        %v2085 = vpack.c.bf16 %v2013, %v2010
        %v2086 = vpack.c.bf16 %v2014, %v2011
        %v2087 = vpack.c.bf16 %v2015, %v2012
        %v2088 = vpack.c.bf16 %v2019, %v2016
        %v2089 = vpack.c.bf16 %v2020, %v2017
        %v2090 = vpack.c.bf16 %v2021, %v2018
        %v2091 = vpack.c.bf16 %v2025, %v2022
        %v2092 = vpack.c.bf16 %v2026, %v2023
        %v2093 = vpack.c.bf16 %v2027, %v2024
        %v2094 = vpack.c.bf16 %v2031, %v2028
        %v2095 = vpack.c.bf16 %v2032, %v2029
        %v2096 = vpack.c.bf16 %v2033, %v2030
        %v2097 = vpack.c.bf16 %v2037, %v2034
        %v2098 = vpack.c.bf16 %v2038, %v2035
        %v2099 = vpack.c.bf16 %v2039, %v2036
        %v2100 = vpack.c.bf16 %v2043, %v2040
        %v2101 = vpack.c.bf16 %v2044, %v2041
        %v2102 = vpack.c.bf16 %v2045, %v2042
        %v2103 = vpack.c.bf16 %v2049, %v2046
        %v2104 = vpack.c.bf16 %v2050, %v2047
        %v2105 = vpack.c.bf16 %v2051, %v2048
        %v2106 = vpack.c.bf16 %v2055, %v2052
        %v2107 = vpack.c.bf16 %v2056, %v2053
        %v2108 = vpack.c.bf16 %v2057, %v2054
        %v2109 = vpack.c.bf16 %v2061, %v2058
        %v2110 = vpack.c.bf16 %v2062, %v2059
        %v2111 = vpack.c.bf16 %v2063, %v2060
        %2112 = vst [vmem:[#allocation2 + $0x58] sm:$0xff] %v2065
        %2113 = vst [vmem:[#allocation2 + $0x60] sm:$0xff] %v2066
        %2114 = vst [vmem:[#allocation2 + $0xa0] sm:$0xff] %v2068
        %2115 = vst [vmem:[#allocation2 + $0xa8] sm:$0xff] %v2069
        %2116 = vst [vmem:[#allocation2 + $0xe8] sm:$0xff] %v2071
        %2117 = vst [vmem:[#allocation2 + $0xf0] sm:$0xff] %v2072
        %2118 = vst [vmem:[#allocation2 + $0x130] sm:$0xff] %v2074
        %2119 = vst [vmem:[#allocation2 + $0x138] sm:$0xff] %v2075
        %2120 = vst [vmem:[#allocation2 + $0x178] sm:$0xff] %v2077
        %2121 = vst [vmem:[#allocation2 + $0x180] sm:$0xff] %v2078
        %2122 = vst [vmem:[#allocation2 + $0x1c0] sm:$0xff] %v2080
        %2123 = vst [vmem:[#allocation2 + $0x1c8] sm:$0xff] %v2081
        %2124 = vst [vmem:[#allocation2 + $0x208] sm:$0xff] %v2083
        %2125 = vst [vmem:[#allocation2 + $0x210] sm:$0xff] %v2084
        %2126 = vst [vmem:[#allocation2 + $0x250] sm:$0xff] %v2086
        %2127 = vst [vmem:[#allocation2 + $0x258] sm:$0xff] %v2087
        %2128 = vst [vmem:[#allocation2 + $0x298] sm:$0xff] %v2089
        %2129 = vst [vmem:[#allocation2 + $0x2a0] sm:$0xff] %v2090
        %2130 = vst [vmem:[#allocation2 + $0x2e0] sm:$0xff] %v2092
        %2131 = vst [vmem:[#allocation2 + $0x2e8] sm:$0xff] %v2093
        %2132 = vst [vmem:[#allocation2 + $0x328] sm:$0xff] %v2095
        %2133 = vst [vmem:[#allocation2 + $0x330] sm:$0xff] %v2096
        %2134 = vst [vmem:[#allocation2 + $0x370] sm:$0xff] %v2098
        %2135 = vst [vmem:[#allocation2 + $0x378] sm:$0xff] %v2099
        %2136 = vst [vmem:[#allocation2 + $0x3b8] sm:$0xff] %v2101
        %2137 = vst [vmem:[#allocation2 + $0x3c0] sm:$0xff] %v2102
        %2138 = vst [vmem:[#allocation2 + $0x400] sm:$0xff] %v2104
        %2139 = vst [vmem:[#allocation2 + $0x408] sm:$0xff] %v2105
        %2140 = vst [vmem:[#allocation2 + $0x448] sm:$0xff] %v2107
        %2141 = vst [vmem:[#allocation2 + $0x450] sm:$0xff] %v2108
        %2142 = vst [vmem:[#allocation2 + $0x490] sm:$0xff] %v2110
        %2143 = vst [vmem:[#allocation2 + $0x498] sm:$0xff] %v2111
        %v2144 = vld [vmem:[#allocation2 + $0x10] sm:$0x80]
        %v2145 = vld [vmem:[#allocation2 + $0x18] sm:$0x80]
        %v2146 = vld [vmem:[#allocation2 + $0x58] sm:$0xff]
        %v2147 = vld [vmem:[#allocation2 + $0x60] sm:$0xff]
        %v2148 = vld [vmem:[#allocation2 + $0xa0] sm:$0xff]
        %v2149 = vld [vmem:[#allocation2 + $0xa8] sm:$0xff]
        %v2150 = vld [vmem:[#allocation2 + $0xe8] sm:$0xff]
        %v2151 = vld [vmem:[#allocation2 + $0xf0] sm:$0xff]
        %v2152 = vld [vmem:[#allocation2 + $0x130] sm:$0xff]
        %v2153 = vld [vmem:[#allocation2 + $0x138] sm:$0xff]
        %v2154 = vld [vmem:[#allocation2 + $0x178] sm:$0xff]
        %v2155 = vld [vmem:[#allocation2 + $0x180] sm:$0xff]
        %v2156 = vld [vmem:[#allocation2 + $0x1c0] sm:$0xff]
        %v2157 = vld [vmem:[#allocation2 + $0x1c8] sm:$0xff]
        %v2158 = vld [vmem:[#allocation2 + $0x208] sm:$0xff]
        %v2159 = vld [vmem:[#allocation2 + $0x210] sm:$0xff]
        %v2160 = vld [vmem:[#allocation2 + $0x250] sm:$0xff]
        %v2161 = vld [vmem:[#allocation2 + $0x258] sm:$0xff]
        %v2162 = vld [vmem:[#allocation2 + $0x298] sm:$0xff]
        %v2163 = vld [vmem:[#allocation2 + $0x2a0] sm:$0xff]
        %v2164 = vld [vmem:[#allocation2 + $0x2e0] sm:$0xff]
        %v2165 = vld [vmem:[#allocation2 + $0x2e8] sm:$0xff]
        %v2166 = vld [vmem:[#allocation2 + $0x328] sm:$0xff]
        %v2167 = vld [vmem:[#allocation2 + $0x330] sm:$0xff]
        %v2168 = vld [vmem:[#allocation2 + $0x370] sm:$0xff]
        %v2169 = vld [vmem:[#allocation2 + $0x378] sm:$0xff]
        %v2170 = vld [vmem:[#allocation2 + $0x3b8] sm:$0xff]
        %v2171 = vld [vmem:[#allocation2 + $0x3c0] sm:$0xff]
        %v2172 = vld [vmem:[#allocation2 + $0x400] sm:$0xff]
        %v2173 = vld [vmem:[#allocation2 + $0x408] sm:$0xff]
        %v2174 = vld [vmem:[#allocation2 + $0x448] sm:$0xff]
        %v2175 = vld [vmem:[#allocation2 + $0x450] sm:$0xff]
        %v2176 = vld [vmem:[#allocation2 + $0x490] sm:$0xff]
        %v2177 = vld [vmem:[#allocation2 + $0x498] sm:$0xff]
        %vm2178 = vsmask.f32 7424
        %v2180 = vshll.u32 %v740, 16
        %v2182 = vrot.slane %v2180, 1
        %v2183 = vshrl.u32 %v740, 16
        %v2185 = vor.u32 %v2183, %v2182
        %v2187 = vshll.u32 %v741, 16
        %v2189 = vrot.slane %v2187, 1
        %v2190 = vsel %vm2178, %v2185, %v2189
        %v2191 = vshrl.u32 %v741, 16
        %v2193 = vor.u32 %v2191, %v2189
        %v2195 = vshll.u32 %v742, 16
        %v2197 = vrot.slane %v2195, 1
        %v2198 = vsel %vm2178, %v2193, %v2197
        %v2199 = vshrl.u32 %v742, 16
        %v2201 = vor.u32 %v2199, %v2197
        %v2203 = vshll.u32 %v743, 16
        %v2205 = vrot.slane %v2203, 1
        %v2206 = vsel %vm2178, %v2201, %v2205
        %v2207 = vshrl.u32 %v743, 16
        %v2209 = vor.u32 %v2207, %v2205
        %v2211 = vshll.u32 %v744, 16
        %v2213 = vrot.slane %v2211, 1
        %v2214 = vsel %vm2178, %v2209, %v2213
        %v2215 = vshrl.u32 %v744, 16
        %v2217 = vor.u32 %v2215, %v2213
        %v2219 = vshll.u32 %v745, 16
        %v2221 = vrot.slane %v2219, 1
        %v2222 = vsel %vm2178, %v2217, %v2221
        %v2223 = vshrl.u32 %v745, 16
        %v2225 = vor.u32 %v2223, %v2221
        %v2227 = vshll.u32 %v746, 16
        %v2229 = vrot.slane %v2227, 1
        %v2230 = vsel %vm2178, %v2225, %v2229
        %v2231 = vshrl.u32 %v746, 16
        %v2233 = vor.u32 %v2231, %v2229
        %v2235 = vshll.u32 %v747, 16
        %v2237 = vrot.slane %v2235, 1
        %v2238 = vsel %vm2178, %v2233, %v2237
        %v2239 = vshrl.u32 %v747, 16
        %v2241 = vor.u32 %v2239, %v2237
        %v2243 = vshll.u32 %v748, 16
        %v2245 = vrot.slane %v2243, 1
        %v2246 = vsel %vm2178, %v2241, %v2245
        %v2247 = vshrl.u32 %v748, 16
        %v2249 = vor.u32 %v2247, %v2245
        %v2251 = vshll.u32 %v749, 16
        %v2253 = vrot.slane %v2251, 1
        %v2254 = vsel %vm2178, %v2249, %v2253
        %v2255 = vshrl.u32 %v749, 16
        %v2257 = vor.u32 %v2255, %v2253
        %v2259 = vshll.u32 %v750, 16
        %v2261 = vrot.slane %v2259, 1
        %v2262 = vsel %vm2178, %v2257, %v2261
        %v2263 = vshrl.u32 %v750, 16
        %v2265 = vor.u32 %v2263, %v2261
        %v2267 = vshll.u32 %v751, 16
        %v2269 = vrot.slane %v2267, 1
        %v2270 = vsel %vm2178, %v2265, %v2269
        %v2271 = vshrl.u32 %v751, 16
        %v2273 = vor.u32 %v2271, %v2269
        %v2275 = vshll.u32 %v752, 16
        %v2277 = vrot.slane %v2275, 1
        %v2278 = vsel %vm2178, %v2273, %v2277
        %v2279 = vshrl.u32 %v752, 16
        %v2281 = vor.u32 %v2279, %v2277
        %v2283 = vshll.u32 %v753, 16
        %v2285 = vrot.slane %v2283, 1
        %v2286 = vsel %vm2178, %v2281, %v2285
        %v2287 = vshrl.u32 %v753, 16
        %v2289 = vor.u32 %v2287, %v2285
        %v2291 = vshll.u32 %v754, 16
        %v2293 = vrot.slane %v2291, 1
        %v2294 = vsel %vm2178, %v2289, %v2293
        %v2295 = vshrl.u32 %v754, 16
        %v2297 = vor.u32 %v2295, %v2293
        %v2299 = vshll.u32 %v755, 16
        %v2301 = vrot.slane %v2299, 1
        %v2302 = vsel %vm2178, %v2297, %v2301
        %v2303 = vshrl.u32 %v755, 16
        %v2305 = vor.u32 %v2303, %v2301
        %v2323 = vmul.bf16 %v2144, %v2182
        %v2324 = vmul.bf16 %v2145, %v2182
        %v2325 = vmul.bf16 %v2146, %v2190
        %v2326 = vmul.bf16 %v2147, %v2190
        %v2327 = vmul.bf16 %v2148, %v2198
        %v2328 = vmul.bf16 %v2149, %v2198
        %v2329 = vmul.bf16 %v2150, %v2206
        %v2330 = vmul.bf16 %v2151, %v2206
        %v2331 = vmul.bf16 %v2152, %v2214
        %v2332 = vmul.bf16 %v2153, %v2214
        %v2333 = vmul.bf16 %v2154, %v2222
        %v2334 = vmul.bf16 %v2155, %v2222
        %v2335 = vmul.bf16 %v2156, %v2230
        %v2336 = vmul.bf16 %v2157, %v2230
        %v2337 = vmul.bf16 %v2158, %v2238
        %v2338 = vmul.bf16 %v2159, %v2238
        %v2339 = vmul.bf16 %v2160, %v2246
        %v2340 = vmul.bf16 %v2161, %v2246
        %v2341 = vmul.bf16 %v2162, %v2254
        %v2342 = vmul.bf16 %v2163, %v2254
        %v2343 = vmul.bf16 %v2164, %v2262
        %v2344 = vmul.bf16 %v2165, %v2262
        %v2345 = vmul.bf16 %v2166, %v2270
        %v2346 = vmul.bf16 %v2167, %v2270
        %v2347 = vmul.bf16 %v2168, %v2278
        %v2348 = vmul.bf16 %v2169, %v2278
        %v2349 = vmul.bf16 %v2170, %v2286
        %v2350 = vmul.bf16 %v2171, %v2286
        %v2351 = vmul.bf16 %v2172, %v2294
        %v2352 = vmul.bf16 %v2173, %v2294
        %v2353 = vmul.bf16 %v2174, %v2302
        %v2354 = vmul.bf16 %v2175, %v2302
        %v2355 = vmul.bf16 %v2176, %v2305
        %v2356 = vmul.bf16 %v2177, %v2305
        %vm2357 = vsmask.f32 256
        %v2359 = vshrl.u32 %v2323, 16
        %v2361 = vrot.slane %v2359, 7
        %v2363 = vshrl.u32 %v2325, 16
        %v2365 = vrot.slane %v2363, 7
        %v2366 = vshll.u32 %v2325, 16
        %v2368 = vor.u32 %v2365, %v2366
        %v2369 = vsel %vm2357, %v2361, %v2368
        %v2371 = vshrl.u32 %v2324, 16
        %v2373 = vrot.slane %v2371, 7
        %v2375 = vshrl.u32 %v2326, 16
        %v2377 = vrot.slane %v2375, 7
        %v2378 = vshll.u32 %v2326, 16
        %v2380 = vor.u32 %v2377, %v2378
        %v2381 = vsel %vm2357, %v2373, %v2380
        %v2383 = vshrl.u32 %v2327, 16
        %v2385 = vrot.slane %v2383, 7
        %v2386 = vshll.u32 %v2327, 16
        %v2388 = vor.u32 %v2385, %v2386
        %v2389 = vsel %vm2357, %v2365, %v2388
        %v2391 = vshrl.u32 %v2328, 16
        %v2393 = vrot.slane %v2391, 7
        %v2394 = vshll.u32 %v2328, 16
        %v2396 = vor.u32 %v2393, %v2394
        %v2397 = vsel %vm2357, %v2377, %v2396
        %v2399 = vshrl.u32 %v2329, 16
        %v2401 = vrot.slane %v2399, 7
        %v2402 = vshll.u32 %v2329, 16
        %v2404 = vor.u32 %v2401, %v2402
        %v2405 = vsel %vm2357, %v2385, %v2404
        %v2407 = vshrl.u32 %v2330, 16
        %v2409 = vrot.slane %v2407, 7
        %v2410 = vshll.u32 %v2330, 16
        %v2412 = vor.u32 %v2409, %v2410
        %v2413 = vsel %vm2357, %v2393, %v2412
        %v2415 = vshrl.u32 %v2331, 16
        %v2417 = vrot.slane %v2415, 7
        %v2418 = vshll.u32 %v2331, 16
        %v2420 = vor.u32 %v2417, %v2418
        %v2421 = vsel %vm2357, %v2401, %v2420
        %v2423 = vshrl.u32 %v2332, 16
        %v2425 = vrot.slane %v2423, 7
        %v2426 = vshll.u32 %v2332, 16
        %v2428 = vor.u32 %v2425, %v2426
        %v2429 = vsel %vm2357, %v2409, %v2428
        %v2431 = vshrl.u32 %v2333, 16
        %v2433 = vrot.slane %v2431, 7
        %v2434 = vshll.u32 %v2333, 16
        %v2436 = vor.u32 %v2433, %v2434
        %v2437 = vsel %vm2357, %v2417, %v2436
        %v2439 = vshrl.u32 %v2334, 16
        %v2441 = vrot.slane %v2439, 7
        %v2442 = vshll.u32 %v2334, 16
        %v2444 = vor.u32 %v2441, %v2442
        %v2445 = vsel %vm2357, %v2425, %v2444
        %v2447 = vshrl.u32 %v2335, 16
        %v2449 = vrot.slane %v2447, 7
        %v2450 = vshll.u32 %v2335, 16
        %v2452 = vor.u32 %v2449, %v2450
        %v2453 = vsel %vm2357, %v2433, %v2452
        %v2455 = vshrl.u32 %v2336, 16
        %v2457 = vrot.slane %v2455, 7
        %v2458 = vshll.u32 %v2336, 16
        %v2460 = vor.u32 %v2457, %v2458
        %v2461 = vsel %vm2357, %v2441, %v2460
        %v2463 = vshrl.u32 %v2337, 16
        %v2465 = vrot.slane %v2463, 7
        %v2466 = vshll.u32 %v2337, 16
        %v2468 = vor.u32 %v2465, %v2466
        %v2469 = vsel %vm2357, %v2449, %v2468
        %v2471 = vshrl.u32 %v2338, 16
        %v2473 = vrot.slane %v2471, 7
        %v2474 = vshll.u32 %v2338, 16
        %v2476 = vor.u32 %v2473, %v2474
        %v2477 = vsel %vm2357, %v2457, %v2476
        %v2479 = vshrl.u32 %v2339, 16
        %v2481 = vrot.slane %v2479, 7
        %v2482 = vshll.u32 %v2339, 16
        %v2484 = vor.u32 %v2481, %v2482
        %v2485 = vsel %vm2357, %v2465, %v2484
        %v2487 = vshrl.u32 %v2340, 16
        %v2489 = vrot.slane %v2487, 7
        %v2490 = vshll.u32 %v2340, 16
        %v2492 = vor.u32 %v2489, %v2490
        %v2493 = vsel %vm2357, %v2473, %v2492
        %v2495 = vshrl.u32 %v2341, 16
        %v2497 = vrot.slane %v2495, 7
        %v2498 = vshll.u32 %v2341, 16
        %v2500 = vor.u32 %v2497, %v2498
        %v2501 = vsel %vm2357, %v2481, %v2500
        %v2503 = vshrl.u32 %v2342, 16
        %v2505 = vrot.slane %v2503, 7
        %v2506 = vshll.u32 %v2342, 16
        %v2508 = vor.u32 %v2505, %v2506
        %v2509 = vsel %vm2357, %v2489, %v2508
        %v2511 = vshrl.u32 %v2343, 16
        %v2513 = vrot.slane %v2511, 7
        %v2514 = vshll.u32 %v2343, 16
        %v2516 = vor.u32 %v2513, %v2514
        %v2517 = vsel %vm2357, %v2497, %v2516
        %v2519 = vshrl.u32 %v2344, 16
        %v2521 = vrot.slane %v2519, 7
        %v2522 = vshll.u32 %v2344, 16
        %v2524 = vor.u32 %v2521, %v2522
        %v2525 = vsel %vm2357, %v2505, %v2524
        %v2527 = vshrl.u32 %v2345, 16
        %v2529 = vrot.slane %v2527, 7
        %v2530 = vshll.u32 %v2345, 16
        %v2532 = vor.u32 %v2529, %v2530
        %v2533 = vsel %vm2357, %v2513, %v2532
        %v2535 = vshrl.u32 %v2346, 16
        %v2537 = vrot.slane %v2535, 7
        %v2538 = vshll.u32 %v2346, 16
        %v2540 = vor.u32 %v2537, %v2538
        %v2541 = vsel %vm2357, %v2521, %v2540
        %v2543 = vshrl.u32 %v2347, 16
        %v2545 = vrot.slane %v2543, 7
        %v2546 = vshll.u32 %v2347, 16
        %v2548 = vor.u32 %v2545, %v2546
        %v2549 = vsel %vm2357, %v2529, %v2548
        %v2551 = vshrl.u32 %v2348, 16
        %v2553 = vrot.slane %v2551, 7
        %v2554 = vshll.u32 %v2348, 16
        %v2556 = vor.u32 %v2553, %v2554
        %v2557 = vsel %vm2357, %v2537, %v2556
        %v2559 = vshrl.u32 %v2349, 16
        %v2561 = vrot.slane %v2559, 7
        %v2562 = vshll.u32 %v2349, 16
        %v2564 = vor.u32 %v2561, %v2562
        %v2565 = vsel %vm2357, %v2545, %v2564
        %v2567 = vshrl.u32 %v2350, 16
        %v2569 = vrot.slane %v2567, 7
        %v2570 = vshll.u32 %v2350, 16
        %v2572 = vor.u32 %v2569, %v2570
        %v2573 = vsel %vm2357, %v2553, %v2572
        %v2575 = vshrl.u32 %v2351, 16
        %v2577 = vrot.slane %v2575, 7
        %v2578 = vshll.u32 %v2351, 16
        %v2580 = vor.u32 %v2577, %v2578
        %v2581 = vsel %vm2357, %v2561, %v2580
        %v2583 = vshrl.u32 %v2352, 16
        %v2585 = vrot.slane %v2583, 7
        %v2586 = vshll.u32 %v2352, 16
        %v2588 = vor.u32 %v2585, %v2586
        %v2589 = vsel %vm2357, %v2569, %v2588
        %v2591 = vshrl.u32 %v2353, 16
        %v2593 = vrot.slane %v2591, 7
        %v2594 = vshll.u32 %v2353, 16
        %v2596 = vor.u32 %v2593, %v2594
        %v2597 = vsel %vm2357, %v2577, %v2596
        %v2599 = vshrl.u32 %v2354, 16
        %v2601 = vrot.slane %v2599, 7
        %v2602 = vshll.u32 %v2354, 16
        %v2604 = vor.u32 %v2601, %v2602
        %v2605 = vsel %vm2357, %v2585, %v2604
        %v2607 = vshrl.u32 %v2355, 16
        %v2609 = vrot.slane %v2607, 7
        %v2610 = vshll.u32 %v2355, 16
        %v2612 = vor.u32 %v2609, %v2610
        %v2613 = vsel %vm2357, %v2593, %v2612
        %v2615 = vshrl.u32 %v2356, 16
        %v2617 = vrot.slane %v2615, 7
        %v2618 = vshll.u32 %v2356, 16
        %v2620 = vor.u32 %v2617, %v2618
        %v2621 = vsel %vm2357, %v2601, %v2620
        %2654 = vst [vmem:[#allocation2 + $0x48] sm:$0xff] %v2369
        %2655 = vst [vmem:[#allocation2 + $0x50] sm:$0xff] %v2381
        %2656 = vst [vmem:[#allocation2 + $0x90] sm:$0xff] %v2389
        %2657 = vst [vmem:[#allocation2 + $0x98] sm:$0xff] %v2397
        %2658 = vst [vmem:[#allocation2 + $0xd8] sm:$0xff] %v2405
        %2659 = vst [vmem:[#allocation2 + $0xe0] sm:$0xff] %v2413
        %2660 = vst [vmem:[#allocation2 + $0x120] sm:$0xff] %v2421
        %2661 = vst [vmem:[#allocation2 + $0x128] sm:$0xff] %v2429
        %2662 = vst [vmem:[#allocation2 + $0x168] sm:$0xff] %v2437
        %2663 = vst [vmem:[#allocation2 + $0x170] sm:$0xff] %v2445
        %2664 = vst [vmem:[#allocation2 + $0x1b0] sm:$0xff] %v2453
        %2665 = vst [vmem:[#allocation2 + $0x1b8] sm:$0xff] %v2461
        %2666 = vst [vmem:[#allocation2 + $0x1f8] sm:$0xff] %v2469
        %2667 = vst [vmem:[#allocation2 + $0x200] sm:$0xff] %v2477
        %2668 = vst [vmem:[#allocation2 + $0x240] sm:$0xff] %v2485
        %2669 = vst [vmem:[#allocation2 + $0x248] sm:$0xff] %v2493
        %2670 = vst [vmem:[#allocation2 + $0x288] sm:$0xff] %v2501
        %2671 = vst [vmem:[#allocation2 + $0x290] sm:$0xff] %v2509
        %2672 = vst [vmem:[#allocation2 + $0x2d0] sm:$0xff] %v2517
        %2673 = vst [vmem:[#allocation2 + $0x2d8] sm:$0xff] %v2525
        %2674 = vst [vmem:[#allocation2 + $0x318] sm:$0xff] %v2533
        %2675 = vst [vmem:[#allocation2 + $0x320] sm:$0xff] %v2541
        %2676 = vst [vmem:[#allocation2 + $0x360] sm:$0xff] %v2549
        %2677 = vst [vmem:[#allocation2 + $0x368] sm:$0xff] %v2557
        %2678 = vst [vmem:[#allocation2 + $0x3a8] sm:$0xff] %v2565
        %2679 = vst [vmem:[#allocation2 + $0x3b0] sm:$0xff] %v2573
        %2680 = vst [vmem:[#allocation2 + $0x3f0] sm:$0xff] %v2581
        %2681 = vst [vmem:[#allocation2 + $0x3f8] sm:$0xff] %v2589
        %2682 = vst [vmem:[#allocation2 + $0x438] sm:$0xff] %v2597
        %2683 = vst [vmem:[#allocation2 + $0x440] sm:$0xff] %v2605
        %2684 = vst [vmem:[#allocation2 + $0x480] sm:$0xff] %v2613
        %2685 = vst [vmem:[#allocation2 + $0x488] sm:$0xff] %v2621
        %v2686 = vld [vmem:[#allocation2 + $0x58] sm:$0xff]
        %v2687 = vld [vmem:[#allocation2 + $0x60] sm:$0xff]
        %v2688 = vld [vmem:[#allocation2 + $0xa0] sm:$0xff]
        %v2689 = vld [vmem:[#allocation2 + $0xa8] sm:$0xff]
        %v2690 = vld [vmem:[#allocation2 + $0xe8] sm:$0xff]
        %v2691 = vld [vmem:[#allocation2 + $0xf0] sm:$0xff]
        %v2692 = vld [vmem:[#allocation2 + $0x130] sm:$0xff]
        %v2693 = vld [vmem:[#allocation2 + $0x138] sm:$0xff]
        %v2694 = vld [vmem:[#allocation2 + $0x178] sm:$0xff]
        %v2695 = vld [vmem:[#allocation2 + $0x180] sm:$0xff]
        %v2696 = vld [vmem:[#allocation2 + $0x1c0] sm:$0xff]
        %v2697 = vld [vmem:[#allocation2 + $0x1c8] sm:$0xff]
        %v2698 = vld [vmem:[#allocation2 + $0x208] sm:$0xff]
        %v2699 = vld [vmem:[#allocation2 + $0x210] sm:$0xff]
        %v2700 = vld [vmem:[#allocation2 + $0x250] sm:$0xff]
        %v2701 = vld [vmem:[#allocation2 + $0x258] sm:$0xff]
        %v2702 = vld [vmem:[#allocation2 + $0x298] sm:$0xff]
        %v2703 = vld [vmem:[#allocation2 + $0x2a0] sm:$0xff]
        %v2704 = vld [vmem:[#allocation2 + $0x2e0] sm:$0xff]
        %v2705 = vld [vmem:[#allocation2 + $0x2e8] sm:$0xff]
        %v2706 = vld [vmem:[#allocation2 + $0x328] sm:$0xff]
        %v2707 = vld [vmem:[#allocation2 + $0x330] sm:$0xff]
        %v2708 = vld [vmem:[#allocation2 + $0x370] sm:$0xff]
        %v2709 = vld [vmem:[#allocation2 + $0x378] sm:$0xff]
        %v2710 = vld [vmem:[#allocation2 + $0x3b8] sm:$0xff]
        %v2711 = vld [vmem:[#allocation2 + $0x3c0] sm:$0xff]
        %v2712 = vld [vmem:[#allocation2 + $0x400] sm:$0xff]
        %v2713 = vld [vmem:[#allocation2 + $0x408] sm:$0xff]
        %v2714 = vld [vmem:[#allocation2 + $0x448] sm:$0xff]
        %v2715 = vld [vmem:[#allocation2 + $0x450] sm:$0xff]
        %v2716 = vld [vmem:[#allocation2 + $0x490] sm:$0xff]
        %v2717 = vld [vmem:[#allocation2 + $0x498] sm:$0xff]
        %v2718 = vld [vmem:[#allocation2 + $0x4d8] sm:$0x1]
        %v2719 = vld [vmem:[#allocation2 + $0x4e0] sm:$0x1]
        %v2721 = vshrl.u32 %v852, 16
        %v2723 = vrot.slane %v2721, 7
        %v2724 = vshll.u32 %v852, 16
        %v2726 = vor.u32 %v2723, %v2724
        %v2728 = vshrl.u32 %v853, 16
        %v2730 = vrot.slane %v2728, 7
        %v2731 = vshll.u32 %v853, 16
        %v2733 = vor.u32 %v2730, %v2731
        %v2734 = vsel %vm2357, %v2723, %v2733
        %v2736 = vshrl.u32 %v854, 16
        %v2738 = vrot.slane %v2736, 7
        %v2739 = vshll.u32 %v854, 16
        %v2741 = vor.u32 %v2738, %v2739
        %v2742 = vsel %vm2357, %v2730, %v2741
        %v2744 = vshrl.u32 %v855, 16
        %v2746 = vrot.slane %v2744, 7
        %v2747 = vshll.u32 %v855, 16
        %v2749 = vor.u32 %v2746, %v2747
        %v2750 = vsel %vm2357, %v2738, %v2749
        %v2752 = vshrl.u32 %v856, 16
        %v2754 = vrot.slane %v2752, 7
        %v2755 = vshll.u32 %v856, 16
        %v2757 = vor.u32 %v2754, %v2755
        %v2758 = vsel %vm2357, %v2746, %v2757
        %v2760 = vshrl.u32 %v857, 16
        %v2762 = vrot.slane %v2760, 7
        %v2763 = vshll.u32 %v857, 16
        %v2765 = vor.u32 %v2762, %v2763
        %v2766 = vsel %vm2357, %v2754, %v2765
        %v2768 = vshrl.u32 %v858, 16
        %v2770 = vrot.slane %v2768, 7
        %v2771 = vshll.u32 %v858, 16
        %v2773 = vor.u32 %v2770, %v2771
        %v2774 = vsel %vm2357, %v2762, %v2773
        %v2776 = vshrl.u32 %v859, 16
        %v2778 = vrot.slane %v2776, 7
        %v2779 = vshll.u32 %v859, 16
        %v2781 = vor.u32 %v2778, %v2779
        %v2782 = vsel %vm2357, %v2770, %v2781
        %v2784 = vshrl.u32 %v860, 16
        %v2786 = vrot.slane %v2784, 7
        %v2787 = vshll.u32 %v860, 16
        %v2789 = vor.u32 %v2786, %v2787
        %v2790 = vsel %vm2357, %v2778, %v2789
        %v2792 = vshrl.u32 %v861, 16
        %v2794 = vrot.slane %v2792, 7
        %v2795 = vshll.u32 %v861, 16
        %v2797 = vor.u32 %v2794, %v2795
        %v2798 = vsel %vm2357, %v2786, %v2797
        %v2800 = vshrl.u32 %v862, 16
        %v2802 = vrot.slane %v2800, 7
        %v2803 = vshll.u32 %v862, 16
        %v2805 = vor.u32 %v2802, %v2803
        %v2806 = vsel %vm2357, %v2794, %v2805
        %v2808 = vshrl.u32 %v863, 16
        %v2810 = vrot.slane %v2808, 7
        %v2811 = vshll.u32 %v863, 16
        %v2813 = vor.u32 %v2810, %v2811
        %v2814 = vsel %vm2357, %v2802, %v2813
        %v2816 = vshrl.u32 %v864, 16
        %v2818 = vrot.slane %v2816, 7
        %v2819 = vshll.u32 %v864, 16
        %v2821 = vor.u32 %v2818, %v2819
        %v2822 = vsel %vm2357, %v2810, %v2821
        %v2824 = vshrl.u32 %v865, 16
        %v2826 = vrot.slane %v2824, 7
        %v2827 = vshll.u32 %v865, 16
        %v2829 = vor.u32 %v2826, %v2827
        %v2830 = vsel %vm2357, %v2818, %v2829
        %v2832 = vshrl.u32 %v866, 16
        %v2834 = vrot.slane %v2832, 7
        %v2835 = vshll.u32 %v866, 16
        %v2837 = vor.u32 %v2834, %v2835
        %v2838 = vsel %vm2357, %v2826, %v2837
        %v2840 = vshrl.u32 %v867, 16
        %v2842 = vrot.slane %v2840, 7
        %v2843 = vshll.u32 %v867, 16
        %v2845 = vor.u32 %v2842, %v2843
        %v2846 = vsel %vm2357, %v2834, %v2845
        %v2864 = vmul.bf16 %v2686, %v2726
        %v2865 = vmul.bf16 %v2687, %v2726
        %v2866 = vmul.bf16 %v2688, %v2734
        %v2867 = vmul.bf16 %v2689, %v2734
        %v2868 = vmul.bf16 %v2690, %v2742
        %v2869 = vmul.bf16 %v2691, %v2742
        %v2870 = vmul.bf16 %v2692, %v2750
        %v2871 = vmul.bf16 %v2693, %v2750
        %v2872 = vmul.bf16 %v2694, %v2758
        %v2873 = vmul.bf16 %v2695, %v2758
        %v2874 = vmul.bf16 %v2696, %v2766
        %v2875 = vmul.bf16 %v2697, %v2766
        %v2876 = vmul.bf16 %v2698, %v2774
        %v2877 = vmul.bf16 %v2699, %v2774
        %v2878 = vmul.bf16 %v2700, %v2782
        %v2879 = vmul.bf16 %v2701, %v2782
        %v2880 = vmul.bf16 %v2702, %v2790
        %v2881 = vmul.bf16 %v2703, %v2790
        %v2882 = vmul.bf16 %v2704, %v2798
        %v2883 = vmul.bf16 %v2705, %v2798
        %v2884 = vmul.bf16 %v2706, %v2806
        %v2885 = vmul.bf16 %v2707, %v2806
        %v2886 = vmul.bf16 %v2708, %v2814
        %v2887 = vmul.bf16 %v2709, %v2814
        %v2888 = vmul.bf16 %v2710, %v2822
        %v2889 = vmul.bf16 %v2711, %v2822
        %v2890 = vmul.bf16 %v2712, %v2830
        %v2891 = vmul.bf16 %v2713, %v2830
        %v2892 = vmul.bf16 %v2714, %v2838
        %v2893 = vmul.bf16 %v2715, %v2838
        %v2894 = vmul.bf16 %v2716, %v2846
        %v2895 = vmul.bf16 %v2717, %v2846
        %v2896 = vmul.bf16 %v2718, %v2842
        %v2897 = vmul.bf16 %v2719, %v2842
        %v2899 = vshrl.u32 %v2864, 16
        %v2901 = vshll.u32 %v2864, 16
        %v2903 = vrot.slane %v2901, 1
        %v2904 = vor.u32 %v2899, %v2903
        %v2906 = vshll.u32 %v2866, 16
        %v2908 = vrot.slane %v2906, 1
        %v2909 = vsel %vm2178, %v2904, %v2908
        %v2911 = vshrl.u32 %v2865, 16
        %v2913 = vshll.u32 %v2865, 16
        %v2915 = vrot.slane %v2913, 1
        %v2916 = vor.u32 %v2911, %v2915
        %v2918 = vshll.u32 %v2867, 16
        %v2920 = vrot.slane %v2918, 1
        %v2921 = vsel %vm2178, %v2916, %v2920
        %v2922 = vshrl.u32 %v2866, 16
        %v2924 = vor.u32 %v2922, %v2908
        %v2926 = vshll.u32 %v2868, 16
        %v2928 = vrot.slane %v2926, 1
        %v2929 = vsel %vm2178, %v2924, %v2928
        %v2930 = vshrl.u32 %v2867, 16
        %v2932 = vor.u32 %v2930, %v2920
        %v2934 = vshll.u32 %v2869, 16
        %v2936 = vrot.slane %v2934, 1
        %v2937 = vsel %vm2178, %v2932, %v2936
        %v2938 = vshrl.u32 %v2868, 16
        %v2940 = vor.u32 %v2938, %v2928
        %v2942 = vshll.u32 %v2870, 16
        %v2944 = vrot.slane %v2942, 1
        %v2945 = vsel %vm2178, %v2940, %v2944
        %v2946 = vshrl.u32 %v2869, 16
        %v2948 = vor.u32 %v2946, %v2936
        %v2950 = vshll.u32 %v2871, 16
        %v2952 = vrot.slane %v2950, 1
        %v2953 = vsel %vm2178, %v2948, %v2952
        %v2954 = vshrl.u32 %v2870, 16
        %v2956 = vor.u32 %v2954, %v2944
        %v2958 = vshll.u32 %v2872, 16
        %v2960 = vrot.slane %v2958, 1
        %v2961 = vsel %vm2178, %v2956, %v2960
        %v2962 = vshrl.u32 %v2871, 16
        %v2964 = vor.u32 %v2962, %v2952
        %v2966 = vshll.u32 %v2873, 16
        %v2968 = vrot.slane %v2966, 1
        %v2969 = vsel %vm2178, %v2964, %v2968
        %v2970 = vshrl.u32 %v2872, 16
        %v2972 = vor.u32 %v2970, %v2960
        %v2974 = vshll.u32 %v2874, 16
        %v2976 = vrot.slane %v2974, 1
        %v2977 = vsel %vm2178, %v2972, %v2976
        %v2978 = vshrl.u32 %v2873, 16
        %v2980 = vor.u32 %v2978, %v2968
        %v2982 = vshll.u32 %v2875, 16
        %v2984 = vrot.slane %v2982, 1
        %v2985 = vsel %vm2178, %v2980, %v2984
        %v2986 = vshrl.u32 %v2874, 16
        %v2988 = vor.u32 %v2986, %v2976
        %v2990 = vshll.u32 %v2876, 16
        %v2992 = vrot.slane %v2990, 1
        %v2993 = vsel %vm2178, %v2988, %v2992
        %v2994 = vshrl.u32 %v2875, 16
        %v2996 = vor.u32 %v2994, %v2984
        %v2998 = vshll.u32 %v2877, 16
        %v3000 = vrot.slane %v2998, 1
        %v3001 = vsel %vm2178, %v2996, %v3000
        %v3002 = vshrl.u32 %v2876, 16
        %v3004 = vor.u32 %v3002, %v2992
        %v3006 = vshll.u32 %v2878, 16
        %v3008 = vrot.slane %v3006, 1
        %v3009 = vsel %vm2178, %v3004, %v3008
        %v3010 = vshrl.u32 %v2877, 16
        %v3012 = vor.u32 %v3010, %v3000
        %v3014 = vshll.u32 %v2879, 16
        %v3016 = vrot.slane %v3014, 1
        %v3017 = vsel %vm2178, %v3012, %v3016
        %v3018 = vshrl.u32 %v2878, 16
        %v3020 = vor.u32 %v3018, %v3008
        %v3022 = vshll.u32 %v2880, 16
        %v3024 = vrot.slane %v3022, 1
        %v3025 = vsel %vm2178, %v3020, %v3024
        %v3026 = vshrl.u32 %v2879, 16
        %v3028 = vor.u32 %v3026, %v3016
        %v3030 = vshll.u32 %v2881, 16
        %v3032 = vrot.slane %v3030, 1
        %v3033 = vsel %vm2178, %v3028, %v3032
        %v3034 = vshrl.u32 %v2880, 16
        %v3036 = vor.u32 %v3034, %v3024
        %v3038 = vshll.u32 %v2882, 16
        %v3040 = vrot.slane %v3038, 1
        %v3041 = vsel %vm2178, %v3036, %v3040
        %v3042 = vshrl.u32 %v2881, 16
        %v3044 = vor.u32 %v3042, %v3032
        %v3046 = vshll.u32 %v2883, 16
        %v3048 = vrot.slane %v3046, 1
        %v3049 = vsel %vm2178, %v3044, %v3048
        %v3050 = vshrl.u32 %v2882, 16
        %v3052 = vor.u32 %v3050, %v3040
        %v3054 = vshll.u32 %v2884, 16
        %v3056 = vrot.slane %v3054, 1
        %v3057 = vsel %vm2178, %v3052, %v3056
        %v3058 = vshrl.u32 %v2883, 16
        %v3060 = vor.u32 %v3058, %v3048
        %v3062 = vshll.u32 %v2885, 16
        %v3064 = vrot.slane %v3062, 1
        %v3065 = vsel %vm2178, %v3060, %v3064
        %v3066 = vshrl.u32 %v2884, 16
        %v3068 = vor.u32 %v3066, %v3056
        %v3070 = vshll.u32 %v2886, 16
        %v3072 = vrot.slane %v3070, 1
        %v3073 = vsel %vm2178, %v3068, %v3072
        %v3074 = vshrl.u32 %v2885, 16
        %v3076 = vor.u32 %v3074, %v3064
        %v3078 = vshll.u32 %v2887, 16
        %v3080 = vrot.slane %v3078, 1
        %v3081 = vsel %vm2178, %v3076, %v3080
        %v3082 = vshrl.u32 %v2886, 16
        %v3084 = vor.u32 %v3082, %v3072
        %v3086 = vshll.u32 %v2888, 16
        %v3088 = vrot.slane %v3086, 1
        %v3089 = vsel %vm2178, %v3084, %v3088
        %v3090 = vshrl.u32 %v2887, 16
        %v3092 = vor.u32 %v3090, %v3080
        %v3094 = vshll.u32 %v2889, 16
        %v3096 = vrot.slane %v3094, 1
        %v3097 = vsel %vm2178, %v3092, %v3096
        %v3098 = vshrl.u32 %v2888, 16
        %v3100 = vor.u32 %v3098, %v3088
        %v3102 = vshll.u32 %v2890, 16
        %v3104 = vrot.slane %v3102, 1
        %v3105 = vsel %vm2178, %v3100, %v3104
        %v3106 = vshrl.u32 %v2889, 16
        %v3108 = vor.u32 %v3106, %v3096
        %v3110 = vshll.u32 %v2891, 16
        %v3112 = vrot.slane %v3110, 1
        %v3113 = vsel %vm2178, %v3108, %v3112
        %v3114 = vshrl.u32 %v2890, 16
        %v3116 = vor.u32 %v3114, %v3104
        %v3118 = vshll.u32 %v2892, 16
        %v3120 = vrot.slane %v3118, 1
        %v3121 = vsel %vm2178, %v3116, %v3120
        %v3122 = vshrl.u32 %v2891, 16
        %v3124 = vor.u32 %v3122, %v3112
        %v3126 = vshll.u32 %v2893, 16
        %v3128 = vrot.slane %v3126, 1
        %v3129 = vsel %vm2178, %v3124, %v3128
        %v3130 = vshrl.u32 %v2892, 16
        %v3132 = vor.u32 %v3130, %v3120
        %v3134 = vshll.u32 %v2894, 16
        %v3136 = vrot.slane %v3134, 1
        %v3137 = vsel %vm2178, %v3132, %v3136
        %v3138 = vshrl.u32 %v2893, 16
        %v3140 = vor.u32 %v3138, %v3128
        %v3142 = vshll.u32 %v2895, 16
        %v3144 = vrot.slane %v3142, 1
        %v3145 = vsel %vm2178, %v3140, %v3144
        %v3146 = vshrl.u32 %v2894, 16
        %v3148 = vor.u32 %v3146, %v3136
        %v3150 = vshll.u32 %v2896, 16
        %v3152 = vrot.slane %v3150, 1
        %v3153 = vsel %vm2178, %v3148, %v3152
        %v3154 = vshrl.u32 %v2895, 16
        %v3156 = vor.u32 %v3154, %v3144
        %v3158 = vshll.u32 %v2897, 16
        %v3160 = vrot.slane %v3158, 1
        %v3161 = vsel %vm2178, %v3156, %v3160
        %3194 = vst [vmem:[#allocation2 + $0x68] sm:$0xff] %v2909
        %3195 = vst [vmem:[#allocation2 + $0x70] sm:$0xff] %v2921
        %3196 = vst [vmem:[#allocation2 + $0xb0] sm:$0xff] %v2929
        %3197 = vst [vmem:[#allocation2 + $0xb8] sm:$0xff] %v2937
        %3198 = vst [vmem:[#allocation2 + $0xf8] sm:$0xff] %v2945
        %3199 = vst [vmem:[#allocation2 + $0x100] sm:$0xff] %v2953
        %3200 = vst [vmem:[#allocation2 + $0x140] sm:$0xff] %v2961
        %3201 = vst [vmem:[#allocation2 + $0x148] sm:$0xff] %v2969
        %3202 = vst [vmem:[#allocation2 + $0x188] sm:$0xff] %v2977
        %3203 = vst [vmem:[#allocation2 + $0x190] sm:$0xff] %v2985
        %3204 = vst [vmem:[#allocation2 + $0x1d0] sm:$0xff] %v2993
        %3205 = vst [vmem:[#allocation2 + $0x1d8] sm:$0xff] %v3001
        %3206 = vst [vmem:[#allocation2 + $0x218] sm:$0xff] %v3009
        %3207 = vst [vmem:[#allocation2 + $0x220] sm:$0xff] %v3017
        %3208 = vst [vmem:[#allocation2 + $0x260] sm:$0xff] %v3025
        %3209 = vst [vmem:[#allocation2 + $0x268] sm:$0xff] %v3033
        %3210 = vst [vmem:[#allocation2 + $0x2a8] sm:$0xff] %v3041
        %3211 = vst [vmem:[#allocation2 + $0x2b0] sm:$0xff] %v3049
        %3212 = vst [vmem:[#allocation2 + $0x2f0] sm:$0xff] %v3057
        %3213 = vst [vmem:[#allocation2 + $0x2f8] sm:$0xff] %v3065
        %3214 = vst [vmem:[#allocation2 + $0x338] sm:$0xff] %v3073
        %3215 = vst [vmem:[#allocation2 + $0x340] sm:$0xff] %v3081
        %3216 = vst [vmem:[#allocation2 + $0x380] sm:$0xff] %v3089
        %3217 = vst [vmem:[#allocation2 + $0x388] sm:$0xff] %v3097
        %3218 = vst [vmem:[#allocation2 + $0x3c8] sm:$0xff] %v3105
        %3219 = vst [vmem:[#allocation2 + $0x3d0] sm:$0xff] %v3113
        %3220 = vst [vmem:[#allocation2 + $0x410] sm:$0xff] %v3121
        %3221 = vst [vmem:[#allocation2 + $0x418] sm:$0xff] %v3129
        %3222 = vst [vmem:[#allocation2 + $0x458] sm:$0xff] %v3137
        %3223 = vst [vmem:[#allocation2 + $0x460] sm:$0xff] %v3145
        %3224 = vst [vmem:[#allocation2 + $0x4a0] sm:$0xff] %v3153
        %3225 = vst [vmem:[#allocation2 + $0x4a8] sm:$0xff] %v3161
        %v3226 = vld [vmem:[#allocation2] sm:$0xff]
        %v3227 = vld [vmem:[#allocation2 + $0x8] sm:$0xff]
        %v3228 = vld [vmem:[#allocation2 + $0x10] sm:$0xff]
        %v3229 = vld [vmem:[#allocation2 + $0x18] sm:$0xff]
        %v3230 = vld [vmem:[#allocation2 + $0x20] sm:$0xff]
        %v3231 = vld [vmem:[#allocation2 + $0x28] sm:$0xff]
        %v3232 = vld [vmem:[#allocation2 + $0x48] sm:$0xff]
        %v3233 = vld [vmem:[#allocation2 + $0x50] sm:$0xff]
        %v3234 = vld [vmem:[#allocation2 + $0x58] sm:$0xff]
        %v3235 = vld [vmem:[#allocation2 + $0x60] sm:$0xff]
        %v3236 = vld [vmem:[#allocation2 + $0x68] sm:$0xff]
        %v3237 = vld [vmem:[#allocation2 + $0x70] sm:$0xff]
        %v3238 = vld [vmem:[#allocation2 + $0x90] sm:$0xff]
        %v3239 = vld [vmem:[#allocation2 + $0x98] sm:$0xff]
        %v3240 = vld [vmem:[#allocation2 + $0xa0] sm:$0xff]
        %v3241 = vld [vmem:[#allocation2 + $0xa8] sm:$0xff]
        %v3242 = vld [vmem:[#allocation2 + $0xb0] sm:$0xff]
        %v3243 = vld [vmem:[#allocation2 + $0xb8] sm:$0xff]
        %v3244 = vld [vmem:[#allocation2 + $0xd8] sm:$0xff]
        %v3245 = vld [vmem:[#allocation2 + $0xe0] sm:$0xff]
        %v3246 = vld [vmem:[#allocation2 + $0xe8] sm:$0xff]
        %v3247 = vld [vmem:[#allocation2 + $0xf0] sm:$0xff]
        %v3248 = vld [vmem:[#allocation2 + $0xf8] sm:$0xff]
        %v3249 = vld [vmem:[#allocation2 + $0x100] sm:$0xff]
        %v3250 = vld [vmem:[#allocation2 + $0x120] sm:$0xff]
        %v3251 = vld [vmem:[#allocation2 + $0x128] sm:$0xff]
        %v3252 = vld [vmem:[#allocation2 + $0x130] sm:$0xff]
        %v3253 = vld [vmem:[#allocation2 + $0x138] sm:$0xff]
        %v3254 = vld [vmem:[#allocation2 + $0x140] sm:$0xff]
        %v3255 = vld [vmem:[#allocation2 + $0x148] sm:$0xff]
        %v3256 = vld [vmem:[#allocation2 + $0x168] sm:$0xff]
        %v3257 = vld [vmem:[#allocation2 + $0x170] sm:$0xff]
        %v3258 = vld [vmem:[#allocation2 + $0x178] sm:$0xff]
        %v3259 = vld [vmem:[#allocation2 + $0x180] sm:$0xff]
        %v3260 = vld [vmem:[#allocation2 + $0x188] sm:$0xff]
        %v3261 = vld [vmem:[#allocation2 + $0x190] sm:$0xff]
        %v3262 = vld [vmem:[#allocation2 + $0x1b0] sm:$0xff]
        %v3263 = vld [vmem:[#allocation2 + $0x1b8] sm:$0xff]
        %v3264 = vld [vmem:[#allocation2 + $0x1c0] sm:$0xff]
        %v3265 = vld [vmem:[#allocation2 + $0x1c8] sm:$0xff]
        %v3266 = vld [vmem:[#allocation2 + $0x1d0] sm:$0xff]
        %v3267 = vld [vmem:[#allocation2 + $0x1d8] sm:$0xff]
        %v3268 = vld [vmem:[#allocation2 + $0x1f8] sm:$0xff]
        %v3269 = vld [vmem:[#allocation2 + $0x200] sm:$0xff]
        %v3270 = vld [vmem:[#allocation2 + $0x208] sm:$0xff]
        %v3271 = vld [vmem:[#allocation2 + $0x210] sm:$0xff]
        %v3272 = vld [vmem:[#allocation2 + $0x218] sm:$0xff]
        %v3273 = vld [vmem:[#allocation2 + $0x220] sm:$0xff]
        %v3274 = vld [vmem:[#allocation2 + $0x240] sm:$0xff]
        %v3275 = vld [vmem:[#allocation2 + $0x248] sm:$0xff]
        %v3276 = vld [vmem:[#allocation2 + $0x250] sm:$0xff]
        %v3277 = vld [vmem:[#allocation2 + $0x258] sm:$0xff]
        %v3278 = vld [vmem:[#allocation2 + $0x260] sm:$0xff]
        %v3279 = vld [vmem:[#allocation2 + $0x268] sm:$0xff]
        %v3280 = vld [vmem:[#allocation2 + $0x288] sm:$0xff]
        %v3281 = vld [vmem:[#allocation2 + $0x290] sm:$0xff]
        %v3282 = vld [vmem:[#allocation2 + $0x298] sm:$0xff]
        %v3283 = vld [vmem:[#allocation2 + $0x2a0] sm:$0xff]
        %v3284 = vld [vmem:[#allocation2 + $0x2a8] sm:$0xff]
        %v3285 = vld [vmem:[#allocation2 + $0x2b0] sm:$0xff]
        %v3286 = vld [vmem:[#allocation2 + $0x2d0] sm:$0xff]
        %v3287 = vld [vmem:[#allocation2 + $0x2d8] sm:$0xff]
        %v3288 = vld [vmem:[#allocation2 + $0x2e0] sm:$0xff]
        %v3289 = vld [vmem:[#allocation2 + $0x2e8] sm:$0xff]
        %v3290 = vld [vmem:[#allocation2 + $0x2f0] sm:$0xff]
        %v3291 = vld [vmem:[#allocation2 + $0x2f8] sm:$0xff]
        %v3292 = vld [vmem:[#allocation2 + $0x318] sm:$0xff]
        %v3293 = vld [vmem:[#allocation2 + $0x320] sm:$0xff]
        %v3294 = vld [vmem:[#allocation2 + $0x328] sm:$0xff]
        %v3295 = vld [vmem:[#allocation2 + $0x330] sm:$0xff]
        %v3296 = vld [vmem:[#allocation2 + $0x338] sm:$0xff]
        %v3297 = vld [vmem:[#allocation2 + $0x340] sm:$0xff]
        %v3298 = vld [vmem:[#allocation2 + $0x360] sm:$0xff]
        %v3299 = vld [vmem:[#allocation2 + $0x368] sm:$0xff]
        %v3300 = vld [vmem:[#allocation2 + $0x370] sm:$0xff]
        %v3301 = vld [vmem:[#allocation2 + $0x378] sm:$0xff]
        %v3302 = vld [vmem:[#allocation2 + $0x380] sm:$0xff]
        %v3303 = vld [vmem:[#allocation2 + $0x388] sm:$0xff]
        %v3304 = vld [vmem:[#allocation2 + $0x3a8] sm:$0xff]
        %v3305 = vld [vmem:[#allocation2 + $0x3b0] sm:$0xff]
        %v3306 = vld [vmem:[#allocation2 + $0x3b8] sm:$0xff]
        %v3307 = vld [vmem:[#allocation2 + $0x3c0] sm:$0xff]
        %v3308 = vld [vmem:[#allocation2 + $0x3c8] sm:$0xff]
        %v3309 = vld [vmem:[#allocation2 + $0x3d0] sm:$0xff]
        %v3310 = vld [vmem:[#allocation2 + $0x3f0] sm:$0xff]
        %v3311 = vld [vmem:[#allocation2 + $0x3f8] sm:$0xff]
        %v3312 = vld [vmem:[#allocation2 + $0x400] sm:$0xff]
        %v3313 = vld [vmem:[#allocation2 + $0x408] sm:$0xff]
        %v3314 = vld [vmem:[#allocation2 + $0x410] sm:$0xff]
        %v3315 = vld [vmem:[#allocation2 + $0x418] sm:$0xff]
        %v3316 = vld [vmem:[#allocation2 + $0x438] sm:$0xff]
        %v3317 = vld [vmem:[#allocation2 + $0x440] sm:$0xff]
        %v3318 = vld [vmem:[#allocation2 + $0x448] sm:$0xff]
        %v3319 = vld [vmem:[#allocation2 + $0x450] sm:$0xff]
        %v3320 = vld [vmem:[#allocation2 + $0x458] sm:$0xff]
        %v3321 = vld [vmem:[#allocation2 + $0x460] sm:$0xff]
        %v3322 = vld [vmem:[#allocation2 + $0x480] sm:$0xff]
        %v3323 = vld [vmem:[#allocation2 + $0x488] sm:$0xff]
        %v3324 = vld [vmem:[#allocation2 + $0x490] sm:$0xff]
        %v3325 = vld [vmem:[#allocation2 + $0x498] sm:$0xff]
        %v3326 = vld [vmem:[#allocation2 + $0x4a0] sm:$0xff]
        %v3327 = vld [vmem:[#allocation2 + $0x4a8] sm:$0xff]
        %v3328 = vld [vmem:[#allocation2 + $0x4c8] sm:$0xff]
        %v3329 = vld [vmem:[#allocation2 + $0x4d0] sm:$0xff]
        %v3330 = vld [vmem:[#allocation2 + $0x4d8] sm:$0xff]
        %v3331 = vld [vmem:[#allocation2 + $0x4e0] sm:$0xff]
        %v3332 = vld [vmem:[#allocation2 + $0x4e8] sm:$0xff]
        %v3333 = vld [vmem:[#allocation2 + $0x4f0] sm:$0xff]
        %v3334 = vld [vmem:[%s2] sm:$0xff]
        %v3335 = vld [vmem:[%s2 + $0x8] sm:$0xff]
        %v3336 = vld [vmem:[%s2 + $0x10] sm:$0xff]
        %v3337 = vld [vmem:[%s2 + $0x18] sm:$0xff]
        %v3338 = vld [vmem:[%s2 + $0x20] sm:$0xff]
        %v3339 = vld [vmem:[%s2 + $0x28] sm:$0xff]
        %v3340 = vld [vmem:[%s2 + $0x30] sm:$0xff]
        %v3341 = vld [vmem:[%s2 + $0x38] sm:$0xff]
        %v3342 = vld [vmem:[%s2 + $0x40] sm:$0xff]
        %v3343 = vld [vmem:[%s2 + $0x48] sm:$0xff]
        %v3344 = vld [vmem:[%s2 + $0x50] sm:$0xff]
        %v3345 = vld [vmem:[%s2 + $0x58] sm:$0xff]
        %v3346 = vld [vmem:[%s2 + $0x60] sm:$0xff]
        %v3347 = vld [vmem:[%s2 + $0x68] sm:$0xff]
        %v3348 = vld [vmem:[%s2 + $0x70] sm:$0xff]
        %v3349 = vld [vmem:[%s2 + $0x78] sm:$0xff]
        %v3350 = vld [vmem:[%s2 + $0x80] sm:$0xff]
        %v3351 = vld [vmem:[%s2 + $0x88] sm:$0xff]
        %v3352 = vld [vmem:[%s2 + $0x90] sm:$0xff]
        %v3353 = vld [vmem:[%s2 + $0x98] sm:$0xff]
        %v3354 = vld [vmem:[%s2 + $0xa0] sm:$0xff]
        %v3355 = vld [vmem:[%s2 + $0xa8] sm:$0xff]
        %v3356 = vld [vmem:[%s2 + $0xb0] sm:$0xff]
        %v3357 = vld [vmem:[%s2 + $0xb8] sm:$0xff]
        %v3358 = vld [vmem:[%s2 + $0xc0] sm:$0xff]
        %v3359 = vld [vmem:[%s2 + $0xc8] sm:$0xff]
        %v3360 = vld [vmem:[%s2 + $0xd0] sm:$0xff]
        %v3361 = vld [vmem:[%s2 + $0xd8] sm:$0xff]
        %v3362 = vld [vmem:[%s2 + $0xe0] sm:$0xff]
        %v3363 = vld [vmem:[%s2 + $0xe8] sm:$0xff]
        %v3364 = vld [vmem:[%s2 + $0xf0] sm:$0xff]
        %v3365 = vld [vmem:[%s2 + $0xf8] sm:$0xff]
        %v3366 = vld [vmem:[%s2 + $0x100] sm:$0xff]
        %v3367 = vld [vmem:[%s2 + $0x108] sm:$0xff]
        %v3368 = vld [vmem:[%s2 + $0x110] sm:$0xff]
        %v3369 = vld [vmem:[%s2 + $0x118] sm:$0xff]
        %v3370 = vld [vmem:[%s2 + $0x120] sm:$0xff]
        %v3371 = vld [vmem:[%s2 + $0x128] sm:$0xff]
        %v3372 = vld [vmem:[%s2 + $0x130] sm:$0xff]
        %v3373 = vld [vmem:[%s2 + $0x138] sm:$0xff]
        %v3374 = vld [vmem:[%s2 + $0x140] sm:$0xff]
        %v3375 = vld [vmem:[%s2 + $0x148] sm:$0xff]
        %v3376 = vld [vmem:[%s2 + $0x150] sm:$0xff]
        %v3377 = vld [vmem:[%s2 + $0x158] sm:$0xff]
        %v3378 = vld [vmem:[%s2 + $0x160] sm:$0xff]
        %v3379 = vld [vmem:[%s2 + $0x168] sm:$0xff]
        %v3380 = vld [vmem:[%s2 + $0x170] sm:$0xff]
        %v3381 = vld [vmem:[%s2 + $0x178] sm:$0xff]
        %v3382 = vld [vmem:[%s2 + $0x180] sm:$0xff]
        %v3383 = vld [vmem:[%s2 + $0x188] sm:$0xff]
        %v3384 = vld [vmem:[%s2 + $0x190] sm:$0xff]
        %v3385 = vld [vmem:[%s2 + $0x198] sm:$0xff]
        %v3386 = vld [vmem:[%s2 + $0x1a0] sm:$0xff]
        %v3387 = vld [vmem:[%s2 + $0x1a8] sm:$0xff]
        %v3388 = vld [vmem:[%s2 + $0x1b0] sm:$0xff]
        %v3389 = vld [vmem:[%s2 + $0x1b8] sm:$0xff]
        %v3390 = vld [vmem:[%s2 + $0x1c0] sm:$0xff]
        %v3391 = vld [vmem:[%s2 + $0x1c8] sm:$0xff]
        %v3392 = vld [vmem:[%s2 + $0x1d0] sm:$0xff]
        %v3393 = vld [vmem:[%s2 + $0x1d8] sm:$0xff]
        %v3394 = vld [vmem:[%s2 + $0x1e0] sm:$0xff]
        %v3395 = vld [vmem:[%s2 + $0x1e8] sm:$0xff]
        %v3396 = vld [vmem:[%s2 + $0x1f0] sm:$0xff]
        %v3397 = vld [vmem:[%s2 + $0x1f8] sm:$0xff]
        %v3398 = vld [vmem:[%s2 + $0x200] sm:$0xff]
        %v3399 = vld [vmem:[%s2 + $0x208] sm:$0xff]
        %v3400 = vld [vmem:[%s2 + $0x210] sm:$0xff]
        %v3401 = vld [vmem:[%s2 + $0x218] sm:$0xff]
        %v3402 = vld [vmem:[%s2 + $0x220] sm:$0xff]
        %v3403 = vld [vmem:[%s2 + $0x228] sm:$0xff]
        %v3404 = vld [vmem:[%s2 + $0x230] sm:$0xff]
        %v3405 = vld [vmem:[%s2 + $0x238] sm:$0xff]
        %v3406 = vld [vmem:[%s2 + $0x240] sm:$0xff]
        %v3407 = vld [vmem:[%s2 + $0x248] sm:$0xff]
        %v3408 = vld [vmem:[%s2 + $0x250] sm:$0xff]
        %v3409 = vld [vmem:[%s2 + $0x258] sm:$0xff]
        %v3410 = vld [vmem:[%s2 + $0x260] sm:$0xff]
        %v3411 = vld [vmem:[%s2 + $0x268] sm:$0xff]
        %v3412 = vld [vmem:[%s2 + $0x270] sm:$0xff]
        %v3413 = vld [vmem:[%s2 + $0x278] sm:$0xff]
        %v3414 = vld [vmem:[%s2 + $0x280] sm:$0xff]
        %v3415 = vld [vmem:[%s2 + $0x288] sm:$0xff]
        %v3416 = vld [vmem:[%s2 + $0x290] sm:$0xff]
        %v3417 = vld [vmem:[%s2 + $0x298] sm:$0xff]
        %v3418 = vld [vmem:[%s2 + $0x2a0] sm:$0xff]
        %v3419 = vld [vmem:[%s2 + $0x2a8] sm:$0xff]
        %v3420 = vld [vmem:[%s2 + $0x2b0] sm:$0xff]
        %v3421 = vld [vmem:[%s2 + $0x2b8] sm:$0xff]
        %v3422 = vld [vmem:[%s2 + $0x2c0] sm:$0xff]
        %v3423 = vld [vmem:[%s2 + $0x2c8] sm:$0xff]
        %v3424 = vld [vmem:[%s2 + $0x2d0] sm:$0xff]
        %v3425 = vld [vmem:[%s2 + $0x2d8] sm:$0xff]
        %v3426 = vld [vmem:[%s2 + $0x2e0] sm:$0xff]
        %v3427 = vld [vmem:[%s2 + $0x2e8] sm:$0xff]
        %v3428 = vld [vmem:[%s2 + $0x2f0] sm:$0xff]
        %v3429 = vld [vmem:[%s2 + $0x2f8] sm:$0xff]
        %v3430 = vld [vmem:[%s2 + $0x300] sm:$0xff]
        %v3431 = vld [vmem:[%s2 + $0x308] sm:$0xff]
        %v3432 = vld [vmem:[%s2 + $0x310] sm:$0xff]
        %v3433 = vld [vmem:[%s2 + $0x318] sm:$0xff]
        %v3434 = vld [vmem:[%s2 + $0x320] sm:$0xff]
        %v3435 = vld [vmem:[%s2 + $0x328] sm:$0xff]
        %v3436 = vld [vmem:[%s2 + $0x330] sm:$0xff]
        %v3437 = vld [vmem:[%s2 + $0x338] sm:$0xff]
        %v3438 = vld [vmem:[%s2 + $0x340] sm:$0xff]
        %v3439 = vld [vmem:[%s2 + $0x348] sm:$0xff]
        %v3440 = vld [vmem:[%s2 + $0x350] sm:$0xff]
        %v3441 = vld [vmem:[%s2 + $0x358] sm:$0xff]
        %v3442 = vld [vmem:[%s2 + $0x360] sm:$0xff]
        %v3443 = vld [vmem:[%s2 + $0x368] sm:$0xff]
        %v3444 = vld [vmem:[%s2 + $0x370] sm:$0xff]
        %v3445 = vld [vmem:[%s2 + $0x378] sm:$0xff]
        %v3446 = vld [vmem:[%s2 + $0x380] sm:$0xff]
        %v3447 = vld [vmem:[%s2 + $0x388] sm:$0xff]
        %v3448 = vld [vmem:[%s2 + $0x390] sm:$0xff]
        %v3449 = vld [vmem:[%s2 + $0x398] sm:$0xff]
        %v3450 = vld [vmem:[%s2 + $0x3a0] sm:$0xff]
        %v3451 = vld [vmem:[%s2 + $0x3a8] sm:$0xff]
        %v3452 = vld [vmem:[%s2 + $0x3b0] sm:$0xff]
        %v3453 = vld [vmem:[%s2 + $0x3b8] sm:$0xff]
        %v3454 = vld [vmem:[%s2 + $0x3c0] sm:$0xff]
        %v3455 = vld [vmem:[%s2 + $0x3c8] sm:$0xff]
        %v3456 = vld [vmem:[%s2 + $0x3d0] sm:$0xff]
        %v3457 = vld [vmem:[%s2 + $0x3d8] sm:$0xff]
        %v3458 = vld [vmem:[%s2 + $0x3e0] sm:$0xff]
        %v3459 = vld [vmem:[%s2 + $0x3e8] sm:$0xff]
        %v3460 = vld [vmem:[%s2 + $0x3f0] sm:$0xff]
        %v3461 = vld [vmem:[%s2 + $0x3f8] sm:$0xff]
        %v3462 = vld [vmem:[%s2 + $0x400] sm:$0xff]
        %v3463 = vld [vmem:[%s2 + $0x408] sm:$0xff]
        %v3464 = vld [vmem:[%s2 + $0x410] sm:$0xff]
        %v3465 = vld [vmem:[%s2 + $0x418] sm:$0xff]
        %v3466 = vld [vmem:[%s2 + $0x420] sm:$0xff]
        %v3467 = vld [vmem:[%s2 + $0x428] sm:$0xff]
        %v3468 = vld [vmem:[%s2 + $0x430] sm:$0xff]
        %v3469 = vld [vmem:[%s2 + $0x438] sm:$0xff]
        %v3470 = vld [vmem:[%s2 + $0x440] sm:$0xff]
        %v3471 = vld [vmem:[%s2 + $0x448] sm:$0xff]
        %v3472 = vld [vmem:[%s2 + $0x450] sm:$0xff]
        %v3473 = vld [vmem:[%s2 + $0x458] sm:$0xff]
        %v3474 = vld [vmem:[%s2 + $0x460] sm:$0xff]
        %v3475 = vld [vmem:[%s2 + $0x468] sm:$0xff]
        %v3476 = vld [vmem:[%s2 + $0x470] sm:$0xff]
        %v3477 = vld [vmem:[%s2 + $0x478] sm:$0xff]
        %v3478 = vld [vmem:[%s2 + $0x480] sm:$0xff]
        %v3479 = vld [vmem:[%s2 + $0x488] sm:$0xff]
        %v3480 = vld [vmem:[%s2 + $0x490] sm:$0xff]
        %v3481 = vld [vmem:[%s2 + $0x498] sm:$0xff]
        %v3482 = vld [vmem:[%s2 + $0x4a0] sm:$0xff]
        %v3483 = vld [vmem:[%s2 + $0x4a8] sm:$0xff]
        %v3484 = vld [vmem:[%s2 + $0x4b0] sm:$0xff]
        %v3485 = vld [vmem:[%s2 + $0x4b8] sm:$0xff]
        %v3486 = vld [vmem:[%s2 + $0x4c0] sm:$0xff]
        %v3487 = vld [vmem:[%s2 + $0x4c8] sm:$0xff]
        %v3488 = vld [vmem:[%s2 + $0x4d0] sm:$0xff]
        %v3489 = vld [vmem:[%s2 + $0x4d8] sm:$0xff]
        %v3490 = vld [vmem:[%s2 + $0x4e0] sm:$0xff]
        %v3491 = vld [vmem:[%s2 + $0x4e8] sm:$0xff]
        %v3492 = vld [vmem:[%s2 + $0x4f0] sm:$0xff]
        %v3493 = vld [vmem:[%s2 + $0x4f8] sm:$0xff]
        %v3494 = vld [vmem:[%s2 + $0x500] sm:$0xff]
        %v3495 = vld [vmem:[%s2 + $0x508] sm:$0xff]
        %v3496 = vld [vmem:[%s2 + $0x510] sm:$0xff]
        %v3497 = vld [vmem:[%s2 + $0x518] sm:$0xff]
        %v3498 = vld [vmem:[%s2 + $0x520] sm:$0xff]
        %v3499 = vld [vmem:[%s2 + $0x528] sm:$0xff]
        %v3500 = vld [vmem:[%s2 + $0x530] sm:$0xff]
        %v3501 = vld [vmem:[%s2 + $0x538] sm:$0xff]
        %v3502 = vld [vmem:[%s2 + $0x540] sm:$0xff]
        %v3503 = vld [vmem:[%s2 + $0x548] sm:$0xff]
        %v3504 = vld [vmem:[%s2 + $0x550] sm:$0xff]
        %v3505 = vld [vmem:[%s2 + $0x558] sm:$0xff]
        %v3506 = vld [vmem:[%s2 + $0x560] sm:$0xff]
        %v3507 = vld [vmem:[%s2 + $0x568] sm:$0xff]
        %v3508 = vld [vmem:[%s2 + $0x570] sm:$0xff]
        %v3509 = vld [vmem:[%s2 + $0x578] sm:$0xff]
        %v3510 = vld [vmem:[%s2 + $0x580] sm:$0xff]
        %v3511 = vld [vmem:[%s2 + $0x588] sm:$0xff]
        %v3512 = vld [vmem:[%s2 + $0x590] sm:$0xff]
        %v3513 = vld [vmem:[%s2 + $0x598] sm:$0xff]
        %v3514 = vld [vmem:[%s2 + $0x5a0] sm:$0xff]
        %v3515 = vld [vmem:[%s2 + $0x5a8] sm:$0xff]
        %v3516 = vld [vmem:[%s2 + $0x5b0] sm:$0xff]
        %v3517 = vld [vmem:[%s2 + $0x5b8] sm:$0xff]
        %v3518 = vld [vmem:[%s2 + $0x5c0] sm:$0xff]
        %v3519 = vld [vmem:[%s2 + $0x5c8] sm:$0xff]
        %v3520 = vld [vmem:[%s2 + $0x5d0] sm:$0xff]
        %v3521 = vld [vmem:[%s2 + $0x5d8] sm:$0xff]
        %v3522 = vld [vmem:[%s2 + $0x5e0] sm:$0xff]
        %v3523 = vld [vmem:[%s2 + $0x5e8] sm:$0xff]
        %v3524 = vld [vmem:[%s2 + $0x5f0] sm:$0xff]
        %v3525 = vld [vmem:[%s2 + $0x5f8] sm:$0xff]
        %v3526 = vld [vmem:[%s2 + $0x600] sm:$0xff]
        %v3527 = vld [vmem:[%s2 + $0x608] sm:$0xff]
        %v3528 = vld [vmem:[%s2 + $0x610] sm:$0xff]
        %v3529 = vld [vmem:[%s2 + $0x618] sm:$0xff]
        %v3530 = vld [vmem:[%s2 + $0x620] sm:$0xff]
        %v3531 = vld [vmem:[%s2 + $0x628] sm:$0xff]
        %v3532 = vld [vmem:[%s2 + $0x630] sm:$0xff]
        %v3533 = vld [vmem:[%s2 + $0x638] sm:$0xff]
        %v3534 = vld [vmem:[%s2 + $0x640] sm:$0xff]
        %v3535 = vld [vmem:[%s2 + $0x648] sm:$0xff]
        %v3536 = vld [vmem:[%s2 + $0x650] sm:$0xff]
        %v3537 = vld [vmem:[%s2 + $0x658] sm:$0xff]
        %v3538 = vld [vmem:[%s2 + $0x660] sm:$0xff]
        %v3539 = vld [vmem:[%s2 + $0x668] sm:$0xff]
        %v3540 = vld [vmem:[%s2 + $0x670] sm:$0xff]
        %v3541 = vld [vmem:[%s2 + $0x678] sm:$0xff]
        %v3542 = vld [vmem:[%s2 + $0x680] sm:$0xff]
        %v3543 = vld [vmem:[%s2 + $0x688] sm:$0xff]
        %v3544 = vld [vmem:[%s2 + $0x690] sm:$0xff]
        %v3545 = vld [vmem:[%s2 + $0x698] sm:$0xff]
        %v3546 = vld [vmem:[%s2 + $0x6a0] sm:$0xff]
        %v3547 = vld [vmem:[%s2 + $0x6a8] sm:$0xff]
        %v3548 = vld [vmem:[%s2 + $0x6b0] sm:$0xff]
        %v3549 = vld [vmem:[%s2 + $0x6b8] sm:$0xff]
        %v3550 = vld [vmem:[%s2 + $0x6c0] sm:$0xff]
        %v3551 = vld [vmem:[%s2 + $0x6c8] sm:$0xff]
        %v3552 = vld [vmem:[%s2 + $0x6d0] sm:$0xff]
        %v3553 = vld [vmem:[%s2 + $0x6d8] sm:$0xff]
        %v3554 = vld [vmem:[%s2 + $0x6e0] sm:$0xff]
        %v3555 = vld [vmem:[%s2 + $0x6e8] sm:$0xff]
        %v3556 = vld [vmem:[%s2 + $0x6f0] sm:$0xff]
        %v3557 = vld [vmem:[%s2 + $0x6f8] sm:$0xff]
        %v3558 = vld [vmem:[%s2 + $0x700] sm:$0xff]
        %v3559 = vld [vmem:[%s2 + $0x708] sm:$0xff]
        %v3560 = vld [vmem:[%s2 + $0x710] sm:$0xff]
        %v3561 = vld [vmem:[%s2 + $0x718] sm:$0xff]
        %v3562 = vld [vmem:[%s2 + $0x720] sm:$0xff]
        %v3563 = vld [vmem:[%s2 + $0x728] sm:$0xff]
        %v3564 = vld [vmem:[%s2 + $0x730] sm:$0xff]
        %v3565 = vld [vmem:[%s2 + $0x738] sm:$0xff]
        %v3566 = vld [vmem:[%s2 + $0x740] sm:$0xff]
        %v3567 = vld [vmem:[%s2 + $0x748] sm:$0xff]
        %v3568 = vld [vmem:[%s2 + $0x750] sm:$0xff]
        %v3569 = vld [vmem:[%s2 + $0x758] sm:$0xff]
        %v3570 = vld [vmem:[%s2 + $0x760] sm:$0xff]
        %v3571 = vld [vmem:[%s2 + $0x768] sm:$0xff]
        %v3572 = vld [vmem:[%s2 + $0x770] sm:$0xff]
        %v3573 = vld [vmem:[%s2 + $0x778] sm:$0xff]
        %v3574 = vld [vmem:[%s2 + $0x780] sm:$0xff]
        %v3575 = vld [vmem:[%s2 + $0x788] sm:$0xff]
        %v3576 = vld [vmem:[%s2 + $0x790] sm:$0xff]
        %v3577 = vld [vmem:[%s2 + $0x798] sm:$0xff]
        %v3578 = vld [vmem:[%s2 + $0x7a0] sm:$0xff]
        %v3579 = vld [vmem:[%s2 + $0x7a8] sm:$0xff]
        %v3580 = vld [vmem:[%s2 + $0x7b0] sm:$0xff]
        %v3581 = vld [vmem:[%s2 + $0x7b8] sm:$0xff]
        %v3582 = vld [vmem:[%s2 + $0x7c0] sm:$0xff]
        %v3583 = vld [vmem:[%s2 + $0x7c8] sm:$0xff]
        %v3584 = vld [vmem:[%s2 + $0x7d0] sm:$0xff]
        %v3585 = vld [vmem:[%s2 + $0x7d8] sm:$0xff]
        %v3586 = vld [vmem:[%s2 + $0x7e0] sm:$0xff]
        %v3587 = vld [vmem:[%s2 + $0x7e8] sm:$0xff]
        %v3588 = vld [vmem:[%s2 + $0x7f0] sm:$0xff]
        %v3589 = vld [vmem:[%s2 + $0x7f8] sm:$0xff]
        %v3590 = vld [vmem:[%s2 + $0x800] sm:$0xff]
        %v3591 = vld [vmem:[%s2 + $0x808] sm:$0xff]
        %v3592 = vld [vmem:[%s2 + $0x810] sm:$0xff]
        %v3593 = vld [vmem:[%s2 + $0x818] sm:$0xff]
        %v3594 = vld [vmem:[%s2 + $0x820] sm:$0xff]
        %v3595 = vld [vmem:[%s2 + $0x828] sm:$0xff]
        %v3596 = vld [vmem:[%s2 + $0x830] sm:$0xff]
        %v3597 = vld [vmem:[%s2 + $0x838] sm:$0xff]
        %v3598 = vld [vmem:[%s2 + $0x840] sm:$0xff]
        %v3599 = vld [vmem:[%s2 + $0x848] sm:$0xff]
        %v3600 = vld [vmem:[%s2 + $0x850] sm:$0xff]
        %v3601 = vld [vmem:[%s2 + $0x858] sm:$0xff]
        %v3602 = vld [vmem:[%s2 + $0x860] sm:$0xff]
        %v3603 = vld [vmem:[%s2 + $0x868] sm:$0xff]
        %v3604 = vld [vmem:[%s2 + $0x870] sm:$0xff]
        %v3605 = vld [vmem:[%s2 + $0x878] sm:$0xff]
        %v3606 = vld [vmem:[%s2 + $0x880] sm:$0xff]
        %v3607 = vld [vmem:[%s2 + $0x888] sm:$0xff]
        %v3608 = vld [vmem:[%s2 + $0x890] sm:$0xff]
        %v3609 = vld [vmem:[%s2 + $0x898] sm:$0xff]
        %v3610 = vld [vmem:[%s2 + $0x8a0] sm:$0xff]
        %v3611 = vld [vmem:[%s2 + $0x8a8] sm:$0xff]
        %v3612 = vld [vmem:[%s2 + $0x8b0] sm:$0xff]
        %v3613 = vld [vmem:[%s2 + $0x8b8] sm:$0xff]
        %v3614 = vld [vmem:[%s2 + $0x8c0] sm:$0xff]
        %v3615 = vld [vmem:[%s2 + $0x8c8] sm:$0xff]
        %v3616 = vld [vmem:[%s2 + $0x8d0] sm:$0xff]
        %v3617 = vld [vmem:[%s2 + $0x8d8] sm:$0xff]
        %v3618 = vld [vmem:[%s2 + $0x8e0] sm:$0xff]
        %v3619 = vld [vmem:[%s2 + $0x8e8] sm:$0xff]
        %v3620 = vld [vmem:[%s2 + $0x8f0] sm:$0xff]
        %v3621 = vld [vmem:[%s2 + $0x8f8] sm:$0xff]
        %v3622 = vlaneseq
        %v3623 = vshrl.u32 %v3622, 7
        %v3624 = vsub.s32 2, %v3623
        %v3625 = vrot.slane %v224, %v3624
        %v3626 = vlaneseq
        %v3627 = vshrl.u32 %v3626, 7
        %v3628 = vsub.s32 2, %v3627
        %v3629 = vrot.slane %v225, %v3628
        %v3918 = vunpack.c.l.b16 %v3334
        %v3919 = vunpack.c.h.b16 %v3334
        %v3920 = vunpack.c.l.b16 %v3335
        %v3921 = vunpack.c.h.b16 %v3335
        %v3922 = vunpack.c.l.b16 %v3336
        %v3923 = vunpack.c.h.b16 %v3336
        %v3924 = vunpack.c.l.b16 %v3337
        %v3925 = vunpack.c.h.b16 %v3337
        %v3926 = vunpack.c.l.b16 %v3338
        %v3927 = vunpack.c.h.b16 %v3338
        %v3928 = vunpack.c.l.b16 %v3339
        %v3929 = vunpack.c.h.b16 %v3339
        %v3930 = vunpack.c.l.b16 %v3340
        %v3931 = vunpack.c.h.b16 %v3340
        %v3932 = vunpack.c.l.b16 %v3341
        %v3933 = vunpack.c.h.b16 %v3341
        %v3934 = vunpack.c.l.b16 %v3342
        %v3935 = vunpack.c.h.b16 %v3342
        %v3936 = vunpack.c.l.b16 %v3343
        %v3937 = vunpack.c.h.b16 %v3343
        %v3938 = vunpack.c.l.b16 %v3344
        %v3939 = vunpack.c.h.b16 %v3344
        %v3940 = vunpack.c.l.b16 %v3345
        %v3941 = vunpack.c.h.b16 %v3345
        %v3942 = vunpack.c.l.b16 %v3346
        %v3943 = vunpack.c.h.b16 %v3346
        %v3944 = vunpack.c.l.b16 %v3347
        %v3945 = vunpack.c.h.b16 %v3347
        %v3946 = vunpack.c.l.b16 %v3348
        %v3947 = vunpack.c.h.b16 %v3348
        %v3948 = vunpack.c.l.b16 %v3349
        %v3949 = vunpack.c.h.b16 %v3349
        %v3950 = vunpack.c.l.b16 %v3350
        %v3951 = vunpack.c.h.b16 %v3350
        %v3952 = vunpack.c.l.b16 %v3351
        %v3953 = vunpack.c.h.b16 %v3351
        %v3954 = vunpack.c.l.b16 %v3352
        %v3955 = vunpack.c.h.b16 %v3352
        %v3956 = vunpack.c.l.b16 %v3353
        %v3957 = vunpack.c.h.b16 %v3353
        %v3958 = vunpack.c.l.b16 %v3354
        %v3959 = vunpack.c.h.b16 %v3354
        %v3960 = vunpack.c.l.b16 %v3355
        %v3961 = vunpack.c.h.b16 %v3355
        %v3962 = vunpack.c.l.b16 %v3356
        %v3963 = vunpack.c.h.b16 %v3356
        %v3964 = vunpack.c.l.b16 %v3357
        %v3965 = vunpack.c.h.b16 %v3357
        %v3966 = vunpack.c.l.b16 %v3358
        %v3967 = vunpack.c.h.b16 %v3358
        %v3968 = vunpack.c.l.b16 %v3359
        %v3969 = vunpack.c.h.b16 %v3359
        %v3970 = vunpack.c.l.b16 %v3360
        %v3971 = vunpack.c.h.b16 %v3360
        %v3972 = vunpack.c.l.b16 %v3361
        %v3973 = vunpack.c.h.b16 %v3361
        %v3974 = vunpack.c.l.b16 %v3362
        %v3975 = vunpack.c.h.b16 %v3362
        %v3976 = vunpack.c.l.b16 %v3363
        %v3977 = vunpack.c.h.b16 %v3363
        %v3978 = vunpack.c.l.b16 %v3364
        %v3979 = vunpack.c.h.b16 %v3364
        %v3980 = vunpack.c.l.b16 %v3365
        %v3981 = vunpack.c.h.b16 %v3365
        %v3982 = vunpack.c.l.b16 %v3366
        %v3983 = vunpack.c.h.b16 %v3366
        %v3984 = vunpack.c.l.b16 %v3367
        %v3985 = vunpack.c.h.b16 %v3367
        %v3986 = vunpack.c.l.b16 %v3368
        %v3987 = vunpack.c.h.b16 %v3368
        %v3988 = vunpack.c.l.b16 %v3369
        %v3989 = vunpack.c.h.b16 %v3369
        %v3990 = vunpack.c.l.b16 %v3370
        %v3991 = vunpack.c.h.b16 %v3370
        %v3992 = vunpack.c.l.b16 %v3371
        %v3993 = vunpack.c.h.b16 %v3371
        %v3994 = vunpack.c.l.b16 %v3372
        %v3995 = vunpack.c.h.b16 %v3372
        %v3996 = vunpack.c.l.b16 %v3373
        %v3997 = vunpack.c.h.b16 %v3373
        %v3998 = vunpack.c.l.b16 %v3374
        %v3999 = vunpack.c.h.b16 %v3374
        %v4000 = vunpack.c.l.b16 %v3375
        %v4001 = vunpack.c.h.b16 %v3375
        %v4002 = vunpack.c.l.b16 %v3376
        %v4003 = vunpack.c.h.b16 %v3376
        %v4004 = vunpack.c.l.b16 %v3377
        %v4005 = vunpack.c.h.b16 %v3377
        %v4006 = vunpack.c.l.b16 %v3378
        %v4007 = vunpack.c.h.b16 %v3378
        %v4008 = vunpack.c.l.b16 %v3379
        %v4009 = vunpack.c.h.b16 %v3379
        %v4010 = vunpack.c.l.b16 %v3380
        %v4011 = vunpack.c.h.b16 %v3380
        %v4012 = vunpack.c.l.b16 %v3381
        %v4013 = vunpack.c.h.b16 %v3381
        %v4014 = vunpack.c.l.b16 %v3382
        %v4015 = vunpack.c.h.b16 %v3382
        %v4016 = vunpack.c.l.b16 %v3383
        %v4017 = vunpack.c.h.b16 %v3383
        %v4018 = vunpack.c.l.b16 %v3384
        %v4019 = vunpack.c.h.b16 %v3384
        %v4020 = vunpack.c.l.b16 %v3385
        %v4021 = vunpack.c.h.b16 %v3385
        %v4022 = vunpack.c.l.b16 %v3386
        %v4023 = vunpack.c.h.b16 %v3386
        %v4024 = vunpack.c.l.b16 %v3387
        %v4025 = vunpack.c.h.b16 %v3387
        %v4026 = vunpack.c.l.b16 %v3388
        %v4027 = vunpack.c.h.b16 %v3388
        %v4028 = vunpack.c.l.b16 %v3389
        %v4029 = vunpack.c.h.b16 %v3389
        %v4030 = vunpack.c.l.b16 %v3390
        %v4031 = vunpack.c.h.b16 %v3390
        %v4032 = vunpack.c.l.b16 %v3391
        %v4033 = vunpack.c.h.b16 %v3391
        %v4034 = vunpack.c.l.b16 %v3392
        %v4035 = vunpack.c.h.b16 %v3392
        %v4036 = vunpack.c.l.b16 %v3393
        %v4037 = vunpack.c.h.b16 %v3393
        %v4038 = vunpack.c.l.b16 %v3394
        %v4039 = vunpack.c.h.b16 %v3394
        %v4040 = vunpack.c.l.b16 %v3395
        %v4041 = vunpack.c.h.b16 %v3395
        %v4042 = vunpack.c.l.b16 %v3396
        %v4043 = vunpack.c.h.b16 %v3396
        %v4044 = vunpack.c.l.b16 %v3397
        %v4045 = vunpack.c.h.b16 %v3397
        %v4046 = vunpack.c.l.b16 %v3398
        %v4047 = vunpack.c.h.b16 %v3398
        %v4048 = vunpack.c.l.b16 %v3399
        %v4049 = vunpack.c.h.b16 %v3399
        %v4050 = vunpack.c.l.b16 %v3400
        %v4051 = vunpack.c.h.b16 %v3400
        %v4052 = vunpack.c.l.b16 %v3401
        %v4053 = vunpack.c.h.b16 %v3401
        %v4054 = vunpack.c.l.b16 %v3402
        %v4055 = vunpack.c.h.b16 %v3402
        %v4056 = vunpack.c.l.b16 %v3403
        %v4057 = vunpack.c.h.b16 %v3403
        %v4058 = vunpack.c.l.b16 %v3404
        %v4059 = vunpack.c.h.b16 %v3404
        %v4060 = vunpack.c.l.b16 %v3405
        %v4061 = vunpack.c.h.b16 %v3405
        %v4062 = vunpack.c.l.b16 %v3406
        %v4063 = vunpack.c.h.b16 %v3406
        %v4064 = vunpack.c.l.b16 %v3407
        %v4065 = vunpack.c.h.b16 %v3407
        %v4066 = vunpack.c.l.b16 %v3408
        %v4067 = vunpack.c.h.b16 %v3408
        %v4068 = vunpack.c.l.b16 %v3409
        %v4069 = vunpack.c.h.b16 %v3409
        %v4070 = vunpack.c.l.b16 %v3410
        %v4071 = vunpack.c.h.b16 %v3410
        %v4072 = vunpack.c.l.b16 %v3411
        %v4073 = vunpack.c.h.b16 %v3411
        %v4074 = vunpack.c.l.b16 %v3412
        %v4075 = vunpack.c.h.b16 %v3412
        %v4076 = vunpack.c.l.b16 %v3413
        %v4077 = vunpack.c.h.b16 %v3413
        %v4078 = vunpack.c.l.b16 %v3414
        %v4079 = vunpack.c.h.b16 %v3414
        %v4080 = vunpack.c.l.b16 %v3415
        %v4081 = vunpack.c.h.b16 %v3415
        %v4082 = vunpack.c.l.b16 %v3416
        %v4083 = vunpack.c.h.b16 %v3416
        %v4084 = vunpack.c.l.b16 %v3417
        %v4085 = vunpack.c.h.b16 %v3417
        %v4086 = vunpack.c.l.b16 %v3418
        %v4087 = vunpack.c.h.b16 %v3418
        %v4088 = vunpack.c.l.b16 %v3419
        %v4089 = vunpack.c.h.b16 %v3419
        %v4090 = vunpack.c.l.b16 %v3420
        %v4091 = vunpack.c.h.b16 %v3420
        %v4092 = vunpack.c.l.b16 %v3421
        %v4093 = vunpack.c.h.b16 %v3421
        %v4094 = vunpack.c.l.b16 %v3422
        %v4095 = vunpack.c.h.b16 %v3422
        %v4096 = vunpack.c.l.b16 %v3423
        %v4097 = vunpack.c.h.b16 %v3423
        %v4098 = vunpack.c.l.b16 %v3424
        %v4099 = vunpack.c.h.b16 %v3424
        %v4100 = vunpack.c.l.b16 %v3425
        %v4101 = vunpack.c.h.b16 %v3425
        %v4102 = vunpack.c.l.b16 %v3426
        %v4103 = vunpack.c.h.b16 %v3426
        %v4104 = vunpack.c.l.b16 %v3427
        %v4105 = vunpack.c.h.b16 %v3427
        %v4106 = vunpack.c.l.b16 %v3428
        %v4107 = vunpack.c.h.b16 %v3428
        %v4108 = vunpack.c.l.b16 %v3429
        %v4109 = vunpack.c.h.b16 %v3429
        %v4110 = vunpack.c.l.b16 %v3430
        %v4111 = vunpack.c.h.b16 %v3430
        %v4112 = vunpack.c.l.b16 %v3431
        %v4113 = vunpack.c.h.b16 %v3431
        %v4114 = vunpack.c.l.b16 %v3432
        %v4115 = vunpack.c.h.b16 %v3432
        %v4116 = vunpack.c.l.b16 %v3433
        %v4117 = vunpack.c.h.b16 %v3433
        %v4118 = vunpack.c.l.b16 %v3434
        %v4119 = vunpack.c.h.b16 %v3434
        %v4120 = vunpack.c.l.b16 %v3435
        %v4121 = vunpack.c.h.b16 %v3435
        %v4122 = vunpack.c.l.b16 %v3436
        %v4123 = vunpack.c.h.b16 %v3436
        %v4124 = vunpack.c.l.b16 %v3437
        %v4125 = vunpack.c.h.b16 %v3437
        %v4126 = vunpack.c.l.b16 %v3438
        %v4127 = vunpack.c.h.b16 %v3438
        %v4128 = vunpack.c.l.b16 %v3439
        %v4129 = vunpack.c.h.b16 %v3439
        %v4130 = vunpack.c.l.b16 %v3440
        %v4131 = vunpack.c.h.b16 %v3440
        %v4132 = vunpack.c.l.b16 %v3441
        %v4133 = vunpack.c.h.b16 %v3441
        %v4134 = vunpack.c.l.b16 %v3442
        %v4135 = vunpack.c.h.b16 %v3442
        %v4136 = vunpack.c.l.b16 %v3443
        %v4137 = vunpack.c.h.b16 %v3443
        %v4138 = vunpack.c.l.b16 %v3444
        %v4139 = vunpack.c.h.b16 %v3444
        %v4140 = vunpack.c.l.b16 %v3445
        %v4141 = vunpack.c.h.b16 %v3445
        %v4142 = vunpack.c.l.b16 %v3446
        %v4143 = vunpack.c.h.b16 %v3446
        %v4144 = vunpack.c.l.b16 %v3447
        %v4145 = vunpack.c.h.b16 %v3447
        %v4146 = vunpack.c.l.b16 %v3448
        %v4147 = vunpack.c.h.b16 %v3448
        %v4148 = vunpack.c.l.b16 %v3449
        %v4149 = vunpack.c.h.b16 %v3449
        %v4150 = vunpack.c.l.b16 %v3450
        %v4151 = vunpack.c.h.b16 %v3450
        %v4152 = vunpack.c.l.b16 %v3451
        %v4153 = vunpack.c.h.b16 %v3451
        %v4154 = vunpack.c.l.b16 %v3452
        %v4155 = vunpack.c.h.b16 %v3452
        %v4156 = vunpack.c.l.b16 %v3453
        %v4157 = vunpack.c.h.b16 %v3453
        %v4158 = vunpack.c.l.b16 %v3454
        %v4159 = vunpack.c.h.b16 %v3454
        %v4160 = vunpack.c.l.b16 %v3455
        %v4161 = vunpack.c.h.b16 %v3455
        %v4162 = vunpack.c.l.b16 %v3456
        %v4163 = vunpack.c.h.b16 %v3456
        %v4164 = vunpack.c.l.b16 %v3457
        %v4165 = vunpack.c.h.b16 %v3457
        %v4166 = vunpack.c.l.b16 %v3458
        %v4167 = vunpack.c.h.b16 %v3458
        %v4168 = vunpack.c.l.b16 %v3459
        %v4169 = vunpack.c.h.b16 %v3459
        %v4170 = vunpack.c.l.b16 %v3460
        %v4171 = vunpack.c.h.b16 %v3460
        %v4172 = vunpack.c.l.b16 %v3461
        %v4173 = vunpack.c.h.b16 %v3461
        %v4174 = vunpack.c.l.b16 %v3462
        %v4175 = vunpack.c.h.b16 %v3462
        %v4176 = vunpack.c.l.b16 %v3463
        %v4177 = vunpack.c.h.b16 %v3463
        %v4178 = vunpack.c.l.b16 %v3464
        %v4179 = vunpack.c.h.b16 %v3464
        %v4180 = vunpack.c.l.b16 %v3465
        %v4181 = vunpack.c.h.b16 %v3465
        %v4182 = vunpack.c.l.b16 %v3466
        %v4183 = vunpack.c.h.b16 %v3466
        %v4184 = vunpack.c.l.b16 %v3467
        %v4185 = vunpack.c.h.b16 %v3467
        %v4186 = vunpack.c.l.b16 %v3468
        %v4187 = vunpack.c.h.b16 %v3468
        %v4188 = vunpack.c.l.b16 %v3469
        %v4189 = vunpack.c.h.b16 %v3469
        %v4190 = vunpack.c.l.b16 %v3470
        %v4191 = vunpack.c.h.b16 %v3470
        %v4192 = vunpack.c.l.b16 %v3471
        %v4193 = vunpack.c.h.b16 %v3471
        %v4194 = vunpack.c.l.b16 %v3472
        %v4195 = vunpack.c.h.b16 %v3472
        %v4196 = vunpack.c.l.b16 %v3473
        %v4197 = vunpack.c.h.b16 %v3473
        %v4198 = vunpack.c.l.b16 %v3474
        %v4199 = vunpack.c.h.b16 %v3474
        %v4200 = vunpack.c.l.b16 %v3475
        %v4201 = vunpack.c.h.b16 %v3475
        %v4202 = vunpack.c.l.b16 %v3476
        %v4203 = vunpack.c.h.b16 %v3476
        %v4204 = vunpack.c.l.b16 %v3477
        %v4205 = vunpack.c.h.b16 %v3477
        %v4206 = vunpack.c.l.b16 %v3478
        %v4207 = vunpack.c.h.b16 %v3478
        %v4208 = vunpack.c.l.b16 %v3479
        %v4209 = vunpack.c.h.b16 %v3479
        %v4210 = vunpack.c.l.b16 %v3480
        %v4211 = vunpack.c.h.b16 %v3480
        %v4212 = vunpack.c.l.b16 %v3481
        %v4213 = vunpack.c.h.b16 %v3481
        %v4214 = vunpack.c.l.b16 %v3482
        %v4215 = vunpack.c.h.b16 %v3482
        %v4216 = vunpack.c.l.b16 %v3483
        %v4217 = vunpack.c.h.b16 %v3483
        %v4218 = vunpack.c.l.b16 %v3484
        %v4219 = vunpack.c.h.b16 %v3484
        %v4220 = vunpack.c.l.b16 %v3485
        %v4221 = vunpack.c.h.b16 %v3485
        %v4222 = vunpack.c.l.b16 %v3486
        %v4223 = vunpack.c.h.b16 %v3486
        %v4224 = vunpack.c.l.b16 %v3487
        %v4225 = vunpack.c.h.b16 %v3487
        %v4226 = vunpack.c.l.b16 %v3488
        %v4227 = vunpack.c.h.b16 %v3488
        %v4228 = vunpack.c.l.b16 %v3489
        %v4229 = vunpack.c.h.b16 %v3489
        %v4230 = vunpack.c.l.b16 %v3490
        %v4231 = vunpack.c.h.b16 %v3490
        %v4232 = vunpack.c.l.b16 %v3491
        %v4233 = vunpack.c.h.b16 %v3491
        %v4234 = vunpack.c.l.b16 %v3492
        %v4235 = vunpack.c.h.b16 %v3492
        %v4236 = vunpack.c.l.b16 %v3493
        %v4237 = vunpack.c.h.b16 %v3493
        %v4238 = vunpack.c.l.b16 %v3494
        %v4239 = vunpack.c.h.b16 %v3494
        %v4240 = vunpack.c.l.b16 %v3495
        %v4241 = vunpack.c.h.b16 %v3495
        %v4242 = vunpack.c.l.b16 %v3496
        %v4243 = vunpack.c.h.b16 %v3496
        %v4244 = vunpack.c.l.b16 %v3497
        %v4245 = vunpack.c.h.b16 %v3497
        %v4246 = vunpack.c.l.b16 %v3498
        %v4247 = vunpack.c.h.b16 %v3498
        %v4248 = vunpack.c.l.b16 %v3499
        %v4249 = vunpack.c.h.b16 %v3499
        %v4250 = vunpack.c.l.b16 %v3500
        %v4251 = vunpack.c.h.b16 %v3500
        %v4252 = vunpack.c.l.b16 %v3501
        %v4253 = vunpack.c.h.b16 %v3501
        %v4254 = vunpack.c.l.b16 %v3502
        %v4255 = vunpack.c.h.b16 %v3502
        %v4256 = vunpack.c.l.b16 %v3503
        %v4257 = vunpack.c.h.b16 %v3503
        %v4258 = vunpack.c.l.b16 %v3504
        %v4259 = vunpack.c.h.b16 %v3504
        %v4260 = vunpack.c.l.b16 %v3505
        %v4261 = vunpack.c.h.b16 %v3505
        %v4262 = vunpack.c.l.b16 %v3506
        %v4263 = vunpack.c.h.b16 %v3506
        %v4264 = vunpack.c.l.b16 %v3507
        %v4265 = vunpack.c.h.b16 %v3507
        %v4266 = vunpack.c.l.b16 %v3508
        %v4267 = vunpack.c.h.b16 %v3508
        %v4268 = vunpack.c.l.b16 %v3509
        %v4269 = vunpack.c.h.b16 %v3509
        %v4270 = vunpack.c.l.b16 %v3510
        %v4271 = vunpack.c.h.b16 %v3510
        %v4272 = vunpack.c.l.b16 %v3511
        %v4273 = vunpack.c.h.b16 %v3511
        %v4274 = vunpack.c.l.b16 %v3512
        %v4275 = vunpack.c.h.b16 %v3512
        %v4276 = vunpack.c.l.b16 %v3513
        %v4277 = vunpack.c.h.b16 %v3513
        %v4278 = vunpack.c.l.b16 %v3514
        %v4279 = vunpack.c.h.b16 %v3514
        %v4280 = vunpack.c.l.b16 %v3515
        %v4281 = vunpack.c.h.b16 %v3515
        %v4282 = vunpack.c.l.b16 %v3516
        %v4283 = vunpack.c.h.b16 %v3516
        %v4284 = vunpack.c.l.b16 %v3517
        %v4285 = vunpack.c.h.b16 %v3517
        %v4286 = vunpack.c.l.b16 %v3518
        %v4287 = vunpack.c.h.b16 %v3518
        %v4288 = vunpack.c.l.b16 %v3519
        %v4289 = vunpack.c.h.b16 %v3519
        %v4290 = vunpack.c.l.b16 %v3520
        %v4291 = vunpack.c.h.b16 %v3520
        %v4292 = vunpack.c.l.b16 %v3521
        %v4293 = vunpack.c.h.b16 %v3521
        %v4294 = vunpack.c.l.b16 %v3522
        %v4295 = vunpack.c.h.b16 %v3522
        %v4296 = vunpack.c.l.b16 %v3523
        %v4297 = vunpack.c.h.b16 %v3523
        %v4298 = vunpack.c.l.b16 %v3524
        %v4299 = vunpack.c.h.b16 %v3524
        %v4300 = vunpack.c.l.b16 %v3525
        %v4301 = vunpack.c.h.b16 %v3525
        %v4302 = vunpack.c.l.b16 %v3526
        %v4303 = vunpack.c.h.b16 %v3526
        %v4304 = vunpack.c.l.b16 %v3527
        %v4305 = vunpack.c.h.b16 %v3527
        %v4306 = vunpack.c.l.b16 %v3528
        %v4307 = vunpack.c.h.b16 %v3528
        %v4308 = vunpack.c.l.b16 %v3529
        %v4309 = vunpack.c.h.b16 %v3529
        %v4310 = vunpack.c.l.b16 %v3530
        %v4311 = vunpack.c.h.b16 %v3530
        %v4312 = vunpack.c.l.b16 %v3531
        %v4313 = vunpack.c.h.b16 %v3531
        %v4314 = vunpack.c.l.b16 %v3532
        %v4315 = vunpack.c.h.b16 %v3532
        %v4316 = vunpack.c.l.b16 %v3533
        %v4317 = vunpack.c.h.b16 %v3533
        %v4318 = vunpack.c.l.b16 %v3534
        %v4319 = vunpack.c.h.b16 %v3534
        %v4320 = vunpack.c.l.b16 %v3535
        %v4321 = vunpack.c.h.b16 %v3535
        %v4322 = vunpack.c.l.b16 %v3536
        %v4323 = vunpack.c.h.b16 %v3536
        %v4324 = vunpack.c.l.b16 %v3537
        %v4325 = vunpack.c.h.b16 %v3537
        %v4326 = vunpack.c.l.b16 %v3538
        %v4327 = vunpack.c.h.b16 %v3538
        %v4328 = vunpack.c.l.b16 %v3539
        %v4329 = vunpack.c.h.b16 %v3539
        %v4330 = vunpack.c.l.b16 %v3540
        %v4331 = vunpack.c.h.b16 %v3540
        %v4332 = vunpack.c.l.b16 %v3541
        %v4333 = vunpack.c.h.b16 %v3541
        %v4334 = vunpack.c.l.b16 %v3542
        %v4335 = vunpack.c.h.b16 %v3542
        %v4336 = vunpack.c.l.b16 %v3543
        %v4337 = vunpack.c.h.b16 %v3543
        %v4338 = vunpack.c.l.b16 %v3544
        %v4339 = vunpack.c.h.b16 %v3544
        %v4340 = vunpack.c.l.b16 %v3545
        %v4341 = vunpack.c.h.b16 %v3545
        %v4342 = vunpack.c.l.b16 %v3546
        %v4343 = vunpack.c.h.b16 %v3546
        %v4344 = vunpack.c.l.b16 %v3547
        %v4345 = vunpack.c.h.b16 %v3547
        %v4346 = vunpack.c.l.b16 %v3548
        %v4347 = vunpack.c.h.b16 %v3548
        %v4348 = vunpack.c.l.b16 %v3549
        %v4349 = vunpack.c.h.b16 %v3549
        %v4350 = vunpack.c.l.b16 %v3550
        %v4351 = vunpack.c.h.b16 %v3550
        %v4352 = vunpack.c.l.b16 %v3551
        %v4353 = vunpack.c.h.b16 %v3551
        %v4354 = vunpack.c.l.b16 %v3552
        %v4355 = vunpack.c.h.b16 %v3552
        %v4356 = vunpack.c.l.b16 %v3553
        %v4357 = vunpack.c.h.b16 %v3553
        %v4358 = vunpack.c.l.b16 %v3554
        %v4359 = vunpack.c.h.b16 %v3554
        %v4360 = vunpack.c.l.b16 %v3555
        %v4361 = vunpack.c.h.b16 %v3555
        %v4362 = vunpack.c.l.b16 %v3556
        %v4363 = vunpack.c.h.b16 %v3556
        %v4364 = vunpack.c.l.b16 %v3557
        %v4365 = vunpack.c.h.b16 %v3557
        %v4366 = vunpack.c.l.b16 %v3558
        %v4367 = vunpack.c.h.b16 %v3558
        %v4368 = vunpack.c.l.b16 %v3559
        %v4369 = vunpack.c.h.b16 %v3559
        %v4370 = vunpack.c.l.b16 %v3560
        %v4371 = vunpack.c.h.b16 %v3560
        %v4372 = vunpack.c.l.b16 %v3561
        %v4373 = vunpack.c.h.b16 %v3561
        %v4374 = vunpack.c.l.b16 %v3562
        %v4375 = vunpack.c.h.b16 %v3562
        %v4376 = vunpack.c.l.b16 %v3563
        %v4377 = vunpack.c.h.b16 %v3563
        %v4378 = vunpack.c.l.b16 %v3564
        %v4379 = vunpack.c.h.b16 %v3564
        %v4380 = vunpack.c.l.b16 %v3565
        %v4381 = vunpack.c.h.b16 %v3565
        %v4382 = vunpack.c.l.b16 %v3566
        %v4383 = vunpack.c.h.b16 %v3566
        %v4384 = vunpack.c.l.b16 %v3567
        %v4385 = vunpack.c.h.b16 %v3567
        %v4386 = vunpack.c.l.b16 %v3568
        %v4387 = vunpack.c.h.b16 %v3568
        %v4388 = vunpack.c.l.b16 %v3569
        %v4389 = vunpack.c.h.b16 %v3569
        %v4390 = vunpack.c.l.b16 %v3570
        %v4391 = vunpack.c.h.b16 %v3570
        %v4392 = vunpack.c.l.b16 %v3571
        %v4393 = vunpack.c.h.b16 %v3571
        %v4394 = vunpack.c.l.b16 %v3572
        %v4395 = vunpack.c.h.b16 %v3572
        %v4396 = vunpack.c.l.b16 %v3573
        %v4397 = vunpack.c.h.b16 %v3573
        %v4398 = vunpack.c.l.b16 %v3574
        %v4399 = vunpack.c.h.b16 %v3574
        %v4400 = vunpack.c.l.b16 %v3575
        %v4401 = vunpack.c.h.b16 %v3575
        %v4402 = vunpack.c.l.b16 %v3576
        %v4403 = vunpack.c.h.b16 %v3576
        %v4404 = vunpack.c.l.b16 %v3577
        %v4405 = vunpack.c.h.b16 %v3577
        %v4406 = vunpack.c.l.b16 %v3578
        %v4407 = vunpack.c.h.b16 %v3578
        %v4408 = vunpack.c.l.b16 %v3579
        %v4409 = vunpack.c.h.b16 %v3579
        %v4410 = vunpack.c.l.b16 %v3580
        %v4411 = vunpack.c.h.b16 %v3580
        %v4412 = vunpack.c.l.b16 %v3581
        %v4413 = vunpack.c.h.b16 %v3581
        %v4414 = vunpack.c.l.b16 %v3582
        %v4415 = vunpack.c.h.b16 %v3582
        %v4416 = vunpack.c.l.b16 %v3583
        %v4417 = vunpack.c.h.b16 %v3583
        %v4418 = vunpack.c.l.b16 %v3584
        %v4419 = vunpack.c.h.b16 %v3584
        %v4420 = vunpack.c.l.b16 %v3585
        %v4421 = vunpack.c.h.b16 %v3585
        %v4422 = vunpack.c.l.b16 %v3586
        %v4423 = vunpack.c.h.b16 %v3586
        %v4424 = vunpack.c.l.b16 %v3587
        %v4425 = vunpack.c.h.b16 %v3587
        %v4426 = vunpack.c.l.b16 %v3588
        %v4427 = vunpack.c.h.b16 %v3588
        %v4428 = vunpack.c.l.b16 %v3589
        %v4429 = vunpack.c.h.b16 %v3589
        %v4430 = vunpack.c.l.b16 %v3590
        %v4431 = vunpack.c.h.b16 %v3590
        %v4432 = vunpack.c.l.b16 %v3591
        %v4433 = vunpack.c.h.b16 %v3591
        %v4434 = vunpack.c.l.b16 %v3592
        %v4435 = vunpack.c.h.b16 %v3592
        %v4436 = vunpack.c.l.b16 %v3593
        %v4437 = vunpack.c.h.b16 %v3593
        %v4438 = vunpack.c.l.b16 %v3594
        %v4439 = vunpack.c.h.b16 %v3594
        %v4440 = vunpack.c.l.b16 %v3595
        %v4441 = vunpack.c.h.b16 %v3595
        %v4442 = vunpack.c.l.b16 %v3596
        %v4443 = vunpack.c.h.b16 %v3596
        %v4444 = vunpack.c.l.b16 %v3597
        %v4445 = vunpack.c.h.b16 %v3597
        %v4446 = vunpack.c.l.b16 %v3598
        %v4447 = vunpack.c.h.b16 %v3598
        %v4448 = vunpack.c.l.b16 %v3599
        %v4449 = vunpack.c.h.b16 %v3599
        %v4450 = vunpack.c.l.b16 %v3600
        %v4451 = vunpack.c.h.b16 %v3600
        %v4452 = vunpack.c.l.b16 %v3601
        %v4453 = vunpack.c.h.b16 %v3601
        %v4454 = vunpack.c.l.b16 %v3602
        %v4455 = vunpack.c.h.b16 %v3602
        %v4456 = vunpack.c.l.b16 %v3603
        %v4457 = vunpack.c.h.b16 %v3603
        %v4458 = vunpack.c.l.b16 %v3604
        %v4459 = vunpack.c.h.b16 %v3604
        %v4460 = vunpack.c.l.b16 %v3605
        %v4461 = vunpack.c.h.b16 %v3605
        %v4462 = vunpack.c.l.b16 %v3606
        %v4463 = vunpack.c.h.b16 %v3606
        %v4464 = vunpack.c.l.b16 %v3607
        %v4465 = vunpack.c.h.b16 %v3607
        %v4466 = vunpack.c.l.b16 %v3608
        %v4467 = vunpack.c.h.b16 %v3608
        %v4468 = vunpack.c.l.b16 %v3609
        %v4469 = vunpack.c.h.b16 %v3609
        %v4470 = vunpack.c.l.b16 %v3610
        %v4471 = vunpack.c.h.b16 %v3610
        %v4472 = vunpack.c.l.b16 %v3611
        %v4473 = vunpack.c.h.b16 %v3611
        %v4474 = vunpack.c.l.b16 %v3612
        %v4475 = vunpack.c.h.b16 %v3612
        %v4476 = vunpack.c.l.b16 %v3613
        %v4477 = vunpack.c.h.b16 %v3613
        %v4478 = vunpack.c.l.b16 %v3614
        %v4479 = vunpack.c.h.b16 %v3614
        %v4480 = vunpack.c.l.b16 %v3615
        %v4481 = vunpack.c.h.b16 %v3615
        %v4482 = vunpack.c.l.b16 %v3616
        %v4483 = vunpack.c.h.b16 %v3616
        %v4484 = vunpack.c.l.b16 %v3617
        %v4485 = vunpack.c.h.b16 %v3617
        %v4486 = vunpack.c.l.b16 %v3618
        %v4487 = vunpack.c.h.b16 %v3618
        %v4488 = vunpack.c.l.b16 %v3619
        %v4489 = vunpack.c.h.b16 %v3619
        %v4490 = vunpack.c.l.b16 %v3620
        %v4491 = vunpack.c.h.b16 %v3620
        %v4492 = vunpack.c.l.b16 %v3621
        %v4493 = vunpack.c.h.b16 %v3621
        %v4494 = vpack.c.b16 %v3920, %v3918
        %v4495 = vpack.c.b16 %v3921, %v3919
        %v4496 = vpack.c.b16 %v3924, %v3922
        %v4497 = vpack.c.b16 %v3925, %v3923
        %v4498 = vpack.c.b16 %v3928, %v3926
        %v4499 = vpack.c.b16 %v3929, %v3927
        %v4500 = vpack.c.b16 %v3932, %v3930
        %v4501 = vpack.c.b16 %v3933, %v3931
        %v4502 = vpack.c.b16 %v3936, %v3934
        %v4503 = vpack.c.b16 %v3937, %v3935
        %v4504 = vpack.c.b16 %v3940, %v3938
        %v4505 = vpack.c.b16 %v3941, %v3939
        %v4506 = vpack.c.b16 %v3944, %v3942
        %v4507 = vpack.c.b16 %v3945, %v3943
        %v4508 = vpack.c.b16 %v3948, %v3946
        %v4509 = vpack.c.b16 %v3949, %v3947
        %v4510 = vpack.c.b16 %v3952, %v3950
        %v4511 = vpack.c.b16 %v3953, %v3951
        %v4512 = vpack.c.b16 %v3956, %v3954
        %v4513 = vpack.c.b16 %v3957, %v3955
        %v4514 = vpack.c.b16 %v3960, %v3958
        %v4515 = vpack.c.b16 %v3961, %v3959
        %v4516 = vpack.c.b16 %v3964, %v3962
        %v4517 = vpack.c.b16 %v3965, %v3963
        %v4518 = vpack.c.b16 %v3968, %v3966
        %v4519 = vpack.c.b16 %v3969, %v3967
        %v4520 = vpack.c.b16 %v3972, %v3970
        %v4521 = vpack.c.b16 %v3973, %v3971
        %v4522 = vpack.c.b16 %v3976, %v3974
        %v4523 = vpack.c.b16 %v3977, %v3975
        %v4524 = vpack.c.b16 %v3980, %v3978
        %v4525 = vpack.c.b16 %v3981, %v3979
        %v4526 = vpack.c.b16 %v3984, %v3982
        %v4527 = vpack.c.b16 %v3985, %v3983
        %v4528 = vpack.c.b16 %v3988, %v3986
        %v4529 = vpack.c.b16 %v3989, %v3987
        %v4530 = vpack.c.b16 %v3992, %v3990
        %v4531 = vpack.c.b16 %v3993, %v3991
        %v4532 = vpack.c.b16 %v3996, %v3994
        %v4533 = vpack.c.b16 %v3997, %v3995
        %v4534 = vpack.c.b16 %v4000, %v3998
        %v4535 = vpack.c.b16 %v4001, %v3999
        %v4536 = vpack.c.b16 %v4004, %v4002
        %v4537 = vpack.c.b16 %v4005, %v4003
        %v4538 = vpack.c.b16 %v4008, %v4006
        %v4539 = vpack.c.b16 %v4009, %v4007
        %v4540 = vpack.c.b16 %v4012, %v4010
        %v4541 = vpack.c.b16 %v4013, %v4011
        %v4542 = vpack.c.b16 %v4016, %v4014
        %v4543 = vpack.c.b16 %v4017, %v4015
        %v4544 = vpack.c.b16 %v4020, %v4018
        %v4545 = vpack.c.b16 %v4021, %v4019
        %v4546 = vpack.c.b16 %v4024, %v4022
        %v4547 = vpack.c.b16 %v4025, %v4023
        %v4548 = vpack.c.b16 %v4028, %v4026
        %v4549 = vpack.c.b16 %v4029, %v4027
        %v4550 = vpack.c.b16 %v4032, %v4030
        %v4551 = vpack.c.b16 %v4033, %v4031
        %v4552 = vpack.c.b16 %v4036, %v4034
        %v4553 = vpack.c.b16 %v4037, %v4035
        %v4554 = vpack.c.b16 %v4040, %v4038
        %v4555 = vpack.c.b16 %v4041, %v4039
        %v4556 = vpack.c.b16 %v4044, %v4042
        %v4557 = vpack.c.b16 %v4045, %v4043
        %v4558 = vpack.c.b16 %v4048, %v4046
        %v4559 = vpack.c.b16 %v4049, %v4047
        %v4560 = vpack.c.b16 %v4052, %v4050
        %v4561 = vpack.c.b16 %v4053, %v4051
        %v4562 = vpack.c.b16 %v4056, %v4054
        %v4563 = vpack.c.b16 %v4057, %v4055
        %v4564 = vpack.c.b16 %v4060, %v4058
        %v4565 = vpack.c.b16 %v4061, %v4059
        %v4566 = vpack.c.b16 %v4064, %v4062
        %v4567 = vpack.c.b16 %v4065, %v4063
        %v4568 = vpack.c.b16 %v4068, %v4066
        %v4569 = vpack.c.b16 %v4069, %v4067
        %v4570 = vpack.c.b16 %v4072, %v4070
        %v4571 = vpack.c.b16 %v4073, %v4071
        %v4572 = vpack.c.b16 %v4076, %v4074
        %v4573 = vpack.c.b16 %v4077, %v4075
        %v4574 = vpack.c.b16 %v4080, %v4078
        %v4575 = vpack.c.b16 %v4081, %v4079
        %v4576 = vpack.c.b16 %v4084, %v4082
        %v4577 = vpack.c.b16 %v4085, %v4083
        %v4578 = vpack.c.b16 %v4088, %v4086
        %v4579 = vpack.c.b16 %v4089, %v4087
        %v4580 = vpack.c.b16 %v4092, %v4090
        %v4581 = vpack.c.b16 %v4093, %v4091
        %v4582 = vpack.c.b16 %v4096, %v4094
        %v4583 = vpack.c.b16 %v4097, %v4095
        %v4584 = vpack.c.b16 %v4100, %v4098
        %v4585 = vpack.c.b16 %v4101, %v4099
        %v4586 = vpack.c.b16 %v4104, %v4102
        %v4587 = vpack.c.b16 %v4105, %v4103
        %v4588 = vpack.c.b16 %v4108, %v4106
        %v4589 = vpack.c.b16 %v4109, %v4107
        %v4590 = vpack.c.b16 %v4112, %v4110
        %v4591 = vpack.c.b16 %v4113, %v4111
        %v4592 = vpack.c.b16 %v4116, %v4114
        %v4593 = vpack.c.b16 %v4117, %v4115
        %v4594 = vpack.c.b16 %v4120, %v4118
        %v4595 = vpack.c.b16 %v4121, %v4119
        %v4596 = vpack.c.b16 %v4124, %v4122
        %v4597 = vpack.c.b16 %v4125, %v4123
        %v4598 = vpack.c.b16 %v4128, %v4126
        %v4599 = vpack.c.b16 %v4129, %v4127
        %v4600 = vpack.c.b16 %v4132, %v4130
        %v4601 = vpack.c.b16 %v4133, %v4131
        %v4602 = vpack.c.b16 %v4136, %v4134
        %v4603 = vpack.c.b16 %v4137, %v4135
        %v4604 = vpack.c.b16 %v4140, %v4138
        %v4605 = vpack.c.b16 %v4141, %v4139
        %v4606 = vpack.c.b16 %v4144, %v4142
        %v4607 = vpack.c.b16 %v4145, %v4143
        %v4608 = vpack.c.b16 %v4148, %v4146
        %v4609 = vpack.c.b16 %v4149, %v4147
        %v4610 = vpack.c.b16 %v4152, %v4150
        %v4611 = vpack.c.b16 %v4153, %v4151
        %v4612 = vpack.c.b16 %v4156, %v4154
        %v4613 = vpack.c.b16 %v4157, %v4155
        %v4614 = vpack.c.b16 %v4160, %v4158
        %v4615 = vpack.c.b16 %v4161, %v4159
        %v4616 = vpack.c.b16 %v4164, %v4162
        %v4617 = vpack.c.b16 %v4165, %v4163
        %v4618 = vpack.c.b16 %v4168, %v4166
        %v4619 = vpack.c.b16 %v4169, %v4167
        %v4620 = vpack.c.b16 %v4172, %v4170
        %v4621 = vpack.c.b16 %v4173, %v4171
        %v4622 = vpack.c.b16 %v4176, %v4174
        %v4623 = vpack.c.b16 %v4177, %v4175
        %v4624 = vpack.c.b16 %v4180, %v4178
        %v4625 = vpack.c.b16 %v4181, %v4179
        %v4626 = vpack.c.b16 %v4184, %v4182
        %v4627 = vpack.c.b16 %v4185, %v4183
        %v4628 = vpack.c.b16 %v4188, %v4186
        %v4629 = vpack.c.b16 %v4189, %v4187
        %v4630 = vpack.c.b16 %v4192, %v4190
        %v4631 = vpack.c.b16 %v4193, %v4191
        %v4632 = vpack.c.b16 %v4196, %v4194
        %v4633 = vpack.c.b16 %v4197, %v4195
        %v4634 = vpack.c.b16 %v4200, %v4198
        %v4635 = vpack.c.b16 %v4201, %v4199
        %v4636 = vpack.c.b16 %v4204, %v4202
        %v4637 = vpack.c.b16 %v4205, %v4203
        %v4638 = vpack.c.b16 %v4208, %v4206
        %v4639 = vpack.c.b16 %v4209, %v4207
        %v4640 = vpack.c.b16 %v4212, %v4210
        %v4641 = vpack.c.b16 %v4213, %v4211
        %v4642 = vpack.c.b16 %v4216, %v4214
        %v4643 = vpack.c.b16 %v4217, %v4215
        %v4644 = vpack.c.b16 %v4220, %v4218
        %v4645 = vpack.c.b16 %v4221, %v4219
        %v4646 = vpack.c.b16 %v4224, %v4222
        %v4647 = vpack.c.b16 %v4225, %v4223
        %v4648 = vpack.c.b16 %v4228, %v4226
        %v4649 = vpack.c.b16 %v4229, %v4227
        %v4650 = vpack.c.b16 %v4232, %v4230
        %v4651 = vpack.c.b16 %v4233, %v4231
        %v4652 = vpack.c.b16 %v4236, %v4234
        %v4653 = vpack.c.b16 %v4237, %v4235
        %v4654 = vpack.c.b16 %v4240, %v4238
        %v4655 = vpack.c.b16 %v4241, %v4239
        %v4656 = vpack.c.b16 %v4244, %v4242
        %v4657 = vpack.c.b16 %v4245, %v4243
        %v4658 = vpack.c.b16 %v4248, %v4246
        %v4659 = vpack.c.b16 %v4249, %v4247
        %v4660 = vpack.c.b16 %v4252, %v4250
        %v4661 = vpack.c.b16 %v4253, %v4251
        %v4662 = vpack.c.b16 %v4256, %v4254
        %v4663 = vpack.c.b16 %v4257, %v4255
        %v4664 = vpack.c.b16 %v4260, %v4258
        %v4665 = vpack.c.b16 %v4261, %v4259
        %v4666 = vpack.c.b16 %v4264, %v4262
        %v4667 = vpack.c.b16 %v4265, %v4263
        %v4668 = vpack.c.b16 %v4268, %v4266
        %v4669 = vpack.c.b16 %v4269, %v4267
        %v4670 = vpack.c.b16 %v4272, %v4270
        %v4671 = vpack.c.b16 %v4273, %v4271
        %v4672 = vpack.c.b16 %v4276, %v4274
        %v4673 = vpack.c.b16 %v4277, %v4275
        %v4674 = vpack.c.b16 %v4280, %v4278
        %v4675 = vpack.c.b16 %v4281, %v4279
        %v4676 = vpack.c.b16 %v4284, %v4282
        %v4677 = vpack.c.b16 %v4285, %v4283
        %v4678 = vpack.c.b16 %v4288, %v4286
        %v4679 = vpack.c.b16 %v4289, %v4287
        %v4680 = vpack.c.b16 %v4292, %v4290
        %v4681 = vpack.c.b16 %v4293, %v4291
        %v4682 = vpack.c.b16 %v4296, %v4294
        %v4683 = vpack.c.b16 %v4297, %v4295
        %v4684 = vpack.c.b16 %v4300, %v4298
        %v4685 = vpack.c.b16 %v4301, %v4299
        %v4686 = vpack.c.b16 %v4304, %v4302
        %v4687 = vpack.c.b16 %v4305, %v4303
        %v4688 = vpack.c.b16 %v4308, %v4306
        %v4689 = vpack.c.b16 %v4309, %v4307
        %v4690 = vpack.c.b16 %v4312, %v4310
        %v4691 = vpack.c.b16 %v4313, %v4311
        %v4692 = vpack.c.b16 %v4316, %v4314
        %v4693 = vpack.c.b16 %v4317, %v4315
        %v4694 = vpack.c.b16 %v4320, %v4318
        %v4695 = vpack.c.b16 %v4321, %v4319
        %v4696 = vpack.c.b16 %v4324, %v4322
        %v4697 = vpack.c.b16 %v4325, %v4323
        %v4698 = vpack.c.b16 %v4328, %v4326
        %v4699 = vpack.c.b16 %v4329, %v4327
        %v4700 = vpack.c.b16 %v4332, %v4330
        %v4701 = vpack.c.b16 %v4333, %v4331
        %v4702 = vpack.c.b16 %v4336, %v4334
        %v4703 = vpack.c.b16 %v4337, %v4335
        %v4704 = vpack.c.b16 %v4340, %v4338
        %v4705 = vpack.c.b16 %v4341, %v4339
        %v4706 = vpack.c.b16 %v4344, %v4342
        %v4707 = vpack.c.b16 %v4345, %v4343
        %v4708 = vpack.c.b16 %v4348, %v4346
        %v4709 = vpack.c.b16 %v4349, %v4347
        %v4710 = vpack.c.b16 %v4352, %v4350
        %v4711 = vpack.c.b16 %v4353, %v4351
        %v4712 = vpack.c.b16 %v4356, %v4354
        %v4713 = vpack.c.b16 %v4357, %v4355
        %v4714 = vpack.c.b16 %v4360, %v4358
        %v4715 = vpack.c.b16 %v4361, %v4359
        %v4716 = vpack.c.b16 %v4364, %v4362
        %v4717 = vpack.c.b16 %v4365, %v4363
        %v4718 = vpack.c.b16 %v4368, %v4366
        %v4719 = vpack.c.b16 %v4369, %v4367
        %v4720 = vpack.c.b16 %v4372, %v4370
        %v4721 = vpack.c.b16 %v4373, %v4371
        %v4722 = vpack.c.b16 %v4376, %v4374
        %v4723 = vpack.c.b16 %v4377, %v4375
        %v4724 = vpack.c.b16 %v4380, %v4378
        %v4725 = vpack.c.b16 %v4381, %v4379
        %v4726 = vpack.c.b16 %v4384, %v4382
        %v4727 = vpack.c.b16 %v4385, %v4383
        %v4728 = vpack.c.b16 %v4388, %v4386
        %v4729 = vpack.c.b16 %v4389, %v4387
        %v4730 = vpack.c.b16 %v4392, %v4390
        %v4731 = vpack.c.b16 %v4393, %v4391
        %v4732 = vpack.c.b16 %v4396, %v4394
        %v4733 = vpack.c.b16 %v4397, %v4395
        %v4734 = vpack.c.b16 %v4400, %v4398
        %v4735 = vpack.c.b16 %v4401, %v4399
        %v4736 = vpack.c.b16 %v4404, %v4402
        %v4737 = vpack.c.b16 %v4405, %v4403
        %v4738 = vpack.c.b16 %v4408, %v4406
        %v4739 = vpack.c.b16 %v4409, %v4407
        %v4740 = vpack.c.b16 %v4412, %v4410
        %v4741 = vpack.c.b16 %v4413, %v4411
        %v4742 = vpack.c.b16 %v4416, %v4414
        %v4743 = vpack.c.b16 %v4417, %v4415
        %v4744 = vpack.c.b16 %v4420, %v4418
        %v4745 = vpack.c.b16 %v4421, %v4419
        %v4746 = vpack.c.b16 %v4424, %v4422
        %v4747 = vpack.c.b16 %v4425, %v4423
        %v4748 = vpack.c.b16 %v4428, %v4426
        %v4749 = vpack.c.b16 %v4429, %v4427
        %v4750 = vpack.c.b16 %v4432, %v4430
        %v4751 = vpack.c.b16 %v4433, %v4431
        %v4752 = vpack.c.b16 %v4436, %v4434
        %v4753 = vpack.c.b16 %v4437, %v4435
        %v4754 = vpack.c.b16 %v4440, %v4438
        %v4755 = vpack.c.b16 %v4441, %v4439
        %v4756 = vpack.c.b16 %v4444, %v4442
        %v4757 = vpack.c.b16 %v4445, %v4443
        %v4758 = vpack.c.b16 %v4448, %v4446
        %v4759 = vpack.c.b16 %v4449, %v4447
        %v4760 = vpack.c.b16 %v4452, %v4450
        %v4761 = vpack.c.b16 %v4453, %v4451
        %v4762 = vpack.c.b16 %v4456, %v4454
        %v4763 = vpack.c.b16 %v4457, %v4455
        %v4764 = vpack.c.b16 %v4460, %v4458
        %v4765 = vpack.c.b16 %v4461, %v4459
        %v4766 = vpack.c.b16 %v4464, %v4462
        %v4767 = vpack.c.b16 %v4465, %v4463
        %v4768 = vpack.c.b16 %v4468, %v4466
        %v4769 = vpack.c.b16 %v4469, %v4467
        %v4770 = vpack.c.b16 %v4472, %v4470
        %v4771 = vpack.c.b16 %v4473, %v4471
        %v4772 = vpack.c.b16 %v4476, %v4474
        %v4773 = vpack.c.b16 %v4477, %v4475
        %v4774 = vpack.c.b16 %v4480, %v4478
        %v4775 = vpack.c.b16 %v4481, %v4479
        %v4776 = vpack.c.b16 %v4484, %v4482
        %v4777 = vpack.c.b16 %v4485, %v4483
        %v4778 = vpack.c.b16 %v4488, %v4486
        %v4779 = vpack.c.b16 %v4489, %v4487
        %v4780 = vpack.c.b16 %v4492, %v4490
        %v4781 = vpack.c.b16 %v4493, %v4491
        %5070 = vmatprep.subr.bf16.mxu0 %v4495
        %5071 = vmatpush1.bf16.msra.mxu0 %v4494
        %5072 = vmatprep.subr.bf16.mxu0 %v4497
        %5073 = vmatpush1.bf16.msra.mxu0 %v4496
        %5074 = vmatprep.subr.bf16.mxu0 %v4499
        %5075 = vmatpush1.bf16.msra.mxu0 %v4498
        %5076 = vmatprep.subr.bf16.mxu0 %v4501
        %5077 = vmatpush1.bf16.msra.mxu0 %v4500
        %5078 = vmatprep.subr.bf16.mxu0 %v4503
        %5079 = vmatpush1.bf16.msra.mxu0 %v4502
        %5080 = vmatprep.subr.bf16.mxu0 %v4505
        %5081 = vmatpush1.bf16.msra.mxu0 %v4504
        %5082 = vmatprep.subr.bf16.mxu0 %v4507
        %5083 = vmatpush1.bf16.msra.mxu0 %v4506
        %5084 = vmatprep.subr.bf16.mxu0 %v4509
        %5085 = vmatpush1.bf16.msra.mxu0 %v4508
        %5086 = vmatprep.subr.bf16.mxu0 %v4511
        %5087 = vmatpush1.bf16.msra.mxu0 %v4510
        %5088 = vmatprep.subr.bf16.mxu0 %v4513
        %5089 = vmatpush1.bf16.msra.mxu0 %v4512
        %5090 = vmatprep.subr.bf16.mxu0 %v4515
        %5091 = vmatpush1.bf16.msra.mxu0 %v4514
        %5092 = vmatprep.subr.bf16.mxu0 %v4517
        %5093 = vmatpush1.bf16.msra.mxu0 %v4516
        %5094 = vmatprep.subr.bf16.mxu0 %v4519
        %5095 = vmatpush1.bf16.msra.mxu0 %v4518
        %5096 = vmatprep.subr.bf16.mxu0 %v4521
        %5097 = vmatpush1.bf16.msra.mxu0 %v4520
        %5098 = vmatprep.subr.bf16.mxu0 %v4523
        %5099 = vmatpush1.bf16.msra.mxu0 %v4522
        %5100 = vmatprep.subr.bf16.mxu0 %v4525
        %5101 = vmatpush1.bf16.msra.mxu0 %v4524
        %5102 = vmatprep.mubr.bf16.mxu0 %v3227
        %5103 = vmatmul.mubr.bf16.gmra.mrb[0].mxu0 %v3226
        %v5104 = vpop.f32.mrb[0].mxu0
        %v5105 = vadd.f32 %v3625, %v5104
        %v5106 = vpop.f32.mrb[0].mxu0
        %v5107 = vadd.f32 %v3629, %v5106
        %v5108 = vpop.f32.mrb[0].mxu0
        %v5109 = vadd.f32 %v3625, %v5108
        %v5110 = vpop.f32.mrb[0].mxu0
        %v5111 = vadd.f32 %v3629, %v5110
        %5112 = vmatprep.mubr.bf16.mxu0 %v3233
        %5113 = vmatmul.mubr.bf16.gmra.mrb[0].mxu0 %v3232
        %v5114 = vpop.f32.mrb[0].mxu0
        %v5115 = vadd.f32 %v3625, %v5114
        %v5116 = vpop.f32.mrb[0].mxu0
        %v5117 = vadd.f32 %v3629, %v5116
        %v5118 = vpop.f32.mrb[0].mxu0
        %v5119 = vadd.f32 %v3625, %v5118
        %v5120 = vpop.f32.mrb[0].mxu0
        %v5121 = vadd.f32 %v3629, %v5120
        %5122 = vmatprep.mubr.bf16.mxu0 %v3239
        %5123 = vmatmul.mubr.bf16.gmra.mrb[0].mxu0 %v3238
        %v5124 = vpop.f32.mrb[0].mxu0
        %v5125 = vadd.f32 %v3625, %v5124
        %v5126 = vpop.f32.mrb[0].mxu0
        %v5127 = vadd.f32 %v3629, %v5126
        %v5128 = vpop.f32.mrb[0].mxu0
        %v5129 = vadd.f32 %v3625, %v5128
        %v5130 = vpop.f32.mrb[0].mxu0
        %v5131 = vadd.f32 %v3629, %v5130
        %5132 = vmatprep.mubr.bf16.mxu0 %v3245
        %5133 = vmatmul.mubr.bf16.gmra.mrb[0].mxu0 %v3244
        %v5134 = vpop.f32.mrb[0].mxu0
        %v5135 = vadd.f32 %v3625, %v5134
        %v5136 = vpop.f32.mrb[0].mxu0
        %v5137 = vadd.f32 %v3629, %v5136
        %v5138 = vpop.f32.mrb[0].mxu0
        %v5139 = vadd.f32 %v3625, %v5138
        %v5140 = vpop.f32.mrb[0].mxu0
        %v5141 = vadd.f32 %v3629, %v5140
        %5142 = vmatprep.mubr.bf16.mxu0 %v3251
        %5143 = vmatmul.mubr.bf16.gmra.mrb[0].mxu0 %v3250
        %v5144 = vpop.f32.mrb[0].mxu0
        %v5145 = vadd.f32 %v3625, %v5144
        %v5146 = vpop.f32.mrb[0].mxu0
        %v5147 = vadd.f32 %v3629, %v5146
        %v5148 = vpop.f32.mrb[0].mxu0
        %v5149 = vadd.f32 %v3625, %v5148
        %v5150 = vpop.f32.mrb[0].mxu0
        %v5151 = vadd.f32 %v3629, %v5150
        %5152 = vmatprep.mubr.bf16.mxu0 %v3257
        %5153 = vmatmul.mubr.bf16.gmra.mrb[0].mxu0 %v3256
        %v5154 = vpop.f32.mrb[0].mxu0
        %v5155 = vadd.f32 %v3625, %v5154
        %v5156 = vpop.f32.mrb[0].mxu0
        %v5157 = vadd.f32 %v3629, %v5156
        %v5158 = vpop.f32.mrb[0].mxu0
        %v5159 = vadd.f32 %v3625, %v5158
        %v5160 = vpop.f32.mrb[0].mxu0
        %v5161 = vadd.f32 %v3629, %v5160
        %5162 = vmatprep.mubr.bf16.mxu0 %v3263
        %5163 = vmatmul.mubr.bf16.gmra.mrb[0].mxu0 %v3262
        %v5164 = vpop.f32.mrb[0].mxu0
        %v5165 = vadd.f32 %v3625, %v5164
        %v5166 = vpop.f32.mrb[0].mxu0
        %v5167 = vadd.f32 %v3629, %v5166
        %v5168 = vpop.f32.mrb[0].mxu0
        %v5169 = vadd.f32 %v3625, %v5168
        %v5170 = vpop.f32.mrb[0].mxu0
        %v5171 = vadd.f32 %v3629, %v5170
        %5172 = vmatprep.mubr.bf16.mxu0 %v3269
        %5173 = vmatmul.mubr.bf16.gmra.mrb[0].mxu0 %v3268
        %v5174 = vpop.f32.mrb[0].mxu0
        %v5175 = vadd.f32 %v3625, %v5174
        %v5176 = vpop.f32.mrb[0].mxu0
        %v5177 = vadd.f32 %v3629, %v5176
        %v5178 = vpop.f32.mrb[0].mxu0
        %v5179 = vadd.f32 %v3625, %v5178
        %v5180 = vpop.f32.mrb[0].mxu0
        %v5181 = vadd.f32 %v3629, %v5180
        %5182 = vmatprep.mubr.bf16.mxu0 %v3275
        %5183 = vmatmul.mubr.bf16.gmra.mrb[0].mxu0 %v3274
        %v5184 = vpop.f32.mrb[0].mxu0
        %v5185 = vadd.f32 %v3625, %v5184
        %v5186 = vpop.f32.mrb[0].mxu0
        %v5187 = vadd.f32 %v3629, %v5186
        %v5188 = vpop.f32.mrb[0].mxu0
        %v5189 = vadd.f32 %v3625, %v5188
        %v5190 = vpop.f32.mrb[0].mxu0
        %v5191 = vadd.f32 %v3629, %v5190
        %5192 = vmatprep.mubr.bf16.mxu0 %v3281
        %5193 = vmatmul.mubr.bf16.gmra.mrb[0].mxu0 %v3280
        %v5194 = vpop.f32.mrb[0].mxu0
        %v5195 = vadd.f32 %v3625, %v5194
        %v5196 = vpop.f32.mrb[0].mxu0
        %v5197 = vadd.f32 %v3629, %v5196
        %v5198 = vpop.f32.mrb[0].mxu0
        %v5199 = vadd.f32 %v3625, %v5198
        %v5200 = vpop.f32.mrb[0].mxu0
        %v5201 = vadd.f32 %v3629, %v5200
        %5202 = vmatprep.mubr.bf16.mxu0 %v3287
        %5203 = vmatmul.mubr.bf16.gmra.mrb[0].mxu0 %v3286
        %v5204 = vpop.f32.mrb[0].mxu0
        %v5205 = vadd.f32 %v3625, %v5204
        %v5206 = vpop.f32.mrb[0].mxu0
        %v5207 = vadd.f32 %v3629, %v5206
        %v5208 = vpop.f32.mrb[0].mxu0
        %v5209 = vadd.f32 %v3625, %v5208
        %v5210 = vpop.f32.mrb[0].mxu0
        %v5211 = vadd.f32 %v3629, %v5210
        %5212 = vmatprep.mubr.bf16.mxu0 %v3293
        %5213 = vmatmul.mubr.bf16.gmra.mrb[0].mxu0 %v3292
        %v5214 = vpop.f32.mrb[0].mxu0
        %v5215 = vadd.f32 %v3625, %v5214
        %v5216 = vpop.f32.mrb[0].mxu0
        %v5217 = vadd.f32 %v3629, %v5216
        %v5218 = vpop.f32.mrb[0].mxu0
        %v5219 = vadd.f32 %v3625, %v5218
        %v5220 = vpop.f32.mrb[0].mxu0
        %v5221 = vadd.f32 %v3629, %v5220
        %5222 = vmatprep.mubr.bf16.mxu0 %v3299
        %5223 = vmatmul.mubr.bf16.gmra.mrb[0].mxu0 %v3298
        %v5224 = vpop.f32.mrb[0].mxu0
        %v5225 = vadd.f32 %v3625, %v5224
        %v5226 = vpop.f32.mrb[0].mxu0
        %v5227 = vadd.f32 %v3629, %v5226
        %v5228 = vpop.f32.mrb[0].mxu0
        %v5229 = vadd.f32 %v3625, %v5228
        %v5230 = vpop.f32.mrb[0].mxu0
        %v5231 = vadd.f32 %v3629, %v5230
        %5232 = vmatprep.mubr.bf16.mxu0 %v3305
        %5233 = vmatmul.mubr.bf16.gmra.mrb[0].mxu0 %v3304
        %v5234 = vpop.f32.mrb[0].mxu0
        %v5235 = vadd.f32 %v3625, %v5234
        %v5236 = vpop.f32.mrb[0].mxu0
        %v5237 = vadd.f32 %v3629, %v5236
        %v5238 = vpop.f32.mrb[0].mxu0
        %v5239 = vadd.f32 %v3625, %v5238
        %v5240 = vpop.f32.mrb[0].mxu0
        %v5241 = vadd.f32 %v3629, %v5240
        %5242 = vmatprep.mubr.bf16.mxu0 %v3311
        %5243 = vmatmul.mubr.bf16.gmra.mrb[0].mxu0 %v3310
        %v5244 = vpop.f32.mrb[0].mxu0
        %v5245 = vadd.f32 %v3625, %v5244
        %v5246 = vpop.f32.mrb[0].mxu0
        %v5247 = vadd.f32 %v3629, %v5246
        %v5248 = vpop.f32.mrb[0].mxu0
        %v5249 = vadd.f32 %v3625, %v5248
        %v5250 = vpop.f32.mrb[0].mxu0
        %v5251 = vadd.f32 %v3629, %v5250
        %5252 = vmatprep.mubr.bf16.mxu0 %v3317
        %5253 = vmatmul.mubr.bf16.gmra.mrb[0].mxu0 %v3316
        %v5254 = vpop.f32.mrb[0].mxu0
        %v5255 = vadd.f32 %v3625, %v5254
        %v5256 = vpop.f32.mrb[0].mxu0
        %v5257 = vadd.f32 %v3629, %v5256
        %v5258 = vpop.f32.mrb[0].mxu0
        %v5259 = vadd.f32 %v3625, %v5258
        %v5260 = vpop.f32.mrb[0].mxu0
        %v5261 = vadd.f32 %v3629, %v5260
        %5262 = vdwg.mxu0
        %5263 = vmatprep.subr.bf16.mxu0 %v4527
        %5264 = vmatpush1.bf16.msra.mxu0 %v4526
        %5265 = vmatprep.subr.bf16.mxu0 %v4529
        %5266 = vmatpush1.bf16.msra.mxu0 %v4528
        %5267 = vmatprep.subr.bf16.mxu0 %v4531
        %5268 = vmatpush1.bf16.msra.mxu0 %v4530
        %5269 = vmatprep.subr.bf16.mxu0 %v4533
        %5270 = vmatpush1.bf16.msra.mxu0 %v4532
        %5271 = vmatprep.subr.bf16.mxu0 %v4535
        %5272 = vmatpush1.bf16.msra.mxu0 %v4534
        %5273 = vmatprep.subr.bf16.mxu0 %v4537
        %5274 = vmatpush1.bf16.msra.mxu0 %v4536
        %5275 = vmatprep.subr.bf16.mxu0 %v4539
        %5276 = vmatpush1.bf16.msra.mxu0 %v4538
        %5277 = vmatprep.subr.bf16.mxu0 %v4541
        %5278 = vmatpush1.bf16.msra.mxu0 %v4540
        %5279 = vmatprep.subr.bf16.mxu0 %v4543
        %5280 = vmatpush1.bf16.msra.mxu0 %v4542
        %5281 = vmatprep.subr.bf16.mxu0 %v4545
        %5282 = vmatpush1.bf16.msra.mxu0 %v4544
        %5283 = vmatprep.subr.bf16.mxu0 %v4547
        %5284 = vmatpush1.bf16.msra.mxu0 %v4546
        %5285 = vmatprep.subr.bf16.mxu0 %v4549
        %5286 = vmatpush1.bf16.msra.mxu0 %v4548
        %5287 = vmatprep.subr.bf16.mxu0 %v4551
        %5288 = vmatpush1.bf16.msra.mxu0 %v4550
        %5289 = vmatprep.subr.bf16.mxu0 %v4553
        %5290 = vmatpush1.bf16.msra.mxu0 %v4552
        %5291 = vmatprep.subr.bf16.mxu0 %v4555
        %5292 = vmatpush1.bf16.msra.mxu0 %v4554
        %5293 = vmatprep.subr.bf16.mxu0 %v4557
        %5294 = vmatpush1.bf16.msra.mxu0 %v4556
        %5295 = vmatprep.mubr.bf16.mxu0 %v3229
        %5296 = vmatmul.mubr.bf16.gmra.mrb[0].mxu0 %v3228
        %v5297 = vpop.f32.mrb[0].mxu0
        %v5298 = vadd.f32 %v5105, %v5297
        %v5299 = vpop.f32.mrb[0].mxu0
        %v5300 = vadd.f32 %v5107, %v5299
        %v5301 = vpop.f32.mrb[0].mxu0
        %v5302 = vadd.f32 %v5109, %v5301
        %v5303 = vpop.f32.mrb[0].mxu0
        %v5304 = vadd.f32 %v5111, %v5303
        %5305 = vmatprep.mubr.bf16.mxu0 %v3235
        %5306 = vmatmul.mubr.bf16.gmra.mrb[0].mxu0 %v3234
        %v5307 = vpop.f32.mrb[0].mxu0
        %v5308 = vadd.f32 %v5115, %v5307
        %v5309 = vpop.f32.mrb[0].mxu0
        %v5310 = vadd.f32 %v5117, %v5309
        %v5311 = vpop.f32.mrb[0].mxu0
        %v5312 = vadd.f32 %v5119, %v5311
        %v5313 = vpop.f32.mrb[0].mxu0
        %v5314 = vadd.f32 %v5121, %v5313
        %5315 = vmatprep.mubr.bf16.mxu0 %v3241
        %5316 = vmatmul.mubr.bf16.gmra.mrb[0].mxu0 %v3240
        %v5317 = vpop.f32.mrb[0].mxu0
        %v5318 = vadd.f32 %v5125, %v5317
        %v5319 = vpop.f32.mrb[0].mxu0
        %v5320 = vadd.f32 %v5127, %v5319
        %v5321 = vpop.f32.mrb[0].mxu0
        %v5322 = vadd.f32 %v5129, %v5321
        %v5323 = vpop.f32.mrb[0].mxu0
        %v5324 = vadd.f32 %v5131, %v5323
        %5325 = vmatprep.mubr.bf16.mxu0 %v3247
        %5326 = vmatmul.mubr.bf16.gmra.mrb[0].mxu0 %v3246
        %v5327 = vpop.f32.mrb[0].mxu0
        %v5328 = vadd.f32 %v5135, %v5327
        %v5329 = vpop.f32.mrb[0].mxu0
        %v5330 = vadd.f32 %v5137, %v5329
        %v5331 = vpop.f32.mrb[0].mxu0
        %v5332 = vadd.f32 %v5139, %v5331
        %v5333 = vpop.f32.mrb[0].mxu0
        %v5334 = vadd.f32 %v5141, %v5333
        %5335 = vmatprep.mubr.bf16.mxu0 %v3253
        %5336 = vmatmul.mubr.bf16.gmra.mrb[0].mxu0 %v3252
        %v5337 = vpop.f32.mrb[0].mxu0
        %v5338 = vadd.f32 %v5145, %v5337
        %v5339 = vpop.f32.mrb[0].mxu0
        %v5340 = vadd.f32 %v5147, %v5339
        %v5341 = vpop.f32.mrb[0].mxu0
        %v5342 = vadd.f32 %v5149, %v5341
        %v5343 = vpop.f32.mrb[0].mxu0
        %v5344 = vadd.f32 %v5151, %v5343
        %5345 = vmatprep.mubr.bf16.mxu0 %v3259
        %5346 = vmatmul.mubr.bf16.gmra.mrb[0].mxu0 %v3258
        %v5347 = vpop.f32.mrb[0].mxu0
        %v5348 = vadd.f32 %v5155, %v5347
        %v5349 = vpop.f32.mrb[0].mxu0
        %v5350 = vadd.f32 %v5157, %v5349
        %v5351 = vpop.f32.mrb[0].mxu0
        %v5352 = vadd.f32 %v5159, %v5351
        %v5353 = vpop.f32.mrb[0].mxu0
        %v5354 = vadd.f32 %v5161, %v5353
        %5355 = vmatprep.mubr.bf16.mxu0 %v3265
        %5356 = vmatmul.mubr.bf16.gmra.mrb[0].mxu0 %v3264
        %v5357 = vpop.f32.mrb[0].mxu0
        %v5358 = vadd.f32 %v5165, %v5357
        %v5359 = vpop.f32.mrb[0].mxu0
        %v5360 = vadd.f32 %v5167, %v5359
        %v5361 = vpop.f32.mrb[0].mxu0
        %v5362 = vadd.f32 %v5169, %v5361
        %v5363 = vpop.f32.mrb[0].mxu0
        %v5364 = vadd.f32 %v5171, %v5363
        %5365 = vmatprep.mubr.bf16.mxu0 %v3271
        %5366 = vmatmul.mubr.bf16.gmra.mrb[0].mxu0 %v3270
        %v5367 = vpop.f32.mrb[0].mxu0
        %v5368 = vadd.f32 %v5175, %v5367
        %v5369 = vpop.f32.mrb[0].mxu0
        %v5370 = vadd.f32 %v5177, %v5369
        %v5371 = vpop.f32.mrb[0].mxu0
        %v5372 = vadd.f32 %v5179, %v5371
        %v5373 = vpop.f32.mrb[0].mxu0
        %v5374 = vadd.f32 %v5181, %v5373
        %5375 = vmatprep.mubr.bf16.mxu0 %v3277
        %5376 = vmatmul.mubr.bf16.gmra.mrb[0].mxu0 %v3276
        %v5377 = vpop.f32.mrb[0].mxu0
        %v5378 = vadd.f32 %v5185, %v5377
        %v5379 = vpop.f32.mrb[0].mxu0
        %v5380 = vadd.f32 %v5187, %v5379
        %v5381 = vpop.f32.mrb[0].mxu0
        %v5382 = vadd.f32 %v5189, %v5381
        %v5383 = vpop.f32.mrb[0].mxu0
        %v5384 = vadd.f32 %v5191, %v5383
        %5385 = vmatprep.mubr.bf16.mxu0 %v3283
        %5386 = vmatmul.mubr.bf16.gmra.mrb[0].mxu0 %v3282
        %v5387 = vpop.f32.mrb[0].mxu0
        %v5388 = vadd.f32 %v5195, %v5387
        %v5389 = vpop.f32.mrb[0].mxu0
        %v5390 = vadd.f32 %v5197, %v5389
        %v5391 = vpop.f32.mrb[0].mxu0
        %v5392 = vadd.f32 %v5199, %v5391
        %v5393 = vpop.f32.mrb[0].mxu0
        %v5394 = vadd.f32 %v5201, %v5393
        %5395 = vmatprep.mubr.bf16.mxu0 %v3289
        %5396 = vmatmul.mubr.bf16.gmra.mrb[0].mxu0 %v3288
        %v5397 = vpop.f32.mrb[0].mxu0
        %v5398 = vadd.f32 %v5205, %v5397
        %v5399 = vpop.f32.mrb[0].mxu0
        %v5400 = vadd.f32 %v5207, %v5399
        %v5401 = vpop.f32.mrb[0].mxu0
        %v5402 = vadd.f32 %v5209, %v5401
        %v5403 = vpop.f32.mrb[0].mxu0
        %v5404 = vadd.f32 %v5211, %v5403
        %5405 = vmatprep.mubr.bf16.mxu0 %v3295
        %5406 = vmatmul.mubr.bf16.gmra.mrb[0].mxu0 %v3294
        %v5407 = vpop.f32.mrb[0].mxu0
        %v5408 = vadd.f32 %v5215, %v5407
        %v5409 = vpop.f32.mrb[0].mxu0
        %v5410 = vadd.f32 %v5217, %v5409
        %v5411 = vpop.f32.mrb[0].mxu0
        %v5412 = vadd.f32 %v5219, %v5411
        %v5413 = vpop.f32.mrb[0].mxu0
        %v5414 = vadd.f32 %v5221, %v5413
        %5415 = vmatprep.mubr.bf16.mxu0 %v3301
        %5416 = vmatmul.mubr.bf16.gmra.mrb[0].mxu0 %v3300
        %v5417 = vpop.f32.mrb[0].mxu0
        %v5418 = vadd.f32 %v5225, %v5417
        %v5419 = vpop.f32.mrb[0].mxu0
        %v5420 = vadd.f32 %v5227, %v5419
        %v5421 = vpop.f32.mrb[0].mxu0
        %v5422 = vadd.f32 %v5229, %v5421
        %v5423 = vpop.f32.mrb[0].mxu0
        %v5424 = vadd.f32 %v5231, %v5423
        %5425 = vmatprep.mubr.bf16.mxu0 %v3307
        %5426 = vmatmul.mubr.bf16.gmra.mrb[0].mxu0 %v3306
        %v5427 = vpop.f32.mrb[0].mxu0
        %v5428 = vadd.f32 %v5235, %v5427
        %v5429 = vpop.f32.mrb[0].mxu0
        %v5430 = vadd.f32 %v5237, %v5429
        %v5431 = vpop.f32.mrb[0].mxu0
        %v5432 = vadd.f32 %v5239, %v5431
        %v5433 = vpop.f32.mrb[0].mxu0
        %v5434 = vadd.f32 %v5241, %v5433
        %5435 = vmatprep.mubr.bf16.mxu0 %v3313
        %5436 = vmatmul.mubr.bf16.gmra.mrb[0].mxu0 %v3312
        %v5437 = vpop.f32.mrb[0].mxu0
        %v5438 = vadd.f32 %v5245, %v5437
        %v5439 = vpop.f32.mrb[0].mxu0
        %v5440 = vadd.f32 %v5247, %v5439
        %v5441 = vpop.f32.mrb[0].mxu0
        %v5442 = vadd.f32 %v5249, %v5441
        %v5443 = vpop.f32.mrb[0].mxu0
        %v5444 = vadd.f32 %v5251, %v5443
        %5445 = vmatprep.mubr.bf16.mxu0 %v3319
        %5446 = vmatmul.mubr.bf16.gmra.mrb[0].mxu0 %v3318
        %v5447 = vpop.f32.mrb[0].mxu0
        %v5448 = vadd.f32 %v5255, %v5447
        %v5449 = vpop.f32.mrb[0].mxu0
        %v5450 = vadd.f32 %v5257, %v5449
        %v5451 = vpop.f32.mrb[0].mxu0
        %v5452 = vadd.f32 %v5259, %v5451
        %v5453 = vpop.f32.mrb[0].mxu0
        %v5454 = vadd.f32 %v5261, %v5453
        %5455 = vdwg.mxu0
        %5456 = vmatprep.subr.bf16.mxu0 %v4559
        %5457 = vmatpush1.bf16.msra.mxu0 %v4558
        %5458 = vmatprep.subr.bf16.mxu0 %v4561
        %5459 = vmatpush1.bf16.msra.mxu0 %v4560
        %5460 = vmatprep.subr.bf16.mxu0 %v4563
        %5461 = vmatpush1.bf16.msra.mxu0 %v4562
        %5462 = vmatprep.subr.bf16.mxu0 %v4565
        %5463 = vmatpush1.bf16.msra.mxu0 %v4564
        %5464 = vmatprep.subr.bf16.mxu0 %v4567
        %5465 = vmatpush1.bf16.msra.mxu0 %v4566
        %5466 = vmatprep.subr.bf16.mxu0 %v4569
        %5467 = vmatpush1.bf16.msra.mxu0 %v4568
        %5468 = vmatprep.subr.bf16.mxu0 %v4571
        %5469 = vmatpush1.bf16.msra.mxu0 %v4570
        %5470 = vmatprep.subr.bf16.mxu0 %v4573
        %5471 = vmatpush1.bf16.msra.mxu0 %v4572
        %5472 = vmatprep.subr.bf16.mxu0 %v4575
        %5473 = vmatpush1.bf16.msra.mxu0 %v4574
        %5474 = vmatprep.subr.bf16.mxu0 %v4577
        %5475 = vmatpush1.bf16.msra.mxu0 %v4576
        %5476 = vmatprep.subr.bf16.mxu0 %v4579
        %5477 = vmatpush1.bf16.msra.mxu0 %v4578
        %5478 = vmatprep.subr.bf16.mxu0 %v4581
        %5479 = vmatpush1.bf16.msra.mxu0 %v4580
        %5480 = vmatprep.subr.bf16.mxu0 %v4583
        %5481 = vmatpush1.bf16.msra.mxu0 %v4582
        %5482 = vmatprep.subr.bf16.mxu0 %v4585
        %5483 = vmatpush1.bf16.msra.mxu0 %v4584
        %5484 = vmatprep.subr.bf16.mxu0 %v4587
        %5485 = vmatpush1.bf16.msra.mxu0 %v4586
        %5486 = vmatprep.subr.bf16.mxu0 %v4589
        %5487 = vmatpush1.bf16.msra.mxu0 %v4588
        %5488 = vmatprep.mubr.bf16.mxu0 %v3231
        %5489 = vmatmul.mubr.bf16.gmra.mrb[0].mxu0 %v3230
        %v5490 = vpop.f32.mrb[0].mxu0
        %v5491 = vadd.f32 %v5298, %v5490
        %v5492 = vpop.f32.mrb[0].mxu0
        %v5493 = vadd.f32 %v5300, %v5492
        %v5494 = vpop.f32.mrb[0].mxu0
        %v5495 = vadd.f32 %v5302, %v5494
        %v5496 = vpop.f32.mrb[0].mxu0
        %v5497 = vadd.f32 %v5304, %v5496
        %5498 = vmatprep.mubr.bf16.mxu0 %v3237
        %5499 = vmatmul.mubr.bf16.gmra.mrb[0].mxu0 %v3236
        %v5500 = vpop.f32.mrb[0].mxu0
        %v5501 = vadd.f32 %v5308, %v5500
        %v5502 = vpop.f32.mrb[0].mxu0
        %v5503 = vadd.f32 %v5310, %v5502
        %v5504 = vpop.f32.mrb[0].mxu0
        %v5505 = vadd.f32 %v5312, %v5504
        %v5506 = vpop.f32.mrb[0].mxu0
        %v5507 = vadd.f32 %v5314, %v5506
        %5508 = vmatprep.mubr.bf16.mxu0 %v3243
        %5509 = vmatmul.mubr.bf16.gmra.mrb[0].mxu0 %v3242
        %v5510 = vpop.f32.mrb[0].mxu0
        %v5511 = vadd.f32 %v5318, %v5510
        %v5512 = vpop.f32.mrb[0].mxu0
        %v5513 = vadd.f32 %v5320, %v5512
        %v5514 = vpop.f32.mrb[0].mxu0
        %v5515 = vadd.f32 %v5322, %v5514
        %v5516 = vpop.f32.mrb[0].mxu0
        %v5517 = vadd.f32 %v5324, %v5516
        %5518 = vmatprep.mubr.bf16.mxu0 %v3249
        %5519 = vmatmul.mubr.bf16.gmra.mrb[0].mxu0 %v3248
        %v5520 = vpop.f32.mrb[0].mxu0
        %v5521 = vadd.f32 %v5328, %v5520
        %v5522 = vpop.f32.mrb[0].mxu0
        %v5523 = vadd.f32 %v5330, %v5522
        %v5524 = vpop.f32.mrb[0].mxu0
        %v5525 = vadd.f32 %v5332, %v5524
        %v5526 = vpop.f32.mrb[0].mxu0
        %v5527 = vadd.f32 %v5334, %v5526
        %5528 = vmatprep.mubr.bf16.mxu0 %v3255
        %5529 = vmatmul.mubr.bf16.gmra.mrb[0].mxu0 %v3254
        %v5530 = vpop.f32.mrb[0].mxu0
        %v5531 = vadd.f32 %v5338, %v5530
        %v5532 = vpop.f32.mrb[0].mxu0
        %v5533 = vadd.f32 %v5340, %v5532
        %v5534 = vpop.f32.mrb[0].mxu0
        %v5535 = vadd.f32 %v5342, %v5534
        %v5536 = vpop.f32.mrb[0].mxu0
        %v5537 = vadd.f32 %v5344, %v5536
        %5538 = vmatprep.mubr.bf16.mxu0 %v3261
        %5539 = vmatmul.mubr.bf16.gmra.mrb[0].mxu0 %v3260
        %v5540 = vpop.f32.mrb[0].mxu0
        %v5541 = vadd.f32 %v5348, %v5540
        %v5542 = vpop.f32.mrb[0].mxu0
        %v5543 = vadd.f32 %v5350, %v5542
        %v5544 = vpop.f32.mrb[0].mxu0
        %v5545 = vadd.f32 %v5352, %v5544
        %v5546 = vpop.f32.mrb[0].mxu0
        %v5547 = vadd.f32 %v5354, %v5546
        %5548 = vmatprep.mubr.bf16.mxu0 %v3267
        %5549 = vmatmul.mubr.bf16.gmra.mrb[0].mxu0 %v3266
        %v5550 = vpop.f32.mrb[0].mxu0
        %v5551 = vadd.f32 %v5358, %v5550
        %v5552 = vpop.f32.mrb[0].mxu0
        %v5553 = vadd.f32 %v5360, %v5552
        %v5554 = vpop.f32.mrb[0].mxu0
        %v5555 = vadd.f32 %v5362, %v5554
        %v5556 = vpop.f32.mrb[0].mxu0
        %v5557 = vadd.f32 %v5364, %v5556
        %5558 = vmatprep.mubr.bf16.mxu0 %v3273
        %5559 = vmatmul.mubr.bf16.gmra.mrb[0].mxu0 %v3272
        %v5560 = vpop.f32.mrb[0].mxu0
        %v5561 = vadd.f32 %v5368, %v5560
        %v5562 = vpop.f32.mrb[0].mxu0
        %v5563 = vadd.f32 %v5370, %v5562
        %v5564 = vpop.f32.mrb[0].mxu0
        %v5565 = vadd.f32 %v5372, %v5564
        %v5566 = vpop.f32.mrb[0].mxu0
        %v5567 = vadd.f32 %v5374, %v5566
        %5568 = vmatprep.mubr.bf16.mxu0 %v3279
        %5569 = vmatmul.mubr.bf16.gmra.mrb[0].mxu0 %v3278
        %v5570 = vpop.f32.mrb[0].mxu0
        %v5571 = vadd.f32 %v5378, %v5570
        %v5572 = vpop.f32.mrb[0].mxu0
        %v5573 = vadd.f32 %v5380, %v5572
        %v5574 = vpop.f32.mrb[0].mxu0
        %v5575 = vadd.f32 %v5382, %v5574
        %v5576 = vpop.f32.mrb[0].mxu0
        %v5577 = vadd.f32 %v5384, %v5576
        %5578 = vmatprep.mubr.bf16.mxu0 %v3285
        %5579 = vmatmul.mubr.bf16.gmra.mrb[0].mxu0 %v3284
        %v5580 = vpop.f32.mrb[0].mxu0
        %v5581 = vadd.f32 %v5388, %v5580
        %v5582 = vpop.f32.mrb[0].mxu0
        %v5583 = vadd.f32 %v5390, %v5582
        %v5584 = vpop.f32.mrb[0].mxu0
        %v5585 = vadd.f32 %v5392, %v5584
        %v5586 = vpop.f32.mrb[0].mxu0
        %v5587 = vadd.f32 %v5394, %v5586
        %5588 = vmatprep.mubr.bf16.mxu0 %v3291
        %5589 = vmatmul.mubr.bf16.gmra.mrb[0].mxu0 %v3290
        %v5590 = vpop.f32.mrb[0].mxu0
        %v5591 = vadd.f32 %v5398, %v5590
        %v5592 = vpop.f32.mrb[0].mxu0
        %v5593 = vadd.f32 %v5400, %v5592
        %v5594 = vpop.f32.mrb[0].mxu0
        %v5595 = vadd.f32 %v5402, %v5594
        %v5596 = vpop.f32.mrb[0].mxu0
        %v5597 = vadd.f32 %v5404, %v5596
        %5598 = vmatprep.mubr.bf16.mxu0 %v3297
        %5599 = vmatmul.mubr.bf16.gmra.mrb[0].mxu0 %v3296
        %v5600 = vpop.f32.mrb[0].mxu0
        %v5601 = vadd.f32 %v5408, %v5600
        %v5602 = vpop.f32.mrb[0].mxu0
        %v5603 = vadd.f32 %v5410, %v5602
        %v5604 = vpop.f32.mrb[0].mxu0
        %v5605 = vadd.f32 %v5412, %v5604
        %v5606 = vpop.f32.mrb[0].mxu0
        %v5607 = vadd.f32 %v5414, %v5606
        %5608 = vmatprep.mubr.bf16.mxu0 %v3303
        %5609 = vmatmul.mubr.bf16.gmra.mrb[0].mxu0 %v3302
        %v5610 = vpop.f32.mrb[0].mxu0
        %v5611 = vadd.f32 %v5418, %v5610
        %v5612 = vpop.f32.mrb[0].mxu0
        %v5613 = vadd.f32 %v5420, %v5612
        %v5614 = vpop.f32.mrb[0].mxu0
        %v5615 = vadd.f32 %v5422, %v5614
        %v5616 = vpop.f32.mrb[0].mxu0
        %v5617 = vadd.f32 %v5424, %v5616
        %5618 = vmatprep.mubr.bf16.mxu0 %v3309
        %5619 = vmatmul.mubr.bf16.gmra.mrb[0].mxu0 %v3308
        %v5620 = vpop.f32.mrb[0].mxu0
        %v5621 = vadd.f32 %v5428, %v5620
        %v5622 = vpop.f32.mrb[0].mxu0
        %v5623 = vadd.f32 %v5430, %v5622
        %v5624 = vpop.f32.mrb[0].mxu0
        %v5625 = vadd.f32 %v5432, %v5624
        %v5626 = vpop.f32.mrb[0].mxu0
        %v5627 = vadd.f32 %v5434, %v5626
        %5628 = vmatprep.mubr.bf16.mxu0 %v3315
        %5629 = vmatmul.mubr.bf16.gmra.mrb[0].mxu0 %v3314
        %v5630 = vpop.f32.mrb[0].mxu0
        %v5631 = vadd.f32 %v5438, %v5630
        %v5632 = vpop.f32.mrb[0].mxu0
        %v5633 = vadd.f32 %v5440, %v5632
        %v5634 = vpop.f32.mrb[0].mxu0
        %v5635 = vadd.f32 %v5442, %v5634
        %v5636 = vpop.f32.mrb[0].mxu0
        %v5637 = vadd.f32 %v5444, %v5636
        %5638 = vmatprep.mubr.bf16.mxu0 %v3321
        %5639 = vmatmul.mubr.bf16.gmra.mrb[0].mxu0 %v3320
        %v5640 = vpop.f32.mrb[0].mxu0
        %v5641 = vadd.f32 %v5448, %v5640
        %v5642 = vpop.f32.mrb[0].mxu0
        %v5643 = vadd.f32 %v5450, %v5642
        %v5644 = vpop.f32.mrb[0].mxu0
        %v5645 = vadd.f32 %v5452, %v5644
        %v5646 = vpop.f32.mrb[0].mxu0
        %v5647 = vadd.f32 %v5454, %v5646
        %5648 = vdwg.mxu0
        %5649 = vmatprep.subr.bf16.mxu0 %v4591
        %5650 = vmatpush1.bf16.msra.mxu0 %v4590
        %5651 = vmatprep.subr.bf16.mxu0 %v4593
        %5652 = vmatpush1.bf16.msra.mxu0 %v4592
        %5653 = vmatprep.subr.bf16.mxu0 %v4595
        %5654 = vmatpush1.bf16.msra.mxu0 %v4594
        %5655 = vmatprep.subr.bf16.mxu0 %v4597
        %5656 = vmatpush1.bf16.msra.mxu0 %v4596
        %5657 = vmatprep.subr.bf16.mxu0 %v4599
        %5658 = vmatpush1.bf16.msra.mxu0 %v4598
        %5659 = vmatprep.subr.bf16.mxu0 %v4601
        %5660 = vmatpush1.bf16.msra.mxu0 %v4600
        %5661 = vmatprep.subr.bf16.mxu0 %v4603
        %5662 = vmatpush1.bf16.msra.mxu0 %v4602
        %5663 = vmatprep.subr.bf16.mxu0 %v4605
        %5664 = vmatpush1.bf16.msra.mxu0 %v4604
        %5665 = vmatprep.subr.bf16.mxu0 %v4607
        %5666 = vmatpush1.bf16.msra.mxu0 %v4606
        %5667 = vmatprep.subr.bf16.mxu0 %v4609
        %5668 = vmatpush1.bf16.msra.mxu0 %v4608
        %5669 = vmatprep.subr.bf16.mxu0 %v4611
        %5670 = vmatpush1.bf16.msra.mxu0 %v4610
        %5671 = vmatprep.subr.bf16.mxu0 %v4613
        %5672 = vmatpush1.bf16.msra.mxu0 %v4612
        %5673 = vmatprep.subr.bf16.mxu0 %v4615
        %5674 = vmatpush1.bf16.msra.mxu0 %v4614
        %5675 = vmatprep.subr.bf16.mxu0 %v4617
        %5676 = vmatpush1.bf16.msra.mxu0 %v4616
        %5677 = vmatprep.subr.bf16.mxu0 %v4619
        %5678 = vmatpush1.bf16.msra.mxu0 %v4618
        %5679 = vmatprep.subr.bf16.mxu0 %v4621
        %5680 = vmatpush1.bf16.msra.mxu0 %v4620
        %5681 = vmatprep.mubr.bf16.mxu0 %v3233
        %5682 = vmatmul.mubr.bf16.gmra.mrb[0].mxu0 %v3232
        %v5683 = vpop.f32.mrb[0].mxu0
        %v5684 = vadd.f32 %v5491, %v5683
        %v5685 = vpop.f32.mrb[0].mxu0
        %v5686 = vadd.f32 %v5493, %v5685
        %v5687 = vpop.f32.mrb[0].mxu0
        %v5688 = vadd.f32 %v5495, %v5687
        %v5689 = vpop.f32.mrb[0].mxu0
        %v5690 = vadd.f32 %v5497, %v5689
        %5691 = vmatprep.mubr.bf16.mxu0 %v3239
        %5692 = vmatmul.mubr.bf16.gmra.mrb[0].mxu0 %v3238
        %v5693 = vpop.f32.mrb[0].mxu0
        %v5694 = vadd.f32 %v5501, %v5693
        %v5695 = vpop.f32.mrb[0].mxu0
        %v5696 = vadd.f32 %v5503, %v5695
        %v5697 = vpop.f32.mrb[0].mxu0
        %v5698 = vadd.f32 %v5505, %v5697
        %v5699 = vpop.f32.mrb[0].mxu0
        %v5700 = vadd.f32 %v5507, %v5699
        %5701 = vmatprep.mubr.bf16.mxu0 %v3245
        %5702 = vmatmul.mubr.bf16.gmra.mrb[0].mxu0 %v3244
        %v5703 = vpop.f32.mrb[0].mxu0
        %v5704 = vadd.f32 %v5511, %v5703
        %v5705 = vpop.f32.mrb[0].mxu0
        %v5706 = vadd.f32 %v5513, %v5705
        %v5707 = vpop.f32.mrb[0].mxu0
        %v5708 = vadd.f32 %v5515, %v5707
        %v5709 = vpop.f32.mrb[0].mxu0
        %v5710 = vadd.f32 %v5517, %v5709
        %5711 = vmatprep.mubr.bf16.mxu0 %v3251
        %5712 = vmatmul.mubr.bf16.gmra.mrb[0].mxu0 %v3250
        %v5713 = vpop.f32.mrb[0].mxu0
        %v5714 = vadd.f32 %v5521, %v5713
        %v5715 = vpop.f32.mrb[0].mxu0
        %v5716 = vadd.f32 %v5523, %v5715
        %v5717 = vpop.f32.mrb[0].mxu0
        %v5718 = vadd.f32 %v5525, %v5717
        %v5719 = vpop.f32.mrb[0].mxu0
        %v5720 = vadd.f32 %v5527, %v5719
        %5721 = vmatprep.mubr.bf16.mxu0 %v3257
        %5722 = vmatmul.mubr.bf16.gmra.mrb[0].mxu0 %v3256
        %v5723 = vpop.f32.mrb[0].mxu0
        %v5724 = vadd.f32 %v5531, %v5723
        %v5725 = vpop.f32.mrb[0].mxu0
        %v5726 = vadd.f32 %v5533, %v5725
        %v5727 = vpop.f32.mrb[0].mxu0
        %v5728 = vadd.f32 %v5535, %v5727
        %v5729 = vpop.f32.mrb[0].mxu0
        %v5730 = vadd.f32 %v5537, %v5729
        %5731 = vmatprep.mubr.bf16.mxu0 %v3263
        %5732 = vmatmul.mubr.bf16.gmra.mrb[0].mxu0 %v3262
        %v5733 = vpop.f32.mrb[0].mxu0
        %v5734 = vadd.f32 %v5541, %v5733
        %v5735 = vpop.f32.mrb[0].mxu0
        %v5736 = vadd.f32 %v5543, %v5735
        %v5737 = vpop.f32.mrb[0].mxu0
        %v5738 = vadd.f32 %v5545, %v5737
        %v5739 = vpop.f32.mrb[0].mxu0
        %v5740 = vadd.f32 %v5547, %v5739
        %5741 = vmatprep.mubr.bf16.mxu0 %v3269
        %5742 = vmatmul.mubr.bf16.gmra.mrb[0].mxu0 %v3268
        %v5743 = vpop.f32.mrb[0].mxu0
        %v5744 = vadd.f32 %v5551, %v5743
        %v5745 = vpop.f32.mrb[0].mxu0
        %v5746 = vadd.f32 %v5553, %v5745
        %v5747 = vpop.f32.mrb[0].mxu0
        %v5748 = vadd.f32 %v5555, %v5747
        %v5749 = vpop.f32.mrb[0].mxu0
        %v5750 = vadd.f32 %v5557, %v5749
        %5751 = vmatprep.mubr.bf16.mxu0 %v3275
        %5752 = vmatmul.mubr.bf16.gmra.mrb[0].mxu0 %v3274
        %v5753 = vpop.f32.mrb[0].mxu0
        %v5754 = vadd.f32 %v5561, %v5753
        %v5755 = vpop.f32.mrb[0].mxu0
        %v5756 = vadd.f32 %v5563, %v5755
        %v5757 = vpop.f32.mrb[0].mxu0
        %v5758 = vadd.f32 %v5565, %v5757
        %v5759 = vpop.f32.mrb[0].mxu0
        %v5760 = vadd.f32 %v5567, %v5759
        %5761 = vmatprep.mubr.bf16.mxu0 %v3281
        %5762 = vmatmul.mubr.bf16.gmra.mrb[0].mxu0 %v3280
        %v5763 = vpop.f32.mrb[0].mxu0
        %v5764 = vadd.f32 %v5571, %v5763
        %v5765 = vpop.f32.mrb[0].mxu0
        %v5766 = vadd.f32 %v5573, %v5765
        %v5767 = vpop.f32.mrb[0].mxu0
        %v5768 = vadd.f32 %v5575, %v5767
        %v5769 = vpop.f32.mrb[0].mxu0
        %v5770 = vadd.f32 %v5577, %v5769
        %5771 = vmatprep.mubr.bf16.mxu0 %v3287
        %5772 = vmatmul.mubr.bf16.gmra.mrb[0].mxu0 %v3286
        %v5773 = vpop.f32.mrb[0].mxu0
        %v5774 = vadd.f32 %v5581, %v5773
        %v5775 = vpop.f32.mrb[0].mxu0
        %v5776 = vadd.f32 %v5583, %v5775
        %v5777 = vpop.f32.mrb[0].mxu0
        %v5778 = vadd.f32 %v5585, %v5777
        %v5779 = vpop.f32.mrb[0].mxu0
        %v5780 = vadd.f32 %v5587, %v5779
        %5781 = vmatprep.mubr.bf16.mxu0 %v3293
        %5782 = vmatmul.mubr.bf16.gmra.mrb[0].mxu0 %v3292
        %v5783 = vpop.f32.mrb[0].mxu0
        %v5784 = vadd.f32 %v5591, %v5783
        %v5785 = vpop.f32.mrb[0].mxu0
        %v5786 = vadd.f32 %v5593, %v5785
        %v5787 = vpop.f32.mrb[0].mxu0
        %v5788 = vadd.f32 %v5595, %v5787
        %v5789 = vpop.f32.mrb[0].mxu0
        %v5790 = vadd.f32 %v5597, %v5789
        %5791 = vmatprep.mubr.bf16.mxu0 %v3299
        %5792 = vmatmul.mubr.bf16.gmra.mrb[0].mxu0 %v3298
        %v5793 = vpop.f32.mrb[0].mxu0
        %v5794 = vadd.f32 %v5601, %v5793
        %v5795 = vpop.f32.mrb[0].mxu0
        %v5796 = vadd.f32 %v5603, %v5795
        %v5797 = vpop.f32.mrb[0].mxu0
        %v5798 = vadd.f32 %v5605, %v5797
        %v5799 = vpop.f32.mrb[0].mxu0
        %v5800 = vadd.f32 %v5607, %v5799
        %5801 = vmatprep.mubr.bf16.mxu0 %v3305
        %5802 = vmatmul.mubr.bf16.gmra.mrb[0].mxu0 %v3304
        %v5803 = vpop.f32.mrb[0].mxu0
        %v5804 = vadd.f32 %v5611, %v5803
        %v5805 = vpop.f32.mrb[0].mxu0
        %v5806 = vadd.f32 %v5613, %v5805
        %v5807 = vpop.f32.mrb[0].mxu0
        %v5808 = vadd.f32 %v5615, %v5807
        %v5809 = vpop.f32.mrb[0].mxu0
        %v5810 = vadd.f32 %v5617, %v5809
        %5811 = vmatprep.mubr.bf16.mxu0 %v3311
        %5812 = vmatmul.mubr.bf16.gmra.mrb[0].mxu0 %v3310
        %v5813 = vpop.f32.mrb[0].mxu0
        %v5814 = vadd.f32 %v5621, %v5813
        %v5815 = vpop.f32.mrb[0].mxu0
        %v5816 = vadd.f32 %v5623, %v5815
        %v5817 = vpop.f32.mrb[0].mxu0
        %v5818 = vadd.f32 %v5625, %v5817
        %v5819 = vpop.f32.mrb[0].mxu0
        %v5820 = vadd.f32 %v5627, %v5819
        %5821 = vmatprep.mubr.bf16.mxu0 %v3317
        %5822 = vmatmul.mubr.bf16.gmra.mrb[0].mxu0 %v3316
        %v5823 = vpop.f32.mrb[0].mxu0
        %v5824 = vadd.f32 %v5631, %v5823
        %v5825 = vpop.f32.mrb[0].mxu0
        %v5826 = vadd.f32 %v5633, %v5825
        %v5827 = vpop.f32.mrb[0].mxu0
        %v5828 = vadd.f32 %v5635, %v5827
        %v5829 = vpop.f32.mrb[0].mxu0
        %v5830 = vadd.f32 %v5637, %v5829
        %5831 = vmatprep.mubr.bf16.mxu0 %v3323
        %5832 = vmatmul.mubr.bf16.gmra.mrb[0].mxu0 %v3322
        %v5833 = vpop.f32.mrb[0].mxu0
        %v5834 = vadd.f32 %v5641, %v5833
        %v5835 = vpop.f32.mrb[0].mxu0
        %v5836 = vadd.f32 %v5643, %v5835
        %v5837 = vpop.f32.mrb[0].mxu0
        %v5838 = vadd.f32 %v5645, %v5837
        %v5839 = vpop.f32.mrb[0].mxu0
        %v5840 = vadd.f32 %v5647, %v5839
        %5841 = vdwg.mxu0
        %5842 = vmatprep.subr.bf16.mxu0 %v4623
        %5843 = vmatpush1.bf16.msra.mxu0 %v4622
        %5844 = vmatprep.subr.bf16.mxu0 %v4625
        %5845 = vmatpush1.bf16.msra.mxu0 %v4624
        %5846 = vmatprep.subr.bf16.mxu0 %v4627
        %5847 = vmatpush1.bf16.msra.mxu0 %v4626
        %5848 = vmatprep.subr.bf16.mxu0 %v4629
        %5849 = vmatpush1.bf16.msra.mxu0 %v4628
        %5850 = vmatprep.subr.bf16.mxu0 %v4631
        %5851 = vmatpush1.bf16.msra.mxu0 %v4630
        %5852 = vmatprep.subr.bf16.mxu0 %v4633
        %5853 = vmatpush1.bf16.msra.mxu0 %v4632
        %5854 = vmatprep.subr.bf16.mxu0 %v4635
        %5855 = vmatpush1.bf16.msra.mxu0 %v4634
        %5856 = vmatprep.subr.bf16.mxu0 %v4637
        %5857 = vmatpush1.bf16.msra.mxu0 %v4636
        %5858 = vmatprep.subr.bf16.mxu0 %v4639
        %5859 = vmatpush1.bf16.msra.mxu0 %v4638
        %5860 = vmatprep.subr.bf16.mxu0 %v4641
        %5861 = vmatpush1.bf16.msra.mxu0 %v4640
        %5862 = vmatprep.subr.bf16.mxu0 %v4643
        %5863 = vmatpush1.bf16.msra.mxu0 %v4642
        %5864 = vmatprep.subr.bf16.mxu0 %v4645
        %5865 = vmatpush1.bf16.msra.mxu0 %v4644
        %5866 = vmatprep.subr.bf16.mxu0 %v4647
        %5867 = vmatpush1.bf16.msra.mxu0 %v4646
        %5868 = vmatprep.subr.bf16.mxu0 %v4649
        %5869 = vmatpush1.bf16.msra.mxu0 %v4648
        %5870 = vmatprep.subr.bf16.mxu0 %v4651
        %5871 = vmatpush1.bf16.msra.mxu0 %v4650
        %5872 = vmatprep.subr.bf16.mxu0 %v4653
        %5873 = vmatpush1.bf16.msra.mxu0 %v4652
        %5874 = vmatprep.mubr.bf16.mxu0 %v3235
        %5875 = vmatmul.mubr.bf16.gmra.mrb[0].mxu0 %v3234
        %v5876 = vpop.f32.mrb[0].mxu0
        %v5877 = vadd.f32 %v5684, %v5876
        %v5878 = vpop.f32.mrb[0].mxu0
        %v5879 = vadd.f32 %v5686, %v5878
        %v5880 = vpop.f32.mrb[0].mxu0
        %v5881 = vadd.f32 %v5688, %v5880
        %v5882 = vpop.f32.mrb[0].mxu0
        %v5883 = vadd.f32 %v5690, %v5882
        %5884 = vmatprep.mubr.bf16.mxu0 %v3241
        %5885 = vmatmul.mubr.bf16.gmra.mrb[0].mxu0 %v3240
        %v5886 = vpop.f32.mrb[0].mxu0
        %v5887 = vadd.f32 %v5694, %v5886
        %v5888 = vpop.f32.mrb[0].mxu0
        %v5889 = vadd.f32 %v5696, %v5888
        %v5890 = vpop.f32.mrb[0].mxu0
        %v5891 = vadd.f32 %v5698, %v5890
        %v5892 = vpop.f32.mrb[0].mxu0
        %v5893 = vadd.f32 %v5700, %v5892
        %5894 = vmatprep.mubr.bf16.mxu0 %v3247
        %5895 = vmatmul.mubr.bf16.gmra.mrb[0].mxu0 %v3246
        %v5896 = vpop.f32.mrb[0].mxu0
        %v5897 = vadd.f32 %v5704, %v5896
        %v5898 = vpop.f32.mrb[0].mxu0
        %v5899 = vadd.f32 %v5706, %v5898
        %v5900 = vpop.f32.mrb[0].mxu0
        %v5901 = vadd.f32 %v5708, %v5900
        %v5902 = vpop.f32.mrb[0].mxu0
        %v5903 = vadd.f32 %v5710, %v5902
        %5904 = vmatprep.mubr.bf16.mxu0 %v3253
        %5905 = vmatmul.mubr.bf16.gmra.mrb[0].mxu0 %v3252
        %v5906 = vpop.f32.mrb[0].mxu0
        %v5907 = vadd.f32 %v5714, %v5906
        %v5908 = vpop.f32.mrb[0].mxu0
        %v5909 = vadd.f32 %v5716, %v5908
        %v5910 = vpop.f32.mrb[0].mxu0
        %v5911 = vadd.f32 %v5718, %v5910
        %v5912 = vpop.f32.mrb[0].mxu0
        %v5913 = vadd.f32 %v5720, %v5912
        %5914 = vmatprep.mubr.bf16.mxu0 %v3259
        %5915 = vmatmul.mubr.bf16.gmra.mrb[0].mxu0 %v3258
        %v5916 = vpop.f32.mrb[0].mxu0
        %v5917 = vadd.f32 %v5724, %v5916
        %v5918 = vpop.f32.mrb[0].mxu0
        %v5919 = vadd.f32 %v5726, %v5918
        %v5920 = vpop.f32.mrb[0].mxu0
        %v5921 = vadd.f32 %v5728, %v5920
        %v5922 = vpop.f32.mrb[0].mxu0
        %v5923 = vadd.f32 %v5730, %v5922
        %5924 = vmatprep.mubr.bf16.mxu0 %v3265
        %5925 = vmatmul.mubr.bf16.gmra.mrb[0].mxu0 %v3264
        %v5926 = vpop.f32.mrb[0].mxu0
        %v5927 = vadd.f32 %v5734, %v5926
        %v5928 = vpop.f32.mrb[0].mxu0
        %v5929 = vadd.f32 %v5736, %v5928
        %v5930 = vpop.f32.mrb[0].mxu0
        %v5931 = vadd.f32 %v5738, %v5930
        %v5932 = vpop.f32.mrb[0].mxu0
        %v5933 = vadd.f32 %v5740, %v5932
        %5934 = vmatprep.mubr.bf16.mxu0 %v3271
        %5935 = vmatmul.mubr.bf16.gmra.mrb[0].mxu0 %v3270
        %v5936 = vpop.f32.mrb[0].mxu0
        %v5937 = vadd.f32 %v5744, %v5936
        %v5938 = vpop.f32.mrb[0].mxu0
        %v5939 = vadd.f32 %v5746, %v5938
        %v5940 = vpop.f32.mrb[0].mxu0
        %v5941 = vadd.f32 %v5748, %v5940
        %v5942 = vpop.f32.mrb[0].mxu0
        %v5943 = vadd.f32 %v5750, %v5942
        %5944 = vmatprep.mubr.bf16.mxu0 %v3277
        %5945 = vmatmul.mubr.bf16.gmra.mrb[0].mxu0 %v3276
        %v5946 = vpop.f32.mrb[0].mxu0
        %v5947 = vadd.f32 %v5754, %v5946
        %v5948 = vpop.f32.mrb[0].mxu0
        %v5949 = vadd.f32 %v5756, %v5948
        %v5950 = vpop.f32.mrb[0].mxu0
        %v5951 = vadd.f32 %v5758, %v5950
        %v5952 = vpop.f32.mrb[0].mxu0
        %v5953 = vadd.f32 %v5760, %v5952
        %5954 = vmatprep.mubr.bf16.mxu0 %v3283
        %5955 = vmatmul.mubr.bf16.gmra.mrb[0].mxu0 %v3282
        %v5956 = vpop.f32.mrb[0].mxu0
        %v5957 = vadd.f32 %v5764, %v5956
        %v5958 = vpop.f32.mrb[0].mxu0
        %v5959 = vadd.f32 %v5766, %v5958
        %v5960 = vpop.f32.mrb[0].mxu0
        %v5961 = vadd.f32 %v5768, %v5960
        %v5962 = vpop.f32.mrb[0].mxu0
        %v5963 = vadd.f32 %v5770, %v5962
        %5964 = vmatprep.mubr.bf16.mxu0 %v3289
        %5965 = vmatmul.mubr.bf16.gmra.mrb[0].mxu0 %v3288
        %v5966 = vpop.f32.mrb[0].mxu0
        %v5967 = vadd.f32 %v5774, %v5966
        %v5968 = vpop.f32.mrb[0].mxu0
        %v5969 = vadd.f32 %v5776, %v5968
        %v5970 = vpop.f32.mrb[0].mxu0
        %v5971 = vadd.f32 %v5778, %v5970
        %v5972 = vpop.f32.mrb[0].mxu0
        %v5973 = vadd.f32 %v5780, %v5972
        %5974 = vmatprep.mubr.bf16.mxu0 %v3295
        %5975 = vmatmul.mubr.bf16.gmra.mrb[0].mxu0 %v3294
        %v5976 = vpop.f32.mrb[0].mxu0
        %v5977 = vadd.f32 %v5784, %v5976
        %v5978 = vpop.f32.mrb[0].mxu0
        %v5979 = vadd.f32 %v5786, %v5978
        %v5980 = vpop.f32.mrb[0].mxu0
        %v5981 = vadd.f32 %v5788, %v5980
        %v5982 = vpop.f32.mrb[0].mxu0
        %v5983 = vadd.f32 %v5790, %v5982
        %5984 = vmatprep.mubr.bf16.mxu0 %v3301
        %5985 = vmatmul.mubr.bf16.gmra.mrb[0].mxu0 %v3300
        %v5986 = vpop.f32.mrb[0].mxu0
        %v5987 = vadd.f32 %v5794, %v5986
        %v5988 = vpop.f32.mrb[0].mxu0
        %v5989 = vadd.f32 %v5796, %v5988
        %v5990 = vpop.f32.mrb[0].mxu0
        %v5991 = vadd.f32 %v5798, %v5990
        %v5992 = vpop.f32.mrb[0].mxu0
        %v5993 = vadd.f32 %v5800, %v5992
        %5994 = vmatprep.mubr.bf16.mxu0 %v3307
        %5995 = vmatmul.mubr.bf16.gmra.mrb[0].mxu0 %v3306
        %v5996 = vpop.f32.mrb[0].mxu0
        %v5997 = vadd.f32 %v5804, %v5996
        %v5998 = vpop.f32.mrb[0].mxu0
        %v5999 = vadd.f32 %v5806, %v5998
        %v6000 = vpop.f32.mrb[0].mxu0
        %v6001 = vadd.f32 %v5808, %v6000
        %v6002 = vpop.f32.mrb[0].mxu0
        %v6003 = vadd.f32 %v5810, %v6002
        %6004 = vmatprep.mubr.bf16.mxu0 %v3313
        %6005 = vmatmul.mubr.bf16.gmra.mrb[0].mxu0 %v3312
        %v6006 = vpop.f32.mrb[0].mxu0
        %v6007 = vadd.f32 %v5814, %v6006
        %v6008 = vpop.f32.mrb[0].mxu0
        %v6009 = vadd.f32 %v5816, %v6008
        %v6010 = vpop.f32.mrb[0].mxu0
        %v6011 = vadd.f32 %v5818, %v6010
        %v6012 = vpop.f32.mrb[0].mxu0
        %v6013 = vadd.f32 %v5820, %v6012
        %6014 = vmatprep.mubr.bf16.mxu0 %v3319
        %6015 = vmatmul.mubr.bf16.gmra.mrb[0].mxu0 %v3318
        %v6016 = vpop.f32.mrb[0].mxu0
        %v6017 = vadd.f32 %v5824, %v6016
        %v6018 = vpop.f32.mrb[0].mxu0
        %v6019 = vadd.f32 %v5826, %v6018
        %v6020 = vpop.f32.mrb[0].mxu0
        %v6021 = vadd.f32 %v5828, %v6020
        %v6022 = vpop.f32.mrb[0].mxu0
        %v6023 = vadd.f32 %v5830, %v6022
        %6024 = vmatprep.mubr.bf16.mxu0 %v3325
        %6025 = vmatmul.mubr.bf16.gmra.mrb[0].mxu0 %v3324
        %v6026 = vpop.f32.mrb[0].mxu0
        %v6027 = vadd.f32 %v5834, %v6026
        %v6028 = vpop.f32.mrb[0].mxu0
        %v6029 = vadd.f32 %v5836, %v6028
        %v6030 = vpop.f32.mrb[0].mxu0
        %v6031 = vadd.f32 %v5838, %v6030
        %v6032 = vpop.f32.mrb[0].mxu0
        %v6033 = vadd.f32 %v5840, %v6032
        %6034 = vdwg.mxu0
        %6035 = vmatprep.subr.bf16.mxu0 %v4655
        %6036 = vmatpush1.bf16.msra.mxu0 %v4654
        %6037 = vmatprep.subr.bf16.mxu0 %v4657
        %6038 = vmatpush1.bf16.msra.mxu0 %v4656
        %6039 = vmatprep.subr.bf16.mxu0 %v4659
        %6040 = vmatpush1.bf16.msra.mxu0 %v4658
        %6041 = vmatprep.subr.bf16.mxu0 %v4661
        %6042 = vmatpush1.bf16.msra.mxu0 %v4660
        %6043 = vmatprep.subr.bf16.mxu0 %v4663
        %6044 = vmatpush1.bf16.msra.mxu0 %v4662
        %6045 = vmatprep.subr.bf16.mxu0 %v4665
        %6046 = vmatpush1.bf16.msra.mxu0 %v4664
        %6047 = vmatprep.subr.bf16.mxu0 %v4667
        %6048 = vmatpush1.bf16.msra.mxu0 %v4666
        %6049 = vmatprep.subr.bf16.mxu0 %v4669
        %6050 = vmatpush1.bf16.msra.mxu0 %v4668
        %6051 = vmatprep.subr.bf16.mxu0 %v4671
        %6052 = vmatpush1.bf16.msra.mxu0 %v4670
        %6053 = vmatprep.subr.bf16.mxu0 %v4673
        %6054 = vmatpush1.bf16.msra.mxu0 %v4672
        %6055 = vmatprep.subr.bf16.mxu0 %v4675
        %6056 = vmatpush1.bf16.msra.mxu0 %v4674
        %6057 = vmatprep.subr.bf16.mxu0 %v4677
        %6058 = vmatpush1.bf16.msra.mxu0 %v4676
        %6059 = vmatprep.subr.bf16.mxu0 %v4679
        %6060 = vmatpush1.bf16.msra.mxu0 %v4678
        %6061 = vmatprep.subr.bf16.mxu0 %v4681
        %6062 = vmatpush1.bf16.msra.mxu0 %v4680
        %6063 = vmatprep.subr.bf16.mxu0 %v4683
        %6064 = vmatpush1.bf16.msra.mxu0 %v4682
        %6065 = vmatprep.subr.bf16.mxu0 %v4685
        %6066 = vmatpush1.bf16.msra.mxu0 %v4684
        %6067 = vmatprep.mubr.bf16.mxu0 %v3237
        %6068 = vmatmul.mubr.bf16.gmra.mrb[0].mxu0 %v3236
        %v6069 = vpop.f32.mrb[0].mxu0
        %v6070 = vadd.f32 %v5877, %v6069
        %v6071 = vpop.f32.mrb[0].mxu0
        %v6072 = vadd.f32 %v5879, %v6071
        %v6073 = vpop.f32.mrb[0].mxu0
        %v6074 = vadd.f32 %v5881, %v6073
        %v6075 = vpop.f32.mrb[0].mxu0
        %v6076 = vadd.f32 %v5883, %v6075
        %6077 = vmatprep.mubr.bf16.mxu0 %v3243
        %6078 = vmatmul.mubr.bf16.gmra.mrb[0].mxu0 %v3242
        %v6079 = vpop.f32.mrb[0].mxu0
        %v6080 = vadd.f32 %v5887, %v6079
        %v6081 = vpop.f32.mrb[0].mxu0
        %v6082 = vadd.f32 %v5889, %v6081
        %v6083 = vpop.f32.mrb[0].mxu0
        %v6084 = vadd.f32 %v5891, %v6083
        %v6085 = vpop.f32.mrb[0].mxu0
        %v6086 = vadd.f32 %v5893, %v6085
        %6087 = vmatprep.mubr.bf16.mxu0 %v3249
        %6088 = vmatmul.mubr.bf16.gmra.mrb[0].mxu0 %v3248
        %v6089 = vpop.f32.mrb[0].mxu0
        %v6090 = vadd.f32 %v5897, %v6089
        %v6091 = vpop.f32.mrb[0].mxu0
        %v6092 = vadd.f32 %v5899, %v6091
        %v6093 = vpop.f32.mrb[0].mxu0
        %v6094 = vadd.f32 %v5901, %v6093
        %v6095 = vpop.f32.mrb[0].mxu0
        %v6096 = vadd.f32 %v5903, %v6095
        %6097 = vmatprep.mubr.bf16.mxu0 %v3255
        %6098 = vmatmul.mubr.bf16.gmra.mrb[0].mxu0 %v3254
        %v6099 = vpop.f32.mrb[0].mxu0
        %v6100 = vadd.f32 %v5907, %v6099
        %v6101 = vpop.f32.mrb[0].mxu0
        %v6102 = vadd.f32 %v5909, %v6101
        %v6103 = vpop.f32.mrb[0].mxu0
        %v6104 = vadd.f32 %v5911, %v6103
        %v6105 = vpop.f32.mrb[0].mxu0
        %v6106 = vadd.f32 %v5913, %v6105
        %6107 = vmatprep.mubr.bf16.mxu0 %v3261
        %6108 = vmatmul.mubr.bf16.gmra.mrb[0].mxu0 %v3260
        %v6109 = vpop.f32.mrb[0].mxu0
        %v6110 = vadd.f32 %v5917, %v6109
        %v6111 = vpop.f32.mrb[0].mxu0
        %v6112 = vadd.f32 %v5919, %v6111
        %v6113 = vpop.f32.mrb[0].mxu0
        %v6114 = vadd.f32 %v5921, %v6113
        %v6115 = vpop.f32.mrb[0].mxu0
        %v6116 = vadd.f32 %v5923, %v6115
        %6117 = vmatprep.mubr.bf16.mxu0 %v3267
        %6118 = vmatmul.mubr.bf16.gmra.mrb[0].mxu0 %v3266
        %v6119 = vpop.f32.mrb[0].mxu0
        %v6120 = vadd.f32 %v5927, %v6119
        %v6121 = vpop.f32.mrb[0].mxu0
        %v6122 = vadd.f32 %v5929, %v6121
        %v6123 = vpop.f32.mrb[0].mxu0
        %v6124 = vadd.f32 %v5931, %v6123
        %v6125 = vpop.f32.mrb[0].mxu0
        %v6126 = vadd.f32 %v5933, %v6125
        %6127 = vmatprep.mubr.bf16.mxu0 %v3273
        %6128 = vmatmul.mubr.bf16.gmra.mrb[0].mxu0 %v3272
        %v6129 = vpop.f32.mrb[0].mxu0
        %v6130 = vadd.f32 %v5937, %v6129
        %v6131 = vpop.f32.mrb[0].mxu0
        %v6132 = vadd.f32 %v5939, %v6131
        %v6133 = vpop.f32.mrb[0].mxu0
        %v6134 = vadd.f32 %v5941, %v6133
        %v6135 = vpop.f32.mrb[0].mxu0
        %v6136 = vadd.f32 %v5943, %v6135
        %6137 = vmatprep.mubr.bf16.mxu0 %v3279
        %6138 = vmatmul.mubr.bf16.gmra.mrb[0].mxu0 %v3278
        %v6139 = vpop.f32.mrb[0].mxu0
        %v6140 = vadd.f32 %v5947, %v6139
        %v6141 = vpop.f32.mrb[0].mxu0
        %v6142 = vadd.f32 %v5949, %v6141
        %v6143 = vpop.f32.mrb[0].mxu0
        %v6144 = vadd.f32 %v5951, %v6143
        %v6145 = vpop.f32.mrb[0].mxu0
        %v6146 = vadd.f32 %v5953, %v6145
        %6147 = vmatprep.mubr.bf16.mxu0 %v3285
        %6148 = vmatmul.mubr.bf16.gmra.mrb[0].mxu0 %v3284
        %v6149 = vpop.f32.mrb[0].mxu0
        %v6150 = vadd.f32 %v5957, %v6149
        %v6151 = vpop.f32.mrb[0].mxu0
        %v6152 = vadd.f32 %v5959, %v6151
        %v6153 = vpop.f32.mrb[0].mxu0
        %v6154 = vadd.f32 %v5961, %v6153
        %v6155 = vpop.f32.mrb[0].mxu0
        %v6156 = vadd.f32 %v5963, %v6155
        %6157 = vmatprep.mubr.bf16.mxu0 %v3291
        %6158 = vmatmul.mubr.bf16.gmra.mrb[0].mxu0 %v3290
        %v6159 = vpop.f32.mrb[0].mxu0
        %v6160 = vadd.f32 %v5967, %v6159
        %v6161 = vpop.f32.mrb[0].mxu0
        %v6162 = vadd.f32 %v5969, %v6161
        %v6163 = vpop.f32.mrb[0].mxu0
        %v6164 = vadd.f32 %v5971, %v6163
        %v6165 = vpop.f32.mrb[0].mxu0
        %v6166 = vadd.f32 %v5973, %v6165
        %6167 = vmatprep.mubr.bf16.mxu0 %v3297
        %6168 = vmatmul.mubr.bf16.gmra.mrb[0].mxu0 %v3296
        %v6169 = vpop.f32.mrb[0].mxu0
        %v6170 = vadd.f32 %v5977, %v6169
        %v6171 = vpop.f32.mrb[0].mxu0
        %v6172 = vadd.f32 %v5979, %v6171
        %v6173 = vpop.f32.mrb[0].mxu0
        %v6174 = vadd.f32 %v5981, %v6173
        %v6175 = vpop.f32.mrb[0].mxu0
        %v6176 = vadd.f32 %v5983, %v6175
        %6177 = vmatprep.mubr.bf16.mxu0 %v3303
        %6178 = vmatmul.mubr.bf16.gmra.mrb[0].mxu0 %v3302
        %v6179 = vpop.f32.mrb[0].mxu0
        %v6180 = vadd.f32 %v5987, %v6179
        %v6181 = vpop.f32.mrb[0].mxu0
        %v6182 = vadd.f32 %v5989, %v6181
        %v6183 = vpop.f32.mrb[0].mxu0
        %v6184 = vadd.f32 %v5991, %v6183
        %v6185 = vpop.f32.mrb[0].mxu0
        %v6186 = vadd.f32 %v5993, %v6185
        %6187 = vmatprep.mubr.bf16.mxu0 %v3309
        %6188 = vmatmul.mubr.bf16.gmra.mrb[0].mxu0 %v3308
        %v6189 = vpop.f32.mrb[0].mxu0
        %v6190 = vadd.f32 %v5997, %v6189
        %v6191 = vpop.f32.mrb[0].mxu0
        %v6192 = vadd.f32 %v5999, %v6191
        %v6193 = vpop.f32.mrb[0].mxu0
        %v6194 = vadd.f32 %v6001, %v6193
        %v6195 = vpop.f32.mrb[0].mxu0
        %v6196 = vadd.f32 %v6003, %v6195
        %6197 = vmatprep.mubr.bf16.mxu0 %v3315
        %6198 = vmatmul.mubr.bf16.gmra.mrb[0].mxu0 %v3314
        %v6199 = vpop.f32.mrb[0].mxu0
        %v6200 = vadd.f32 %v6007, %v6199
        %v6201 = vpop.f32.mrb[0].mxu0
        %v6202 = vadd.f32 %v6009, %v6201
        %v6203 = vpop.f32.mrb[0].mxu0
        %v6204 = vadd.f32 %v6011, %v6203
        %v6205 = vpop.f32.mrb[0].mxu0
        %v6206 = vadd.f32 %v6013, %v6205
        %6207 = vmatprep.mubr.bf16.mxu0 %v3321
        %6208 = vmatmul.mubr.bf16.gmra.mrb[0].mxu0 %v3320
        %v6209 = vpop.f32.mrb[0].mxu0
        %v6210 = vadd.f32 %v6017, %v6209
        %v6211 = vpop.f32.mrb[0].mxu0
        %v6212 = vadd.f32 %v6019, %v6211
        %v6213 = vpop.f32.mrb[0].mxu0
        %v6214 = vadd.f32 %v6021, %v6213
        %v6215 = vpop.f32.mrb[0].mxu0
        %v6216 = vadd.f32 %v6023, %v6215
        %6217 = vmatprep.mubr.bf16.mxu0 %v3327
        %6218 = vmatmul.mubr.bf16.gmra.mrb[0].mxu0 %v3326
        %v6219 = vpop.f32.mrb[0].mxu0
        %v6220 = vadd.f32 %v6027, %v6219
        %v6221 = vpop.f32.mrb[0].mxu0
        %v6222 = vadd.f32 %v6029, %v6221
        %v6223 = vpop.f32.mrb[0].mxu0
        %v6224 = vadd.f32 %v6031, %v6223
        %v6225 = vpop.f32.mrb[0].mxu0
        %v6226 = vadd.f32 %v6033, %v6225
        %6227 = vdwg.mxu0
        %6228 = vmatprep.subr.bf16.mxu0 %v4687
        %6229 = vmatpush1.bf16.msra.mxu0 %v4686
        %6230 = vmatprep.subr.bf16.mxu0 %v4689
        %6231 = vmatpush1.bf16.msra.mxu0 %v4688
        %6232 = vmatprep.subr.bf16.mxu0 %v4691
        %6233 = vmatpush1.bf16.msra.mxu0 %v4690
        %6234 = vmatprep.subr.bf16.mxu0 %v4693
        %6235 = vmatpush1.bf16.msra.mxu0 %v4692
        %6236 = vmatprep.subr.bf16.mxu0 %v4695
        %6237 = vmatpush1.bf16.msra.mxu0 %v4694
        %6238 = vmatprep.subr.bf16.mxu0 %v4697
        %6239 = vmatpush1.bf16.msra.mxu0 %v4696
        %6240 = vmatprep.subr.bf16.mxu0 %v4699
        %6241 = vmatpush1.bf16.msra.mxu0 %v4698
        %6242 = vmatprep.subr.bf16.mxu0 %v4701
        %6243 = vmatpush1.bf16.msra.mxu0 %v4700
        %6244 = vmatprep.subr.bf16.mxu0 %v4703
        %6245 = vmatpush1.bf16.msra.mxu0 %v4702
        %6246 = vmatprep.subr.bf16.mxu0 %v4705
        %6247 = vmatpush1.bf16.msra.mxu0 %v4704
        %6248 = vmatprep.subr.bf16.mxu0 %v4707
        %6249 = vmatpush1.bf16.msra.mxu0 %v4706
        %6250 = vmatprep.subr.bf16.mxu0 %v4709
        %6251 = vmatpush1.bf16.msra.mxu0 %v4708
        %6252 = vmatprep.subr.bf16.mxu0 %v4711
        %6253 = vmatpush1.bf16.msra.mxu0 %v4710
        %6254 = vmatprep.subr.bf16.mxu0 %v4713
        %6255 = vmatpush1.bf16.msra.mxu0 %v4712
        %6256 = vmatprep.subr.bf16.mxu0 %v4715
        %6257 = vmatpush1.bf16.msra.mxu0 %v4714
        %6258 = vmatprep.subr.bf16.mxu0 %v4717
        %6259 = vmatpush1.bf16.msra.mxu0 %v4716
        %6260 = vmatprep.mubr.bf16.mxu0 %v3239
        %6261 = vmatmul.mubr.bf16.gmra.mrb[0].mxu0 %v3238
        %v6262 = vpop.f32.mrb[0].mxu0
        %v6263 = vadd.f32 %v6070, %v6262
        %v6264 = vpop.f32.mrb[0].mxu0
        %v6265 = vadd.f32 %v6072, %v6264
        %v6266 = vpop.f32.mrb[0].mxu0
        %v6267 = vadd.f32 %v6074, %v6266
        %v6268 = vpop.f32.mrb[0].mxu0
        %v6269 = vadd.f32 %v6076, %v6268
        %6270 = vmatprep.mubr.bf16.mxu0 %v3245
        %6271 = vmatmul.mubr.bf16.gmra.mrb[0].mxu0 %v3244
        %v6272 = vpop.f32.mrb[0].mxu0
        %v6273 = vadd.f32 %v6080, %v6272
        %v6274 = vpop.f32.mrb[0].mxu0
        %v6275 = vadd.f32 %v6082, %v6274
        %v6276 = vpop.f32.mrb[0].mxu0
        %v6277 = vadd.f32 %v6084, %v6276
        %v6278 = vpop.f32.mrb[0].mxu0
        %v6279 = vadd.f32 %v6086, %v6278
        %6280 = vmatprep.mubr.bf16.mxu0 %v3251
        %6281 = vmatmul.mubr.bf16.gmra.mrb[0].mxu0 %v3250
        %v6282 = vpop.f32.mrb[0].mxu0
        %v6283 = vadd.f32 %v6090, %v6282
        %v6284 = vpop.f32.mrb[0].mxu0
        %v6285 = vadd.f32 %v6092, %v6284
        %v6286 = vpop.f32.mrb[0].mxu0
        %v6287 = vadd.f32 %v6094, %v6286
        %v6288 = vpop.f32.mrb[0].mxu0
        %v6289 = vadd.f32 %v6096, %v6288
        %6290 = vmatprep.mubr.bf16.mxu0 %v3257
        %6291 = vmatmul.mubr.bf16.gmra.mrb[0].mxu0 %v3256
        %v6292 = vpop.f32.mrb[0].mxu0
        %v6293 = vadd.f32 %v6100, %v6292
        %v6294 = vpop.f32.mrb[0].mxu0
        %v6295 = vadd.f32 %v6102, %v6294
        %v6296 = vpop.f32.mrb[0].mxu0
        %v6297 = vadd.f32 %v6104, %v6296
        %v6298 = vpop.f32.mrb[0].mxu0
        %v6299 = vadd.f32 %v6106, %v6298
        %6300 = vmatprep.mubr.bf16.mxu0 %v3263
        %6301 = vmatmul.mubr.bf16.gmra.mrb[0].mxu0 %v3262
        %v6302 = vpop.f32.mrb[0].mxu0
        %v6303 = vadd.f32 %v6110, %v6302
        %v6304 = vpop.f32.mrb[0].mxu0
        %v6305 = vadd.f32 %v6112, %v6304
        %v6306 = vpop.f32.mrb[0].mxu0
        %v6307 = vadd.f32 %v6114, %v6306
        %v6308 = vpop.f32.mrb[0].mxu0
        %v6309 = vadd.f32 %v6116, %v6308
        %6310 = vmatprep.mubr.bf16.mxu0 %v3269
        %6311 = vmatmul.mubr.bf16.gmra.mrb[0].mxu0 %v3268
        %v6312 = vpop.f32.mrb[0].mxu0
        %v6313 = vadd.f32 %v6120, %v6312
        %v6314 = vpop.f32.mrb[0].mxu0
        %v6315 = vadd.f32 %v6122, %v6314
        %v6316 = vpop.f32.mrb[0].mxu0
        %v6317 = vadd.f32 %v6124, %v6316
        %v6318 = vpop.f32.mrb[0].mxu0
        %v6319 = vadd.f32 %v6126, %v6318
        %6320 = vmatprep.mubr.bf16.mxu0 %v3275
        %6321 = vmatmul.mubr.bf16.gmra.mrb[0].mxu0 %v3274
        %v6322 = vpop.f32.mrb[0].mxu0
        %v6323 = vadd.f32 %v6130, %v6322
        %v6324 = vpop.f32.mrb[0].mxu0
        %v6325 = vadd.f32 %v6132, %v6324
        %v6326 = vpop.f32.mrb[0].mxu0
        %v6327 = vadd.f32 %v6134, %v6326
        %v6328 = vpop.f32.mrb[0].mxu0
        %v6329 = vadd.f32 %v6136, %v6328
        %6330 = vmatprep.mubr.bf16.mxu0 %v3281
        %6331 = vmatmul.mubr.bf16.gmra.mrb[0].mxu0 %v3280
        %v6332 = vpop.f32.mrb[0].mxu0
        %v6333 = vadd.f32 %v6140, %v6332
        %v6334 = vpop.f32.mrb[0].mxu0
        %v6335 = vadd.f32 %v6142, %v6334
        %v6336 = vpop.f32.mrb[0].mxu0
        %v6337 = vadd.f32 %v6144, %v6336
        %v6338 = vpop.f32.mrb[0].mxu0
        %v6339 = vadd.f32 %v6146, %v6338
        %6340 = vmatprep.mubr.bf16.mxu0 %v3287
        %6341 = vmatmul.mubr.bf16.gmra.mrb[0].mxu0 %v3286
        %v6342 = vpop.f32.mrb[0].mxu0
        %v6343 = vadd.f32 %v6150, %v6342
        %v6344 = vpop.f32.mrb[0].mxu0
        %v6345 = vadd.f32 %v6152, %v6344
        %v6346 = vpop.f32.mrb[0].mxu0
        %v6347 = vadd.f32 %v6154, %v6346
        %v6348 = vpop.f32.mrb[0].mxu0
        %v6349 = vadd.f32 %v6156, %v6348
        %6350 = vmatprep.mubr.bf16.mxu0 %v3293
        %6351 = vmatmul.mubr.bf16.gmra.mrb[0].mxu0 %v3292
        %v6352 = vpop.f32.mrb[0].mxu0
        %v6353 = vadd.f32 %v6160, %v6352
        %v6354 = vpop.f32.mrb[0].mxu0
        %v6355 = vadd.f32 %v6162, %v6354
        %v6356 = vpop.f32.mrb[0].mxu0
        %v6357 = vadd.f32 %v6164, %v6356
        %v6358 = vpop.f32.mrb[0].mxu0
        %v6359 = vadd.f32 %v6166, %v6358
        %6360 = vmatprep.mubr.bf16.mxu0 %v3299
        %6361 = vmatmul.mubr.bf16.gmra.mrb[0].mxu0 %v3298
        %v6362 = vpop.f32.mrb[0].mxu0
        %v6363 = vadd.f32 %v6170, %v6362
        %v6364 = vpop.f32.mrb[0].mxu0
        %v6365 = vadd.f32 %v6172, %v6364
        %v6366 = vpop.f32.mrb[0].mxu0
        %v6367 = vadd.f32 %v6174, %v6366
        %v6368 = vpop.f32.mrb[0].mxu0
        %v6369 = vadd.f32 %v6176, %v6368
        %6370 = vmatprep.mubr.bf16.mxu0 %v3305
        %6371 = vmatmul.mubr.bf16.gmra.mrb[0].mxu0 %v3304
        %v6372 = vpop.f32.mrb[0].mxu0
        %v6373 = vadd.f32 %v6180, %v6372
        %v6374 = vpop.f32.mrb[0].mxu0
        %v6375 = vadd.f32 %v6182, %v6374
        %v6376 = vpop.f32.mrb[0].mxu0
        %v6377 = vadd.f32 %v6184, %v6376
        %v6378 = vpop.f32.mrb[0].mxu0
        %v6379 = vadd.f32 %v6186, %v6378
        %6380 = vmatprep.mubr.bf16.mxu0 %v3311
        %6381 = vmatmul.mubr.bf16.gmra.mrb[0].mxu0 %v3310
        %v6382 = vpop.f32.mrb[0].mxu0
        %v6383 = vadd.f32 %v6190, %v6382
        %v6384 = vpop.f32.mrb[0].mxu0
        %v6385 = vadd.f32 %v6192, %v6384
        %v6386 = vpop.f32.mrb[0].mxu0
        %v6387 = vadd.f32 %v6194, %v6386
        %v6388 = vpop.f32.mrb[0].mxu0
        %v6389 = vadd.f32 %v6196, %v6388
        %6390 = vmatprep.mubr.bf16.mxu0 %v3317
        %6391 = vmatmul.mubr.bf16.gmra.mrb[0].mxu0 %v3316
        %v6392 = vpop.f32.mrb[0].mxu0
        %v6393 = vadd.f32 %v6200, %v6392
        %v6394 = vpop.f32.mrb[0].mxu0
        %v6395 = vadd.f32 %v6202, %v6394
        %v6396 = vpop.f32.mrb[0].mxu0
        %v6397 = vadd.f32 %v6204, %v6396
        %v6398 = vpop.f32.mrb[0].mxu0
        %v6399 = vadd.f32 %v6206, %v6398
        %6400 = vmatprep.mubr.bf16.mxu0 %v3323
        %6401 = vmatmul.mubr.bf16.gmra.mrb[0].mxu0 %v3322
        %v6402 = vpop.f32.mrb[0].mxu0
        %v6403 = vadd.f32 %v6210, %v6402
        %v6404 = vpop.f32.mrb[0].mxu0
        %v6405 = vadd.f32 %v6212, %v6404
        %v6406 = vpop.f32.mrb[0].mxu0
        %v6407 = vadd.f32 %v6214, %v6406
        %v6408 = vpop.f32.mrb[0].mxu0
        %v6409 = vadd.f32 %v6216, %v6408
        %6410 = vmatprep.mubr.bf16.mxu0 %v3329
        %6411 = vmatmul.mubr.bf16.gmra.mrb[0].mxu0 %v3328
        %v6412 = vpop.f32.mrb[0].mxu0
        %v6413 = vadd.f32 %v6220, %v6412
        %v6414 = vpop.f32.mrb[0].mxu0
        %v6415 = vadd.f32 %v6222, %v6414
        %v6416 = vpop.f32.mrb[0].mxu0
        %v6417 = vadd.f32 %v6224, %v6416
        %v6418 = vpop.f32.mrb[0].mxu0
        %v6419 = vadd.f32 %v6226, %v6418
        %6420 = vdwg.mxu0
        %6421 = vmatprep.subr.bf16.mxu0 %v4719
        %6422 = vmatpush1.bf16.msra.mxu0 %v4718
        %6423 = vmatprep.subr.bf16.mxu0 %v4721
        %6424 = vmatpush1.bf16.msra.mxu0 %v4720
        %6425 = vmatprep.subr.bf16.mxu0 %v4723
        %6426 = vmatpush1.bf16.msra.mxu0 %v4722
        %6427 = vmatprep.subr.bf16.mxu0 %v4725
        %6428 = vmatpush1.bf16.msra.mxu0 %v4724
        %6429 = vmatprep.subr.bf16.mxu0 %v4727
        %6430 = vmatpush1.bf16.msra.mxu0 %v4726
        %6431 = vmatprep.subr.bf16.mxu0 %v4729
        %6432 = vmatpush1.bf16.msra.mxu0 %v4728
        %6433 = vmatprep.subr.bf16.mxu0 %v4731
        %6434 = vmatpush1.bf16.msra.mxu0 %v4730
        %6435 = vmatprep.subr.bf16.mxu0 %v4733
        %6436 = vmatpush1.bf16.msra.mxu0 %v4732
        %6437 = vmatprep.subr.bf16.mxu0 %v4735
        %6438 = vmatpush1.bf16.msra.mxu0 %v4734
        %6439 = vmatprep.subr.bf16.mxu0 %v4737
        %6440 = vmatpush1.bf16.msra.mxu0 %v4736
        %6441 = vmatprep.subr.bf16.mxu0 %v4739
        %6442 = vmatpush1.bf16.msra.mxu0 %v4738
        %6443 = vmatprep.subr.bf16.mxu0 %v4741
        %6444 = vmatpush1.bf16.msra.mxu0 %v4740
        %6445 = vmatprep.subr.bf16.mxu0 %v4743
        %6446 = vmatpush1.bf16.msra.mxu0 %v4742
        %6447 = vmatprep.subr.bf16.mxu0 %v4745
        %6448 = vmatpush1.bf16.msra.mxu0 %v4744
        %6449 = vmatprep.subr.bf16.mxu0 %v4747
        %6450 = vmatpush1.bf16.msra.mxu0 %v4746
        %6451 = vmatprep.subr.bf16.mxu0 %v4749
        %6452 = vmatpush1.bf16.msra.mxu0 %v4748
        %6453 = vmatprep.mubr.bf16.mxu0 %v3241
        %6454 = vmatmul.mubr.bf16.gmra.mrb[0].mxu0 %v3240
        %v6455 = vpop.f32.mrb[0].mxu0
        %v6456 = vadd.f32 %v6263, %v6455
        %v6457 = vpop.f32.mrb[0].mxu0
        %v6458 = vadd.f32 %v6265, %v6457
        %v6459 = vpop.f32.mrb[0].mxu0
        %v6460 = vadd.f32 %v6267, %v6459
        %v6461 = vpop.f32.mrb[0].mxu0
        %v6462 = vadd.f32 %v6269, %v6461
        %6463 = vmatprep.mubr.bf16.mxu0 %v3247
        %6464 = vmatmul.mubr.bf16.gmra.mrb[0].mxu0 %v3246
        %v6465 = vpop.f32.mrb[0].mxu0
        %v6466 = vadd.f32 %v6273, %v6465
        %v6467 = vpop.f32.mrb[0].mxu0
        %v6468 = vadd.f32 %v6275, %v6467
        %v6469 = vpop.f32.mrb[0].mxu0
        %v6470 = vadd.f32 %v6277, %v6469
        %v6471 = vpop.f32.mrb[0].mxu0
        %v6472 = vadd.f32 %v6279, %v6471
        %6473 = vmatprep.mubr.bf16.mxu0 %v3253
        %6474 = vmatmul.mubr.bf16.gmra.mrb[0].mxu0 %v3252
        %v6475 = vpop.f32.mrb[0].mxu0
        %v6476 = vadd.f32 %v6283, %v6475
        %v6477 = vpop.f32.mrb[0].mxu0
        %v6478 = vadd.f32 %v6285, %v6477
        %v6479 = vpop.f32.mrb[0].mxu0
        %v6480 = vadd.f32 %v6287, %v6479
        %v6481 = vpop.f32.mrb[0].mxu0
        %v6482 = vadd.f32 %v6289, %v6481
        %6483 = vmatprep.mubr.bf16.mxu0 %v3259
        %6484 = vmatmul.mubr.bf16.gmra.mrb[0].mxu0 %v3258
        %v6485 = vpop.f32.mrb[0].mxu0
        %v6486 = vadd.f32 %v6293, %v6485
        %v6487 = vpop.f32.mrb[0].mxu0
        %v6488 = vadd.f32 %v6295, %v6487
        %v6489 = vpop.f32.mrb[0].mxu0
        %v6490 = vadd.f32 %v6297, %v6489
        %v6491 = vpop.f32.mrb[0].mxu0
        %v6492 = vadd.f32 %v6299, %v6491
        %6493 = vmatprep.mubr.bf16.mxu0 %v3265
        %6494 = vmatmul.mubr.bf16.gmra.mrb[0].mxu0 %v3264
        %v6495 = vpop.f32.mrb[0].mxu0
        %v6496 = vadd.f32 %v6303, %v6495
        %v6497 = vpop.f32.mrb[0].mxu0
        %v6498 = vadd.f32 %v6305, %v6497
        %v6499 = vpop.f32.mrb[0].mxu0
        %v6500 = vadd.f32 %v6307, %v6499
        %v6501 = vpop.f32.mrb[0].mxu0
        %v6502 = vadd.f32 %v6309, %v6501
        %6503 = vmatprep.mubr.bf16.mxu0 %v3271
        %6504 = vmatmul.mubr.bf16.gmra.mrb[0].mxu0 %v3270
        %v6505 = vpop.f32.mrb[0].mxu0
        %v6506 = vadd.f32 %v6313, %v6505
        %v6507 = vpop.f32.mrb[0].mxu0
        %v6508 = vadd.f32 %v6315, %v6507
        %v6509 = vpop.f32.mrb[0].mxu0
        %v6510 = vadd.f32 %v6317, %v6509
        %v6511 = vpop.f32.mrb[0].mxu0
        %v6512 = vadd.f32 %v6319, %v6511
        %6513 = vmatprep.mubr.bf16.mxu0 %v3277
        %6514 = vmatmul.mubr.bf16.gmra.mrb[0].mxu0 %v3276
        %v6515 = vpop.f32.mrb[0].mxu0
        %v6516 = vadd.f32 %v6323, %v6515
        %v6517 = vpop.f32.mrb[0].mxu0
        %v6518 = vadd.f32 %v6325, %v6517
        %v6519 = vpop.f32.mrb[0].mxu0
        %v6520 = vadd.f32 %v6327, %v6519
        %v6521 = vpop.f32.mrb[0].mxu0
        %v6522 = vadd.f32 %v6329, %v6521
        %6523 = vmatprep.mubr.bf16.mxu0 %v3283
        %6524 = vmatmul.mubr.bf16.gmra.mrb[0].mxu0 %v3282
        %v6525 = vpop.f32.mrb[0].mxu0
        %v6526 = vadd.f32 %v6333, %v6525
        %v6527 = vpop.f32.mrb[0].mxu0
        %v6528 = vadd.f32 %v6335, %v6527
        %v6529 = vpop.f32.mrb[0].mxu0
        %v6530 = vadd.f32 %v6337, %v6529
        %v6531 = vpop.f32.mrb[0].mxu0
        %v6532 = vadd.f32 %v6339, %v6531
        %6533 = vmatprep.mubr.bf16.mxu0 %v3289
        %6534 = vmatmul.mubr.bf16.gmra.mrb[0].mxu0 %v3288
        %v6535 = vpop.f32.mrb[0].mxu0
        %v6536 = vadd.f32 %v6343, %v6535
        %v6537 = vpop.f32.mrb[0].mxu0
        %v6538 = vadd.f32 %v6345, %v6537
        %v6539 = vpop.f32.mrb[0].mxu0
        %v6540 = vadd.f32 %v6347, %v6539
        %v6541 = vpop.f32.mrb[0].mxu0
        %v6542 = vadd.f32 %v6349, %v6541
        %6543 = vmatprep.mubr.bf16.mxu0 %v3295
        %6544 = vmatmul.mubr.bf16.gmra.mrb[0].mxu0 %v3294
        %v6545 = vpop.f32.mrb[0].mxu0
        %v6546 = vadd.f32 %v6353, %v6545
        %v6547 = vpop.f32.mrb[0].mxu0
        %v6548 = vadd.f32 %v6355, %v6547
        %v6549 = vpop.f32.mrb[0].mxu0
        %v6550 = vadd.f32 %v6357, %v6549
        %v6551 = vpop.f32.mrb[0].mxu0
        %v6552 = vadd.f32 %v6359, %v6551
        %6553 = vmatprep.mubr.bf16.mxu0 %v3301
        %6554 = vmatmul.mubr.bf16.gmra.mrb[0].mxu0 %v3300
        %v6555 = vpop.f32.mrb[0].mxu0
        %v6556 = vadd.f32 %v6363, %v6555
        %v6557 = vpop.f32.mrb[0].mxu0
        %v6558 = vadd.f32 %v6365, %v6557
        %v6559 = vpop.f32.mrb[0].mxu0
        %v6560 = vadd.f32 %v6367, %v6559
        %v6561 = vpop.f32.mrb[0].mxu0
        %v6562 = vadd.f32 %v6369, %v6561
        %6563 = vmatprep.mubr.bf16.mxu0 %v3307
        %6564 = vmatmul.mubr.bf16.gmra.mrb[0].mxu0 %v3306
        %v6565 = vpop.f32.mrb[0].mxu0
        %v6566 = vadd.f32 %v6373, %v6565
        %v6567 = vpop.f32.mrb[0].mxu0
        %v6568 = vadd.f32 %v6375, %v6567
        %v6569 = vpop.f32.mrb[0].mxu0
        %v6570 = vadd.f32 %v6377, %v6569
        %v6571 = vpop.f32.mrb[0].mxu0
        %v6572 = vadd.f32 %v6379, %v6571
        %6573 = vmatprep.mubr.bf16.mxu0 %v3313
        %6574 = vmatmul.mubr.bf16.gmra.mrb[0].mxu0 %v3312
        %v6575 = vpop.f32.mrb[0].mxu0
        %v6576 = vadd.f32 %v6383, %v6575
        %v6577 = vpop.f32.mrb[0].mxu0
        %v6578 = vadd.f32 %v6385, %v6577
        %v6579 = vpop.f32.mrb[0].mxu0
        %v6580 = vadd.f32 %v6387, %v6579
        %v6581 = vpop.f32.mrb[0].mxu0
        %v6582 = vadd.f32 %v6389, %v6581
        %6583 = vmatprep.mubr.bf16.mxu0 %v3319
        %6584 = vmatmul.mubr.bf16.gmra.mrb[0].mxu0 %v3318
        %v6585 = vpop.f32.mrb[0].mxu0
        %v6586 = vadd.f32 %v6393, %v6585
        %v6587 = vpop.f32.mrb[0].mxu0
        %v6588 = vadd.f32 %v6395, %v6587
        %v6589 = vpop.f32.mrb[0].mxu0
        %v6590 = vadd.f32 %v6397, %v6589
        %v6591 = vpop.f32.mrb[0].mxu0
        %v6592 = vadd.f32 %v6399, %v6591
        %6593 = vmatprep.mubr.bf16.mxu0 %v3325
        %6594 = vmatmul.mubr.bf16.gmra.mrb[0].mxu0 %v3324
        %v6595 = vpop.f32.mrb[0].mxu0
        %v6596 = vadd.f32 %v6403, %v6595
        %v6597 = vpop.f32.mrb[0].mxu0
        %v6598 = vadd.f32 %v6405, %v6597
        %v6599 = vpop.f32.mrb[0].mxu0
        %v6600 = vadd.f32 %v6407, %v6599
        %v6601 = vpop.f32.mrb[0].mxu0
        %v6602 = vadd.f32 %v6409, %v6601
        %6603 = vmatprep.mubr.bf16.mxu0 %v3331
        %6604 = vmatmul.mubr.bf16.gmra.mrb[0].mxu0 %v3330
        %v6605 = vpop.f32.mrb[0].mxu0
        %v6606 = vadd.f32 %v6413, %v6605
        %v6607 = vpop.f32.mrb[0].mxu0
        %v6608 = vadd.f32 %v6415, %v6607
        %v6609 = vpop.f32.mrb[0].mxu0
        %v6610 = vadd.f32 %v6417, %v6609
        %v6611 = vpop.f32.mrb[0].mxu0
        %v6612 = vadd.f32 %v6419, %v6611
        %6613 = vdwg.mxu0
        %6614 = vmatprep.subr.bf16.mxu0 %v4751
        %6615 = vmatpush1.bf16.msra.mxu0 %v4750
        %6616 = vmatprep.subr.bf16.mxu0 %v4753
        %6617 = vmatpush1.bf16.msra.mxu0 %v4752
        %6618 = vmatprep.subr.bf16.mxu0 %v4755
        %6619 = vmatpush1.bf16.msra.mxu0 %v4754
        %6620 = vmatprep.subr.bf16.mxu0 %v4757
        %6621 = vmatpush1.bf16.msra.mxu0 %v4756
        %6622 = vmatprep.subr.bf16.mxu0 %v4759
        %6623 = vmatpush1.bf16.msra.mxu0 %v4758
        %6624 = vmatprep.subr.bf16.mxu0 %v4761
        %6625 = vmatpush1.bf16.msra.mxu0 %v4760
        %6626 = vmatprep.subr.bf16.mxu0 %v4763
        %6627 = vmatpush1.bf16.msra.mxu0 %v4762
        %6628 = vmatprep.subr.bf16.mxu0 %v4765
        %6629 = vmatpush1.bf16.msra.mxu0 %v4764
        %6630 = vmatprep.subr.bf16.mxu0 %v4767
        %6631 = vmatpush1.bf16.msra.mxu0 %v4766
        %6632 = vmatprep.subr.bf16.mxu0 %v4769
        %6633 = vmatpush1.bf16.msra.mxu0 %v4768
        %6634 = vmatprep.subr.bf16.mxu0 %v4771
        %6635 = vmatpush1.bf16.msra.mxu0 %v4770
        %6636 = vmatprep.subr.bf16.mxu0 %v4773
        %6637 = vmatpush1.bf16.msra.mxu0 %v4772
        %6638 = vmatprep.subr.bf16.mxu0 %v4775
        %6639 = vmatpush1.bf16.msra.mxu0 %v4774
        %6640 = vmatprep.subr.bf16.mxu0 %v4777
        %6641 = vmatpush1.bf16.msra.mxu0 %v4776
        %6642 = vmatprep.subr.bf16.mxu0 %v4779
        %6643 = vmatpush1.bf16.msra.mxu0 %v4778
        %6644 = vmatprep.subr.bf16.mxu0 %v4781
        %6645 = vmatpush1.bf16.msra.mxu0 %v4780
        %6646 = vmatprep.mubr.bf16.mxu0 %v3243
        %6647 = vmatmul.mubr.bf16.gmra.mrb[0].mxu0 %v3242
        %v6648 = vpop.f32.mrb[0].mxu0
        %v6649 = vadd.f32 %v6456, %v6648
        %v6650 = vpop.f32.mrb[0].mxu0
        %v6651 = vadd.f32 %v6458, %v6650
        %v6652 = vpop.f32.mrb[0].mxu0
        %v6653 = vadd.f32 %v6460, %v6652
        %v6654 = vpop.f32.mrb[0].mxu0
        %v6655 = vadd.f32 %v6462, %v6654
        %6656 = vmatprep.mubr.bf16.mxu0 %v3249
        %6657 = vmatmul.mubr.bf16.gmra.mrb[0].mxu0 %v3248
        %v6658 = vpop.f32.mrb[0].mxu0
        %v6659 = vadd.f32 %v6466, %v6658
        %v6660 = vpop.f32.mrb[0].mxu0
        %v6661 = vadd.f32 %v6468, %v6660
        %v6662 = vpop.f32.mrb[0].mxu0
        %v6663 = vadd.f32 %v6470, %v6662
        %v6664 = vpop.f32.mrb[0].mxu0
        %v6665 = vadd.f32 %v6472, %v6664
        %6666 = vmatprep.mubr.bf16.mxu0 %v3255
        %6667 = vmatmul.mubr.bf16.gmra.mrb[0].mxu0 %v3254
        %v6668 = vpop.f32.mrb[0].mxu0
        %v6669 = vadd.f32 %v6476, %v6668
        %v6670 = vpop.f32.mrb[0].mxu0
        %v6671 = vadd.f32 %v6478, %v6670
        %v6672 = vpop.f32.mrb[0].mxu0
        %v6673 = vadd.f32 %v6480, %v6672
        %v6674 = vpop.f32.mrb[0].mxu0
        %v6675 = vadd.f32 %v6482, %v6674
        %6676 = vmatprep.mubr.bf16.mxu0 %v3261
        %6677 = vmatmul.mubr.bf16.gmra.mrb[0].mxu0 %v3260
        %v6678 = vpop.f32.mrb[0].mxu0
        %v6679 = vadd.f32 %v6486, %v6678
        %v6680 = vpop.f32.mrb[0].mxu0
        %v6681 = vadd.f32 %v6488, %v6680
        %v6682 = vpop.f32.mrb[0].mxu0
        %v6683 = vadd.f32 %v6490, %v6682
        %v6684 = vpop.f32.mrb[0].mxu0
        %v6685 = vadd.f32 %v6492, %v6684
        %6686 = vmatprep.mubr.bf16.mxu0 %v3267
        %6687 = vmatmul.mubr.bf16.gmra.mrb[0].mxu0 %v3266
        %v6688 = vpop.f32.mrb[0].mxu0
        %v6689 = vadd.f32 %v6496, %v6688
        %v6690 = vpop.f32.mrb[0].mxu0
        %v6691 = vadd.f32 %v6498, %v6690
        %v6692 = vpop.f32.mrb[0].mxu0
        %v6693 = vadd.f32 %v6500, %v6692
        %v6694 = vpop.f32.mrb[0].mxu0
        %v6695 = vadd.f32 %v6502, %v6694
        %6696 = vmatprep.mubr.bf16.mxu0 %v3273
        %6697 = vmatmul.mubr.bf16.gmra.mrb[0].mxu0 %v3272
        %v6698 = vpop.f32.mrb[0].mxu0
        %v6699 = vadd.f32 %v6506, %v6698
        %v6700 = vpop.f32.mrb[0].mxu0
        %v6701 = vadd.f32 %v6508, %v6700
        %v6702 = vpop.f32.mrb[0].mxu0
        %v6703 = vadd.f32 %v6510, %v6702
        %v6704 = vpop.f32.mrb[0].mxu0
        %v6705 = vadd.f32 %v6512, %v6704
        %6706 = vmatprep.mubr.bf16.mxu0 %v3279
        %6707 = vmatmul.mubr.bf16.gmra.mrb[0].mxu0 %v3278
        %v6708 = vpop.f32.mrb[0].mxu0
        %v6709 = vadd.f32 %v6516, %v6708
        %v6710 = vpop.f32.mrb[0].mxu0
        %v6711 = vadd.f32 %v6518, %v6710
        %v6712 = vpop.f32.mrb[0].mxu0
        %v6713 = vadd.f32 %v6520, %v6712
        %v6714 = vpop.f32.mrb[0].mxu0
        %v6715 = vadd.f32 %v6522, %v6714
        %6716 = vmatprep.mubr.bf16.mxu0 %v3285
        %6717 = vmatmul.mubr.bf16.gmra.mrb[0].mxu0 %v3284
        %v6718 = vpop.f32.mrb[0].mxu0
        %v6719 = vadd.f32 %v6526, %v6718
        %v6720 = vpop.f32.mrb[0].mxu0
        %v6721 = vadd.f32 %v6528, %v6720
        %v6722 = vpop.f32.mrb[0].mxu0
        %v6723 = vadd.f32 %v6530, %v6722
        %v6724 = vpop.f32.mrb[0].mxu0
        %v6725 = vadd.f32 %v6532, %v6724
        %6726 = vmatprep.mubr.bf16.mxu0 %v3291
        %6727 = vmatmul.mubr.bf16.gmra.mrb[0].mxu0 %v3290
        %v6728 = vpop.f32.mrb[0].mxu0
        %v6729 = vadd.f32 %v6536, %v6728
        %v6730 = vpop.f32.mrb[0].mxu0
        %v6731 = vadd.f32 %v6538, %v6730
        %v6732 = vpop.f32.mrb[0].mxu0
        %v6733 = vadd.f32 %v6540, %v6732
        %v6734 = vpop.f32.mrb[0].mxu0
        %v6735 = vadd.f32 %v6542, %v6734
        %6736 = vmatprep.mubr.bf16.mxu0 %v3297
        %6737 = vmatmul.mubr.bf16.gmra.mrb[0].mxu0 %v3296
        %v6738 = vpop.f32.mrb[0].mxu0
        %v6739 = vadd.f32 %v6546, %v6738
        %v6740 = vpop.f32.mrb[0].mxu0
        %v6741 = vadd.f32 %v6548, %v6740
        %v6742 = vpop.f32.mrb[0].mxu0
        %v6743 = vadd.f32 %v6550, %v6742
        %v6744 = vpop.f32.mrb[0].mxu0
        %v6745 = vadd.f32 %v6552, %v6744
        %6746 = vmatprep.mubr.bf16.mxu0 %v3303
        %6747 = vmatmul.mubr.bf16.gmra.mrb[0].mxu0 %v3302
        %v6748 = vpop.f32.mrb[0].mxu0
        %v6749 = vadd.f32 %v6556, %v6748
        %v6750 = vpop.f32.mrb[0].mxu0
        %v6751 = vadd.f32 %v6558, %v6750
        %v6752 = vpop.f32.mrb[0].mxu0
        %v6753 = vadd.f32 %v6560, %v6752
        %v6754 = vpop.f32.mrb[0].mxu0
        %v6755 = vadd.f32 %v6562, %v6754
        %6756 = vmatprep.mubr.bf16.mxu0 %v3309
        %6757 = vmatmul.mubr.bf16.gmra.mrb[0].mxu0 %v3308
        %v6758 = vpop.f32.mrb[0].mxu0
        %v6759 = vadd.f32 %v6566, %v6758
        %v6760 = vpop.f32.mrb[0].mxu0
        %v6761 = vadd.f32 %v6568, %v6760
        %v6762 = vpop.f32.mrb[0].mxu0
        %v6763 = vadd.f32 %v6570, %v6762
        %v6764 = vpop.f32.mrb[0].mxu0
        %v6765 = vadd.f32 %v6572, %v6764
        %6766 = vmatprep.mubr.bf16.mxu0 %v3315
        %6767 = vmatmul.mubr.bf16.gmra.mrb[0].mxu0 %v3314
        %v6768 = vpop.f32.mrb[0].mxu0
        %v6769 = vadd.f32 %v6576, %v6768
        %v6770 = vpop.f32.mrb[0].mxu0
        %v6771 = vadd.f32 %v6578, %v6770
        %v6772 = vpop.f32.mrb[0].mxu0
        %v6773 = vadd.f32 %v6580, %v6772
        %v6774 = vpop.f32.mrb[0].mxu0
        %v6775 = vadd.f32 %v6582, %v6774
        %6776 = vmatprep.mubr.bf16.mxu0 %v3321
        %6777 = vmatmul.mubr.bf16.gmra.mrb[0].mxu0 %v3320
        %v6778 = vpop.f32.mrb[0].mxu0
        %v6779 = vadd.f32 %v6586, %v6778
        %v6780 = vpop.f32.mrb[0].mxu0
        %v6781 = vadd.f32 %v6588, %v6780
        %v6782 = vpop.f32.mrb[0].mxu0
        %v6783 = vadd.f32 %v6590, %v6782
        %v6784 = vpop.f32.mrb[0].mxu0
        %v6785 = vadd.f32 %v6592, %v6784
        %6786 = vmatprep.mubr.bf16.mxu0 %v3327
        %6787 = vmatmul.mubr.bf16.gmra.mrb[0].mxu0 %v3326
        %v6788 = vpop.f32.mrb[0].mxu0
        %v6789 = vadd.f32 %v6596, %v6788
        %v6790 = vpop.f32.mrb[0].mxu0
        %v6791 = vadd.f32 %v6598, %v6790
        %v6792 = vpop.f32.mrb[0].mxu0
        %v6793 = vadd.f32 %v6600, %v6792
        %v6794 = vpop.f32.mrb[0].mxu0
        %v6795 = vadd.f32 %v6602, %v6794
        %6796 = vmatprep.mubr.bf16.mxu0 %v3333
        %6797 = vmatmul.mubr.bf16.gmra.mrb[0].mxu0 %v3332
        %v6798 = vpop.f32.mrb[0].mxu0
        %v6799 = vadd.f32 %v6606, %v6798
        %v6800 = vpop.f32.mrb[0].mxu0
        %v6801 = vadd.f32 %v6608, %v6800
        %v6802 = vpop.f32.mrb[0].mxu0
        %v6803 = vadd.f32 %v6610, %v6802
        %v6804 = vpop.f32.mrb[0].mxu0
        %v6805 = vadd.f32 %v6612, %v6804
        %6806 = vdwg.mxu0
        %v6807 = vpack.c.bf16 %v6653, %v6649
        %v6808 = vpack.c.bf16 %v6655, %v6651
        %v6809 = vpack.c.bf16 %v6663, %v6659
        %v6810 = vpack.c.bf16 %v6665, %v6661
        %v6811 = vpack.c.bf16 %v6673, %v6669
        %v6812 = vpack.c.bf16 %v6675, %v6671
        %v6813 = vpack.c.bf16 %v6683, %v6679
        %v6814 = vpack.c.bf16 %v6685, %v6681
        %v6815 = vpack.c.bf16 %v6693, %v6689
        %v6816 = vpack.c.bf16 %v6695, %v6691
        %v6817 = vpack.c.bf16 %v6703, %v6699
        %v6818 = vpack.c.bf16 %v6705, %v6701
        %v6819 = vpack.c.bf16 %v6713, %v6709
        %v6820 = vpack.c.bf16 %v6715, %v6711
        %v6821 = vpack.c.bf16 %v6723, %v6719
        %v6822 = vpack.c.bf16 %v6725, %v6721
        %v6823 = vpack.c.bf16 %v6733, %v6729
        %v6824 = vpack.c.bf16 %v6735, %v6731
        %v6825 = vpack.c.bf16 %v6743, %v6739
        %v6826 = vpack.c.bf16 %v6745, %v6741
        %v6827 = vpack.c.bf16 %v6753, %v6749
        %v6828 = vpack.c.bf16 %v6755, %v6751
        %v6829 = vpack.c.bf16 %v6763, %v6759
        %v6830 = vpack.c.bf16 %v6765, %v6761
        %v6831 = vpack.c.bf16 %v6773, %v6769
        %v6832 = vpack.c.bf16 %v6775, %v6771
        %v6833 = vpack.c.bf16 %v6783, %v6779
        %v6834 = vpack.c.bf16 %v6785, %v6781
        %v6835 = vpack.c.bf16 %v6793, %v6789
        %v6836 = vpack.c.bf16 %v6795, %v6791
        %v6837 = vpack.c.bf16 %v6803, %v6799
        %v6838 = vpack.c.bf16 %v6805, %v6801
        %6839 = vst [vmem:[#allocation2 + $0x60] sm:$0xff] %v2064
        %6840 = vst [vmem:[#allocation2 + $0xa8] sm:$0xff] %v2067
        %6841 = vst [vmem:[#allocation2 + $0xf0] sm:$0xff] %v2070
        %6842 = vst [vmem:[#allocation2 + $0x138] sm:$0xff] %v2073
        %6843 = vst [vmem:[#allocation2 + $0x180] sm:$0xff] %v2076
        %6844 = vst [vmem:[#allocation2 + $0x1c8] sm:$0xff] %v2079
        %6845 = vst [vmem:[#allocation2 + $0x210] sm:$0xff] %v2082
        %6846 = vst [vmem:[#allocation2 + $0x258] sm:$0xff] %v2085
        %6847 = vst [vmem:[#allocation2 + $0x2a0] sm:$0xff] %v2088
        %6848 = vst [vmem:[#allocation2 + $0x2e8] sm:$0xff] %v2091
        %6849 = vst [vmem:[#allocation2 + $0x330] sm:$0xff] %v2094
        %6850 = vst [vmem:[#allocation2 + $0x378] sm:$0xff] %v2097
        %6851 = vst [vmem:[#allocation2 + $0x3c0] sm:$0xff] %v2100
        %6852 = vst [vmem:[#allocation2 + $0x408] sm:$0xff] %v2103
        %6853 = vst [vmem:[#allocation2 + $0x450] sm:$0xff] %v2106
        %6854 = vst [vmem:[#allocation2 + $0x498] sm:$0xff] %v2109
        %6855 = vst [vmem:[#allocation2 + $0x68] sm:$0xff] %v6807
        %6856 = vst [vmem:[#allocation2 + $0x70] sm:$0xff] %v6808
        %6857 = vst [vmem:[#allocation2 + $0xb0] sm:$0xff] %v6809
        %6858 = vst [vmem:[#allocation2 + $0xb8] sm:$0xff] %v6810
        %6859 = vst [vmem:[#allocation2 + $0xf8] sm:$0xff] %v6811
        %6860 = vst [vmem:[#allocation2 + $0x100] sm:$0xff] %v6812
        %6861 = vst [vmem:[#allocation2 + $0x140] sm:$0xff] %v6813
        %6862 = vst [vmem:[#allocation2 + $0x148] sm:$0xff] %v6814
        %6863 = vst [vmem:[#allocation2 + $0x188] sm:$0xff] %v6815
        %6864 = vst [vmem:[#allocation2 + $0x190] sm:$0xff] %v6816
        %6865 = vst [vmem:[#allocation2 + $0x1d0] sm:$0xff] %v6817
        %6866 = vst [vmem:[#allocation2 + $0x1d8] sm:$0xff] %v6818
        %6867 = vst [vmem:[#allocation2 + $0x218] sm:$0xff] %v6819
        %6868 = vst [vmem:[#allocation2 + $0x220] sm:$0xff] %v6820
        %6869 = vst [vmem:[#allocation2 + $0x260] sm:$0xff] %v6821
        %6870 = vst [vmem:[#allocation2 + $0x268] sm:$0xff] %v6822
        %6871 = vst [vmem:[#allocation2 + $0x2a8] sm:$0xff] %v6823
        %6872 = vst [vmem:[#allocation2 + $0x2b0] sm:$0xff] %v6824
        %6873 = vst [vmem:[#allocation2 + $0x2f0] sm:$0xff] %v6825
        %6874 = vst [vmem:[#allocation2 + $0x2f8] sm:$0xff] %v6826
        %6875 = vst [vmem:[#allocation2 + $0x338] sm:$0xff] %v6827
        %6876 = vst [vmem:[#allocation2 + $0x340] sm:$0xff] %v6828
        %6877 = vst [vmem:[#allocation2 + $0x380] sm:$0xff] %v6829
        %6878 = vst [vmem:[#allocation2 + $0x388] sm:$0xff] %v6830
        %6879 = vst [vmem:[#allocation2 + $0x3c8] sm:$0xff] %v6831
        %6880 = vst [vmem:[#allocation2 + $0x3d0] sm:$0xff] %v6832
        %6881 = vst [vmem:[#allocation2 + $0x410] sm:$0xff] %v6833
        %6882 = vst [vmem:[#allocation2 + $0x418] sm:$0xff] %v6834
        %6883 = vst [vmem:[#allocation2 + $0x458] sm:$0xff] %v6835
        %6884 = vst [vmem:[#allocation2 + $0x460] sm:$0xff] %v6836
        %6885 = vst [vmem:[#allocation2 + $0x4a0] sm:$0xff] %v6837
        %6886 = vst [vmem:[#allocation2 + $0x4a8] sm:$0xff] %v6838
        %v6887 = vld [vmem:[#allocation2 + $0x18] sm:$0x80]
        %v6888 = vld [vmem:[#allocation2 + $0x20] sm:$0x80]
        %v6889 = vld [vmem:[#allocation2 + $0x28] sm:$0x80]
        %v6890 = vld [vmem:[#allocation2 + $0x60] sm:$0xff]
        %v6891 = vld [vmem:[#allocation2 + $0x68] sm:$0xff]
        %v6892 = vld [vmem:[#allocation2 + $0x70] sm:$0xff]
        %v6893 = vld [vmem:[#allocation2 + $0xa8] sm:$0xff]
        %v6894 = vld [vmem:[#allocation2 + $0xb0] sm:$0xff]
        %v6895 = vld [vmem:[#allocation2 + $0xb8] sm:$0xff]
        %v6896 = vld [vmem:[#allocation2 + $0xf0] sm:$0xff]
        %v6897 = vld [vmem:[#allocation2 + $0xf8] sm:$0xff]
        %v6898 = vld [vmem:[#allocation2 + $0x100] sm:$0xff]
        %v6899 = vld [vmem:[#allocation2 + $0x138] sm:$0xff]
        %v6900 = vld [vmem:[#allocation2 + $0x140] sm:$0xff]
        %v6901 = vld [vmem:[#allocation2 + $0x148] sm:$0xff]
        %v6902 = vld [vmem:[#allocation2 + $0x180] sm:$0xff]
        %v6903 = vld [vmem:[#allocation2 + $0x188] sm:$0xff]
        %v6904 = vld [vmem:[#allocation2 + $0x190] sm:$0xff]
        %v6905 = vld [vmem:[#allocation2 + $0x1c8] sm:$0xff]
        %v6906 = vld [vmem:[#allocation2 + $0x1d0] sm:$0xff]
        %v6907 = vld [vmem:[#allocation2 + $0x1d8] sm:$0xff]
        %v6908 = vld [vmem:[#allocation2 + $0x210] sm:$0xff]
        %v6909 = vld [vmem:[#allocation2 + $0x218] sm:$0xff]
        %v6910 = vld [vmem:[#allocation2 + $0x220] sm:$0xff]
        %v6911 = vld [vmem:[#allocation2 + $0x258] sm:$0xff]
        %v6912 = vld [vmem:[#allocation2 + $0x260] sm:$0xff]
        %v6913 = vld [vmem:[#allocation2 + $0x268] sm:$0xff]
        %v6914 = vld [vmem:[#allocation2 + $0x2a0] sm:$0xff]
        %v6915 = vld [vmem:[#allocation2 + $0x2a8] sm:$0xff]
        %v6916 = vld [vmem:[#allocation2 + $0x2b0] sm:$0xff]
        %v6917 = vld [vmem:[#allocation2 + $0x2e8] sm:$0xff]
        %v6918 = vld [vmem:[#allocation2 + $0x2f0] sm:$0xff]
        %v6919 = vld [vmem:[#allocation2 + $0x2f8] sm:$0xff]
        %v6920 = vld [vmem:[#allocation2 + $0x330] sm:$0xff]
        %v6921 = vld [vmem:[#allocation2 + $0x338] sm:$0xff]
        %v6922 = vld [vmem:[#allocation2 + $0x340] sm:$0xff]
        %v6923 = vld [vmem:[#allocation2 + $0x378] sm:$0xff]
        %v6924 = vld [vmem:[#allocation2 + $0x380] sm:$0xff]
        %v6925 = vld [vmem:[#allocation2 + $0x388] sm:$0xff]
        %v6926 = vld [vmem:[#allocation2 + $0x3c0] sm:$0xff]
        %v6927 = vld [vmem:[#allocation2 + $0x3c8] sm:$0xff]
        %v6928 = vld [vmem:[#allocation2 + $0x3d0] sm:$0xff]
        %v6929 = vld [vmem:[#allocation2 + $0x408] sm:$0xff]
        %v6930 = vld [vmem:[#allocation2 + $0x410] sm:$0xff]
        %v6931 = vld [vmem:[#allocation2 + $0x418] sm:$0xff]
        %v6932 = vld [vmem:[#allocation2 + $0x450] sm:$0xff]
        %v6933 = vld [vmem:[#allocation2 + $0x458] sm:$0xff]
        %v6934 = vld [vmem:[#allocation2 + $0x460] sm:$0xff]
        %v6935 = vld [vmem:[#allocation2 + $0x498] sm:$0xff]
        %v6936 = vld [vmem:[#allocation2 + $0x4a0] sm:$0xff]
        %v6937 = vld [vmem:[#allocation2 + $0x4a8] sm:$0xff]
        %v6938 = vmul.bf16 %v6887, %v2182
        %v6939 = vmul.bf16 %v6888, %v2182
        %v6940 = vmul.bf16 %v6889, %v2182
        %v6941 = vmul.bf16 %v6890, %v2190
        %v6942 = vmul.bf16 %v6891, %v2190
        %v6943 = vmul.bf16 %v6892, %v2190
        %v6944 = vmul.bf16 %v6893, %v2198
        %v6945 = vmul.bf16 %v6894, %v2198
        %v6946 = vmul.bf16 %v6895, %v2198
        %v6947 = vmul.bf16 %v6896, %v2206
        %v6948 = vmul.bf16 %v6897, %v2206
        %v6949 = vmul.bf16 %v6898, %v2206
        %v6950 = vmul.bf16 %v6899, %v2214
        %v6951 = vmul.bf16 %v6900, %v2214
        %v6952 = vmul.bf16 %v6901, %v2214
        %v6953 = vmul.bf16 %v6902, %v2222
        %v6954 = vmul.bf16 %v6903, %v2222
        %v6955 = vmul.bf16 %v6904, %v2222
        %v6956 = vmul.bf16 %v6905, %v2230
        %v6957 = vmul.bf16 %v6906, %v2230
        %v6958 = vmul.bf16 %v6907, %v2230
        %v6959 = vmul.bf16 %v6908, %v2238
        %v6960 = vmul.bf16 %v6909, %v2238
        %v6961 = vmul.bf16 %v6910, %v2238
        %v6962 = vmul.bf16 %v6911, %v2246
        %v6963 = vmul.bf16 %v6912, %v2246
        %v6964 = vmul.bf16 %v6913, %v2246
        %v6965 = vmul.bf16 %v6914, %v2254
        %v6966 = vmul.bf16 %v6915, %v2254
        %v6967 = vmul.bf16 %v6916, %v2254
        %v6968 = vmul.bf16 %v6917, %v2262
        %v6969 = vmul.bf16 %v6918, %v2262
        %v6970 = vmul.bf16 %v6919, %v2262
        %v6971 = vmul.bf16 %v6920, %v2270
        %v6972 = vmul.bf16 %v6921, %v2270
        %v6973 = vmul.bf16 %v6922, %v2270
        %v6974 = vmul.bf16 %v6923, %v2278
        %v6975 = vmul.bf16 %v6924, %v2278
        %v6976 = vmul.bf16 %v6925, %v2278
        %v6977 = vmul.bf16 %v6926, %v2286
        %v6978 = vmul.bf16 %v6927, %v2286
        %v6979 = vmul.bf16 %v6928, %v2286
        %v6980 = vmul.bf16 %v6929, %v2294
        %v6981 = vmul.bf16 %v6930, %v2294
        %v6982 = vmul.bf16 %v6931, %v2294
        %v6983 = vmul.bf16 %v6932, %v2302
        %v6984 = vmul.bf16 %v6933, %v2302
        %v6985 = vmul.bf16 %v6934, %v2302
        %v6986 = vmul.bf16 %v6935, %v2305
        %v6987 = vmul.bf16 %v6936, %v2305
        %v6988 = vmul.bf16 %v6937, %v2305
        %v6990 = vshrl.u32 %v6938, 16
        %v6992 = vrot.slane %v6990, 7
        %v6994 = vshrl.u32 %v6941, 16
        %v6996 = vrot.slane %v6994, 7
        %v6997 = vshll.u32 %v6941, 16
        %v6999 = vor.u32 %v6996, %v6997
        %v7000 = vsel %vm2357, %v6992, %v6999
        %v7002 = vshrl.u32 %v6939, 16
        %v7004 = vrot.slane %v7002, 7
        %v7006 = vshrl.u32 %v6942, 16
        %v7008 = vrot.slane %v7006, 7
        %v7009 = vshll.u32 %v6942, 16
        %v7011 = vor.u32 %v7008, %v7009
        %v7012 = vsel %vm2357, %v7004, %v7011
        %v7014 = vshrl.u32 %v6940, 16
        %v7016 = vrot.slane %v7014, 7
        %v7018 = vshrl.u32 %v6943, 16
        %v7020 = vrot.slane %v7018, 7
        %v7021 = vshll.u32 %v6943, 16
        %v7023 = vor.u32 %v7020, %v7021
        %v7024 = vsel %vm2357, %v7016, %v7023
        %v7026 = vshrl.u32 %v6944, 16
        %v7028 = vrot.slane %v7026, 7
        %v7029 = vshll.u32 %v6944, 16
        %v7031 = vor.u32 %v7028, %v7029
        %v7032 = vsel %vm2357, %v6996, %v7031
        %v7034 = vshrl.u32 %v6945, 16
        %v7036 = vrot.slane %v7034, 7
        %v7037 = vshll.u32 %v6945, 16
        %v7039 = vor.u32 %v7036, %v7037
        %v7040 = vsel %vm2357, %v7008, %v7039
        %v7042 = vshrl.u32 %v6946, 16
        %v7044 = vrot.slane %v7042, 7
        %v7045 = vshll.u32 %v6946, 16
        %v7047 = vor.u32 %v7044, %v7045
        %v7048 = vsel %vm2357, %v7020, %v7047
        %v7050 = vshrl.u32 %v6947, 16
        %v7052 = vrot.slane %v7050, 7
        %v7053 = vshll.u32 %v6947, 16
        %v7055 = vor.u32 %v7052, %v7053
        %v7056 = vsel %vm2357, %v7028, %v7055
        %v7058 = vshrl.u32 %v6948, 16
        %v7060 = vrot.slane %v7058, 7
        %v7061 = vshll.u32 %v6948, 16
        %v7063 = vor.u32 %v7060, %v7061
        %v7064 = vsel %vm2357, %v7036, %v7063
        %v7066 = vshrl.u32 %v6949, 16
        %v7068 = vrot.slane %v7066, 7
        %v7069 = vshll.u32 %v6949, 16
        %v7071 = vor.u32 %v7068, %v7069
        %v7072 = vsel %vm2357, %v7044, %v7071
        %v7074 = vshrl.u32 %v6950, 16
        %v7076 = vrot.slane %v7074, 7
        %v7077 = vshll.u32 %v6950, 16
        %v7079 = vor.u32 %v7076, %v7077
        %v7080 = vsel %vm2357, %v7052, %v7079
        %v7082 = vshrl.u32 %v6951, 16
        %v7084 = vrot.slane %v7082, 7
        %v7085 = vshll.u32 %v6951, 16
        %v7087 = vor.u32 %v7084, %v7085
        %v7088 = vsel %vm2357, %v7060, %v7087
        %v7090 = vshrl.u32 %v6952, 16
        %v7092 = vrot.slane %v7090, 7
        %v7093 = vshll.u32 %v6952, 16
        %v7095 = vor.u32 %v7092, %v7093
        %v7096 = vsel %vm2357, %v7068, %v7095
        %v7098 = vshrl.u32 %v6953, 16
        %v7100 = vrot.slane %v7098, 7
        %v7101 = vshll.u32 %v6953, 16
        %v7103 = vor.u32 %v7100, %v7101
        %v7104 = vsel %vm2357, %v7076, %v7103
        %v7106 = vshrl.u32 %v6954, 16
        %v7108 = vrot.slane %v7106, 7
        %v7109 = vshll.u32 %v6954, 16
        %v7111 = vor.u32 %v7108, %v7109
        %v7112 = vsel %vm2357, %v7084, %v7111
        %v7114 = vshrl.u32 %v6955, 16
        %v7116 = vrot.slane %v7114, 7
        %v7117 = vshll.u32 %v6955, 16
        %v7119 = vor.u32 %v7116, %v7117
        %v7120 = vsel %vm2357, %v7092, %v7119
        %v7122 = vshrl.u32 %v6956, 16
        %v7124 = vrot.slane %v7122, 7
        %v7125 = vshll.u32 %v6956, 16
        %v7127 = vor.u32 %v7124, %v7125
        %v7128 = vsel %vm2357, %v7100, %v7127
        %v7130 = vshrl.u32 %v6957, 16
        %v7132 = vrot.slane %v7130, 7
        %v7133 = vshll.u32 %v6957, 16
        %v7135 = vor.u32 %v7132, %v7133
        %v7136 = vsel %vm2357, %v7108, %v7135
        %v7138 = vshrl.u32 %v6958, 16
        %v7140 = vrot.slane %v7138, 7
        %v7141 = vshll.u32 %v6958, 16
        %v7143 = vor.u32 %v7140, %v7141
        %v7144 = vsel %vm2357, %v7116, %v7143
        %v7146 = vshrl.u32 %v6959, 16
        %v7148 = vrot.slane %v7146, 7
        %v7149 = vshll.u32 %v6959, 16
        %v7151 = vor.u32 %v7148, %v7149
        %v7152 = vsel %vm2357, %v7124, %v7151
        %v7154 = vshrl.u32 %v6960, 16
        %v7156 = vrot.slane %v7154, 7
        %v7157 = vshll.u32 %v6960, 16
        %v7159 = vor.u32 %v7156, %v7157
        %v7160 = vsel %vm2357, %v7132, %v7159
        %v7162 = vshrl.u32 %v6961, 16
        %v7164 = vrot.slane %v7162, 7
        %v7165 = vshll.u32 %v6961, 16
        %v7167 = vor.u32 %v7164, %v7165
        %v7168 = vsel %vm2357, %v7140, %v7167
        %v7170 = vshrl.u32 %v6962, 16
        %v7172 = vrot.slane %v7170, 7
        %v7173 = vshll.u32 %v6962, 16
        %v7175 = vor.u32 %v7172, %v7173
        %v7176 = vsel %vm2357, %v7148, %v7175
        %v7178 = vshrl.u32 %v6963, 16
        %v7180 = vrot.slane %v7178, 7
        %v7181 = vshll.u32 %v6963, 16
        %v7183 = vor.u32 %v7180, %v7181
        %v7184 = vsel %vm2357, %v7156, %v7183
        %v7186 = vshrl.u32 %v6964, 16
        %v7188 = vrot.slane %v7186, 7
        %v7189 = vshll.u32 %v6964, 16
        %v7191 = vor.u32 %v7188, %v7189
        %v7192 = vsel %vm2357, %v7164, %v7191
        %v7194 = vshrl.u32 %v6965, 16
        %v7196 = vrot.slane %v7194, 7
        %v7197 = vshll.u32 %v6965, 16
        %v7199 = vor.u32 %v7196, %v7197
        %v7200 = vsel %vm2357, %v7172, %v7199
        %v7202 = vshrl.u32 %v6966, 16
        %v7204 = vrot.slane %v7202, 7
        %v7205 = vshll.u32 %v6966, 16
        %v7207 = vor.u32 %v7204, %v7205
        %v7208 = vsel %vm2357, %v7180, %v7207
        %v7210 = vshrl.u32 %v6967, 16
        %v7212 = vrot.slane %v7210, 7
        %v7213 = vshll.u32 %v6967, 16
        %v7215 = vor.u32 %v7212, %v7213
        %v7216 = vsel %vm2357, %v7188, %v7215
        %v7218 = vshrl.u32 %v6968, 16
        %v7220 = vrot.slane %v7218, 7
        %v7221 = vshll.u32 %v6968, 16
        %v7223 = vor.u32 %v7220, %v7221
        %v7224 = vsel %vm2357, %v7196, %v7223
        %v7226 = vshrl.u32 %v6969, 16
        %v7228 = vrot.slane %v7226, 7
        %v7229 = vshll.u32 %v6969, 16
        %v7231 = vor.u32 %v7228, %v7229
        %v7232 = vsel %vm2357, %v7204, %v7231
        %v7234 = vshrl.u32 %v6970, 16
        %v7236 = vrot.slane %v7234, 7
        %v7237 = vshll.u32 %v6970, 16
        %v7239 = vor.u32 %v7236, %v7237
        %v7240 = vsel %vm2357, %v7212, %v7239
        %v7242 = vshrl.u32 %v6971, 16
        %v7244 = vrot.slane %v7242, 7
        %v7245 = vshll.u32 %v6971, 16
        %v7247 = vor.u32 %v7244, %v7245
        %v7248 = vsel %vm2357, %v7220, %v7247
        %v7250 = vshrl.u32 %v6972, 16
        %v7252 = vrot.slane %v7250, 7
        %v7253 = vshll.u32 %v6972, 16
        %v7255 = vor.u32 %v7252, %v7253
        %v7256 = vsel %vm2357, %v7228, %v7255
        %v7258 = vshrl.u32 %v6973, 16
        %v7260 = vrot.slane %v7258, 7
        %v7261 = vshll.u32 %v6973, 16
        %v7263 = vor.u32 %v7260, %v7261
        %v7264 = vsel %vm2357, %v7236, %v7263
        %v7266 = vshrl.u32 %v6974, 16
        %v7268 = vrot.slane %v7266, 7
        %v7269 = vshll.u32 %v6974, 16
        %v7271 = vor.u32 %v7268, %v7269
        %v7272 = vsel %vm2357, %v7244, %v7271
        %v7274 = vshrl.u32 %v6975, 16
        %v7276 = vrot.slane %v7274, 7
        %v7277 = vshll.u32 %v6975, 16
        %v7279 = vor.u32 %v7276, %v7277
        %v7280 = vsel %vm2357, %v7252, %v7279
        %v7282 = vshrl.u32 %v6976, 16
        %v7284 = vrot.slane %v7282, 7
        %v7285 = vshll.u32 %v6976, 16
        %v7287 = vor.u32 %v7284, %v7285
        %v7288 = vsel %vm2357, %v7260, %v7287
        %v7290 = vshrl.u32 %v6977, 16
        %v7292 = vrot.slane %v7290, 7
        %v7293 = vshll.u32 %v6977, 16
        %v7295 = vor.u32 %v7292, %v7293
        %v7296 = vsel %vm2357, %v7268, %v7295
        %v7298 = vshrl.u32 %v6978, 16
        %v7300 = vrot.slane %v7298, 7
        %v7301 = vshll.u32 %v6978, 16
        %v7303 = vor.u32 %v7300, %v7301
        %v7304 = vsel %vm2357, %v7276, %v7303
        %v7306 = vshrl.u32 %v6979, 16
        %v7308 = vrot.slane %v7306, 7
        %v7309 = vshll.u32 %v6979, 16
        %v7311 = vor.u32 %v7308, %v7309
        %v7312 = vsel %vm2357, %v7284, %v7311
        %v7314 = vshrl.u32 %v6980, 16
        %v7316 = vrot.slane %v7314, 7
        %v7317 = vshll.u32 %v6980, 16
        %v7319 = vor.u32 %v7316, %v7317
        %v7320 = vsel %vm2357, %v7292, %v7319
        %v7322 = vshrl.u32 %v6981, 16
        %v7324 = vrot.slane %v7322, 7
        %v7325 = vshll.u32 %v6981, 16
        %v7327 = vor.u32 %v7324, %v7325
        %v7328 = vsel %vm2357, %v7300, %v7327
        %v7330 = vshrl.u32 %v6982, 16
        %v7332 = vrot.slane %v7330, 7
        %v7333 = vshll.u32 %v6982, 16
        %v7335 = vor.u32 %v7332, %v7333
        %v7336 = vsel %vm2357, %v7308, %v7335
        %v7338 = vshrl.u32 %v6983, 16
        %v7340 = vrot.slane %v7338, 7
        %v7341 = vshll.u32 %v6983, 16
        %v7343 = vor.u32 %v7340, %v7341
        %v7344 = vsel %vm2357, %v7316, %v7343
        %v7346 = vshrl.u32 %v6984, 16
        %v7348 = vrot.slane %v7346, 7
        %v7349 = vshll.u32 %v6984, 16
        %v7351 = vor.u32 %v7348, %v7349
        %v7352 = vsel %vm2357, %v7324, %v7351
        %v7354 = vshrl.u32 %v6985, 16
        %v7356 = vrot.slane %v7354, 7
        %v7357 = vshll.u32 %v6985, 16
        %v7359 = vor.u32 %v7356, %v7357
        %v7360 = vsel %vm2357, %v7332, %v7359
        %v7362 = vshrl.u32 %v6986, 16
        %v7364 = vrot.slane %v7362, 7
        %v7365 = vshll.u32 %v6986, 16
        %v7367 = vor.u32 %v7364, %v7365
        %v7368 = vsel %vm2357, %v7340, %v7367
        %v7370 = vshrl.u32 %v6987, 16
        %v7372 = vrot.slane %v7370, 7
        %v7373 = vshll.u32 %v6987, 16
        %v7375 = vor.u32 %v7372, %v7373
        %v7376 = vsel %vm2357, %v7348, %v7375
        %v7378 = vshrl.u32 %v6988, 16
        %v7380 = vrot.slane %v7378, 7
        %v7381 = vshll.u32 %v6988, 16
        %v7383 = vor.u32 %v7380, %v7381
        %v7384 = vsel %vm2357, %v7356, %v7383
        %7433 = vst [vmem:[#allocation2 + $0x48] sm:$0xff] %v7000
        %7434 = vst [vmem:[#allocation2 + $0x50] sm:$0xff] %v7012
        %7435 = vst [vmem:[#allocation2 + $0x58] sm:$0xff] %v7024
        %7436 = vst [vmem:[#allocation2 + $0x90] sm:$0xff] %v7032
        %7437 = vst [vmem:[#allocation2 + $0x98] sm:$0xff] %v7040
        %7438 = vst [vmem:[#allocation2 + $0xa0] sm:$0xff] %v7048
        %7439 = vst [vmem:[#allocation2 + $0xd8] sm:$0xff] %v7056
        %7440 = vst [vmem:[#allocation2 + $0xe0] sm:$0xff] %v7064
        %7441 = vst [vmem:[#allocation2 + $0xe8] sm:$0xff] %v7072
        %7442 = vst [vmem:[#allocation2 + $0x120] sm:$0xff] %v7080
        %7443 = vst [vmem:[#allocation2 + $0x128] sm:$0xff] %v7088
        %7444 = vst [vmem:[#allocation2 + $0x130] sm:$0xff] %v7096
        %7445 = vst [vmem:[#allocation2 + $0x168] sm:$0xff] %v7104
        %7446 = vst [vmem:[#allocation2 + $0x170] sm:$0xff] %v7112
        %7447 = vst [vmem:[#allocation2 + $0x178] sm:$0xff] %v7120
        %7448 = vst [vmem:[#allocation2 + $0x1b0] sm:$0xff] %v7128
        %7449 = vst [vmem:[#allocation2 + $0x1b8] sm:$0xff] %v7136
        %7450 = vst [vmem:[#allocation2 + $0x1c0] sm:$0xff] %v7144
        %7451 = vst [vmem:[#allocation2 + $0x1f8] sm:$0xff] %v7152
        %7452 = vst [vmem:[#allocation2 + $0x200] sm:$0xff] %v7160
        %7453 = vst [vmem:[#allocation2 + $0x208] sm:$0xff] %v7168
        %7454 = vst [vmem:[#allocation2 + $0x240] sm:$0xff] %v7176
        %7455 = vst [vmem:[#allocation2 + $0x248] sm:$0xff] %v7184
        %7456 = vst [vmem:[#allocation2 + $0x250] sm:$0xff] %v7192
        %7457 = vst [vmem:[#allocation2 + $0x288] sm:$0xff] %v7200
        %7458 = vst [vmem:[#allocation2 + $0x290] sm:$0xff] %v7208
        %7459 = vst [vmem:[#allocation2 + $0x298] sm:$0xff] %v7216
        %7460 = vst [vmem:[#allocation2 + $0x2d0] sm:$0xff] %v7224
        %7461 = vst [vmem:[#allocation2 + $0x2d8] sm:$0xff] %v7232
        %7462 = vst [vmem:[#allocation2 + $0x2e0] sm:$0xff] %v7240
        %7463 = vst [vmem:[#allocation2 + $0x318] sm:$0xff] %v7248
        %7464 = vst [vmem:[#allocation2 + $0x320] sm:$0xff] %v7256
        %7465 = vst [vmem:[#allocation2 + $0x328] sm:$0xff] %v7264
        %7466 = vst [vmem:[#allocation2 + $0x360] sm:$0xff] %v7272
        %7467 = vst [vmem:[#allocation2 + $0x368] sm:$0xff] %v7280
        %7468 = vst [vmem:[#allocation2 + $0x370] sm:$0xff] %v7288
        %7469 = vst [vmem:[#allocation2 + $0x3a8] sm:$0xff] %v7296
        %7470 = vst [vmem:[#allocation2 + $0x3b0] sm:$0xff] %v7304
        %7471 = vst [vmem:[#allocation2 + $0x3b8] sm:$0xff] %v7312
        %7472 = vst [vmem:[#allocation2 + $0x3f0] sm:$0xff] %v7320
        %7473 = vst [vmem:[#allocation2 + $0x3f8] sm:$0xff] %v7328
        %7474 = vst [vmem:[#allocation2 + $0x400] sm:$0xff] %v7336
        %7475 = vst [vmem:[#allocation2 + $0x438] sm:$0xff] %v7344
        %7476 = vst [vmem:[#allocation2 + $0x440] sm:$0xff] %v7352
        %7477 = vst [vmem:[#allocation2 + $0x448] sm:$0xff] %v7360
        %7478 = vst [vmem:[#allocation2 + $0x480] sm:$0xff] %v7368
        %7479 = vst [vmem:[#allocation2 + $0x488] sm:$0xff] %v7376
        %7480 = vst [vmem:[#allocation2 + $0x490] sm:$0xff] %v7384
        %v7481 = vld [vmem:[#allocation2 + $0x60] sm:$0xff]
        %v7482 = vld [vmem:[#allocation2 + $0x68] sm:$0xff]
        %v7483 = vld [vmem:[#allocation2 + $0x70] sm:$0xff]
        %v7484 = vld [vmem:[#allocation2 + $0xa8] sm:$0xff]
        %v7485 = vld [vmem:[#allocation2 + $0xb0] sm:$0xff]
        %v7486 = vld [vmem:[#allocation2 + $0xb8] sm:$0xff]
        %v7487 = vld [vmem:[#allocation2 + $0xf0] sm:$0xff]
        %v7488 = vld [vmem:[#allocation2 + $0xf8] sm:$0xff]
        %v7489 = vld [vmem:[#allocation2 + $0x100] sm:$0xff]
        %v7490 = vld [vmem:[#allocation2 + $0x138] sm:$0xff]
        %v7491 = vld [vmem:[#allocation2 + $0x140] sm:$0xff]
        %v7492 = vld [vmem:[#allocation2 + $0x148] sm:$0xff]
        %v7493 = vld [vmem:[#allocation2 + $0x180] sm:$0xff]
        %v7494 = vld [vmem:[#allocation2 + $0x188] sm:$0xff]
        %v7495 = vld [vmem:[#allocation2 + $0x190] sm:$0xff]
        %v7496 = vld [vmem:[#allocation2 + $0x1c8] sm:$0xff]
        %v7497 = vld [vmem:[#allocation2 + $0x1d0] sm:$0xff]
        %v7498 = vld [vmem:[#allocation2 + $0x1d8] sm:$0xff]
        %v7499 = vld [vmem:[#allocation2 + $0x210] sm:$0xff]
        %v7500 = vld [vmem:[#allocation2 + $0x218] sm:$0xff]
        %v7501 = vld [vmem:[#allocation2 + $0x220] sm:$0xff]
        %v7502 = vld [vmem:[#allocation2 + $0x258] sm:$0xff]
        %v7503 = vld [vmem:[#allocation2 + $0x260] sm:$0xff]
        %v7504 = vld [vmem:[#allocation2 + $0x268] sm:$0xff]
        %v7505 = vld [vmem:[#allocation2 + $0x2a0] sm:$0xff]
        %v7506 = vld [vmem:[#allocation2 + $0x2a8] sm:$0xff]
        %v7507 = vld [vmem:[#allocation2 + $0x2b0] sm:$0xff]
        %v7508 = vld [vmem:[#allocation2 + $0x2e8] sm:$0xff]
        %v7509 = vld [vmem:[#allocation2 + $0x2f0] sm:$0xff]
        %v7510 = vld [vmem:[#allocation2 + $0x2f8] sm:$0xff]
        %v7511 = vld [vmem:[#allocation2 + $0x330] sm:$0xff]
        %v7512 = vld [vmem:[#allocation2 + $0x338] sm:$0xff]
        %v7513 = vld [vmem:[#allocation2 + $0x340] sm:$0xff]
        %v7514 = vld [vmem:[#allocation2 + $0x378] sm:$0xff]
        %v7515 = vld [vmem:[#allocation2 + $0x380] sm:$0xff]
        %v7516 = vld [vmem:[#allocation2 + $0x388] sm:$0xff]
        %v7517 = vld [vmem:[#allocation2 + $0x3c0] sm:$0xff]
        %v7518 = vld [vmem:[#allocation2 + $0x3c8] sm:$0xff]
        %v7519 = vld [vmem:[#allocation2 + $0x3d0] sm:$0xff]
        %v7520 = vld [vmem:[#allocation2 + $0x408] sm:$0xff]
        %v7521 = vld [vmem:[#allocation2 + $0x410] sm:$0xff]
        %v7522 = vld [vmem:[#allocation2 + $0x418] sm:$0xff]
        %v7523 = vld [vmem:[#allocation2 + $0x450] sm:$0xff]
        %v7524 = vld [vmem:[#allocation2 + $0x458] sm:$0xff]
        %v7525 = vld [vmem:[#allocation2 + $0x460] sm:$0xff]
        %v7526 = vld [vmem:[#allocation2 + $0x498] sm:$0xff]
        %v7527 = vld [vmem:[#allocation2 + $0x4a0] sm:$0xff]
        %v7528 = vld [vmem:[#allocation2 + $0x4a8] sm:$0xff]
        %v7529 = vld [vmem:[#allocation2 + $0x4e0] sm:$0x1]
        %v7530 = vld [vmem:[#allocation2 + $0x4e8] sm:$0x1]
        %v7531 = vld [vmem:[#allocation2 + $0x4f0] sm:$0x1]
        %v7532 = vmul.bf16 %v7481, %v2726
        %v7533 = vmul.bf16 %v7482, %v2726
        %v7534 = vmul.bf16 %v7483, %v2726
        %v7535 = vmul.bf16 %v7484, %v2734
        %v7536 = vmul.bf16 %v7485, %v2734
        %v7537 = vmul.bf16 %v7486, %v2734
        %v7538 = vmul.bf16 %v7487, %v2742
        %v7539 = vmul.bf16 %v7488, %v2742
        %v7540 = vmul.bf16 %v7489, %v2742
        %v7541 = vmul.bf16 %v7490, %v2750
        %v7542 = vmul.bf16 %v7491, %v2750
        %v7543 = vmul.bf16 %v7492, %v2750
        %v7544 = vmul.bf16 %v7493, %v2758
        %v7545 = vmul.bf16 %v7494, %v2758
        %v7546 = vmul.bf16 %v7495, %v2758
        %v7547 = vmul.bf16 %v7496, %v2766
        %v7548 = vmul.bf16 %v7497, %v2766
        %v7549 = vmul.bf16 %v7498, %v2766
        %v7550 = vmul.bf16 %v7499, %v2774
        %v7551 = vmul.bf16 %v7500, %v2774
        %v7552 = vmul.bf16 %v7501, %v2774
        %v7553 = vmul.bf16 %v7502, %v2782
        %v7554 = vmul.bf16 %v7503, %v2782
        %v7555 = vmul.bf16 %v7504, %v2782
        %v7556 = vmul.bf16 %v7505, %v2790
        %v7557 = vmul.bf16 %v7506, %v2790
        %v7558 = vmul.bf16 %v7507, %v2790
        %v7559 = vmul.bf16 %v7508, %v2798
        %v7560 = vmul.bf16 %v7509, %v2798
        %v7561 = vmul.bf16 %v7510, %v2798
        %v7562 = vmul.bf16 %v7511, %v2806
        %v7563 = vmul.bf16 %v7512, %v2806
        %v7564 = vmul.bf16 %v7513, %v2806
        %v7565 = vmul.bf16 %v7514, %v2814
        %v7566 = vmul.bf16 %v7515, %v2814
        %v7567 = vmul.bf16 %v7516, %v2814
        %v7568 = vmul.bf16 %v7517, %v2822
        %v7569 = vmul.bf16 %v7518, %v2822
        %v7570 = vmul.bf16 %v7519, %v2822
        %v7571 = vmul.bf16 %v7520, %v2830
        %v7572 = vmul.bf16 %v7521, %v2830
        %v7573 = vmul.bf16 %v7522, %v2830
        %v7574 = vmul.bf16 %v7523, %v2838
        %v7575 = vmul.bf16 %v7524, %v2838
        %v7576 = vmul.bf16 %v7525, %v2838
        %v7577 = vmul.bf16 %v7526, %v2846
        %v7578 = vmul.bf16 %v7527, %v2846
        %v7579 = vmul.bf16 %v7528, %v2846
        %v7580 = vmul.bf16 %v7529, %v2842
        %v7581 = vmul.bf16 %v7530, %v2842
        %v7582 = vmul.bf16 %v7531, %v2842
        %v7584 = vshrl.u32 %v7532, 16
        %v7586 = vshll.u32 %v7532, 16
        %v7588 = vrot.slane %v7586, 1
        %v7589 = vor.u32 %v7584, %v7588
        %v7591 = vshll.u32 %v7535, 16
        %v7593 = vrot.slane %v7591, 1
        %v7594 = vsel %vm2178, %v7589, %v7593
        %v7596 = vshrl.u32 %v7533, 16
        %v7598 = vshll.u32 %v7533, 16
        %v7600 = vrot.slane %v7598, 1
        %v7601 = vor.u32 %v7596, %v7600
        %v7603 = vshll.u32 %v7536, 16
        %v7605 = vrot.slane %v7603, 1
        %v7606 = vsel %vm2178, %v7601, %v7605
        %v7608 = vshrl.u32 %v7534, 16
        %v7610 = vshll.u32 %v7534, 16
        %v7612 = vrot.slane %v7610, 1
        %v7613 = vor.u32 %v7608, %v7612
        %v7615 = vshll.u32 %v7537, 16
        %v7617 = vrot.slane %v7615, 1
        %v7618 = vsel %vm2178, %v7613, %v7617
        %v7619 = vshrl.u32 %v7535, 16
        %v7621 = vor.u32 %v7619, %v7593
        %v7623 = vshll.u32 %v7538, 16
        %v7625 = vrot.slane %v7623, 1
        %v7626 = vsel %vm2178, %v7621, %v7625
        %v7627 = vshrl.u32 %v7536, 16
        %v7629 = vor.u32 %v7627, %v7605
        %v7631 = vshll.u32 %v7539, 16
        %v7633 = vrot.slane %v7631, 1
        %v7634 = vsel %vm2178, %v7629, %v7633
        %v7635 = vshrl.u32 %v7537, 16
        %v7637 = vor.u32 %v7635, %v7617
        %v7639 = vshll.u32 %v7540, 16
        %v7641 = vrot.slane %v7639, 1
        %v7642 = vsel %vm2178, %v7637, %v7641
        %v7643 = vshrl.u32 %v7538, 16
        %v7645 = vor.u32 %v7643, %v7625
        %v7647 = vshll.u32 %v7541, 16
        %v7649 = vrot.slane %v7647, 1
        %v7650 = vsel %vm2178, %v7645, %v7649
        %v7651 = vshrl.u32 %v7539, 16
        %v7653 = vor.u32 %v7651, %v7633
        %v7655 = vshll.u32 %v7542, 16
        %v7657 = vrot.slane %v7655, 1
        %v7658 = vsel %vm2178, %v7653, %v7657
        %v7659 = vshrl.u32 %v7540, 16
        %v7661 = vor.u32 %v7659, %v7641
        %v7663 = vshll.u32 %v7543, 16
        %v7665 = vrot.slane %v7663, 1
        %v7666 = vsel %vm2178, %v7661, %v7665
        %v7667 = vshrl.u32 %v7541, 16
        %v7669 = vor.u32 %v7667, %v7649
        %v7671 = vshll.u32 %v7544, 16
        %v7673 = vrot.slane %v7671, 1
        %v7674 = vsel %vm2178, %v7669, %v7673
        %v7675 = vshrl.u32 %v7542, 16
        %v7677 = vor.u32 %v7675, %v7657
        %v7679 = vshll.u32 %v7545, 16
        %v7681 = vrot.slane %v7679, 1
        %v7682 = vsel %vm2178, %v7677, %v7681
        %v7683 = vshrl.u32 %v7543, 16
        %v7685 = vor.u32 %v7683, %v7665
        %v7687 = vshll.u32 %v7546, 16
        %v7689 = vrot.slane %v7687, 1
        %v7690 = vsel %vm2178, %v7685, %v7689
        %v7691 = vshrl.u32 %v7544, 16
        %v7693 = vor.u32 %v7691, %v7673
        %v7695 = vshll.u32 %v7547, 16
        %v7697 = vrot.slane %v7695, 1
        %v7698 = vsel %vm2178, %v7693, %v7697
        %v7699 = vshrl.u32 %v7545, 16
        %v7701 = vor.u32 %v7699, %v7681
        %v7703 = vshll.u32 %v7548, 16
        %v7705 = vrot.slane %v7703, 1
        %v7706 = vsel %vm2178, %v7701, %v7705
        %v7707 = vshrl.u32 %v7546, 16
        %v7709 = vor.u32 %v7707, %v7689
        %v7711 = vshll.u32 %v7549, 16
        %v7713 = vrot.slane %v7711, 1
        %v7714 = vsel %vm2178, %v7709, %v7713
        %v7715 = vshrl.u32 %v7547, 16
        %v7717 = vor.u32 %v7715, %v7697
        %v7719 = vshll.u32 %v7550, 16
        %v7721 = vrot.slane %v7719, 1
        %v7722 = vsel %vm2178, %v7717, %v7721
        %v7723 = vshrl.u32 %v7548, 16
        %v7725 = vor.u32 %v7723, %v7705
        %v7727 = vshll.u32 %v7551, 16
        %v7729 = vrot.slane %v7727, 1
        %v7730 = vsel %vm2178, %v7725, %v7729
        %v7731 = vshrl.u32 %v7549, 16
        %v7733 = vor.u32 %v7731, %v7713
        %v7735 = vshll.u32 %v7552, 16
        %v7737 = vrot.slane %v7735, 1
        %v7738 = vsel %vm2178, %v7733, %v7737
        %v7739 = vshrl.u32 %v7550, 16
        %v7741 = vor.u32 %v7739, %v7721
        %v7743 = vshll.u32 %v7553, 16
        %v7745 = vrot.slane %v7743, 1
        %v7746 = vsel %vm2178, %v7741, %v7745
        %v7747 = vshrl.u32 %v7551, 16
        %v7749 = vor.u32 %v7747, %v7729
        %v7751 = vshll.u32 %v7554, 16
        %v7753 = vrot.slane %v7751, 1
        %v7754 = vsel %vm2178, %v7749, %v7753
        %v7755 = vshrl.u32 %v7552, 16
        %v7757 = vor.u32 %v7755, %v7737
        %v7759 = vshll.u32 %v7555, 16
        %v7761 = vrot.slane %v7759, 1
        %v7762 = vsel %vm2178, %v7757, %v7761
        %v7763 = vshrl.u32 %v7553, 16
        %v7765 = vor.u32 %v7763, %v7745
        %v7767 = vshll.u32 %v7556, 16
        %v7769 = vrot.slane %v7767, 1
        %v7770 = vsel %vm2178, %v7765, %v7769
        %v7771 = vshrl.u32 %v7554, 16
        %v7773 = vor.u32 %v7771, %v7753
        %v7775 = vshll.u32 %v7557, 16
        %v7777 = vrot.slane %v7775, 1
        %v7778 = vsel %vm2178, %v7773, %v7777
        %v7779 = vshrl.u32 %v7555, 16
        %v7781 = vor.u32 %v7779, %v7761
        %v7783 = vshll.u32 %v7558, 16
        %v7785 = vrot.slane %v7783, 1
        %v7786 = vsel %vm2178, %v7781, %v7785
        %v7787 = vshrl.u32 %v7556, 16
        %v7789 = vor.u32 %v7787, %v7769
        %v7791 = vshll.u32 %v7559, 16
        %v7793 = vrot.slane %v7791, 1
        %v7794 = vsel %vm2178, %v7789, %v7793
        %v7795 = vshrl.u32 %v7557, 16
        %v7797 = vor.u32 %v7795, %v7777
        %v7799 = vshll.u32 %v7560, 16
        %v7801 = vrot.slane %v7799, 1
        %v7802 = vsel %vm2178, %v7797, %v7801
        %v7803 = vshrl.u32 %v7558, 16
        %v7805 = vor.u32 %v7803, %v7785
        %v7807 = vshll.u32 %v7561, 16
        %v7809 = vrot.slane %v7807, 1
        %v7810 = vsel %vm2178, %v7805, %v7809
        %v7811 = vshrl.u32 %v7559, 16
        %v7813 = vor.u32 %v7811, %v7793
        %v7815 = vshll.u32 %v7562, 16
        %v7817 = vrot.slane %v7815, 1
        %v7818 = vsel %vm2178, %v7813, %v7817
        %v7819 = vshrl.u32 %v7560, 16
        %v7821 = vor.u32 %v7819, %v7801
        %v7823 = vshll.u32 %v7563, 16
        %v7825 = vrot.slane %v7823, 1
        %v7826 = vsel %vm2178, %v7821, %v7825
        %v7827 = vshrl.u32 %v7561, 16
        %v7829 = vor.u32 %v7827, %v7809
        %v7831 = vshll.u32 %v7564, 16
        %v7833 = vrot.slane %v7831, 1
        %v7834 = vsel %vm2178, %v7829, %v7833
        %v7835 = vshrl.u32 %v7562, 16
        %v7837 = vor.u32 %v7835, %v7817
        %v7839 = vshll.u32 %v7565, 16
        %v7841 = vrot.slane %v7839, 1
        %v7842 = vsel %vm2178, %v7837, %v7841
        %v7843 = vshrl.u32 %v7563, 16
        %v7845 = vor.u32 %v7843, %v7825
        %v7847 = vshll.u32 %v7566, 16
        %v7849 = vrot.slane %v7847, 1
        %v7850 = vsel %vm2178, %v7845, %v7849
        %v7851 = vshrl.u32 %v7564, 16
        %v7853 = vor.u32 %v7851, %v7833
        %v7855 = vshll.u32 %v7567, 16
        %v7857 = vrot.slane %v7855, 1
        %v7858 = vsel %vm2178, %v7853, %v7857
        %v7859 = vshrl.u32 %v7565, 16
        %v7861 = vor.u32 %v7859, %v7841
        %v7863 = vshll.u32 %v7568, 16
        %v7865 = vrot.slane %v7863, 1
        %v7866 = vsel %vm2178, %v7861, %v7865
        %v7867 = vshrl.u32 %v7566, 16
        %v7869 = vor.u32 %v7867, %v7849
        %v7871 = vshll.u32 %v7569, 16
        %v7873 = vrot.slane %v7871, 1
        %v7874 = vsel %vm2178, %v7869, %v7873
        %v7875 = vshrl.u32 %v7567, 16
        %v7877 = vor.u32 %v7875, %v7857
        %v7879 = vshll.u32 %v7570, 16
        %v7881 = vrot.slane %v7879, 1
        %v7882 = vsel %vm2178, %v7877, %v7881
        %v7883 = vshrl.u32 %v7568, 16
        %v7885 = vor.u32 %v7883, %v7865
        %v7887 = vshll.u32 %v7571, 16
        %v7889 = vrot.slane %v7887, 1
        %v7890 = vsel %vm2178, %v7885, %v7889
        %v7891 = vshrl.u32 %v7569, 16
        %v7893 = vor.u32 %v7891, %v7873
        %v7895 = vshll.u32 %v7572, 16
        %v7897 = vrot.slane %v7895, 1
        %v7898 = vsel %vm2178, %v7893, %v7897
        %v7899 = vshrl.u32 %v7570, 16
        %v7901 = vor.u32 %v7899, %v7881
        %v7903 = vshll.u32 %v7573, 16
        %v7905 = vrot.slane %v7903, 1
        %v7906 = vsel %vm2178, %v7901, %v7905
        %v7907 = vshrl.u32 %v7571, 16
        %v7909 = vor.u32 %v7907, %v7889
        %v7911 = vshll.u32 %v7574, 16
        %v7913 = vrot.slane %v7911, 1
        %v7914 = vsel %vm2178, %v7909, %v7913
        %v7915 = vshrl.u32 %v7572, 16
        %v7917 = vor.u32 %v7915, %v7897
        %v7919 = vshll.u32 %v7575, 16
        %v7921 = vrot.slane %v7919, 1
        %v7922 = vsel %vm2178, %v7917, %v7921
        %v7923 = vshrl.u32 %v7573, 16
        %v7925 = vor.u32 %v7923, %v7905
        %v7927 = vshll.u32 %v7576, 16
        %v7929 = vrot.slane %v7927, 1
        %v7930 = vsel %vm2178, %v7925, %v7929
        %v7931 = vshrl.u32 %v7574, 16
        %v7933 = vor.u32 %v7931, %v7913
        %v7935 = vshll.u32 %v7577, 16
        %v7937 = vrot.slane %v7935, 1
        %v7938 = vsel %vm2178, %v7933, %v7937
        %v7939 = vshrl.u32 %v7575, 16
        %v7941 = vor.u32 %v7939, %v7921
        %v7943 = vshll.u32 %v7578, 16
        %v7945 = vrot.slane %v7943, 1
        %v7946 = vsel %vm2178, %v7941, %v7945
        %v7947 = vshrl.u32 %v7576, 16
        %v7949 = vor.u32 %v7947, %v7929
        %v7951 = vshll.u32 %v7579, 16
        %v7953 = vrot.slane %v7951, 1
        %v7954 = vsel %vm2178, %v7949, %v7953
        %v7955 = vshrl.u32 %v7577, 16
        %v7957 = vor.u32 %v7955, %v7937
        %v7959 = vshll.u32 %v7580, 16
        %v7961 = vrot.slane %v7959, 1
        %v7962 = vsel %vm2178, %v7957, %v7961
        %v7963 = vshrl.u32 %v7578, 16
        %v7965 = vor.u32 %v7963, %v7945
        %v7967 = vshll.u32 %v7581, 16
        %v7969 = vrot.slane %v7967, 1
        %v7970 = vsel %vm2178, %v7965, %v7969
        %v7971 = vshrl.u32 %v7579, 16
        %v7973 = vor.u32 %v7971, %v7953
        %v7975 = vshll.u32 %v7582, 16
        %v7977 = vrot.slane %v7975, 1
        %v7978 = vsel %vm2178, %v7973, %v7977
        %8027 = vst [vmem:[#allocation2 + $0x78] sm:$0xff] %v7594
        %8028 = vst [vmem:[#allocation2 + $0x80] sm:$0xff] %v7606
        %8029 = vst [vmem:[#allocation2 + $0x88] sm:$0xff] %v7618
        %8030 = vst [vmem:[#allocation2 + $0xc0] sm:$0xff] %v7626
        %8031 = vst [vmem:[#allocation2 + $0xc8] sm:$0xff] %v7634
        %8032 = vst [vmem:[#allocation2 + $0xd0] sm:$0xff] %v7642
        %8033 = vst [vmem:[#allocation2 + $0x108] sm:$0xff] %v7650
        %8034 = vst [vmem:[#allocation2 + $0x110] sm:$0xff] %v7658
        %8035 = vst [vmem:[#allocation2 + $0x118] sm:$0xff] %v7666
        %8036 = vst [vmem:[#allocation2 + $0x150] sm:$0xff] %v7674
        %8037 = vst [vmem:[#allocation2 + $0x158] sm:$0xff] %v7682
        %8038 = vst [vmem:[#allocation2 + $0x160] sm:$0xff] %v7690
        %8039 = vst [vmem:[#allocation2 + $0x198] sm:$0xff] %v7698
        %8040 = vst [vmem:[#allocation2 + $0x1a0] sm:$0xff] %v7706
        %8041 = vst [vmem:[#allocation2 + $0x1a8] sm:$0xff] %v7714
        %8042 = vst [vmem:[#allocation2 + $0x1e0] sm:$0xff] %v7722
        %8043 = vst [vmem:[#allocation2 + $0x1e8] sm:$0xff] %v7730
        %8044 = vst [vmem:[#allocation2 + $0x1f0] sm:$0xff] %v7738
        %8045 = vst [vmem:[#allocation2 + $0x228] sm:$0xff] %v7746
        %8046 = vst [vmem:[#allocation2 + $0x230] sm:$0xff] %v7754
        %8047 = vst [vmem:[#allocation2 + $0x238] sm:$0xff] %v7762
        %8048 = vst [vmem:[#allocation2 + $0x270] sm:$0xff] %v7770
        %8049 = vst [vmem:[#allocation2 + $0x278] sm:$0xff] %v7778
        %8050 = vst [vmem:[#allocation2 + $0x280] sm:$0xff] %v7786
        %8051 = vst [vmem:[#allocation2 + $0x2b8] sm:$0xff] %v7794
        %8052 = vst [vmem:[#allocation2 + $0x2c0] sm:$0xff] %v7802
        %8053 = vst [vmem:[#allocation2 + $0x2c8] sm:$0xff] %v7810
        %8054 = vst [vmem:[#allocation2 + $0x300] sm:$0xff] %v7818
        %8055 = vst [vmem:[#allocation2 + $0x308] sm:$0xff] %v7826
        %8056 = vst [vmem:[#allocation2 + $0x310] sm:$0xff] %v7834
        %8057 = vst [vmem:[#allocation2 + $0x348] sm:$0xff] %v7842
        %8058 = vst [vmem:[#allocation2 + $0x350] sm:$0xff] %v7850
        %8059 = vst [vmem:[#allocation2 + $0x358] sm:$0xff] %v7858
        %8060 = vst [vmem:[#allocation2 + $0x390] sm:$0xff] %v7866
        %8061 = vst [vmem:[#allocation2 + $0x398] sm:$0xff] %v7874
        %8062 = vst [vmem:[#allocation2 + $0x3a0] sm:$0xff] %v7882
        %8063 = vst [vmem:[#allocation2 + $0x3d8] sm:$0xff] %v7890
        %8064 = vst [vmem:[#allocation2 + $0x3e0] sm:$0xff] %v7898
        %8065 = vst [vmem:[#allocation2 + $0x3e8] sm:$0xff] %v7906
        %8066 = vst [vmem:[#allocation2 + $0x420] sm:$0xff] %v7914
        %8067 = vst [vmem:[#allocation2 + $0x428] sm:$0xff] %v7922
        %8068 = vst [vmem:[#allocation2 + $0x430] sm:$0xff] %v7930
        %8069 = vst [vmem:[#allocation2 + $0x468] sm:$0xff] %v7938
        %8070 = vst [vmem:[#allocation2 + $0x470] sm:$0xff] %v7946
        %8071 = vst [vmem:[#allocation2 + $0x478] sm:$0xff] %v7954
        %8072 = vst [vmem:[#allocation2 + $0x4b0] sm:$0xff] %v7962
        %8073 = vst [vmem:[#allocation2 + $0x4b8] sm:$0xff] %v7970
        %8074 = vst [vmem:[#allocation2 + $0x4c0] sm:$0xff] %v7978
        %v8075 = vld [vmem:[#allocation2] sm:$0xff]
        %v8076 = vld [vmem:[#allocation2 + $0x8] sm:$0xff]
        %v8077 = vld [vmem:[#allocation2 + $0x10] sm:$0xff]
        %v8078 = vld [vmem:[#allocation2 + $0x18] sm:$0xff]
        %v8079 = vld [vmem:[#allocation2 + $0x20] sm:$0xff]
        %v8080 = vld [vmem:[#allocation2 + $0x28] sm:$0xff]
        %v8081 = vld [vmem:[#allocation2 + $0x30] sm:$0xff]
        %v8082 = vld [vmem:[#allocation2 + $0x38] sm:$0xff]
        %v8083 = vld [vmem:[#allocation2 + $0x40] sm:$0xff]
        %v8084 = vld [vmem:[#allocation2 + $0x48] sm:$0xff]
        %v8085 = vld [vmem:[#allocation2 + $0x50] sm:$0xff]
        %v8086 = vld [vmem:[#allocation2 + $0x58] sm:$0xff]
        %v8087 = vld [vmem:[#allocation2 + $0x60] sm:$0xff]
        %v8088 = vld [vmem:[#allocation2 + $0x68] sm:$0xff]
        %v8089 = vld [vmem:[#allocation2 + $0x70] sm:$0xff]
        %v8090 = vld [vmem:[#allocation2 + $0x78] sm:$0xff]
        %v8091 = vld [vmem:[#allocation2 + $0x80] sm:$0xff]
        %v8092 = vld [vmem:[#allocation2 + $0x88] sm:$0xff]
        %v8093 = vld [vmem:[#allocation2 + $0x90] sm:$0xff]
        %v8094 = vld [vmem:[#allocation2 + $0x98] sm:$0xff]
        %v8095 = vld [vmem:[#allocation2 + $0xa0] sm:$0xff]
        %v8096 = vld [vmem:[#allocation2 + $0xa8] sm:$0xff]
        %v8097 = vld [vmem:[#allocation2 + $0xb0] sm:$0xff]
        %v8098 = vld [vmem:[#allocation2 + $0xb8] sm:$0xff]
        %v8099 = vld [vmem:[#allocation2 + $0xc0] sm:$0xff]
        %v8100 = vld [vmem:[#allocation2 + $0xc8] sm:$0xff]
        %v8101 = vld [vmem:[#allocation2 + $0xd0] sm:$0xff]
        %v8102 = vld [vmem:[#allocation2 + $0xd8] sm:$0xff]
        %v8103 = vld [vmem:[#allocation2 + $0xe0] sm:$0xff]
        %v8104 = vld [vmem:[#allocation2 + $0xe8] sm:$0xff]
        %v8105 = vld [vmem:[#allocation2 + $0xf0] sm:$0xff]
        %v8106 = vld [vmem:[#allocation2 + $0xf8] sm:$0xff]
        %v8107 = vld [vmem:[#allocation2 + $0x100] sm:$0xff]
        %v8108 = vld [vmem:[#allocation2 + $0x108] sm:$0xff]
        %v8109 = vld [vmem:[#allocation2 + $0x110] sm:$0xff]
        %v8110 = vld [vmem:[#allocation2 + $0x118] sm:$0xff]
        %v8111 = vld [vmem:[#allocation2 + $0x120] sm:$0xff]
        %v8112 = vld [vmem:[#allocation2 + $0x128] sm:$0xff]
        %v8113 = vld [vmem:[#allocation2 + $0x130] sm:$0xff]
        %v8114 = vld [vmem:[#allocation2 + $0x138] sm:$0xff]
        %v8115 = vld [vmem:[#allocation2 + $0x140] sm:$0xff]
        %v8116 = vld [vmem:[#allocation2 + $0x148] sm:$0xff]
        %v8117 = vld [vmem:[#allocation2 + $0x150] sm:$0xff]
        %v8118 = vld [vmem:[#allocation2 + $0x158] sm:$0xff]
        %v8119 = vld [vmem:[#allocation2 + $0x160] sm:$0xff]
        %v8120 = vld [vmem:[#allocation2 + $0x168] sm:$0xff]
        %v8121 = vld [vmem:[#allocation2 + $0x170] sm:$0xff]
        %v8122 = vld [vmem:[#allocation2 + $0x178] sm:$0xff]
        %v8123 = vld [vmem:[#allocation2 + $0x180] sm:$0xff]
        %v8124 = vld [vmem:[#allocation2 + $0x188] sm:$0xff]
        %v8125 = vld [vmem:[#allocation2 + $0x190] sm:$0xff]
        %v8126 = vld [vmem:[#allocation2 + $0x198] sm:$0xff]
        %v8127 = vld [vmem:[#allocation2 + $0x1a0] sm:$0xff]
        %v8128 = vld [vmem:[#allocation2 + $0x1a8] sm:$0xff]
        %v8129 = vld [vmem:[#allocation2 + $0x1b0] sm:$0xff]
        %v8130 = vld [vmem:[#allocation2 + $0x1b8] sm:$0xff]
        %v8131 = vld [vmem:[#allocation2 + $0x1c0] sm:$0xff]
        %v8132 = vld [vmem:[#allocation2 + $0x1c8] sm:$0xff]
        %v8133 = vld [vmem:[#allocation2 + $0x1d0] sm:$0xff]
        %v8134 = vld [vmem:[#allocation2 + $0x1d8] sm:$0xff]
        %v8135 = vld [vmem:[#allocation2 + $0x1e0] sm:$0xff]
        %v8136 = vld [vmem:[#allocation2 + $0x1e8] sm:$0xff]
        %v8137 = vld [vmem:[#allocation2 + $0x1f0] sm:$0xff]
        %v8138 = vld [vmem:[#allocation2 + $0x1f8] sm:$0xff]
        %v8139 = vld [vmem:[#allocation2 + $0x200] sm:$0xff]
        %v8140 = vld [vmem:[#allocation2 + $0x208] sm:$0xff]
        %v8141 = vld [vmem:[#allocation2 + $0x210] sm:$0xff]
        %v8142 = vld [vmem:[#allocation2 + $0x218] sm:$0xff]
        %v8143 = vld [vmem:[#allocation2 + $0x220] sm:$0xff]
        %v8144 = vld [vmem:[#allocation2 + $0x228] sm:$0xff]
        %v8145 = vld [vmem:[#allocation2 + $0x230] sm:$0xff]
        %v8146 = vld [vmem:[#allocation2 + $0x238] sm:$0xff]
        %v8147 = vld [vmem:[#allocation2 + $0x240] sm:$0xff]
        %v8148 = vld [vmem:[#allocation2 + $0x248] sm:$0xff]
        %v8149 = vld [vmem:[#allocation2 + $0x250] sm:$0xff]
        %v8150 = vld [vmem:[#allocation2 + $0x258] sm:$0xff]
        %v8151 = vld [vmem:[#allocation2 + $0x260] sm:$0xff]
        %v8152 = vld [vmem:[#allocation2 + $0x268] sm:$0xff]
        %v8153 = vld [vmem:[#allocation2 + $0x270] sm:$0xff]
        %v8154 = vld [vmem:[#allocation2 + $0x278] sm:$0xff]
        %v8155 = vld [vmem:[#allocation2 + $0x280] sm:$0xff]
        %v8156 = vld [vmem:[#allocation2 + $0x288] sm:$0xff]
        %v8157 = vld [vmem:[#allocation2 + $0x290] sm:$0xff]
        %v8158 = vld [vmem:[#allocation2 + $0x298] sm:$0xff]
        %v8159 = vld [vmem:[#allocation2 + $0x2a0] sm:$0xff]
        %v8160 = vld [vmem:[#allocation2 + $0x2a8] sm:$0xff]
        %v8161 = vld [vmem:[#allocation2 + $0x2b0] sm:$0xff]
        %v8162 = vld [vmem:[#allocation2 + $0x2b8] sm:$0xff]
        %v8163 = vld [vmem:[#allocation2 + $0x2c0] sm:$0xff]
        %v8164 = vld [vmem:[#allocation2 + $0x2c8] sm:$0xff]
        %v8165 = vld [vmem:[#allocation2 + $0x2d0] sm:$0xff]
        %v8166 = vld [vmem:[#allocation2 + $0x2d8] sm:$0xff]
        %v8167 = vld [vmem:[#allocation2 + $0x2e0] sm:$0xff]
        %v8168 = vld [vmem:[#allocation2 + $0x2e8] sm:$0xff]
        %v8169 = vld [vmem:[#allocation2 + $0x2f0] sm:$0xff]
        %v8170 = vld [vmem:[#allocation2 + $0x2f8] sm:$0xff]
        %v8171 = vld [vmem:[#allocation2 + $0x300] sm:$0xff]
        %v8172 = vld [vmem:[#allocation2 + $0x308] sm:$0xff]
        %v8173 = vld [vmem:[#allocation2 + $0x310] sm:$0xff]
        %v8174 = vld [vmem:[#allocation2 + $0x318] sm:$0xff]
        %v8175 = vld [vmem:[#allocation2 + $0x320] sm:$0xff]
        %v8176 = vld [vmem:[#allocation2 + $0x328] sm:$0xff]
        %v8177 = vld [vmem:[#allocation2 + $0x330] sm:$0xff]
        %v8178 = vld [vmem:[#allocation2 + $0x338] sm:$0xff]
        %v8179 = vld [vmem:[#allocation2 + $0x340] sm:$0xff]
        %v8180 = vld [vmem:[#allocation2 + $0x348] sm:$0xff]
        %v8181 = vld [vmem:[#allocation2 + $0x350] sm:$0xff]
        %v8182 = vld [vmem:[#allocation2 + $0x358] sm:$0xff]
        %v8183 = vld [vmem:[#allocation2 + $0x360] sm:$0xff]
        %v8184 = vld [vmem:[#allocation2 + $0x368] sm:$0xff]
        %v8185 = vld [vmem:[#allocation2 + $0x370] sm:$0xff]
        %v8186 = vld [vmem:[#allocation2 + $0x378] sm:$0xff]
        %v8187 = vld [vmem:[#allocation2 + $0x380] sm:$0xff]
        %v8188 = vld [vmem:[#allocation2 + $0x388] sm:$0xff]
        %v8189 = vld [vmem:[#allocation2 + $0x390] sm:$0xff]
        %v8190 = vld [vmem:[#allocation2 + $0x398] sm:$0xff]
        %v8191 = vld [vmem:[#allocation2 + $0x3a0] sm:$0xff]
        %v8192 = vld [vmem:[#allocation2 + $0x3a8] sm:$0xff]
        %v8193 = vld [vmem:[#allocation2 + $0x3b0] sm:$0xff]
        %v8194 = vld [vmem:[#allocation2 + $0x3b8] sm:$0xff]
        %v8195 = vld [vmem:[#allocation2 + $0x3c0] sm:$0xff]
        %v8196 = vld [vmem:[#allocation2 + $0x3c8] sm:$0xff]
        %v8197 = vld [vmem:[#allocation2 + $0x3d0] sm:$0xff]
        %v8198 = vld [vmem:[#allocation2 + $0x3d8] sm:$0xff]
        %v8199 = vld [vmem:[#allocation2 + $0x3e0] sm:$0xff]
        %v8200 = vld [vmem:[#allocation2 + $0x3e8] sm:$0xff]
        %v8201 = vld [vmem:[#allocation2 + $0x3f0] sm:$0xff]
        %v8202 = vld [vmem:[#allocation2 + $0x3f8] sm:$0xff]
        %v8203 = vld [vmem:[#allocation2 + $0x400] sm:$0xff]
        %v8204 = vld [vmem:[#allocation2 + $0x408] sm:$0xff]
        %v8205 = vld [vmem:[#allocation2 + $0x410] sm:$0xff]
        %v8206 = vld [vmem:[#allocation2 + $0x418] sm:$0xff]
        %v8207 = vld [vmem:[#allocation2 + $0x420] sm:$0xff]
        %v8208 = vld [vmem:[#allocation2 + $0x428] sm:$0xff]
        %v8209 = vld [vmem:[#allocation2 + $0x430] sm:$0xff]
        %v8210 = vld [vmem:[#allocation2 + $0x438] sm:$0xff]
        %v8211 = vld [vmem:[#allocation2 + $0x440] sm:$0xff]
        %v8212 = vld [vmem:[#allocation2 + $0x448] sm:$0xff]
        %v8213 = vld [vmem:[#allocation2 + $0x450] sm:$0xff]
        %v8214 = vld [vmem:[#allocation2 + $0x458] sm:$0xff]
        %v8215 = vld [vmem:[#allocation2 + $0x460] sm:$0xff]
        %v8216 = vld [vmem:[#allocation2 + $0x468] sm:$0xff]
        %v8217 = vld [vmem:[#allocation2 + $0x470] sm:$0xff]
        %v8218 = vld [vmem:[#allocation2 + $0x478] sm:$0xff]
        %v8219 = vld [vmem:[#allocation2 + $0x480] sm:$0xff]
        %v8220 = vld [vmem:[#allocation2 + $0x488] sm:$0xff]
        %v8221 = vld [vmem:[#allocation2 + $0x490] sm:$0xff]
        %v8222 = vld [vmem:[#allocation2 + $0x498] sm:$0xff]
        %v8223 = vld [vmem:[#allocation2 + $0x4a0] sm:$0xff]
        %v8224 = vld [vmem:[#allocation2 + $0x4a8] sm:$0xff]
        %v8225 = vld [vmem:[#allocation2 + $0x4b0] sm:$0xff]
        %v8226 = vld [vmem:[#allocation2 + $0x4b8] sm:$0xff]
        %v8227 = vld [vmem:[#allocation2 + $0x4c0] sm:$0xff]
        %v8228 = vld [vmem:[#allocation2 + $0x90] sm:$0xff]
        %v8229 = vld [vmem:[#allocation2 + $0x98] sm:$0xff]
        %v8230 = vld [vmem:[#allocation2 + $0xa0] sm:$0xff]
        %v8231 = vld [vmem:[#allocation2 + $0xa8] sm:$0xff]
        %v8232 = vld [vmem:[#allocation2 + $0xb0] sm:$0xff]
        %v8233 = vld [vmem:[#allocation2 + $0xb8] sm:$0xff]
        %v8234 = vld [vmem:[#allocation2 + $0xc0] sm:$0xff]
        %v8235 = vld [vmem:[#allocation2 + $0xc8] sm:$0xff]
        %v8236 = vld [vmem:[#allocation2 + $0xd0] sm:$0xff]
        %v8237 = vld [vmem:[#allocation2 + $0xd8] sm:$0xff]
        %v8238 = vld [vmem:[#allocation2 + $0xe0] sm:$0xff]
        %v8239 = vld [vmem:[#allocation2 + $0xe8] sm:$0xff]
        %v8240 = vld [vmem:[#allocation2 + $0xf0] sm:$0xff]
        %v8241 = vld [vmem:[#allocation2 + $0xf8] sm:$0xff]
        %v8242 = vld [vmem:[#allocation2 + $0x100] sm:$0xff]
        %v8243 = vld [vmem:[#allocation2 + $0x108] sm:$0xff]
        %v8244 = vld [vmem:[#allocation2 + $0x110] sm:$0xff]
        %v8245 = vld [vmem:[#allocation2 + $0x118] sm:$0xff]
        %v8246 = vld [vmem:[#allocation2 + $0x120] sm:$0xff]
        %v8247 = vld [vmem:[#allocation2 + $0x128] sm:$0xff]
        %v8248 = vld [vmem:[#allocation2 + $0x130] sm:$0xff]
        %v8249 = vld [vmem:[#allocation2 + $0x138] sm:$0xff]
        %v8250 = vld [vmem:[#allocation2 + $0x140] sm:$0xff]
        %v8251 = vld [vmem:[#allocation2 + $0x148] sm:$0xff]
        %v8252 = vld [vmem:[#allocation2 + $0x150] sm:$0xff]
        %v8253 = vld [vmem:[#allocation2 + $0x158] sm:$0xff]
        %v8254 = vld [vmem:[#allocation2 + $0x160] sm:$0xff]
        %v8255 = vld [vmem:[#allocation2 + $0x168] sm:$0xff]
        %v8256 = vld [vmem:[#allocation2 + $0x170] sm:$0xff]
        %v8257 = vld [vmem:[#allocation2 + $0x178] sm:$0xff]
        %v8258 = vld [vmem:[#allocation2 + $0x180] sm:$0xff]
        %v8259 = vld [vmem:[#allocation2 + $0x188] sm:$0xff]
        %v8260 = vld [vmem:[#allocation2 + $0x190] sm:$0xff]
        %v8261 = vld [vmem:[#allocation2 + $0x198] sm:$0xff]
        %v8262 = vld [vmem:[#allocation2 + $0x1a0] sm:$0xff]
        %v8263 = vld [vmem:[#allocation2 + $0x1a8] sm:$0xff]
        %v8264 = vld [vmem:[#allocation2 + $0x1b0] sm:$0xff]
        %v8265 = vld [vmem:[#allocation2 + $0x1b8] sm:$0xff]
        %v8266 = vld [vmem:[#allocation2 + $0x1c0] sm:$0xff]
        %v8267 = vld [vmem:[#allocation2 + $0x1c8] sm:$0xff]
        %v8268 = vld [vmem:[#allocation2 + $0x1d0] sm:$0xff]
        %v8269 = vld [vmem:[#allocation2 + $0x1d8] sm:$0xff]
        %v8270 = vld [vmem:[#allocation2 + $0x1e0] sm:$0xff]
        %v8271 = vld [vmem:[#allocation2 + $0x1e8] sm:$0xff]
        %v8272 = vld [vmem:[#allocation2 + $0x1f0] sm:$0xff]
        %v8273 = vld [vmem:[#allocation2 + $0x1f8] sm:$0xff]
        %v8274 = vld [vmem:[#allocation2 + $0x200] sm:$0xff]
        %v8275 = vld [vmem:[#allocation2 + $0x208] sm:$0xff]
        %v8276 = vld [vmem:[#allocation2 + $0x210] sm:$0xff]
        %v8277 = vld [vmem:[#allocation2 + $0x218] sm:$0xff]
        %v8278 = vld [vmem:[#allocation2 + $0x220] sm:$0xff]
        %v8279 = vld [vmem:[#allocation2 + $0x228] sm:$0xff]
        %v8280 = vld [vmem:[#allocation2 + $0x230] sm:$0xff]
        %v8281 = vld [vmem:[#allocation2 + $0x238] sm:$0xff]
        %v8282 = vld [vmem:[#allocation2 + $0x240] sm:$0xff]
        %v8283 = vld [vmem:[#allocation2 + $0x248] sm:$0xff]
        %v8284 = vld [vmem:[#allocation2 + $0x250] sm:$0xff]
        %v8285 = vld [vmem:[#allocation2 + $0x258] sm:$0xff]
        %v8286 = vld [vmem:[#allocation2 + $0x260] sm:$0xff]
        %v8287 = vld [vmem:[#allocation2 + $0x268] sm:$0xff]
        %v8288 = vld [vmem:[#allocation2 + $0x270] sm:$0xff]
        %v8289 = vld [vmem:[#allocation2 + $0x278] sm:$0xff]
        %v8290 = vld [vmem:[#allocation2 + $0x280] sm:$0xff]
        %v8291 = vld [vmem:[#allocation2 + $0x288] sm:$0xff]
        %v8292 = vld [vmem:[#allocation2 + $0x290] sm:$0xff]
        %v8293 = vld [vmem:[#allocation2 + $0x298] sm:$0xff]
        %v8294 = vld [vmem:[#allocation2 + $0x2a0] sm:$0xff]
        %v8295 = vld [vmem:[#allocation2 + $0x2a8] sm:$0xff]
        %v8296 = vld [vmem:[#allocation2 + $0x2b0] sm:$0xff]
        %v8297 = vld [vmem:[#allocation2 + $0x2b8] sm:$0xff]
        %v8298 = vld [vmem:[#allocation2 + $0x2c0] sm:$0xff]
        %v8299 = vld [vmem:[#allocation2 + $0x2c8] sm:$0xff]
        %v8300 = vld [vmem:[#allocation2 + $0x2d0] sm:$0xff]
        %v8301 = vld [vmem:[#allocation2 + $0x2d8] sm:$0xff]
        %v8302 = vld [vmem:[#allocation2 + $0x2e0] sm:$0xff]
        %v8303 = vld [vmem:[#allocation2 + $0x2e8] sm:$0xff]
        %v8304 = vld [vmem:[#allocation2 + $0x2f0] sm:$0xff]
        %v8305 = vld [vmem:[#allocation2 + $0x2f8] sm:$0xff]
        %v8306 = vld [vmem:[#allocation2 + $0x300] sm:$0xff]
        %v8307 = vld [vmem:[#allocation2 + $0x308] sm:$0xff]
        %v8308 = vld [vmem:[#allocation2 + $0x310] sm:$0xff]
        %v8309 = vld [vmem:[#allocation2 + $0x318] sm:$0xff]
        %v8310 = vld [vmem:[#allocation2 + $0x320] sm:$0xff]
        %v8311 = vld [vmem:[#allocation2 + $0x328] sm:$0xff]
        %v8312 = vld [vmem:[#allocation2 + $0x330] sm:$0xff]
        %v8313 = vld [vmem:[#allocation2 + $0x338] sm:$0xff]
        %v8314 = vld [vmem:[#allocation2 + $0x340] sm:$0xff]
        %v8315 = vld [vmem:[#allocation2 + $0x348] sm:$0xff]
        %v8316 = vld [vmem:[#allocation2 + $0x350] sm:$0xff]
        %v8317 = vld [vmem:[#allocation2 + $0x358] sm:$0xff]
        %v8318 = vld [vmem:[#allocation2 + $0x360] sm:$0xff]
        %v8319 = vld [vmem:[#allocation2 + $0x368] sm:$0xff]
        %v8320 = vld [vmem:[#allocation2 + $0x370] sm:$0xff]
        %v8321 = vld [vmem:[#allocation2 + $0x378] sm:$0xff]
        %v8322 = vld [vmem:[#allocation2 + $0x380] sm:$0xff]
        %v8323 = vld [vmem:[#allocation2 + $0x388] sm:$0xff]
        %v8324 = vld [vmem:[#allocation2 + $0x390] sm:$0xff]
        %v8325 = vld [vmem:[#allocation2 + $0x398] sm:$0xff]
        %v8326 = vld [vmem:[#allocation2 + $0x3a0] sm:$0xff]
        %v8327 = vld [vmem:[#allocation2 + $0x3a8] sm:$0xff]
        %v8328 = vld [vmem:[#allocation2 + $0x3b0] sm:$0xff]
        %v8329 = vld [vmem:[#allocation2 + $0x3b8] sm:$0xff]
        %v8330 = vld [vmem:[#allocation2 + $0x3c0] sm:$0xff]
        %v8331 = vld [vmem:[#allocation2 + $0x3c8] sm:$0xff]
        %v8332 = vld [vmem:[#allocation2 + $0x3d0] sm:$0xff]
        %v8333 = vld [vmem:[#allocation2 + $0x3d8] sm:$0xff]
        %v8334 = vld [vmem:[#allocation2 + $0x3e0] sm:$0xff]
        %v8335 = vld [vmem:[#allocation2 + $0x3e8] sm:$0xff]
        %v8336 = vld [vmem:[#allocation2 + $0x3f0] sm:$0xff]
        %v8337 = vld [vmem:[#allocation2 + $0x3f8] sm:$0xff]
        %v8338 = vld [vmem:[#allocation2 + $0x400] sm:$0xff]
        %v8339 = vld [vmem:[#allocation2 + $0x408] sm:$0xff]
        %v8340 = vld [vmem:[#allocation2 + $0x410] sm:$0xff]
        %v8341 = vld [vmem:[#allocation2 + $0x418] sm:$0xff]
        %v8342 = vld [vmem:[#allocation2 + $0x420] sm:$0xff]
        %v8343 = vld [vmem:[#allocation2 + $0x428] sm:$0xff]
        %v8344 = vld [vmem:[#allocation2 + $0x430] sm:$0xff]
        %v8345 = vld [vmem:[#allocation2 + $0x438] sm:$0xff]
        %v8346 = vld [vmem:[#allocation2 + $0x440] sm:$0xff]
        %v8347 = vld [vmem:[#allocation2 + $0x448] sm:$0xff]
        %v8348 = vld [vmem:[#allocation2 + $0x450] sm:$0xff]
        %v8349 = vld [vmem:[#allocation2 + $0x458] sm:$0xff]
        %v8350 = vld [vmem:[#allocation2 + $0x460] sm:$0xff]
        %v8351 = vld [vmem:[#allocation2 + $0x468] sm:$0xff]
        %v8352 = vld [vmem:[#allocation2 + $0x470] sm:$0xff]
        %v8353 = vld [vmem:[#allocation2 + $0x478] sm:$0xff]
        %v8354 = vld [vmem:[#allocation2 + $0x480] sm:$0xff]
        %v8355 = vld [vmem:[#allocation2 + $0x488] sm:$0xff]
        %v8356 = vld [vmem:[#allocation2 + $0x490] sm:$0xff]
        %v8357 = vld [vmem:[#allocation2 + $0x498] sm:$0xff]
        %v8358 = vld [vmem:[#allocation2 + $0x4a0] sm:$0xff]
        %v8359 = vld [vmem:[#allocation2 + $0x4a8] sm:$0xff]
        %v8360 = vld [vmem:[#allocation2 + $0x4b0] sm:$0xff]
        %v8361 = vld [vmem:[#allocation2 + $0x4b8] sm:$0xff]
        %v8362 = vld [vmem:[#allocation2 + $0x4c0] sm:$0xff]
        %v8363 = vld [vmem:[#allocation2 + $0x4c8] sm:$0xff]
        %v8364 = vld [vmem:[#allocation2 + $0x4d0] sm:$0xff]
        %v8365 = vld [vmem:[#allocation2 + $0x4d8] sm:$0xff]
        %v8366 = vld [vmem:[#allocation2 + $0x4e0] sm:$0xff]
        %v8367 = vld [vmem:[#allocation2 + $0x4e8] sm:$0xff]
        %v8368 = vld [vmem:[#allocation2 + $0x4f0] sm:$0xff]
        %v8369 = vld [vmem:[#allocation2 + $0x4f8] sm:$0xff]
        %v8370 = vld [vmem:[#allocation2 + $0x500] sm:$0xff]
        %v8371 = vld [vmem:[#allocation2 + $0x508] sm:$0xff]
        %v8372 = vld [vmem:[%s3] sm:$0xf]
        %v8373 = vld [vmem:[%s3 + $0x4] sm:$0xf]
        %v8374 = vld [vmem:[%s3 + $0x8] sm:$0xf]
        %v8375 = vld [vmem:[%s3 + $0xc] sm:$0xf]
        %v8376 = vld [vmem:[%s3 + $0x10] sm:$0xf]
        %v8377 = vld [vmem:[%s3 + $0x14] sm:$0xf]
        %v8378 = vld [vmem:[%s3 + $0x18] sm:$0xf]
        %v8379 = vld [vmem:[%s3 + $0x1c] sm:$0xf]
        %v8380 = vld [vmem:[%s3 + $0x20] sm:$0xf]
        %v8381 = vld [vmem:[%s3 + $0x24] sm:$0xf]
        %v8382 = vld [vmem:[%s3 + $0x28] sm:$0xf]
        %v8383 = vld [vmem:[%s3 + $0x2c] sm:$0xf]
        %v8384 = vld [vmem:[%s3 + $0x30] sm:$0xf]
        %v8385 = vld [vmem:[%s3 + $0x34] sm:$0xf]
        %v8386 = vld [vmem:[%s3 + $0x38] sm:$0xf]
        %v8387 = vld [vmem:[%s3 + $0x3c] sm:$0xf]
        %v8388 = vld [vmem:[%s3 + $0x40] sm:$0xf]
        %v8389 = vld [vmem:[%s3 + $0x44] sm:$0xf]
        %v8390 = vld [vmem:[%s3 + $0x48] sm:$0xf]
        %v8391 = vld [vmem:[%s3 + $0x4c] sm:$0xf]
        %v8392 = vld [vmem:[%s3 + $0x50] sm:$0xf]
        %v8393 = vld [vmem:[%s3 + $0x54] sm:$0xf]
        %v8394 = vld [vmem:[%s3 + $0x58] sm:$0xf]
        %v8395 = vld [vmem:[%s3 + $0x5c] sm:$0xf]
        %v8396 = vld [vmem:[%s3 + $0x60] sm:$0xf]
        %v8397 = vld [vmem:[%s3 + $0x64] sm:$0xf]
        %v8398 = vld [vmem:[%s3 + $0x68] sm:$0xf]
        %v8399 = vld [vmem:[%s3 + $0x6c] sm:$0xf]
        %v8400 = vld [vmem:[%s3 + $0x70] sm:$0xf]
        %v8401 = vld [vmem:[%s3 + $0x74] sm:$0xf]
        %v8402 = vld [vmem:[%s3 + $0x78] sm:$0xf]
        %v8403 = vld [vmem:[%s3 + $0x7c] sm:$0xf]
        %v8404 = vld [vmem:[%s3 + $0x80] sm:$0xf]
        %v8405 = vld [vmem:[%s3 + $0x84] sm:$0xf]
        %v8406 = vld [vmem:[%s3 + $0x88] sm:$0xf]
        %v8407 = vld [vmem:[%s3 + $0x8c] sm:$0xf]
        %v8408 = vld [vmem:[%s3 + $0x90] sm:$0xf]
        %v8409 = vld [vmem:[%s3 + $0x94] sm:$0xf]
        %v8410 = vld [vmem:[%s3 + $0x98] sm:$0xf]
        %v8411 = vld [vmem:[%s3 + $0x9c] sm:$0xf]
        %v8412 = vld [vmem:[%s3 + $0xa0] sm:$0xf]
        %v8413 = vld [vmem:[%s3 + $0xa4] sm:$0xf]
        %v8414 = vld [vmem:[%s3 + $0xa8] sm:$0xf]
        %v8415 = vld [vmem:[%s3 + $0xac] sm:$0xf]
        %v8416 = vld [vmem:[%s3 + $0xb0] sm:$0xf]
        %v8417 = vld [vmem:[%s3 + $0xb4] sm:$0xf]
        %v8418 = vld [vmem:[%s3 + $0xb8] sm:$0xf]
        %v8419 = vld [vmem:[%s3 + $0xbc] sm:$0xf]
        %v8420 = vld [vmem:[%s3 + $0xc0] sm:$0xf]
        %v8421 = vld [vmem:[%s3 + $0xc4] sm:$0xf]
        %v8422 = vld [vmem:[%s3 + $0xc8] sm:$0xf]
        %v8423 = vld [vmem:[%s3 + $0xcc] sm:$0xf]
        %v8424 = vld [vmem:[%s3 + $0xd0] sm:$0xf]
        %v8425 = vld [vmem:[%s3 + $0xd4] sm:$0xf]
        %v8426 = vld [vmem:[%s3 + $0xd8] sm:$0xf]
        %v8427 = vld [vmem:[%s3 + $0xdc] sm:$0xf]
        %v8428 = vld [vmem:[%s3 + $0xe0] sm:$0xf]
        %v8429 = vld [vmem:[%s3 + $0xe4] sm:$0xf]
        %v8430 = vld [vmem:[%s3 + $0xe8] sm:$0xf]
        %v8431 = vld [vmem:[%s3 + $0xec] sm:$0xf]
        %v8432 = vld [vmem:[%s3 + $0xf0] sm:$0xf]
        %v8433 = vld [vmem:[%s3 + $0xf4] sm:$0xf]
        %v8434 = vld [vmem:[%s3 + $0xf8] sm:$0xf]
        %v8435 = vld [vmem:[%s3 + $0xfc] sm:$0xf]
        %v8436 = vld [vmem:[%s3 + $0x100] sm:$0xf]
        %v8437 = vld [vmem:[%s3 + $0x104] sm:$0xf]
        %v8438 = vld [vmem:[%s3 + $0x108] sm:$0xf]
        %v8439 = vld [vmem:[%s3 + $0x10c] sm:$0xf]
        %v8440 = vld [vmem:[%s3 + $0x110] sm:$0xf]
        %v8441 = vld [vmem:[%s3 + $0x114] sm:$0xf]
        %v8442 = vld [vmem:[%s3 + $0x118] sm:$0xf]
        %v8443 = vld [vmem:[%s3 + $0x11c] sm:$0xf]
        %v8444 = vld [vmem:[%s3 + $0x120] sm:$0xf]
        %v8445 = vld [vmem:[%s3 + $0x124] sm:$0xf]
        %v8446 = vld [vmem:[%s3 + $0x128] sm:$0xf]
        %v8447 = vld [vmem:[%s3 + $0x12c] sm:$0xf]
        %v8448 = vld [vmem:[%s3 + $0x130] sm:$0xf]
        %v8449 = vld [vmem:[%s3 + $0x134] sm:$0xf]
        %v8450 = vld [vmem:[%s3 + $0x138] sm:$0xf]
        %v8451 = vld [vmem:[%s3 + $0x13c] sm:$0xf]
        %v8452 = vld [vmem:[%s3 + $0x140] sm:$0xf]
        %v8453 = vld [vmem:[%s3 + $0x144] sm:$0xf]
        %v8454 = vld [vmem:[%s3 + $0x148] sm:$0xf]
        %v8455 = vld [vmem:[%s3 + $0x14c] sm:$0xf]
        %v8456 = vld [vmem:[%s3 + $0x150] sm:$0xf]
        %v8457 = vld [vmem:[%s3 + $0x154] sm:$0xf]
        %v8458 = vld [vmem:[%s3 + $0x158] sm:$0xf]
        %v8459 = vld [vmem:[%s3 + $0x15c] sm:$0xf]
        %v8460 = vld [vmem:[%s3 + $0x160] sm:$0xf]
        %v8461 = vld [vmem:[%s3 + $0x164] sm:$0xf]
        %v8462 = vld [vmem:[%s3 + $0x168] sm:$0xf]
        %v8463 = vld [vmem:[%s3 + $0x16c] sm:$0xf]
        %v8464 = vld [vmem:[%s3 + $0x170] sm:$0xf]
        %v8465 = vld [vmem:[%s3 + $0x174] sm:$0xf]
        %v8466 = vld [vmem:[%s3 + $0x178] sm:$0xf]
        %v8467 = vld [vmem:[%s3 + $0x17c] sm:$0xf]
        %v8468 = vld [vmem:[%s3 + $0x180] sm:$0xf]
        %v8469 = vld [vmem:[%s3 + $0x184] sm:$0xf]
        %v8470 = vld [vmem:[%s3 + $0x188] sm:$0xf]
        %v8471 = vld [vmem:[%s3 + $0x18c] sm:$0xf]
        %v8472 = vld [vmem:[%s3 + $0x190] sm:$0xf]
        %v8473 = vld [vmem:[%s3 + $0x194] sm:$0xf]
        %v8474 = vld [vmem:[%s3 + $0x198] sm:$0xf]
        %v8475 = vld [vmem:[%s3 + $0x19c] sm:$0xf]
        %v8476 = vld [vmem:[%s3 + $0x1a0] sm:$0xf]
        %v8477 = vld [vmem:[%s3 + $0x1a4] sm:$0xf]
        %v8478 = vld [vmem:[%s3 + $0x1a8] sm:$0xf]
        %v8479 = vld [vmem:[%s3 + $0x1ac] sm:$0xf]
        %v8480 = vld [vmem:[%s3 + $0x1b0] sm:$0xf]
        %v8481 = vld [vmem:[%s3 + $0x1b4] sm:$0xf]
        %v8482 = vld [vmem:[%s3 + $0x1b8] sm:$0xf]
        %v8483 = vld [vmem:[%s3 + $0x1bc] sm:$0xf]
        %v8484 = vld [vmem:[%s3 + $0x1c0] sm:$0xf]
        %v8485 = vld [vmem:[%s3 + $0x1c4] sm:$0xf]
        %v8486 = vld [vmem:[%s3 + $0x1c8] sm:$0xf]
        %v8487 = vld [vmem:[%s3 + $0x1cc] sm:$0xf]
        %v8488 = vld [vmem:[%s3 + $0x1d0] sm:$0xf]
        %v8489 = vld [vmem:[%s3 + $0x1d4] sm:$0xf]
        %v8490 = vld [vmem:[%s3 + $0x1d8] sm:$0xf]
        %v8491 = vld [vmem:[%s3 + $0x1dc] sm:$0xf]
        %v8492 = vld [vmem:[%s3 + $0x1e0] sm:$0xf]
        %v8493 = vld [vmem:[%s3 + $0x1e4] sm:$0xf]
        %v8494 = vld [vmem:[%s3 + $0x1e8] sm:$0xf]
        %v8495 = vld [vmem:[%s3 + $0x1ec] sm:$0xf]
        %v8496 = vld [vmem:[%s3 + $0x1f0] sm:$0xf]
        %v8497 = vld [vmem:[%s3 + $0x1f4] sm:$0xf]
        %v8498 = vld [vmem:[%s3 + $0x1f8] sm:$0xf]
        %v8499 = vld [vmem:[%s3 + $0x1fc] sm:$0xf]
        %v8500 = vld [vmem:[%s3 + $0x200] sm:$0xf]
        %v8501 = vld [vmem:[%s3 + $0x204] sm:$0xf]
        %v8502 = vld [vmem:[%s3 + $0x208] sm:$0xf]
        %v8503 = vld [vmem:[%s3 + $0x20c] sm:$0xf]
        %v8504 = vld [vmem:[%s3 + $0x210] sm:$0xf]
        %v8505 = vld [vmem:[%s3 + $0x214] sm:$0xf]
        %v8506 = vld [vmem:[%s3 + $0x218] sm:$0xf]
        %v8507 = vld [vmem:[%s3 + $0x21c] sm:$0xf]
        %v8508 = vld [vmem:[%s3 + $0x220] sm:$0xf]
        %v8509 = vld [vmem:[%s3 + $0x224] sm:$0xf]
        %v8510 = vld [vmem:[%s3 + $0x228] sm:$0xf]
        %v8511 = vld [vmem:[%s3 + $0x22c] sm:$0xf]
        %v8512 = vld [vmem:[%s3 + $0x230] sm:$0xf]
        %v8513 = vld [vmem:[%s3 + $0x234] sm:$0xf]
        %v8514 = vld [vmem:[%s3 + $0x238] sm:$0xf]
        %v8515 = vld [vmem:[%s3 + $0x23c] sm:$0xf]
        %v8516 = vld [vmem:[%s3 + $0x240] sm:$0xf]
        %v8517 = vld [vmem:[%s3 + $0x244] sm:$0xf]
        %v8518 = vld [vmem:[%s3 + $0x248] sm:$0xf]
        %v8519 = vld [vmem:[%s3 + $0x24c] sm:$0xf]
        %v8520 = vld [vmem:[%s3 + $0x250] sm:$0xf]
        %v8521 = vld [vmem:[%s3 + $0x254] sm:$0xf]
        %v8522 = vld [vmem:[%s3 + $0x258] sm:$0xf]
        %v8523 = vld [vmem:[%s3 + $0x25c] sm:$0xf]
        %v8524 = vld [vmem:[%s3 + $0x260] sm:$0xf]
        %v8525 = vld [vmem:[%s3 + $0x264] sm:$0xf]
        %v8526 = vld [vmem:[%s3 + $0x268] sm:$0xf]
        %v8527 = vld [vmem:[%s3 + $0x26c] sm:$0xf]
        %v8528 = vld [vmem:[%s3 + $0x270] sm:$0xf]
        %v8529 = vld [vmem:[%s3 + $0x274] sm:$0xf]
        %v8530 = vld [vmem:[%s3 + $0x278] sm:$0xf]
        %v8531 = vld [vmem:[%s3 + $0x27c] sm:$0xf]
        %v8532 = vld [vmem:[%s3 + $0x280] sm:$0xf]
        %v8533 = vld [vmem:[%s3 + $0x284] sm:$0xf]
        %v8534 = vld [vmem:[%s3 + $0x288] sm:$0xf]
        %v8535 = vld [vmem:[%s3 + $0x28c] sm:$0xf]
        %v8536 = vld [vmem:[%s3 + $0x290] sm:$0xf]
        %v8537 = vld [vmem:[%s3 + $0x294] sm:$0xf]
        %v8538 = vld [vmem:[%s3 + $0x298] sm:$0xf]
        %v8539 = vld [vmem:[%s3 + $0x29c] sm:$0xf]
        %v8540 = vld [vmem:[%s3 + $0x2a0] sm:$0xf]
        %v8541 = vld [vmem:[%s3 + $0x2a4] sm:$0xf]
        %v8542 = vld [vmem:[%s3 + $0x2a8] sm:$0xf]
        %v8543 = vld [vmem:[%s3 + $0x2ac] sm:$0xf]
        %v8544 = vld [vmem:[%s3 + $0x2b0] sm:$0xf]
        %v8545 = vld [vmem:[%s3 + $0x2b4] sm:$0xf]
        %v8546 = vld [vmem:[%s3 + $0x2b8] sm:$0xf]
        %v8547 = vld [vmem:[%s3 + $0x2bc] sm:$0xf]
        %v8548 = vld [vmem:[%s3 + $0x2c0] sm:$0xf]
        %v8549 = vld [vmem:[%s3 + $0x2c4] sm:$0xf]
        %v8550 = vld [vmem:[%s3 + $0x2c8] sm:$0xf]
        %v8551 = vld [vmem:[%s3 + $0x2cc] sm:$0xf]
        %v8552 = vld [vmem:[%s3 + $0x2d0] sm:$0xf]
        %v8553 = vld [vmem:[%s3 + $0x2d4] sm:$0xf]
        %v8554 = vld [vmem:[%s3 + $0x2d8] sm:$0xf]
        %v8555 = vld [vmem:[%s3 + $0x2dc] sm:$0xf]
        %v8556 = vld [vmem:[%s3 + $0x2e0] sm:$0xf]
        %v8557 = vld [vmem:[%s3 + $0x2e4] sm:$0xf]
        %v8558 = vld [vmem:[%s3 + $0x2e8] sm:$0xf]
        %v8559 = vld [vmem:[%s3 + $0x2ec] sm:$0xf]
        %v8560 = vld [vmem:[%s3 + $0x2f0] sm:$0xf]
        %v8561 = vld [vmem:[%s3 + $0x2f4] sm:$0xf]
        %v8562 = vld [vmem:[%s3 + $0x2f8] sm:$0xf]
        %v8563 = vld [vmem:[%s3 + $0x2fc] sm:$0xf]
        %v8564 = vld [vmem:[%s3 + $0x300] sm:$0xf]
        %v8565 = vld [vmem:[%s3 + $0x304] sm:$0xf]
        %v8566 = vld [vmem:[%s3 + $0x308] sm:$0xf]
        %v8567 = vld [vmem:[%s3 + $0x30c] sm:$0xf]
        %v8568 = vld [vmem:[%s3 + $0x310] sm:$0xf]
        %v8569 = vld [vmem:[%s3 + $0x314] sm:$0xf]
        %v8570 = vld [vmem:[%s3 + $0x318] sm:$0xf]
        %v8571 = vld [vmem:[%s3 + $0x31c] sm:$0xf]
        %v8572 = vld [vmem:[%s3 + $0x320] sm:$0xf]
        %v8573 = vld [vmem:[%s3 + $0x324] sm:$0xf]
        %v8574 = vld [vmem:[%s3 + $0x328] sm:$0xf]
        %v8575 = vld [vmem:[%s3 + $0x32c] sm:$0xf]
        %v8576 = vld [vmem:[%s3 + $0x330] sm:$0xf]
        %v8577 = vld [vmem:[%s3 + $0x334] sm:$0xf]
        %v8578 = vld [vmem:[%s3 + $0x338] sm:$0xf]
        %v8579 = vld [vmem:[%s3 + $0x33c] sm:$0xf]
        %v8580 = vld [vmem:[%s3 + $0x340] sm:$0xf]
        %v8581 = vld [vmem:[%s3 + $0x344] sm:$0xf]
        %v8582 = vld [vmem:[%s3 + $0x348] sm:$0xf]
        %v8583 = vld [vmem:[%s3 + $0x34c] sm:$0xf]
        %v8584 = vld [vmem:[%s3 + $0x350] sm:$0xf]
        %v8585 = vld [vmem:[%s3 + $0x354] sm:$0xf]
        %v8586 = vld [vmem:[%s3 + $0x358] sm:$0xf]
        %v8587 = vld [vmem:[%s3 + $0x35c] sm:$0xf]
        %v8588 = vld [vmem:[%s3 + $0x360] sm:$0xf]
        %v8589 = vld [vmem:[%s3 + $0x364] sm:$0xf]
        %v8590 = vld [vmem:[%s3 + $0x368] sm:$0xf]
        %v8591 = vld [vmem:[%s3 + $0x36c] sm:$0xf]
        %v8592 = vld [vmem:[%s3 + $0x370] sm:$0xf]
        %v8593 = vld [vmem:[%s3 + $0x374] sm:$0xf]
        %v8594 = vld [vmem:[%s3 + $0x378] sm:$0xf]
        %v8595 = vld [vmem:[%s3 + $0x37c] sm:$0xf]
        %v8596 = vld [vmem:[%s3 + $0x380] sm:$0xf]
        %v8597 = vld [vmem:[%s3 + $0x384] sm:$0xf]
        %v8598 = vld [vmem:[%s3 + $0x388] sm:$0xf]
        %v8599 = vld [vmem:[%s3 + $0x38c] sm:$0xf]
        %v8600 = vld [vmem:[%s3 + $0x390] sm:$0xf]
        %v8601 = vld [vmem:[%s3 + $0x394] sm:$0xf]
        %v8602 = vld [vmem:[%s3 + $0x398] sm:$0xf]
        %v8603 = vld [vmem:[%s3 + $0x39c] sm:$0xf]
        %v8604 = vld [vmem:[%s3 + $0x3a0] sm:$0xf]
        %v8605 = vld [vmem:[%s3 + $0x3a4] sm:$0xf]
        %v8606 = vld [vmem:[%s3 + $0x3a8] sm:$0xf]
        %v8607 = vld [vmem:[%s3 + $0x3ac] sm:$0xf]
        %v8608 = vld [vmem:[%s3 + $0x3b0] sm:$0xf]
        %v8609 = vld [vmem:[%s3 + $0x3b4] sm:$0xf]
        %v8610 = vld [vmem:[%s3 + $0x3b8] sm:$0xf]
        %v8611 = vld [vmem:[%s3 + $0x3bc] sm:$0xf]
        %v8612 = vld [vmem:[%s3 + $0x3c0] sm:$0xf]
        %v8613 = vld [vmem:[%s3 + $0x3c4] sm:$0xf]
        %v8614 = vld [vmem:[%s3 + $0x3c8] sm:$0xf]
        %v8615 = vld [vmem:[%s3 + $0x3cc] sm:$0xf]
        %v8616 = vld [vmem:[%s3 + $0x3d0] sm:$0xf]
        %v8617 = vld [vmem:[%s3 + $0x3d4] sm:$0xf]
        %v8618 = vld [vmem:[%s3 + $0x3d8] sm:$0xf]
        %v8619 = vld [vmem:[%s3 + $0x3dc] sm:$0xf]
        %v8620 = vld [vmem:[%s3 + $0x3e0] sm:$0xf]
        %v8621 = vld [vmem:[%s3 + $0x3e4] sm:$0xf]
        %v8622 = vld [vmem:[%s3 + $0x3e8] sm:$0xf]
        %v8623 = vld [vmem:[%s3 + $0x3ec] sm:$0xf]
        %v8624 = vld [vmem:[%s3 + $0x3f0] sm:$0xf]
        %v8625 = vld [vmem:[%s3 + $0x3f4] sm:$0xf]
        %v8626 = vld [vmem:[%s3 + $0x3f8] sm:$0xf]
        %v8627 = vld [vmem:[%s3 + $0x3fc] sm:$0xf]
        %v8628 = vld [vmem:[%s3 + $0x400] sm:$0xf]
        %v8629 = vld [vmem:[%s3 + $0x404] sm:$0xf]
        %v8630 = vld [vmem:[%s3 + $0x408] sm:$0xf]
        %v8631 = vld [vmem:[%s3 + $0x40c] sm:$0xf]
        %v8632 = vld [vmem:[%s3 + $0x410] sm:$0xf]
        %v8633 = vld [vmem:[%s3 + $0x414] sm:$0xf]
        %v8634 = vld [vmem:[%s3 + $0x418] sm:$0xf]
        %v8635 = vld [vmem:[%s3 + $0x41c] sm:$0xf]
        %v8636 = vld [vmem:[%s3 + $0x420] sm:$0xf]
        %v8637 = vld [vmem:[%s3 + $0x424] sm:$0xf]
        %v8638 = vld [vmem:[%s3 + $0x428] sm:$0xf]
        %v8639 = vld [vmem:[%s3 + $0x42c] sm:$0xf]
        %v8640 = vld [vmem:[%s3 + $0x430] sm:$0xf]
        %v8641 = vld [vmem:[%s3 + $0x434] sm:$0xf]
        %v8642 = vld [vmem:[%s3 + $0x438] sm:$0xf]
        %v8643 = vld [vmem:[%s3 + $0x43c] sm:$0xf]
        %v8644 = vld [vmem:[%s3 + $0x440] sm:$0xf]
        %v8645 = vld [vmem:[%s3 + $0x444] sm:$0xf]
        %v8646 = vld [vmem:[%s3 + $0x448] sm:$0xf]
        %v8647 = vld [vmem:[%s3 + $0x44c] sm:$0xf]
        %v8648 = vld [vmem:[%s3 + $0x450] sm:$0xf]
        %v8649 = vld [vmem:[%s3 + $0x454] sm:$0xf]
        %v8650 = vld [vmem:[%s3 + $0x458] sm:$0xf]
        %v8651 = vld [vmem:[%s3 + $0x45c] sm:$0xf]
        %v8652 = vld [vmem:[%s3 + $0x460] sm:$0xf]
        %v8653 = vld [vmem:[%s3 + $0x464] sm:$0xf]
        %v8654 = vld [vmem:[%s3 + $0x468] sm:$0xf]
        %v8655 = vld [vmem:[%s3 + $0x46c] sm:$0xf]
        %v8656 = vld [vmem:[%s3 + $0x470] sm:$0xf]
        %v8657 = vld [vmem:[%s3 + $0x474] sm:$0xf]
        %v8658 = vld [vmem:[%s3 + $0x478] sm:$0xf]
        %v8659 = vld [vmem:[%s3 + $0x47c] sm:$0xf]
        %v8660 = vld [vmem:[%s3 + $0x480] sm:$0xf]
        %v8661 = vld [vmem:[%s3 + $0x484] sm:$0xf]
        %v8662 = vld [vmem:[%s3 + $0x488] sm:$0xf]
        %v8663 = vld [vmem:[%s3 + $0x48c] sm:$0xf]
        %v8664 = vld [vmem:[%s3 + $0x490] sm:$0xf]
        %v8665 = vld [vmem:[%s3 + $0x494] sm:$0xf]
        %v8666 = vld [vmem:[%s3 + $0x498] sm:$0xf]
        %v8667 = vld [vmem:[%s3 + $0x49c] sm:$0xf]
        %v8668 = vld [vmem:[%s3 + $0x4a0] sm:$0xf]
        %v8669 = vld [vmem:[%s3 + $0x4a4] sm:$0xf]
        %v8670 = vld [vmem:[%s3 + $0x4a8] sm:$0xf]
        %v8671 = vld [vmem:[%s3 + $0x4ac] sm:$0xf]
        %v8672 = vld [vmem:[%s3 + $0x4b0] sm:$0xf]
        %v8673 = vld [vmem:[%s3 + $0x4b4] sm:$0xf]
        %v8674 = vld [vmem:[%s3 + $0x4b8] sm:$0xf]
        %v8675 = vld [vmem:[%s3 + $0x4bc] sm:$0xf]
        %v8676 = vld [vmem:[%s3 + $0x4c0] sm:$0xf]
        %v8677 = vld [vmem:[%s3 + $0x4c4] sm:$0xf]
        %v8678 = vld [vmem:[%s3 + $0x4c8] sm:$0xf]
        %v8679 = vld [vmem:[%s3 + $0x4cc] sm:$0xf]
        %v8680 = vld [vmem:[%s3 + $0x4d0] sm:$0xf]
        %v8681 = vld [vmem:[%s3 + $0x4d4] sm:$0xf]
        %v8682 = vld [vmem:[%s3 + $0x4d8] sm:$0xf]
        %v8683 = vld [vmem:[%s3 + $0x4dc] sm:$0xf]
        %v8684 = vld [vmem:[%s3 + $0x4e0] sm:$0xf]
        %v8685 = vld [vmem:[%s3 + $0x4e4] sm:$0xf]
        %v8686 = vld [vmem:[%s3 + $0x4e8] sm:$0xf]
        %v8687 = vld [vmem:[%s3 + $0x4ec] sm:$0xf]
        %v8688 = vld [vmem:[%s3 + $0x4f0] sm:$0xf]
        %v8689 = vld [vmem:[%s3 + $0x4f4] sm:$0xf]
        %v8690 = vld [vmem:[%s3 + $0x4f8] sm:$0xf]
        %v8691 = vld [vmem:[%s3 + $0x4fc] sm:$0xf]
        %v8692 = vld [vmem:[%s3 + $0x500] sm:$0xf]
        %v8693 = vld [vmem:[%s3 + $0x504] sm:$0xf]
        %v8694 = vld [vmem:[%s3 + $0x508] sm:$0xf]
        %v8695 = vld [vmem:[%s3 + $0x50c] sm:$0xf]
        %v8696 = vld [vmem:[%s3 + $0x510] sm:$0xf]
        %v8697 = vld [vmem:[%s3 + $0x514] sm:$0xf]
        %v8698 = vld [vmem:[%s3 + $0x518] sm:$0xf]
        %v8699 = vld [vmem:[%s3 + $0x51c] sm:$0xf]
        %v8700 = vld [vmem:[%s3 + $0x520] sm:$0xf]
        %v8701 = vld [vmem:[%s3 + $0x524] sm:$0xf]
        %v8702 = vld [vmem:[%s3 + $0x528] sm:$0xf]
        %v8703 = vld [vmem:[%s3 + $0x52c] sm:$0xf]
        %v8704 = vld [vmem:[%s3 + $0x530] sm:$0xf]
        %v8705 = vld [vmem:[%s3 + $0x534] sm:$0xf]
        %v8706 = vld [vmem:[%s3 + $0x538] sm:$0xf]
        %v8707 = vld [vmem:[%s3 + $0x53c] sm:$0xf]
        %v8708 = vld [vmem:[%s3 + $0x540] sm:$0xf]
        %v8709 = vld [vmem:[%s3 + $0x544] sm:$0xf]
        %v8710 = vld [vmem:[%s3 + $0x548] sm:$0xf]
        %v8711 = vld [vmem:[%s3 + $0x54c] sm:$0xf]
        %v8712 = vld [vmem:[%s3 + $0x550] sm:$0xf]
        %v8713 = vld [vmem:[%s3 + $0x554] sm:$0xf]
        %v8714 = vld [vmem:[%s3 + $0x558] sm:$0xf]
        %v8715 = vld [vmem:[%s3 + $0x55c] sm:$0xf]
        %v8716 = vld [vmem:[%s3 + $0x560] sm:$0xf]
        %v8717 = vld [vmem:[%s3 + $0x564] sm:$0xf]
        %v8718 = vld [vmem:[%s3 + $0x568] sm:$0xf]
        %v8719 = vld [vmem:[%s3 + $0x56c] sm:$0xf]
        %v8720 = vld [vmem:[%s3 + $0x570] sm:$0xf]
        %v8721 = vld [vmem:[%s3 + $0x574] sm:$0xf]
        %v8722 = vld [vmem:[%s3 + $0x578] sm:$0xf]
        %v8723 = vld [vmem:[%s3 + $0x57c] sm:$0xf]
        %v8724 = vld [vmem:[%s3 + $0x580] sm:$0xf]
        %v8725 = vld [vmem:[%s3 + $0x584] sm:$0xf]
        %v8726 = vld [vmem:[%s3 + $0x588] sm:$0xf]
        %v8727 = vld [vmem:[%s3 + $0x58c] sm:$0xf]
        %v8728 = vld [vmem:[%s3 + $0x590] sm:$0xf]
        %v8729 = vld [vmem:[%s3 + $0x594] sm:$0xf]
        %v8730 = vld [vmem:[%s3 + $0x598] sm:$0xf]
        %v8731 = vld [vmem:[%s3 + $0x59c] sm:$0xf]
        %v8732 = vld [vmem:[%s3 + $0x5a0] sm:$0xf]
        %v8733 = vld [vmem:[%s3 + $0x5a4] sm:$0xf]
        %v8734 = vld [vmem:[%s3 + $0x5a8] sm:$0xf]
        %v8735 = vld [vmem:[%s3 + $0x5ac] sm:$0xf]
        %v8736 = vld [vmem:[%s3 + $0x5b0] sm:$0xf]
        %v8737 = vld [vmem:[%s3 + $0x5b4] sm:$0xf]
        %v8738 = vld [vmem:[%s3 + $0x5b8] sm:$0xf]
        %v8739 = vld [vmem:[%s3 + $0x5bc] sm:$0xf]
        %v8740 = vld [vmem:[%s3 + $0x5c0] sm:$0xf]
        %v8741 = vld [vmem:[%s3 + $0x5c4] sm:$0xf]
        %v8742 = vld [vmem:[%s3 + $0x5c8] sm:$0xf]
        %v8743 = vld [vmem:[%s3 + $0x5cc] sm:$0xf]
        %v8744 = vld [vmem:[%s3 + $0x5d0] sm:$0xf]
        %v8745 = vld [vmem:[%s3 + $0x5d4] sm:$0xf]
        %v8746 = vld [vmem:[%s3 + $0x5d8] sm:$0xf]
        %v8747 = vld [vmem:[%s3 + $0x5dc] sm:$0xf]
        %v8748 = vld [vmem:[%s3 + $0x5e0] sm:$0xf]
        %v8749 = vld [vmem:[%s3 + $0x5e4] sm:$0xf]
        %v8750 = vld [vmem:[%s3 + $0x5e8] sm:$0xf]
        %v8751 = vld [vmem:[%s3 + $0x5ec] sm:$0xf]
        %v8752 = vld [vmem:[%s3 + $0x5f0] sm:$0xf]
        %v8753 = vld [vmem:[%s3 + $0x5f4] sm:$0xf]
        %v8754 = vld [vmem:[%s3 + $0x5f8] sm:$0xf]
        %v8755 = vld [vmem:[%s3 + $0x5fc] sm:$0xf]
        %v8756 = vld [vmem:[%s3 + $0x600] sm:$0xf]
        %v8757 = vld [vmem:[%s3 + $0x604] sm:$0xf]
        %v8758 = vld [vmem:[%s3 + $0x608] sm:$0xf]
        %v8759 = vld [vmem:[%s3 + $0x60c] sm:$0xf]
        %v8760 = vld [vmem:[%s3 + $0x610] sm:$0xf]
        %v8761 = vld [vmem:[%s3 + $0x614] sm:$0xf]
        %v8762 = vld [vmem:[%s3 + $0x618] sm:$0xf]
        %v8763 = vld [vmem:[%s3 + $0x61c] sm:$0xf]
        %v8764 = vld [vmem:[%s3 + $0x620] sm:$0xf]
        %v8765 = vld [vmem:[%s3 + $0x624] sm:$0xf]
        %v8766 = vld [vmem:[%s3 + $0x628] sm:$0xf]
        %v8767 = vld [vmem:[%s3 + $0x62c] sm:$0xf]
        %v8768 = vld [vmem:[%s3 + $0x630] sm:$0xf]
        %v8769 = vld [vmem:[%s3 + $0x634] sm:$0xf]
        %v8770 = vld [vmem:[%s3 + $0x638] sm:$0xf]
        %v8771 = vld [vmem:[%s3 + $0x63c] sm:$0xf]
        %v8772 = vld [vmem:[%s3 + $0x640] sm:$0xf]
        %v8773 = vld [vmem:[%s3 + $0x644] sm:$0xf]
        %v8774 = vld [vmem:[%s3 + $0x648] sm:$0xf]
        %v8775 = vld [vmem:[%s3 + $0x64c] sm:$0xf]
        %v8776 = vld [vmem:[%s3 + $0x650] sm:$0xf]
        %v8777 = vld [vmem:[%s3 + $0x654] sm:$0xf]
        %v8778 = vld [vmem:[%s3 + $0x658] sm:$0xf]
        %v8779 = vld [vmem:[%s3 + $0x65c] sm:$0xf]
        %v8780 = vld [vmem:[%s3 + $0x660] sm:$0xf]
        %v8781 = vld [vmem:[%s3 + $0x664] sm:$0xf]
        %v8782 = vld [vmem:[%s3 + $0x668] sm:$0xf]
        %v8783 = vld [vmem:[%s3 + $0x66c] sm:$0xf]
        %v8784 = vld [vmem:[%s3 + $0x670] sm:$0xf]
        %v8785 = vld [vmem:[%s3 + $0x674] sm:$0xf]
        %v8786 = vld [vmem:[%s3 + $0x678] sm:$0xf]
        %v8787 = vld [vmem:[%s3 + $0x67c] sm:$0xf]
        %v8788 = vld [vmem:[%s3 + $0x680] sm:$0xf]
        %v8789 = vld [vmem:[%s3 + $0x684] sm:$0xf]
        %v8790 = vld [vmem:[%s3 + $0x688] sm:$0xf]
        %v8791 = vld [vmem:[%s3 + $0x68c] sm:$0xf]
        %v8792 = vld [vmem:[%s3 + $0x690] sm:$0xf]
        %v8793 = vld [vmem:[%s3 + $0x694] sm:$0xf]
        %v8794 = vld [vmem:[%s3 + $0x698] sm:$0xf]
        %v8795 = vld [vmem:[%s3 + $0x69c] sm:$0xf]
        %v8796 = vld [vmem:[%s3 + $0x6a0] sm:$0xf]
        %v8797 = vld [vmem:[%s3 + $0x6a4] sm:$0xf]
        %v8798 = vld [vmem:[%s3 + $0x6a8] sm:$0xf]
        %v8799 = vld [vmem:[%s3 + $0x6ac] sm:$0xf]
        %v8800 = vld [vmem:[%s3 + $0x6b0] sm:$0xf]
        %v8801 = vld [vmem:[%s3 + $0x6b4] sm:$0xf]
        %v8802 = vld [vmem:[%s3 + $0x6b8] sm:$0xf]
        %v8803 = vld [vmem:[%s3 + $0x6bc] sm:$0xf]
        %v9236 = vunpack.c.l.b16 %v8372
        %v9237 = vunpack.c.l.b16 %v8373
        %v9238 = vunpack.c.l.b16 %v8374
        %v9239 = vunpack.c.l.b16 %v8375
        %v9240 = vunpack.c.l.b16 %v8376
        %v9241 = vunpack.c.l.b16 %v8377
        %v9242 = vunpack.c.l.b16 %v8378
        %v9243 = vunpack.c.l.b16 %v8379
        %v9244 = vunpack.c.l.b16 %v8380
        %v9245 = vunpack.c.l.b16 %v8381
        %v9246 = vunpack.c.l.b16 %v8382
        %v9247 = vunpack.c.l.b16 %v8383
        %v9248 = vunpack.c.l.b16 %v8384
        %v9249 = vunpack.c.l.b16 %v8385
        %v9250 = vunpack.c.l.b16 %v8386
        %v9251 = vunpack.c.l.b16 %v8387
        %v9252 = vunpack.c.l.b16 %v8388
        %v9253 = vunpack.c.l.b16 %v8389
        %v9254 = vunpack.c.l.b16 %v8390
        %v9255 = vunpack.c.l.b16 %v8391
        %v9256 = vunpack.c.l.b16 %v8392
        %v9257 = vunpack.c.l.b16 %v8393
        %v9258 = vunpack.c.l.b16 %v8394
        %v9259 = vunpack.c.l.b16 %v8395
        %v9260 = vunpack.c.l.b16 %v8396
        %v9261 = vunpack.c.l.b16 %v8397
        %v9262 = vunpack.c.l.b16 %v8398
        %v9263 = vunpack.c.l.b16 %v8399
        %v9264 = vunpack.c.l.b16 %v8400
        %v9265 = vunpack.c.l.b16 %v8401
        %v9266 = vunpack.c.l.b16 %v8402
        %v9267 = vunpack.c.l.b16 %v8403
        %v9268 = vunpack.c.l.b16 %v8404
        %v9269 = vunpack.c.l.b16 %v8405
        %v9270 = vunpack.c.l.b16 %v8406
        %v9271 = vunpack.c.l.b16 %v8407
        %v9272 = vunpack.c.l.b16 %v8408
        %v9273 = vunpack.c.l.b16 %v8409
        %v9274 = vunpack.c.l.b16 %v8410
        %v9275 = vunpack.c.l.b16 %v8411
        %v9276 = vunpack.c.l.b16 %v8412
        %v9277 = vunpack.c.l.b16 %v8413
        %v9278 = vunpack.c.l.b16 %v8414
        %v9279 = vunpack.c.l.b16 %v8415
        %v9280 = vunpack.c.l.b16 %v8416
        %v9281 = vunpack.c.l.b16 %v8417
        %v9282 = vunpack.c.l.b16 %v8418
        %v9283 = vunpack.c.l.b16 %v8419
        %v9284 = vunpack.c.l.b16 %v8420
        %v9285 = vunpack.c.l.b16 %v8421
        %v9286 = vunpack.c.l.b16 %v8422
        %v9287 = vunpack.c.l.b16 %v8423
        %v9288 = vunpack.c.l.b16 %v8424
        %v9289 = vunpack.c.l.b16 %v8425
        %v9290 = vunpack.c.l.b16 %v8426
        %v9291 = vunpack.c.l.b16 %v8427
        %v9292 = vunpack.c.l.b16 %v8428
        %v9293 = vunpack.c.l.b16 %v8429
        %v9294 = vunpack.c.l.b16 %v8430
        %v9295 = vunpack.c.l.b16 %v8431
        %v9296 = vunpack.c.l.b16 %v8432
        %v9297 = vunpack.c.l.b16 %v8433
        %v9298 = vunpack.c.l.b16 %v8434
        %v9299 = vunpack.c.l.b16 %v8435
        %v9300 = vunpack.c.l.b16 %v8436
        %v9301 = vunpack.c.l.b16 %v8437
        %v9302 = vunpack.c.l.b16 %v8438
        %v9303 = vunpack.c.l.b16 %v8439
        %v9304 = vunpack.c.l.b16 %v8440
        %v9305 = vunpack.c.l.b16 %v8441
        %v9306 = vunpack.c.l.b16 %v8442
        %v9307 = vunpack.c.l.b16 %v8443
        %v9308 = vunpack.c.l.b16 %v8444
        %v9309 = vunpack.c.l.b16 %v8445
        %v9310 = vunpack.c.l.b16 %v8446
        %v9311 = vunpack.c.l.b16 %v8447
        %v9312 = vunpack.c.l.b16 %v8448
        %v9313 = vunpack.c.l.b16 %v8449
        %v9314 = vunpack.c.l.b16 %v8450
        %v9315 = vunpack.c.l.b16 %v8451
        %v9316 = vunpack.c.l.b16 %v8452
        %v9317 = vunpack.c.l.b16 %v8453
        %v9318 = vunpack.c.l.b16 %v8454
        %v9319 = vunpack.c.l.b16 %v8455
        %v9320 = vunpack.c.l.b16 %v8456
        %v9321 = vunpack.c.l.b16 %v8457
        %v9322 = vunpack.c.l.b16 %v8458
        %v9323 = vunpack.c.l.b16 %v8459
        %v9324 = vunpack.c.l.b16 %v8460
        %v9325 = vunpack.c.l.b16 %v8461
        %v9326 = vunpack.c.l.b16 %v8462
        %v9327 = vunpack.c.l.b16 %v8463
        %v9328 = vunpack.c.l.b16 %v8464
        %v9329 = vunpack.c.l.b16 %v8465
        %v9330 = vunpack.c.l.b16 %v8466
        %v9331 = vunpack.c.l.b16 %v8467
        %v9332 = vunpack.c.l.b16 %v8468
        %v9333 = vunpack.c.l.b16 %v8469
        %v9334 = vunpack.c.l.b16 %v8470
        %v9335 = vunpack.c.l.b16 %v8471
        %v9336 = vunpack.c.l.b16 %v8472
        %v9337 = vunpack.c.l.b16 %v8473
        %v9338 = vunpack.c.l.b16 %v8474
        %v9339 = vunpack.c.l.b16 %v8475
        %v9340 = vunpack.c.l.b16 %v8476
        %v9341 = vunpack.c.l.b16 %v8477
        %v9342 = vunpack.c.l.b16 %v8478
        %v9343 = vunpack.c.l.b16 %v8479
        %v9344 = vunpack.c.l.b16 %v8480
        %v9345 = vunpack.c.l.b16 %v8481
        %v9346 = vunpack.c.l.b16 %v8482
        %v9347 = vunpack.c.l.b16 %v8483
        %v9348 = vunpack.c.l.b16 %v8484
        %v9349 = vunpack.c.l.b16 %v8485
        %v9350 = vunpack.c.l.b16 %v8486
        %v9351 = vunpack.c.l.b16 %v8487
        %v9352 = vunpack.c.l.b16 %v8488
        %v9353 = vunpack.c.l.b16 %v8489
        %v9354 = vunpack.c.l.b16 %v8490
        %v9355 = vunpack.c.l.b16 %v8491
        %v9356 = vunpack.c.l.b16 %v8492
        %v9357 = vunpack.c.l.b16 %v8493
        %v9358 = vunpack.c.l.b16 %v8494
        %v9359 = vunpack.c.l.b16 %v8495
        %v9360 = vunpack.c.l.b16 %v8496
        %v9361 = vunpack.c.l.b16 %v8497
        %v9362 = vunpack.c.l.b16 %v8498
        %v9363 = vunpack.c.l.b16 %v8499
        %v9364 = vunpack.c.l.b16 %v8500
        %v9365 = vunpack.c.l.b16 %v8501
        %v9366 = vunpack.c.l.b16 %v8502
        %v9367 = vunpack.c.l.b16 %v8503
        %v9368 = vunpack.c.l.b16 %v8504
        %v9369 = vunpack.c.l.b16 %v8505
        %v9370 = vunpack.c.l.b16 %v8506
        %v9371 = vunpack.c.l.b16 %v8507
        %v9372 = vunpack.c.l.b16 %v8508
        %v9373 = vunpack.c.l.b16 %v8509
        %v9374 = vunpack.c.l.b16 %v8510
        %v9375 = vunpack.c.l.b16 %v8511
        %v9376 = vunpack.c.l.b16 %v8512
        %v9377 = vunpack.c.l.b16 %v8513
        %v9378 = vunpack.c.l.b16 %v8514
        %v9379 = vunpack.c.l.b16 %v8515
        %v9380 = vunpack.c.l.b16 %v8516
        %v9381 = vunpack.c.l.b16 %v8517
        %v9382 = vunpack.c.l.b16 %v8518
        %v9383 = vunpack.c.l.b16 %v8519
        %v9384 = vunpack.c.l.b16 %v8520
        %v9385 = vunpack.c.l.b16 %v8521
        %v9386 = vunpack.c.l.b16 %v8522
        %v9387 = vunpack.c.l.b16 %v8523
        %v9388 = vunpack.c.l.b16 %v8524
        %v9389 = vunpack.c.l.b16 %v8525
        %v9390 = vunpack.c.l.b16 %v8526
        %v9391 = vunpack.c.l.b16 %v8527
        %v9392 = vunpack.c.l.b16 %v8528
        %v9393 = vunpack.c.l.b16 %v8529
        %v9394 = vunpack.c.l.b16 %v8530
        %v9395 = vunpack.c.l.b16 %v8531
        %v9396 = vunpack.c.l.b16 %v8532
        %v9397 = vunpack.c.l.b16 %v8533
        %v9398 = vunpack.c.l.b16 %v8534
        %v9399 = vunpack.c.l.b16 %v8535
        %v9400 = vunpack.c.l.b16 %v8536
        %v9401 = vunpack.c.l.b16 %v8537
        %v9402 = vunpack.c.l.b16 %v8538
        %v9403 = vunpack.c.l.b16 %v8539
        %v9404 = vunpack.c.l.b16 %v8540
        %v9405 = vunpack.c.l.b16 %v8541
        %v9406 = vunpack.c.l.b16 %v8542
        %v9407 = vunpack.c.l.b16 %v8543
        %v9408 = vunpack.c.l.b16 %v8544
        %v9409 = vunpack.c.l.b16 %v8545
        %v9410 = vunpack.c.l.b16 %v8546
        %v9411 = vunpack.c.l.b16 %v8547
        %v9412 = vunpack.c.l.b16 %v8548
        %v9413 = vunpack.c.l.b16 %v8549
        %v9414 = vunpack.c.l.b16 %v8550
        %v9415 = vunpack.c.l.b16 %v8551
        %v9416 = vunpack.c.l.b16 %v8552
        %v9417 = vunpack.c.l.b16 %v8553
        %v9418 = vunpack.c.l.b16 %v8554
        %v9419 = vunpack.c.l.b16 %v8555
        %v9420 = vunpack.c.l.b16 %v8556
        %v9421 = vunpack.c.l.b16 %v8557
        %v9422 = vunpack.c.l.b16 %v8558
        %v9423 = vunpack.c.l.b16 %v8559
        %v9424 = vunpack.c.l.b16 %v8560
        %v9425 = vunpack.c.l.b16 %v8561
        %v9426 = vunpack.c.l.b16 %v8562
        %v9427 = vunpack.c.l.b16 %v8563
        %v9428 = vunpack.c.l.b16 %v8564
        %v9429 = vunpack.c.l.b16 %v8565
        %v9430 = vunpack.c.l.b16 %v8566
        %v9431 = vunpack.c.l.b16 %v8567
        %v9432 = vunpack.c.l.b16 %v8568
        %v9433 = vunpack.c.l.b16 %v8569
        %v9434 = vunpack.c.l.b16 %v8570
        %v9435 = vunpack.c.l.b16 %v8571
        %v9436 = vunpack.c.l.b16 %v8572
        %v9437 = vunpack.c.l.b16 %v8573
        %v9438 = vunpack.c.l.b16 %v8574
        %v9439 = vunpack.c.l.b16 %v8575
        %v9440 = vunpack.c.l.b16 %v8576
        %v9441 = vunpack.c.l.b16 %v8577
        %v9442 = vunpack.c.l.b16 %v8578
        %v9443 = vunpack.c.l.b16 %v8579
        %v9444 = vunpack.c.l.b16 %v8580
        %v9445 = vunpack.c.l.b16 %v8581
        %v9446 = vunpack.c.l.b16 %v8582
        %v9447 = vunpack.c.l.b16 %v8583
        %v9448 = vunpack.c.l.b16 %v8584
        %v9449 = vunpack.c.l.b16 %v8585
        %v9450 = vunpack.c.l.b16 %v8586
        %v9451 = vunpack.c.l.b16 %v8587
        %v9452 = vunpack.c.l.b16 %v8588
        %v9453 = vunpack.c.l.b16 %v8589
        %v9454 = vunpack.c.l.b16 %v8590
        %v9455 = vunpack.c.l.b16 %v8591
        %v9456 = vunpack.c.l.b16 %v8592
        %v9457 = vunpack.c.l.b16 %v8593
        %v9458 = vunpack.c.l.b16 %v8594
        %v9459 = vunpack.c.l.b16 %v8595
        %v9460 = vunpack.c.l.b16 %v8596
        %v9461 = vunpack.c.l.b16 %v8597
        %v9462 = vunpack.c.l.b16 %v8598
        %v9463 = vunpack.c.l.b16 %v8599
        %v9464 = vunpack.c.l.b16 %v8600
        %v9465 = vunpack.c.l.b16 %v8601
        %v9466 = vunpack.c.l.b16 %v8602
        %v9467 = vunpack.c.l.b16 %v8603
        %v9468 = vunpack.c.l.b16 %v8604
        %v9469 = vunpack.c.l.b16 %v8605
        %v9470 = vunpack.c.l.b16 %v8606
        %v9471 = vunpack.c.l.b16 %v8607
        %v9472 = vunpack.c.l.b16 %v8608
        %v9473 = vunpack.c.l.b16 %v8609
        %v9474 = vunpack.c.l.b16 %v8610
        %v9475 = vunpack.c.l.b16 %v8611
        %v9476 = vunpack.c.l.b16 %v8612
        %v9477 = vunpack.c.l.b16 %v8613
        %v9478 = vunpack.c.l.b16 %v8614
        %v9479 = vunpack.c.l.b16 %v8615
        %v9480 = vunpack.c.l.b16 %v8616
        %v9481 = vunpack.c.l.b16 %v8617
        %v9482 = vunpack.c.l.b16 %v8618
        %v9483 = vunpack.c.l.b16 %v8619
        %v9484 = vunpack.c.l.b16 %v8620
        %v9485 = vunpack.c.l.b16 %v8621
        %v9486 = vunpack.c.l.b16 %v8622
        %v9487 = vunpack.c.l.b16 %v8623
        %v9488 = vunpack.c.l.b16 %v8624
        %v9489 = vunpack.c.l.b16 %v8625
        %v9490 = vunpack.c.l.b16 %v8626
        %v9491 = vunpack.c.l.b16 %v8627
        %v9492 = vunpack.c.l.b16 %v8628
        %v9493 = vunpack.c.l.b16 %v8629
        %v9494 = vunpack.c.l.b16 %v8630
        %v9495 = vunpack.c.l.b16 %v8631
        %v9496 = vunpack.c.l.b16 %v8632
        %v9497 = vunpack.c.l.b16 %v8633
        %v9498 = vunpack.c.l.b16 %v8634
        %v9499 = vunpack.c.l.b16 %v8635
        %v9500 = vunpack.c.l.b16 %v8636
        %v9501 = vunpack.c.l.b16 %v8637
        %v9502 = vunpack.c.l.b16 %v8638
        %v9503 = vunpack.c.l.b16 %v8639
        %v9504 = vunpack.c.l.b16 %v8640
        %v9505 = vunpack.c.l.b16 %v8641
        %v9506 = vunpack.c.l.b16 %v8642
        %v9507 = vunpack.c.l.b16 %v8643
        %v9508 = vunpack.c.l.b16 %v8644
        %v9509 = vunpack.c.l.b16 %v8645
        %v9510 = vunpack.c.l.b16 %v8646
        %v9511 = vunpack.c.l.b16 %v8647
        %v9512 = vunpack.c.l.b16 %v8648
        %v9513 = vunpack.c.l.b16 %v8649
        %v9514 = vunpack.c.l.b16 %v8650
        %v9515 = vunpack.c.l.b16 %v8651
        %v9516 = vunpack.c.l.b16 %v8652
        %v9517 = vunpack.c.l.b16 %v8653
        %v9518 = vunpack.c.l.b16 %v8654
        %v9519 = vunpack.c.l.b16 %v8655
        %v9520 = vunpack.c.l.b16 %v8656
        %v9521 = vunpack.c.l.b16 %v8657
        %v9522 = vunpack.c.l.b16 %v8658
        %v9523 = vunpack.c.l.b16 %v8659
        %v9524 = vunpack.c.l.b16 %v8660
        %v9525 = vunpack.c.l.b16 %v8661
        %v9526 = vunpack.c.l.b16 %v8662
        %v9527 = vunpack.c.l.b16 %v8663
        %v9528 = vunpack.c.l.b16 %v8664
        %v9529 = vunpack.c.l.b16 %v8665
        %v9530 = vunpack.c.l.b16 %v8666
        %v9531 = vunpack.c.l.b16 %v8667
        %v9532 = vunpack.c.l.b16 %v8668
        %v9533 = vunpack.c.l.b16 %v8669
        %v9534 = vunpack.c.l.b16 %v8670
        %v9535 = vunpack.c.l.b16 %v8671
        %v9536 = vunpack.c.l.b16 %v8672
        %v9537 = vunpack.c.l.b16 %v8673
        %v9538 = vunpack.c.l.b16 %v8674
        %v9539 = vunpack.c.l.b16 %v8675
        %v9540 = vunpack.c.l.b16 %v8676
        %v9541 = vunpack.c.l.b16 %v8677
        %v9542 = vunpack.c.l.b16 %v8678
        %v9543 = vunpack.c.l.b16 %v8679
        %v9544 = vunpack.c.l.b16 %v8680
        %v9545 = vunpack.c.l.b16 %v8681
        %v9546 = vunpack.c.l.b16 %v8682
        %v9547 = vunpack.c.l.b16 %v8683
        %v9548 = vunpack.c.l.b16 %v8684
        %v9549 = vunpack.c.l.b16 %v8685
        %v9550 = vunpack.c.l.b16 %v8686
        %v9551 = vunpack.c.l.b16 %v8687
        %v9552 = vunpack.c.l.b16 %v8688
        %v9553 = vunpack.c.l.b16 %v8689
        %v9554 = vunpack.c.l.b16 %v8690
        %v9555 = vunpack.c.l.b16 %v8691
        %v9556 = vunpack.c.l.b16 %v8692
        %v9557 = vunpack.c.l.b16 %v8693
        %v9558 = vunpack.c.l.b16 %v8694
        %v9559 = vunpack.c.l.b16 %v8695
        %v9560 = vunpack.c.l.b16 %v8696
        %v9561 = vunpack.c.l.b16 %v8697
        %v9562 = vunpack.c.l.b16 %v8698
        %v9563 = vunpack.c.l.b16 %v8699
        %v9564 = vunpack.c.l.b16 %v8700
        %v9565 = vunpack.c.l.b16 %v8701
        %v9566 = vunpack.c.l.b16 %v8702
        %v9567 = vunpack.c.l.b16 %v8703
        %v9568 = vunpack.c.l.b16 %v8704
        %v9569 = vunpack.c.l.b16 %v8705
        %v9570 = vunpack.c.l.b16 %v8706
        %v9571 = vunpack.c.l.b16 %v8707
        %v9572 = vunpack.c.l.b16 %v8708
        %v9573 = vunpack.c.l.b16 %v8709
        %v9574 = vunpack.c.l.b16 %v8710
        %v9575 = vunpack.c.l.b16 %v8711
        %v9576 = vunpack.c.l.b16 %v8712
        %v9577 = vunpack.c.l.b16 %v8713
        %v9578 = vunpack.c.l.b16 %v8714
        %v9579 = vunpack.c.l.b16 %v8715
        %v9580 = vunpack.c.l.b16 %v8716
        %v9581 = vunpack.c.l.b16 %v8717
        %v9582 = vunpack.c.l.b16 %v8718
        %v9583 = vunpack.c.l.b16 %v8719
        %v9584 = vunpack.c.l.b16 %v8720
        %v9585 = vunpack.c.l.b16 %v8721
        %v9586 = vunpack.c.l.b16 %v8722
        %v9587 = vunpack.c.l.b16 %v8723
        %v9588 = vunpack.c.l.b16 %v8724
        %v9589 = vunpack.c.l.b16 %v8725
        %v9590 = vunpack.c.l.b16 %v8726
        %v9591 = vunpack.c.l.b16 %v8727
        %v9592 = vunpack.c.l.b16 %v8728
        %v9593 = vunpack.c.l.b16 %v8729
        %v9594 = vunpack.c.l.b16 %v8730
        %v9595 = vunpack.c.l.b16 %v8731
        %v9596 = vunpack.c.l.b16 %v8732
        %v9597 = vunpack.c.l.b16 %v8733
        %v9598 = vunpack.c.l.b16 %v8734
        %v9599 = vunpack.c.l.b16 %v8735
        %v9600 = vunpack.c.l.b16 %v8736
        %v9601 = vunpack.c.l.b16 %v8737
        %v9602 = vunpack.c.l.b16 %v8738
        %v9603 = vunpack.c.l.b16 %v8739
        %v9604 = vunpack.c.l.b16 %v8740
        %v9605 = vunpack.c.l.b16 %v8741
        %v9606 = vunpack.c.l.b16 %v8742
        %v9607 = vunpack.c.l.b16 %v8743
        %v9608 = vunpack.c.l.b16 %v8744
        %v9609 = vunpack.c.l.b16 %v8745
        %v9610 = vunpack.c.l.b16 %v8746
        %v9611 = vunpack.c.l.b16 %v8747
        %v9612 = vunpack.c.l.b16 %v8748
        %v9613 = vunpack.c.l.b16 %v8749
        %v9614 = vunpack.c.l.b16 %v8750
        %v9615 = vunpack.c.l.b16 %v8751
        %v9616 = vunpack.c.l.b16 %v8752
        %v9617 = vunpack.c.l.b16 %v8753
        %v9618 = vunpack.c.l.b16 %v8754
        %v9619 = vunpack.c.l.b16 %v8755
        %v9620 = vunpack.c.l.b16 %v8756
        %v9621 = vunpack.c.l.b16 %v8757
        %v9622 = vunpack.c.l.b16 %v8758
        %v9623 = vunpack.c.l.b16 %v8759
        %v9624 = vunpack.c.l.b16 %v8760
        %v9625 = vunpack.c.l.b16 %v8761
        %v9626 = vunpack.c.l.b16 %v8762
        %v9627 = vunpack.c.l.b16 %v8763
        %v9628 = vunpack.c.l.b16 %v8764
        %v9629 = vunpack.c.l.b16 %v8765
        %v9630 = vunpack.c.l.b16 %v8766
        %v9631 = vunpack.c.l.b16 %v8767
        %v9632 = vunpack.c.l.b16 %v8768
        %v9633 = vunpack.c.l.b16 %v8769
        %v9634 = vunpack.c.l.b16 %v8770
        %v9635 = vunpack.c.l.b16 %v8771
        %v9636 = vunpack.c.l.b16 %v8772
        %v9637 = vunpack.c.l.b16 %v8773
        %v9638 = vunpack.c.l.b16 %v8774
        %v9639 = vunpack.c.l.b16 %v8775
        %v9640 = vunpack.c.l.b16 %v8776
        %v9641 = vunpack.c.l.b16 %v8777
        %v9642 = vunpack.c.l.b16 %v8778
        %v9643 = vunpack.c.l.b16 %v8779
        %v9644 = vunpack.c.l.b16 %v8780
        %v9645 = vunpack.c.l.b16 %v8781
        %v9646 = vunpack.c.l.b16 %v8782
        %v9647 = vunpack.c.l.b16 %v8783
        %v9648 = vunpack.c.l.b16 %v8784
        %v9649 = vunpack.c.l.b16 %v8785
        %v9650 = vunpack.c.l.b16 %v8786
        %v9651 = vunpack.c.l.b16 %v8787
        %v9652 = vunpack.c.l.b16 %v8788
        %v9653 = vunpack.c.l.b16 %v8789
        %v9654 = vunpack.c.l.b16 %v8790
        %v9655 = vunpack.c.l.b16 %v8791
        %v9656 = vunpack.c.l.b16 %v8792
        %v9657 = vunpack.c.l.b16 %v8793
        %v9658 = vunpack.c.l.b16 %v8794
        %v9659 = vunpack.c.l.b16 %v8795
        %v9660 = vunpack.c.l.b16 %v8796
        %v9661 = vunpack.c.l.b16 %v8797
        %v9662 = vunpack.c.l.b16 %v8798
        %v9663 = vunpack.c.l.b16 %v8799
        %v9664 = vunpack.c.l.b16 %v8800
        %v9665 = vunpack.c.l.b16 %v8801
        %v9666 = vunpack.c.l.b16 %v8802
        %v9667 = vunpack.c.l.b16 %v8803
        %v9668 = vpack.c.b16 %v9237, %v9236
        %v9669 = vpack.c.b16 %v9239, %v9238
        %v9670 = vpack.c.b16 %v9241, %v9240
        %v9671 = vpack.c.b16 %v9243, %v9242
        %v9672 = vpack.c.b16 %v9245, %v9244
        %v9673 = vpack.c.b16 %v9247, %v9246
        %v9674 = vpack.c.b16 %v9249, %v9248
        %v9675 = vpack.c.b16 %v9251, %v9250
        %v9676 = vpack.c.b16 %v9253, %v9252
        %v9677 = vpack.c.b16 %v9255, %v9254
        %v9678 = vpack.c.b16 %v9257, %v9256
        %v9679 = vpack.c.b16 %v9259, %v9258
        %v9680 = vpack.c.b16 %v9261, %v9260
        %v9681 = vpack.c.b16 %v9263, %v9262
        %v9682 = vpack.c.b16 %v9265, %v9264
        %v9683 = vpack.c.b16 %v9267, %v9266
        %v9684 = vpack.c.b16 %v9269, %v9268
        %v9685 = vpack.c.b16 %v9271, %v9270
        %v9686 = vpack.c.b16 %v9273, %v9272
        %v9687 = vpack.c.b16 %v9275, %v9274
        %v9688 = vpack.c.b16 %v9277, %v9276
        %v9689 = vpack.c.b16 %v9279, %v9278
        %v9690 = vpack.c.b16 %v9281, %v9280
        %v9691 = vpack.c.b16 %v9283, %v9282
        %v9692 = vpack.c.b16 %v9285, %v9284
        %v9693 = vpack.c.b16 %v9287, %v9286
        %v9694 = vpack.c.b16 %v9289, %v9288
        %v9695 = vpack.c.b16 %v9291, %v9290
        %v9696 = vpack.c.b16 %v9293, %v9292
        %v9697 = vpack.c.b16 %v9295, %v9294
        %v9698 = vpack.c.b16 %v9297, %v9296
        %v9699 = vpack.c.b16 %v9299, %v9298
        %v9700 = vpack.c.b16 %v9301, %v9300
        %v9701 = vpack.c.b16 %v9303, %v9302
        %v9702 = vpack.c.b16 %v9305, %v9304
        %v9703 = vpack.c.b16 %v9307, %v9306
        %v9704 = vpack.c.b16 %v9309, %v9308
        %v9705 = vpack.c.b16 %v9311, %v9310
        %v9706 = vpack.c.b16 %v9313, %v9312
        %v9707 = vpack.c.b16 %v9315, %v9314
        %v9708 = vpack.c.b16 %v9317, %v9316
        %v9709 = vpack.c.b16 %v9319, %v9318
        %v9710 = vpack.c.b16 %v9321, %v9320
        %v9711 = vpack.c.b16 %v9323, %v9322
        %v9712 = vpack.c.b16 %v9325, %v9324
        %v9713 = vpack.c.b16 %v9327, %v9326
        %v9714 = vpack.c.b16 %v9329, %v9328
        %v9715 = vpack.c.b16 %v9331, %v9330
        %v9716 = vpack.c.b16 %v9333, %v9332
        %v9717 = vpack.c.b16 %v9335, %v9334
        %v9718 = vpack.c.b16 %v9337, %v9336
        %v9719 = vpack.c.b16 %v9339, %v9338
        %v9720 = vpack.c.b16 %v9341, %v9340
        %v9721 = vpack.c.b16 %v9343, %v9342
        %v9722 = vpack.c.b16 %v9345, %v9344
        %v9723 = vpack.c.b16 %v9347, %v9346
        %v9724 = vpack.c.b16 %v9349, %v9348
        %v9725 = vpack.c.b16 %v9351, %v9350
        %v9726 = vpack.c.b16 %v9353, %v9352
        %v9727 = vpack.c.b16 %v9355, %v9354
        %v9728 = vpack.c.b16 %v9357, %v9356
        %v9729 = vpack.c.b16 %v9359, %v9358
        %v9730 = vpack.c.b16 %v9361, %v9360
        %v9731 = vpack.c.b16 %v9363, %v9362
        %v9732 = vpack.c.b16 %v9365, %v9364
        %v9733 = vpack.c.b16 %v9367, %v9366
        %v9734 = vpack.c.b16 %v9369, %v9368
        %v9735 = vpack.c.b16 %v9371, %v9370
        %v9736 = vpack.c.b16 %v9373, %v9372
        %v9737 = vpack.c.b16 %v9375, %v9374
        %v9738 = vpack.c.b16 %v9377, %v9376
        %v9739 = vpack.c.b16 %v9379, %v9378
        %v9740 = vpack.c.b16 %v9381, %v9380
        %v9741 = vpack.c.b16 %v9383, %v9382
        %v9742 = vpack.c.b16 %v9385, %v9384
        %v9743 = vpack.c.b16 %v9387, %v9386
        %v9744 = vpack.c.b16 %v9389, %v9388
        %v9745 = vpack.c.b16 %v9391, %v9390
        %v9746 = vpack.c.b16 %v9393, %v9392
        %v9747 = vpack.c.b16 %v9395, %v9394
        %v9748 = vpack.c.b16 %v9397, %v9396
        %v9749 = vpack.c.b16 %v9399, %v9398
        %v9750 = vpack.c.b16 %v9401, %v9400
        %v9751 = vpack.c.b16 %v9403, %v9402
        %v9752 = vpack.c.b16 %v9405, %v9404
        %v9753 = vpack.c.b16 %v9407, %v9406
        %v9754 = vpack.c.b16 %v9409, %v9408
        %v9755 = vpack.c.b16 %v9411, %v9410
        %v9756 = vpack.c.b16 %v9413, %v9412
        %v9757 = vpack.c.b16 %v9415, %v9414
        %v9758 = vpack.c.b16 %v9417, %v9416
        %v9759 = vpack.c.b16 %v9419, %v9418
        %v9760 = vpack.c.b16 %v9421, %v9420
        %v9761 = vpack.c.b16 %v9423, %v9422
        %v9762 = vpack.c.b16 %v9425, %v9424
        %v9763 = vpack.c.b16 %v9427, %v9426
        %v9764 = vpack.c.b16 %v9429, %v9428
        %v9765 = vpack.c.b16 %v9431, %v9430
        %v9766 = vpack.c.b16 %v9433, %v9432
        %v9767 = vpack.c.b16 %v9435, %v9434
        %v9768 = vpack.c.b16 %v9437, %v9436
        %v9769 = vpack.c.b16 %v9439, %v9438
        %v9770 = vpack.c.b16 %v9441, %v9440
        %v9771 = vpack.c.b16 %v9443, %v9442
        %v9772 = vpack.c.b16 %v9445, %v9444
        %v9773 = vpack.c.b16 %v9447, %v9446
        %v9774 = vpack.c.b16 %v9449, %v9448
        %v9775 = vpack.c.b16 %v9451, %v9450
        %v9776 = vpack.c.b16 %v9453, %v9452
        %v9777 = vpack.c.b16 %v9455, %v9454
        %v9778 = vpack.c.b16 %v9457, %v9456
        %v9779 = vpack.c.b16 %v9459, %v9458
        %v9780 = vpack.c.b16 %v9461, %v9460
        %v9781 = vpack.c.b16 %v9463, %v9462
        %v9782 = vpack.c.b16 %v9465, %v9464
        %v9783 = vpack.c.b16 %v9467, %v9466
        %v9784 = vpack.c.b16 %v9469, %v9468
        %v9785 = vpack.c.b16 %v9471, %v9470
        %v9786 = vpack.c.b16 %v9473, %v9472
        %v9787 = vpack.c.b16 %v9475, %v9474
        %v9788 = vpack.c.b16 %v9477, %v9476
        %v9789 = vpack.c.b16 %v9479, %v9478
        %v9790 = vpack.c.b16 %v9481, %v9480
        %v9791 = vpack.c.b16 %v9483, %v9482
        %v9792 = vpack.c.b16 %v9485, %v9484
        %v9793 = vpack.c.b16 %v9487, %v9486
        %v9794 = vpack.c.b16 %v9489, %v9488
        %v9795 = vpack.c.b16 %v9491, %v9490
        %v9796 = vpack.c.b16 %v9493, %v9492
        %v9797 = vpack.c.b16 %v9495, %v9494
        %v9798 = vpack.c.b16 %v9497, %v9496
        %v9799 = vpack.c.b16 %v9499, %v9498
        %v9800 = vpack.c.b16 %v9501, %v9500
        %v9801 = vpack.c.b16 %v9503, %v9502
        %v9802 = vpack.c.b16 %v9505, %v9504
        %v9803 = vpack.c.b16 %v9507, %v9506
        %v9804 = vpack.c.b16 %v9509, %v9508
        %v9805 = vpack.c.b16 %v9511, %v9510
        %v9806 = vpack.c.b16 %v9513, %v9512
        %v9807 = vpack.c.b16 %v9515, %v9514
        %v9808 = vpack.c.b16 %v9517, %v9516
        %v9809 = vpack.c.b16 %v9519, %v9518
        %v9810 = vpack.c.b16 %v9521, %v9520
        %v9811 = vpack.c.b16 %v9523, %v9522
        %v9812 = vpack.c.b16 %v9525, %v9524
        %v9813 = vpack.c.b16 %v9527, %v9526
        %v9814 = vpack.c.b16 %v9529, %v9528
        %v9815 = vpack.c.b16 %v9531, %v9530
        %v9816 = vpack.c.b16 %v9533, %v9532
        %v9817 = vpack.c.b16 %v9535, %v9534
        %v9818 = vpack.c.b16 %v9537, %v9536
        %v9819 = vpack.c.b16 %v9539, %v9538
        %v9820 = vpack.c.b16 %v9541, %v9540
        %v9821 = vpack.c.b16 %v9543, %v9542
        %v9822 = vpack.c.b16 %v9545, %v9544
        %v9823 = vpack.c.b16 %v9547, %v9546
        %v9824 = vpack.c.b16 %v9549, %v9548
        %v9825 = vpack.c.b16 %v9551, %v9550
        %v9826 = vpack.c.b16 %v9553, %v9552
        %v9827 = vpack.c.b16 %v9555, %v9554
        %v9828 = vpack.c.b16 %v9557, %v9556
        %v9829 = vpack.c.b16 %v9559, %v9558
        %v9830 = vpack.c.b16 %v9561, %v9560
        %v9831 = vpack.c.b16 %v9563, %v9562
        %v9832 = vpack.c.b16 %v9565, %v9564
        %v9833 = vpack.c.b16 %v9567, %v9566
        %v9834 = vpack.c.b16 %v9569, %v9568
        %v9835 = vpack.c.b16 %v9571, %v9570
        %v9836 = vpack.c.b16 %v9573, %v9572
        %v9837 = vpack.c.b16 %v9575, %v9574
        %v9838 = vpack.c.b16 %v9577, %v9576
        %v9839 = vpack.c.b16 %v9579, %v9578
        %v9840 = vpack.c.b16 %v9581, %v9580
        %v9841 = vpack.c.b16 %v9583, %v9582
        %v9842 = vpack.c.b16 %v9585, %v9584
        %v9843 = vpack.c.b16 %v9587, %v9586
        %v9844 = vpack.c.b16 %v9589, %v9588
        %v9845 = vpack.c.b16 %v9591, %v9590
        %v9846 = vpack.c.b16 %v9593, %v9592
        %v9847 = vpack.c.b16 %v9595, %v9594
        %v9848 = vpack.c.b16 %v9597, %v9596
        %v9849 = vpack.c.b16 %v9599, %v9598
        %v9850 = vpack.c.b16 %v9601, %v9600
        %v9851 = vpack.c.b16 %v9603, %v9602
        %v9852 = vpack.c.b16 %v9605, %v9604
        %v9853 = vpack.c.b16 %v9607, %v9606
        %v9854 = vpack.c.b16 %v9609, %v9608
        %v9855 = vpack.c.b16 %v9611, %v9610
        %v9856 = vpack.c.b16 %v9613, %v9612
        %v9857 = vpack.c.b16 %v9615, %v9614
        %v9858 = vpack.c.b16 %v9617, %v9616
        %v9859 = vpack.c.b16 %v9619, %v9618
        %v9860 = vpack.c.b16 %v9621, %v9620
        %v9861 = vpack.c.b16 %v9623, %v9622
        %v9862 = vpack.c.b16 %v9625, %v9624
        %v9863 = vpack.c.b16 %v9627, %v9626
        %v9864 = vpack.c.b16 %v9629, %v9628
        %v9865 = vpack.c.b16 %v9631, %v9630
        %v9866 = vpack.c.b16 %v9633, %v9632
        %v9867 = vpack.c.b16 %v9635, %v9634
        %v9868 = vpack.c.b16 %v9637, %v9636
        %v9869 = vpack.c.b16 %v9639, %v9638
        %v9870 = vpack.c.b16 %v9641, %v9640
        %v9871 = vpack.c.b16 %v9643, %v9642
        %v9872 = vpack.c.b16 %v9645, %v9644
        %v9873 = vpack.c.b16 %v9647, %v9646
        %v9874 = vpack.c.b16 %v9649, %v9648
        %v9875 = vpack.c.b16 %v9651, %v9650
        %v9876 = vpack.c.b16 %v9653, %v9652
        %v9877 = vpack.c.b16 %v9655, %v9654
        %v9878 = vpack.c.b16 %v9657, %v9656
        %v9879 = vpack.c.b16 %v9659, %v9658
        %v9880 = vpack.c.b16 %v9661, %v9660
        %v9881 = vpack.c.b16 %v9663, %v9662
        %v9882 = vpack.c.b16 %v9665, %v9664
        %v9883 = vpack.c.b16 %v9667, %v9666
        %10100 = vmatprep.subr.bf16.mxu0 0
        %10101 = vmatpush1.bf16.msra.mxu0 %v9668
        %10102 = vmatprep.subr.bf16.mxu0 0
        %10103 = vmatpush1.bf16.msra.mxu0 %v9669
        %10104 = vmatprep.subr.bf16.mxu0 0
        %10105 = vmatpush1.bf16.msra.mxu0 %v9670
        %10106 = vmatprep.subr.bf16.mxu0 0
        %10107 = vmatpush1.bf16.msra.mxu0 %v9671
        %10108 = vmatprep.subr.bf16.mxu0 0
        %10109 = vmatpush1.bf16.msra.mxu0 %v9672
        %10110 = vmatprep.subr.bf16.mxu0 0
        %10111 = vmatpush1.bf16.msra.mxu0 %v9673
        %10112 = vmatprep.subr.bf16.mxu0 0
        %10113 = vmatpush1.bf16.msra.mxu0 %v9674
        %10114 = vmatprep.subr.bf16.mxu0 0
        %10115 = vmatpush1.bf16.msra.mxu0 %v9675
        %10116 = vmatprep.subr.bf16.mxu0 0
        %10117 = vmatpush1.bf16.msra.mxu0 %v9676
        %10118 = vmatprep.subr.bf16.mxu0 0
        %10119 = vmatpush1.bf16.msra.mxu0 %v9677
        %10120 = vmatprep.subr.bf16.mxu0 0
        %10121 = vmatpush1.bf16.msra.mxu0 %v9678
        %10122 = vmatprep.subr.bf16.mxu0 0
        %10123 = vmatpush1.bf16.msra.mxu0 %v9679
        %10124 = vmatprep.subr.bf16.mxu0 0
        %10125 = vmatpush1.bf16.msra.mxu0 %v9680
        %10126 = vmatprep.subr.bf16.mxu0 0
        %10127 = vmatpush1.bf16.msra.mxu0 %v9681
        %10128 = vmatprep.subr.bf16.mxu0 0
        %10129 = vmatpush1.bf16.msra.mxu0 %v9682
        %10130 = vmatprep.subr.bf16.mxu0 0
        %10131 = vmatpush1.bf16.msra.mxu0 %v9683
        %10132 = vmatprep.mubr.bf16.mxu0 %v8076
        %10133 = vmatmul.mubr.bf16.gmra.mrb[0].mxu0 %v8075
        %v10134 = vpop.f32.mrb[0].mxu0
        %v10135 = vadd.f32 0.0, %v10134
        %v10136 = vpop.f32.mrb[0].mxu0
        %v10137 = vpop.f32.mrb[0].mxu0
        %v10138 = vadd.f32 0.0, %v10137
        %v10139 = vpop.f32.mrb[0].mxu0
        %10140 = vmatprep.mubr.bf16.mxu0 %v8085
        %10141 = vmatmul.mubr.bf16.gmra.mrb[0].mxu0 %v8084
        %v10142 = vpop.f32.mrb[0].mxu0
        %v10143 = vadd.f32 0.0, %v10142
        %v10144 = vpop.f32.mrb[0].mxu0
        %v10145 = vpop.f32.mrb[0].mxu0
        %v10146 = vadd.f32 0.0, %v10145
        %v10147 = vpop.f32.mrb[0].mxu0
        %10148 = vmatprep.mubr.bf16.mxu0 %v8094
        %10149 = vmatmul.mubr.bf16.gmra.mrb[0].mxu0 %v8093
        %v10150 = vpop.f32.mrb[0].mxu0
        %v10151 = vadd.f32 0.0, %v10150
        %v10152 = vpop.f32.mrb[0].mxu0
        %v10153 = vpop.f32.mrb[0].mxu0
        %v10154 = vadd.f32 0.0, %v10153
        %v10155 = vpop.f32.mrb[0].mxu0
        %10156 = vmatprep.mubr.bf16.mxu0 %v8103
        %10157 = vmatmul.mubr.bf16.gmra.mrb[0].mxu0 %v8102
        %v10158 = vpop.f32.mrb[0].mxu0
        %v10159 = vadd.f32 0.0, %v10158
        %v10160 = vpop.f32.mrb[0].mxu0
        %v10161 = vpop.f32.mrb[0].mxu0
        %v10162 = vadd.f32 0.0, %v10161
        %v10163 = vpop.f32.mrb[0].mxu0
        %10164 = vmatprep.mubr.bf16.mxu0 %v8112
        %10165 = vmatmul.mubr.bf16.gmra.mrb[0].mxu0 %v8111
        %v10166 = vpop.f32.mrb[0].mxu0
        %v10167 = vadd.f32 0.0, %v10166
        %v10168 = vpop.f32.mrb[0].mxu0
        %v10169 = vpop.f32.mrb[0].mxu0
        %v10170 = vadd.f32 0.0, %v10169
        %v10171 = vpop.f32.mrb[0].mxu0
        %10172 = vmatprep.mubr.bf16.mxu0 %v8121
        %10173 = vmatmul.mubr.bf16.gmra.mrb[0].mxu0 %v8120
        %v10174 = vpop.f32.mrb[0].mxu0
        %v10175 = vadd.f32 0.0, %v10174
        %v10176 = vpop.f32.mrb[0].mxu0
        %v10177 = vpop.f32.mrb[0].mxu0
        %v10178 = vadd.f32 0.0, %v10177
        %v10179 = vpop.f32.mrb[0].mxu0
        %10180 = vmatprep.mubr.bf16.mxu0 %v8130
        %10181 = vmatmul.mubr.bf16.gmra.mrb[0].mxu0 %v8129
        %v10182 = vpop.f32.mrb[0].mxu0
        %v10183 = vadd.f32 0.0, %v10182
        %v10184 = vpop.f32.mrb[0].mxu0
        %v10185 = vpop.f32.mrb[0].mxu0
        %v10186 = vadd.f32 0.0, %v10185
        %v10187 = vpop.f32.mrb[0].mxu0
        %10188 = vmatprep.mubr.bf16.mxu0 %v8139
        %10189 = vmatmul.mubr.bf16.gmra.mrb[0].mxu0 %v8138
        %v10190 = vpop.f32.mrb[0].mxu0
        %v10191 = vadd.f32 0.0, %v10190
        %v10192 = vpop.f32.mrb[0].mxu0
        %v10193 = vpop.f32.mrb[0].mxu0
        %v10194 = vadd.f32 0.0, %v10193
        %v10195 = vpop.f32.mrb[0].mxu0
        %10196 = vmatprep.mubr.bf16.mxu0 %v8148
        %10197 = vmatmul.mubr.bf16.gmra.mrb[0].mxu0 %v8147
        %v10198 = vpop.f32.mrb[0].mxu0
        %v10199 = vadd.f32 0.0, %v10198
        %v10200 = vpop.f32.mrb[0].mxu0
        %v10201 = vpop.f32.mrb[0].mxu0
        %v10202 = vadd.f32 0.0, %v10201
        %v10203 = vpop.f32.mrb[0].mxu0
        %10204 = vmatprep.mubr.bf16.mxu0 %v8157
        %10205 = vmatmul.mubr.bf16.gmra.mrb[0].mxu0 %v8156
        %v10206 = vpop.f32.mrb[0].mxu0
        %v10207 = vadd.f32 0.0, %v10206
        %v10208 = vpop.f32.mrb[0].mxu0
        %v10209 = vpop.f32.mrb[0].mxu0
        %v10210 = vadd.f32 0.0, %v10209
        %v10211 = vpop.f32.mrb[0].mxu0
        %10212 = vmatprep.mubr.bf16.mxu0 %v8166
        %10213 = vmatmul.mubr.bf16.gmra.mrb[0].mxu0 %v8165
        %v10214 = vpop.f32.mrb[0].mxu0
        %v10215 = vadd.f32 0.0, %v10214
        %v10216 = vpop.f32.mrb[0].mxu0
        %v10217 = vpop.f32.mrb[0].mxu0
        %v10218 = vadd.f32 0.0, %v10217
        %v10219 = vpop.f32.mrb[0].mxu0
        %10220 = vmatprep.mubr.bf16.mxu0 %v8175
        %10221 = vmatmul.mubr.bf16.gmra.mrb[0].mxu0 %v8174
        %v10222 = vpop.f32.mrb[0].mxu0
        %v10223 = vadd.f32 0.0, %v10222
        %v10224 = vpop.f32.mrb[0].mxu0
        %v10225 = vpop.f32.mrb[0].mxu0
        %v10226 = vadd.f32 0.0, %v10225
        %v10227 = vpop.f32.mrb[0].mxu0
        %10228 = vmatprep.mubr.bf16.mxu0 %v8184
        %10229 = vmatmul.mubr.bf16.gmra.mrb[0].mxu0 %v8183
        %v10230 = vpop.f32.mrb[0].mxu0
        %v10231 = vadd.f32 0.0, %v10230
        %v10232 = vpop.f32.mrb[0].mxu0
        %v10233 = vpop.f32.mrb[0].mxu0
        %v10234 = vadd.f32 0.0, %v10233
        %v10235 = vpop.f32.mrb[0].mxu0
        %10236 = vmatprep.mubr.bf16.mxu0 %v8193
        %10237 = vmatmul.mubr.bf16.gmra.mrb[0].mxu0 %v8192
        %v10238 = vpop.f32.mrb[0].mxu0
        %v10239 = vadd.f32 0.0, %v10238
        %v10240 = vpop.f32.mrb[0].mxu0
        %v10241 = vpop.f32.mrb[0].mxu0
        %v10242 = vadd.f32 0.0, %v10241
        %v10243 = vpop.f32.mrb[0].mxu0
        %10244 = vmatprep.mubr.bf16.mxu0 %v8202
        %10245 = vmatmul.mubr.bf16.gmra.mrb[0].mxu0 %v8201
        %v10246 = vpop.f32.mrb[0].mxu0
        %v10247 = vadd.f32 0.0, %v10246
        %v10248 = vpop.f32.mrb[0].mxu0
        %v10249 = vpop.f32.mrb[0].mxu0
        %v10250 = vadd.f32 0.0, %v10249
        %v10251 = vpop.f32.mrb[0].mxu0
        %10252 = vmatprep.mubr.bf16.mxu0 %v8211
        %10253 = vmatmul.mubr.bf16.gmra.mrb[0].mxu0 %v8210
        %v10254 = vpop.f32.mrb[0].mxu0
        %v10255 = vadd.f32 0.0, %v10254
        %v10256 = vpop.f32.mrb[0].mxu0
        %v10257 = vpop.f32.mrb[0].mxu0
        %v10258 = vadd.f32 0.0, %v10257
        %v10259 = vpop.f32.mrb[0].mxu0
        %10260 = vdwg.mxu0
        %10261 = vmatprep.subr.bf16.mxu0 0
        %10262 = vmatpush1.bf16.msra.mxu0 %v9684
        %10263 = vmatprep.subr.bf16.mxu0 0
        %10264 = vmatpush1.bf16.msra.mxu0 %v9685
        %10265 = vmatprep.subr.bf16.mxu0 0
        %10266 = vmatpush1.bf16.msra.mxu0 %v9686
        %10267 = vmatprep.subr.bf16.mxu0 0
        %10268 = vmatpush1.bf16.msra.mxu0 %v9687
        %10269 = vmatprep.subr.bf16.mxu0 0
        %10270 = vmatpush1.bf16.msra.mxu0 %v9688
        %10271 = vmatprep.subr.bf16.mxu0 0
        %10272 = vmatpush1.bf16.msra.mxu0 %v9689
        %10273 = vmatprep.subr.bf16.mxu0 0
        %10274 = vmatpush1.bf16.msra.mxu0 %v9690
        %10275 = vmatprep.subr.bf16.mxu0 0
        %10276 = vmatpush1.bf16.msra.mxu0 %v9691
        %10277 = vmatprep.subr.bf16.mxu0 0
        %10278 = vmatpush1.bf16.msra.mxu0 %v9692
        %10279 = vmatprep.subr.bf16.mxu0 0
        %10280 = vmatpush1.bf16.msra.mxu0 %v9693
        %10281 = vmatprep.subr.bf16.mxu0 0
        %10282 = vmatpush1.bf16.msra.mxu0 %v9694
        %10283 = vmatprep.subr.bf16.mxu0 0
        %10284 = vmatpush1.bf16.msra.mxu0 %v9695
        %10285 = vmatprep.subr.bf16.mxu0 0
        %10286 = vmatpush1.bf16.msra.mxu0 %v9696
        %10287 = vmatprep.subr.bf16.mxu0 0
        %10288 = vmatpush1.bf16.msra.mxu0 %v9697
        %10289 = vmatprep.subr.bf16.mxu0 0
        %10290 = vmatpush1.bf16.msra.mxu0 %v9698
        %10291 = vmatprep.subr.bf16.mxu0 0
        %10292 = vmatpush1.bf16.msra.mxu0 %v9699
        %10293 = vmatprep.mubr.bf16.mxu0 %v8078
        %10294 = vmatmul.mubr.bf16.gmra.mrb[0].mxu0 %v8077
        %v10295 = vpop.f32.mrb[0].mxu0
        %v10296 = vadd.f32 %v10135, %v10295
        %v10297 = vpop.f32.mrb[0].mxu0
        %v10298 = vpop.f32.mrb[0].mxu0
        %v10299 = vadd.f32 %v10138, %v10298
        %v10300 = vpop.f32.mrb[0].mxu0
        %10301 = vmatprep.mubr.bf16.mxu0 %v8087
        %10302 = vmatmul.mubr.bf16.gmra.mrb[0].mxu0 %v8086
        %v10303 = vpop.f32.mrb[0].mxu0
        %v10304 = vadd.f32 %v10143, %v10303
        %v10305 = vpop.f32.mrb[0].mxu0
        %v10306 = vpop.f32.mrb[0].mxu0
        %v10307 = vadd.f32 %v10146, %v10306
        %v10308 = vpop.f32.mrb[0].mxu0
        %10309 = vmatprep.mubr.bf16.mxu0 %v8096
        %10310 = vmatmul.mubr.bf16.gmra.mrb[0].mxu0 %v8095
        %v10311 = vpop.f32.mrb[0].mxu0
        %v10312 = vadd.f32 %v10151, %v10311
        %v10313 = vpop.f32.mrb[0].mxu0
        %v10314 = vpop.f32.mrb[0].mxu0
        %v10315 = vadd.f32 %v10154, %v10314
        %v10316 = vpop.f32.mrb[0].mxu0
        %10317 = vmatprep.mubr.bf16.mxu0 %v8105
        %10318 = vmatmul.mubr.bf16.gmra.mrb[0].mxu0 %v8104
        %v10319 = vpop.f32.mrb[0].mxu0
        %v10320 = vadd.f32 %v10159, %v10319
        %v10321 = vpop.f32.mrb[0].mxu0
        %v10322 = vpop.f32.mrb[0].mxu0
        %v10323 = vadd.f32 %v10162, %v10322
        %v10324 = vpop.f32.mrb[0].mxu0
        %10325 = vmatprep.mubr.bf16.mxu0 %v8114
        %10326 = vmatmul.mubr.bf16.gmra.mrb[0].mxu0 %v8113
        %v10327 = vpop.f32.mrb[0].mxu0
        %v10328 = vadd.f32 %v10167, %v10327
        %v10329 = vpop.f32.mrb[0].mxu0
        %v10330 = vpop.f32.mrb[0].mxu0
        %v10331 = vadd.f32 %v10170, %v10330
        %v10332 = vpop.f32.mrb[0].mxu0
        %10333 = vmatprep.mubr.bf16.mxu0 %v8123
        %10334 = vmatmul.mubr.bf16.gmra.mrb[0].mxu0 %v8122
        %v10335 = vpop.f32.mrb[0].mxu0
        %v10336 = vadd.f32 %v10175, %v10335
        %v10337 = vpop.f32.mrb[0].mxu0
        %v10338 = vpop.f32.mrb[0].mxu0
        %v10339 = vadd.f32 %v10178, %v10338
        %v10340 = vpop.f32.mrb[0].mxu0
        %10341 = vmatprep.mubr.bf16.mxu0 %v8132
        %10342 = vmatmul.mubr.bf16.gmra.mrb[0].mxu0 %v8131
        %v10343 = vpop.f32.mrb[0].mxu0
        %v10344 = vadd.f32 %v10183, %v10343
        %v10345 = vpop.f32.mrb[0].mxu0
        %v10346 = vpop.f32.mrb[0].mxu0
        %v10347 = vadd.f32 %v10186, %v10346
        %v10348 = vpop.f32.mrb[0].mxu0
        %10349 = vmatprep.mubr.bf16.mxu0 %v8141
        %10350 = vmatmul.mubr.bf16.gmra.mrb[0].mxu0 %v8140
        %v10351 = vpop.f32.mrb[0].mxu0
        %v10352 = vadd.f32 %v10191, %v10351
        %v10353 = vpop.f32.mrb[0].mxu0
        %v10354 = vpop.f32.mrb[0].mxu0
        %v10355 = vadd.f32 %v10194, %v10354
        %v10356 = vpop.f32.mrb[0].mxu0
        %10357 = vmatprep.mubr.bf16.mxu0 %v8150
        %10358 = vmatmul.mubr.bf16.gmra.mrb[0].mxu0 %v8149
        %v10359 = vpop.f32.mrb[0].mxu0
        %v10360 = vadd.f32 %v10199, %v10359
        %v10361 = vpop.f32.mrb[0].mxu0
        %v10362 = vpop.f32.mrb[0].mxu0
        %v10363 = vadd.f32 %v10202, %v10362
        %v10364 = vpop.f32.mrb[0].mxu0
        %10365 = vmatprep.mubr.bf16.mxu0 %v8159
        %10366 = vmatmul.mubr.bf16.gmra.mrb[0].mxu0 %v8158
        %v10367 = vpop.f32.mrb[0].mxu0
        %v10368 = vadd.f32 %v10207, %v10367
        %v10369 = vpop.f32.mrb[0].mxu0
        %v10370 = vpop.f32.mrb[0].mxu0
        %v10371 = vadd.f32 %v10210, %v10370
        %v10372 = vpop.f32.mrb[0].mxu0
        %10373 = vmatprep.mubr.bf16.mxu0 %v8168
        %10374 = vmatmul.mubr.bf16.gmra.mrb[0].mxu0 %v8167
        %v10375 = vpop.f32.mrb[0].mxu0
        %v10376 = vadd.f32 %v10215, %v10375
        %v10377 = vpop.f32.mrb[0].mxu0
        %v10378 = vpop.f32.mrb[0].mxu0
        %v10379 = vadd.f32 %v10218, %v10378
        %v10380 = vpop.f32.mrb[0].mxu0
        %10381 = vmatprep.mubr.bf16.mxu0 %v8177
        %10382 = vmatmul.mubr.bf16.gmra.mrb[0].mxu0 %v8176
        %v10383 = vpop.f32.mrb[0].mxu0
        %v10384 = vadd.f32 %v10223, %v10383
        %v10385 = vpop.f32.mrb[0].mxu0
        %v10386 = vpop.f32.mrb[0].mxu0
        %v10387 = vadd.f32 %v10226, %v10386
        %v10388 = vpop.f32.mrb[0].mxu0
        %10389 = vmatprep.mubr.bf16.mxu0 %v8186
        %10390 = vmatmul.mubr.bf16.gmra.mrb[0].mxu0 %v8185
        %v10391 = vpop.f32.mrb[0].mxu0
        %v10392 = vadd.f32 %v10231, %v10391
        %v10393 = vpop.f32.mrb[0].mxu0
        %v10394 = vpop.f32.mrb[0].mxu0
        %v10395 = vadd.f32 %v10234, %v10394
        %v10396 = vpop.f32.mrb[0].mxu0
        %10397 = vmatprep.mubr.bf16.mxu0 %v8195
        %10398 = vmatmul.mubr.bf16.gmra.mrb[0].mxu0 %v8194
        %v10399 = vpop.f32.mrb[0].mxu0
        %v10400 = vadd.f32 %v10239, %v10399
        %v10401 = vpop.f32.mrb[0].mxu0
        %v10402 = vpop.f32.mrb[0].mxu0
        %v10403 = vadd.f32 %v10242, %v10402
        %v10404 = vpop.f32.mrb[0].mxu0
        %10405 = vmatprep.mubr.bf16.mxu0 %v8204
        %10406 = vmatmul.mubr.bf16.gmra.mrb[0].mxu0 %v8203
        %v10407 = vpop.f32.mrb[0].mxu0
        %v10408 = vadd.f32 %v10247, %v10407
        %v10409 = vpop.f32.mrb[0].mxu0
        %v10410 = vpop.f32.mrb[0].mxu0
        %v10411 = vadd.f32 %v10250, %v10410
        %v10412 = vpop.f32.mrb[0].mxu0
        %10413 = vmatprep.mubr.bf16.mxu0 %v8213
        %10414 = vmatmul.mubr.bf16.gmra.mrb[0].mxu0 %v8212
        %v10415 = vpop.f32.mrb[0].mxu0
        %v10416 = vadd.f32 %v10255, %v10415
        %v10417 = vpop.f32.mrb[0].mxu0
        %v10418 = vpop.f32.mrb[0].mxu0
        %v10419 = vadd.f32 %v10258, %v10418
        %v10420 = vpop.f32.mrb[0].mxu0
        %10421 = vdwg.mxu0
        %10422 = vmatprep.subr.bf16.mxu0 0
        %10423 = vmatpush1.bf16.msra.mxu0 %v9700
        %10424 = vmatprep.subr.bf16.mxu0 0
        %10425 = vmatpush1.bf16.msra.mxu0 %v9701
        %10426 = vmatprep.subr.bf16.mxu0 0
        %10427 = vmatpush1.bf16.msra.mxu0 %v9702
        %10428 = vmatprep.subr.bf16.mxu0 0
        %10429 = vmatpush1.bf16.msra.mxu0 %v9703
        %10430 = vmatprep.subr.bf16.mxu0 0
        %10431 = vmatpush1.bf16.msra.mxu0 %v9704
        %10432 = vmatprep.subr.bf16.mxu0 0
        %10433 = vmatpush1.bf16.msra.mxu0 %v9705
        %10434 = vmatprep.subr.bf16.mxu0 0
        %10435 = vmatpush1.bf16.msra.mxu0 %v9706
        %10436 = vmatprep.subr.bf16.mxu0 0
        %10437 = vmatpush1.bf16.msra.mxu0 %v9707
        %10438 = vmatprep.subr.bf16.mxu0 0
        %10439 = vmatpush1.bf16.msra.mxu0 %v9708
        %10440 = vmatprep.subr.bf16.mxu0 0
        %10441 = vmatpush1.bf16.msra.mxu0 %v9709
        %10442 = vmatprep.subr.bf16.mxu0 0
        %10443 = vmatpush1.bf16.msra.mxu0 %v9710
        %10444 = vmatprep.subr.bf16.mxu0 0
        %10445 = vmatpush1.bf16.msra.mxu0 %v9711
        %10446 = vmatprep.subr.bf16.mxu0 0
        %10447 = vmatpush1.bf16.msra.mxu0 %v9712
        %10448 = vmatprep.subr.bf16.mxu0 0
        %10449 = vmatpush1.bf16.msra.mxu0 %v9713
        %10450 = vmatprep.subr.bf16.mxu0 0
        %10451 = vmatpush1.bf16.msra.mxu0 %v9714
        %10452 = vmatprep.subr.bf16.mxu0 0
        %10453 = vmatpush1.bf16.msra.mxu0 %v9715
        %10454 = vmatprep.mubr.bf16.mxu0 %v8080
        %10455 = vmatmul.mubr.bf16.gmra.mrb[0].mxu0 %v8079
        %v10456 = vpop.f32.mrb[0].mxu0
        %v10457 = vadd.f32 %v10296, %v10456
        %v10458 = vpop.f32.mrb[0].mxu0
        %v10459 = vpop.f32.mrb[0].mxu0
        %v10460 = vadd.f32 %v10299, %v10459
        %v10461 = vpop.f32.mrb[0].mxu0
        %10462 = vmatprep.mubr.bf16.mxu0 %v8089
        %10463 = vmatmul.mubr.bf16.gmra.mrb[0].mxu0 %v8088
        %v10464 = vpop.f32.mrb[0].mxu0
        %v10465 = vadd.f32 %v10304, %v10464
        %v10466 = vpop.f32.mrb[0].mxu0
        %v10467 = vpop.f32.mrb[0].mxu0
        %v10468 = vadd.f32 %v10307, %v10467
        %v10469 = vpop.f32.mrb[0].mxu0
        %10470 = vmatprep.mubr.bf16.mxu0 %v8098
        %10471 = vmatmul.mubr.bf16.gmra.mrb[0].mxu0 %v8097
        %v10472 = vpop.f32.mrb[0].mxu0
        %v10473 = vadd.f32 %v10312, %v10472
        %v10474 = vpop.f32.mrb[0].mxu0
        %v10475 = vpop.f32.mrb[0].mxu0
        %v10476 = vadd.f32 %v10315, %v10475
        %v10477 = vpop.f32.mrb[0].mxu0
        %10478 = vmatprep.mubr.bf16.mxu0 %v8107
        %10479 = vmatmul.mubr.bf16.gmra.mrb[0].mxu0 %v8106
        %v10480 = vpop.f32.mrb[0].mxu0
        %v10481 = vadd.f32 %v10320, %v10480
        %v10482 = vpop.f32.mrb[0].mxu0
        %v10483 = vpop.f32.mrb[0].mxu0
        %v10484 = vadd.f32 %v10323, %v10483
        %v10485 = vpop.f32.mrb[0].mxu0
        %10486 = vmatprep.mubr.bf16.mxu0 %v8116
        %10487 = vmatmul.mubr.bf16.gmra.mrb[0].mxu0 %v8115
        %v10488 = vpop.f32.mrb[0].mxu0
        %v10489 = vadd.f32 %v10328, %v10488
        %v10490 = vpop.f32.mrb[0].mxu0
        %v10491 = vpop.f32.mrb[0].mxu0
        %v10492 = vadd.f32 %v10331, %v10491
        %v10493 = vpop.f32.mrb[0].mxu0
        %10494 = vmatprep.mubr.bf16.mxu0 %v8125
        %10495 = vmatmul.mubr.bf16.gmra.mrb[0].mxu0 %v8124
        %v10496 = vpop.f32.mrb[0].mxu0
        %v10497 = vadd.f32 %v10336, %v10496
        %v10498 = vpop.f32.mrb[0].mxu0
        %v10499 = vpop.f32.mrb[0].mxu0
        %v10500 = vadd.f32 %v10339, %v10499
        %v10501 = vpop.f32.mrb[0].mxu0
        %10502 = vmatprep.mubr.bf16.mxu0 %v8134
        %10503 = vmatmul.mubr.bf16.gmra.mrb[0].mxu0 %v8133
        %v10504 = vpop.f32.mrb[0].mxu0
        %v10505 = vadd.f32 %v10344, %v10504
        %v10506 = vpop.f32.mrb[0].mxu0
        %v10507 = vpop.f32.mrb[0].mxu0
        %v10508 = vadd.f32 %v10347, %v10507
        %v10509 = vpop.f32.mrb[0].mxu0
        %10510 = vmatprep.mubr.bf16.mxu0 %v8143
        %10511 = vmatmul.mubr.bf16.gmra.mrb[0].mxu0 %v8142
        %v10512 = vpop.f32.mrb[0].mxu0
        %v10513 = vadd.f32 %v10352, %v10512
        %v10514 = vpop.f32.mrb[0].mxu0
        %v10515 = vpop.f32.mrb[0].mxu0
        %v10516 = vadd.f32 %v10355, %v10515
        %v10517 = vpop.f32.mrb[0].mxu0
        %10518 = vmatprep.mubr.bf16.mxu0 %v8152
        %10519 = vmatmul.mubr.bf16.gmra.mrb[0].mxu0 %v8151
        %v10520 = vpop.f32.mrb[0].mxu0
        %v10521 = vadd.f32 %v10360, %v10520
        %v10522 = vpop.f32.mrb[0].mxu0
        %v10523 = vpop.f32.mrb[0].mxu0
        %v10524 = vadd.f32 %v10363, %v10523
        %v10525 = vpop.f32.mrb[0].mxu0
        %10526 = vmatprep.mubr.bf16.mxu0 %v8161
        %10527 = vmatmul.mubr.bf16.gmra.mrb[0].mxu0 %v8160
        %v10528 = vpop.f32.mrb[0].mxu0
        %v10529 = vadd.f32 %v10368, %v10528
        %v10530 = vpop.f32.mrb[0].mxu0
        %v10531 = vpop.f32.mrb[0].mxu0
        %v10532 = vadd.f32 %v10371, %v10531
        %v10533 = vpop.f32.mrb[0].mxu0
        %10534 = vmatprep.mubr.bf16.mxu0 %v8170
        %10535 = vmatmul.mubr.bf16.gmra.mrb[0].mxu0 %v8169
        %v10536 = vpop.f32.mrb[0].mxu0
        %v10537 = vadd.f32 %v10376, %v10536
        %v10538 = vpop.f32.mrb[0].mxu0
        %v10539 = vpop.f32.mrb[0].mxu0
        %v10540 = vadd.f32 %v10379, %v10539
        %v10541 = vpop.f32.mrb[0].mxu0
        %10542 = vmatprep.mubr.bf16.mxu0 %v8179
        %10543 = vmatmul.mubr.bf16.gmra.mrb[0].mxu0 %v8178
        %v10544 = vpop.f32.mrb[0].mxu0
        %v10545 = vadd.f32 %v10384, %v10544
        %v10546 = vpop.f32.mrb[0].mxu0
        %v10547 = vpop.f32.mrb[0].mxu0
        %v10548 = vadd.f32 %v10387, %v10547
        %v10549 = vpop.f32.mrb[0].mxu0
        %10550 = vmatprep.mubr.bf16.mxu0 %v8188
        %10551 = vmatmul.mubr.bf16.gmra.mrb[0].mxu0 %v8187
        %v10552 = vpop.f32.mrb[0].mxu0
        %v10553 = vadd.f32 %v10392, %v10552
        %v10554 = vpop.f32.mrb[0].mxu0
        %v10555 = vpop.f32.mrb[0].mxu0
        %v10556 = vadd.f32 %v10395, %v10555
        %v10557 = vpop.f32.mrb[0].mxu0
        %10558 = vmatprep.mubr.bf16.mxu0 %v8197
        %10559 = vmatmul.mubr.bf16.gmra.mrb[0].mxu0 %v8196
        %v10560 = vpop.f32.mrb[0].mxu0
        %v10561 = vadd.f32 %v10400, %v10560
        %v10562 = vpop.f32.mrb[0].mxu0
        %v10563 = vpop.f32.mrb[0].mxu0
        %v10564 = vadd.f32 %v10403, %v10563
        %v10565 = vpop.f32.mrb[0].mxu0
        %10566 = vmatprep.mubr.bf16.mxu0 %v8206
        %10567 = vmatmul.mubr.bf16.gmra.mrb[0].mxu0 %v8205
        %v10568 = vpop.f32.mrb[0].mxu0
        %v10569 = vadd.f32 %v10408, %v10568
        %v10570 = vpop.f32.mrb[0].mxu0
        %v10571 = vpop.f32.mrb[0].mxu0
        %v10572 = vadd.f32 %v10411, %v10571
        %v10573 = vpop.f32.mrb[0].mxu0
        %10574 = vmatprep.mubr.bf16.mxu0 %v8215
        %10575 = vmatmul.mubr.bf16.gmra.mrb[0].mxu0 %v8214
        %v10576 = vpop.f32.mrb[0].mxu0
        %v10577 = vadd.f32 %v10416, %v10576
        %v10578 = vpop.f32.mrb[0].mxu0
        %v10579 = vpop.f32.mrb[0].mxu0
        %v10580 = vadd.f32 %v10419, %v10579
        %v10581 = vpop.f32.mrb[0].mxu0
        %10582 = vdwg.mxu0
        %10583 = vmatprep.subr.bf16.mxu0 0
        %10584 = vmatpush1.bf16.msra.mxu0 %v9716
        %10585 = vmatprep.subr.bf16.mxu0 0
        %10586 = vmatpush1.bf16.msra.mxu0 %v9717
        %10587 = vmatprep.subr.bf16.mxu0 0
        %10588 = vmatpush1.bf16.msra.mxu0 %v9718
        %10589 = vmatprep.subr.bf16.mxu0 0
        %10590 = vmatpush1.bf16.msra.mxu0 %v9719
        %10591 = vmatprep.subr.bf16.mxu0 0
        %10592 = vmatpush1.bf16.msra.mxu0 %v9720
        %10593 = vmatprep.subr.bf16.mxu0 0
        %10594 = vmatpush1.bf16.msra.mxu0 %v9721
        %10595 = vmatprep.subr.bf16.mxu0 0
        %10596 = vmatpush1.bf16.msra.mxu0 %v9722
        %10597 = vmatprep.subr.bf16.mxu0 0
        %10598 = vmatpush1.bf16.msra.mxu0 %v9723
        %10599 = vmatprep.subr.bf16.mxu0 0
        %10600 = vmatpush1.bf16.msra.mxu0 %v9724
        %10601 = vmatprep.subr.bf16.mxu0 0
        %10602 = vmatpush1.bf16.msra.mxu0 %v9725
        %10603 = vmatprep.subr.bf16.mxu0 0
        %10604 = vmatpush1.bf16.msra.mxu0 %v9726
        %10605 = vmatprep.subr.bf16.mxu0 0
        %10606 = vmatpush1.bf16.msra.mxu0 %v9727
        %10607 = vmatprep.subr.bf16.mxu0 0
        %10608 = vmatpush1.bf16.msra.mxu0 %v9728
        %10609 = vmatprep.subr.bf16.mxu0 0
        %10610 = vmatpush1.bf16.msra.mxu0 %v9729
        %10611 = vmatprep.subr.bf16.mxu0 0
        %10612 = vmatpush1.bf16.msra.mxu0 %v9730
        %10613 = vmatprep.subr.bf16.mxu0 0
        %10614 = vmatpush1.bf16.msra.mxu0 %v9731
        %10615 = vmatprep.mubr.bf16.mxu0 %v8082
        %10616 = vmatmul.mubr.bf16.gmra.mrb[0].mxu0 %v8081
        %v10617 = vpop.f32.mrb[0].mxu0
        %v10618 = vadd.f32 %v10457, %v10617
        %v10619 = vpop.f32.mrb[0].mxu0
        %v10620 = vpop.f32.mrb[0].mxu0
        %v10621 = vadd.f32 %v10460, %v10620
        %v10622 = vpop.f32.mrb[0].mxu0
        %10623 = vmatprep.mubr.bf16.mxu0 %v8091
        %10624 = vmatmul.mubr.bf16.gmra.mrb[0].mxu0 %v8090
        %v10625 = vpop.f32.mrb[0].mxu0
        %v10626 = vadd.f32 %v10465, %v10625
        %v10627 = vpop.f32.mrb[0].mxu0
        %v10628 = vpop.f32.mrb[0].mxu0
        %v10629 = vadd.f32 %v10468, %v10628
        %v10630 = vpop.f32.mrb[0].mxu0
        %10631 = vmatprep.mubr.bf16.mxu0 %v8100
        %10632 = vmatmul.mubr.bf16.gmra.mrb[0].mxu0 %v8099
        %v10633 = vpop.f32.mrb[0].mxu0
        %v10634 = vadd.f32 %v10473, %v10633
        %v10635 = vpop.f32.mrb[0].mxu0
        %v10636 = vpop.f32.mrb[0].mxu0
        %v10637 = vadd.f32 %v10476, %v10636
        %v10638 = vpop.f32.mrb[0].mxu0
        %10639 = vmatprep.mubr.bf16.mxu0 %v8109
        %10640 = vmatmul.mubr.bf16.gmra.mrb[0].mxu0 %v8108
        %v10641 = vpop.f32.mrb[0].mxu0
        %v10642 = vadd.f32 %v10481, %v10641
        %v10643 = vpop.f32.mrb[0].mxu0
        %v10644 = vpop.f32.mrb[0].mxu0
        %v10645 = vadd.f32 %v10484, %v10644
        %v10646 = vpop.f32.mrb[0].mxu0
        %10647 = vmatprep.mubr.bf16.mxu0 %v8118
        %10648 = vmatmul.mubr.bf16.gmra.mrb[0].mxu0 %v8117
        %v10649 = vpop.f32.mrb[0].mxu0
        %v10650 = vadd.f32 %v10489, %v10649
        %v10651 = vpop.f32.mrb[0].mxu0
        %v10652 = vpop.f32.mrb[0].mxu0
        %v10653 = vadd.f32 %v10492, %v10652
        %v10654 = vpop.f32.mrb[0].mxu0
        %10655 = vmatprep.mubr.bf16.mxu0 %v8127
        %10656 = vmatmul.mubr.bf16.gmra.mrb[0].mxu0 %v8126
        %v10657 = vpop.f32.mrb[0].mxu0
        %v10658 = vadd.f32 %v10497, %v10657
        %v10659 = vpop.f32.mrb[0].mxu0
        %v10660 = vpop.f32.mrb[0].mxu0
        %v10661 = vadd.f32 %v10500, %v10660
        %v10662 = vpop.f32.mrb[0].mxu0
        %10663 = vmatprep.mubr.bf16.mxu0 %v8136
        %10664 = vmatmul.mubr.bf16.gmra.mrb[0].mxu0 %v8135
        %v10665 = vpop.f32.mrb[0].mxu0
        %v10666 = vadd.f32 %v10505, %v10665
        %v10667 = vpop.f32.mrb[0].mxu0
        %v10668 = vpop.f32.mrb[0].mxu0
        %v10669 = vadd.f32 %v10508, %v10668
        %v10670 = vpop.f32.mrb[0].mxu0
        %10671 = vmatprep.mubr.bf16.mxu0 %v8145
        %10672 = vmatmul.mubr.bf16.gmra.mrb[0].mxu0 %v8144
        %v10673 = vpop.f32.mrb[0].mxu0
        %v10674 = vadd.f32 %v10513, %v10673
        %v10675 = vpop.f32.mrb[0].mxu0
        %v10676 = vpop.f32.mrb[0].mxu0
        %v10677 = vadd.f32 %v10516, %v10676
        %v10678 = vpop.f32.mrb[0].mxu0
        %10679 = vmatprep.mubr.bf16.mxu0 %v8154
        %10680 = vmatmul.mubr.bf16.gmra.mrb[0].mxu0 %v8153
        %v10681 = vpop.f32.mrb[0].mxu0
        %v10682 = vadd.f32 %v10521, %v10681
        %v10683 = vpop.f32.mrb[0].mxu0
        %v10684 = vpop.f32.mrb[0].mxu0
        %v10685 = vadd.f32 %v10524, %v10684
        %v10686 = vpop.f32.mrb[0].mxu0
        %10687 = vmatprep.mubr.bf16.mxu0 %v8163
        %10688 = vmatmul.mubr.bf16.gmra.mrb[0].mxu0 %v8162
        %v10689 = vpop.f32.mrb[0].mxu0
        %v10690 = vadd.f32 %v10529, %v10689
        %v10691 = vpop.f32.mrb[0].mxu0
        %v10692 = vpop.f32.mrb[0].mxu0
        %v10693 = vadd.f32 %v10532, %v10692
        %v10694 = vpop.f32.mrb[0].mxu0
        %10695 = vmatprep.mubr.bf16.mxu0 %v8172
        %10696 = vmatmul.mubr.bf16.gmra.mrb[0].mxu0 %v8171
        %v10697 = vpop.f32.mrb[0].mxu0
        %v10698 = vadd.f32 %v10537, %v10697
        %v10699 = vpop.f32.mrb[0].mxu0
        %v10700 = vpop.f32.mrb[0].mxu0
        %v10701 = vadd.f32 %v10540, %v10700
        %v10702 = vpop.f32.mrb[0].mxu0
        %10703 = vmatprep.mubr.bf16.mxu0 %v8181
        %10704 = vmatmul.mubr.bf16.gmra.mrb[0].mxu0 %v8180
        %v10705 = vpop.f32.mrb[0].mxu0
        %v10706 = vadd.f32 %v10545, %v10705
        %v10707 = vpop.f32.mrb[0].mxu0
        %v10708 = vpop.f32.mrb[0].mxu0
        %v10709 = vadd.f32 %v10548, %v10708
        %v10710 = vpop.f32.mrb[0].mxu0
        %10711 = vmatprep.mubr.bf16.mxu0 %v8190
        %10712 = vmatmul.mubr.bf16.gmra.mrb[0].mxu0 %v8189
        %v10713 = vpop.f32.mrb[0].mxu0
        %v10714 = vadd.f32 %v10553, %v10713
        %v10715 = vpop.f32.mrb[0].mxu0
        %v10716 = vpop.f32.mrb[0].mxu0
        %v10717 = vadd.f32 %v10556, %v10716
        %v10718 = vpop.f32.mrb[0].mxu0
        %10719 = vmatprep.mubr.bf16.mxu0 %v8199
        %10720 = vmatmul.mubr.bf16.gmra.mrb[0].mxu0 %v8198
        %v10721 = vpop.f32.mrb[0].mxu0
        %v10722 = vadd.f32 %v10561, %v10721
        %v10723 = vpop.f32.mrb[0].mxu0
        %v10724 = vpop.f32.mrb[0].mxu0
        %v10725 = vadd.f32 %v10564, %v10724
        %v10726 = vpop.f32.mrb[0].mxu0
        %10727 = vmatprep.mubr.bf16.mxu0 %v8208
        %10728 = vmatmul.mubr.bf16.gmra.mrb[0].mxu0 %v8207
        %v10729 = vpop.f32.mrb[0].mxu0
        %v10730 = vadd.f32 %v10569, %v10729
        %v10731 = vpop.f32.mrb[0].mxu0
        %v10732 = vpop.f32.mrb[0].mxu0
        %v10733 = vadd.f32 %v10572, %v10732
        %v10734 = vpop.f32.mrb[0].mxu0
        %10735 = vmatprep.mubr.bf16.mxu0 %v8217
        %10736 = vmatmul.mubr.bf16.gmra.mrb[0].mxu0 %v8216
        %v10737 = vpop.f32.mrb[0].mxu0
        %v10738 = vadd.f32 %v10577, %v10737
        %v10739 = vpop.f32.mrb[0].mxu0
        %v10740 = vpop.f32.mrb[0].mxu0
        %v10741 = vadd.f32 %v10580, %v10740
        %v10742 = vpop.f32.mrb[0].mxu0
        %10743 = vdwg.mxu0
        %10744 = vmatprep.subr.bf16.mxu0 0
        %10745 = vmatpush1.bf16.msra.mxu0 %v9732
        %10746 = vmatprep.subr.bf16.mxu0 0
        %10747 = vmatpush1.bf16.msra.mxu0 %v9733
        %10748 = vmatprep.subr.bf16.mxu0 0
        %10749 = vmatpush1.bf16.msra.mxu0 %v9734
        %10750 = vmatprep.subr.bf16.mxu0 0
        %10751 = vmatpush1.bf16.msra.mxu0 %v9735
        %10752 = vmatprep.subr.bf16.mxu0 0
        %10753 = vmatpush1.bf16.msra.mxu0 %v9736
        %10754 = vmatprep.subr.bf16.mxu0 0
        %10755 = vmatpush1.bf16.msra.mxu0 %v9737
        %10756 = vmatprep.subr.bf16.mxu0 0
        %10757 = vmatpush1.bf16.msra.mxu0 %v9738
        %10758 = vmatprep.subr.bf16.mxu0 0
        %10759 = vmatpush1.bf16.msra.mxu0 %v9739
        %10760 = vmatprep.subr.bf16.mxu0 0
        %10761 = vmatpush1.bf16.msra.mxu0 %v9740
        %10762 = vmatprep.subr.bf16.mxu0 0
        %10763 = vmatpush1.bf16.msra.mxu0 %v9741
        %10764 = vmatprep.subr.bf16.mxu0 0
        %10765 = vmatpush1.bf16.msra.mxu0 %v9742
        %10766 = vmatprep.subr.bf16.mxu0 0
        %10767 = vmatpush1.bf16.msra.mxu0 %v9743
        %10768 = vmatprep.subr.bf16.mxu0 0
        %10769 = vmatpush1.bf16.msra.mxu0 %v9744
        %10770 = vmatprep.subr.bf16.mxu0 0
        %10771 = vmatpush1.bf16.msra.mxu0 %v9745
        %10772 = vmatprep.subr.bf16.mxu0 0
        %10773 = vmatpush1.bf16.msra.mxu0 %v9746
        %10774 = vmatprep.subr.bf16.mxu0 0
        %10775 = vmatpush1.bf16.msra.mxu0 %v9747
        %10776 = vmatprep.mubr.bf16.mxu0 %v8084
        %10777 = vmatmul.mubr.bf16.gmra.mrb[0].mxu0 %v8083
        %v10778 = vpop.f32.mrb[0].mxu0
        %v10779 = vadd.f32 %v10618, %v10778
        %v10780 = vpop.f32.mrb[0].mxu0
        %v10781 = vpop.f32.mrb[0].mxu0
        %v10782 = vadd.f32 %v10621, %v10781
        %v10783 = vpop.f32.mrb[0].mxu0
        %10784 = vmatprep.mubr.bf16.mxu0 %v8093
        %10785 = vmatmul.mubr.bf16.gmra.mrb[0].mxu0 %v8092
        %v10786 = vpop.f32.mrb[0].mxu0
        %v10787 = vadd.f32 %v10626, %v10786
        %v10788 = vpop.f32.mrb[0].mxu0
        %v10789 = vpop.f32.mrb[0].mxu0
        %v10790 = vadd.f32 %v10629, %v10789
        %v10791 = vpop.f32.mrb[0].mxu0
        %10792 = vmatprep.mubr.bf16.mxu0 %v8102
        %10793 = vmatmul.mubr.bf16.gmra.mrb[0].mxu0 %v8101
        %v10794 = vpop.f32.mrb[0].mxu0
        %v10795 = vadd.f32 %v10634, %v10794
        %v10796 = vpop.f32.mrb[0].mxu0
        %v10797 = vpop.f32.mrb[0].mxu0
        %v10798 = vadd.f32 %v10637, %v10797
        %v10799 = vpop.f32.mrb[0].mxu0
        %10800 = vmatprep.mubr.bf16.mxu0 %v8111
        %10801 = vmatmul.mubr.bf16.gmra.mrb[0].mxu0 %v8110
        %v10802 = vpop.f32.mrb[0].mxu0
        %v10803 = vadd.f32 %v10642, %v10802
        %v10804 = vpop.f32.mrb[0].mxu0
        %v10805 = vpop.f32.mrb[0].mxu0
        %v10806 = vadd.f32 %v10645, %v10805
        %v10807 = vpop.f32.mrb[0].mxu0
        %10808 = vmatprep.mubr.bf16.mxu0 %v8120
        %10809 = vmatmul.mubr.bf16.gmra.mrb[0].mxu0 %v8119
        %v10810 = vpop.f32.mrb[0].mxu0
        %v10811 = vadd.f32 %v10650, %v10810
        %v10812 = vpop.f32.mrb[0].mxu0
        %v10813 = vpop.f32.mrb[0].mxu0
        %v10814 = vadd.f32 %v10653, %v10813
        %v10815 = vpop.f32.mrb[0].mxu0
        %10816 = vmatprep.mubr.bf16.mxu0 %v8129
        %10817 = vmatmul.mubr.bf16.gmra.mrb[0].mxu0 %v8128
        %v10818 = vpop.f32.mrb[0].mxu0
        %v10819 = vadd.f32 %v10658, %v10818
        %v10820 = vpop.f32.mrb[0].mxu0
        %v10821 = vpop.f32.mrb[0].mxu0
        %v10822 = vadd.f32 %v10661, %v10821
        %v10823 = vpop.f32.mrb[0].mxu0
        %10824 = vmatprep.mubr.bf16.mxu0 %v8138
        %10825 = vmatmul.mubr.bf16.gmra.mrb[0].mxu0 %v8137
        %v10826 = vpop.f32.mrb[0].mxu0
        %v10827 = vadd.f32 %v10666, %v10826
        %v10828 = vpop.f32.mrb[0].mxu0
        %v10829 = vpop.f32.mrb[0].mxu0
        %v10830 = vadd.f32 %v10669, %v10829
        %v10831 = vpop.f32.mrb[0].mxu0
        %10832 = vmatprep.mubr.bf16.mxu0 %v8147
        %10833 = vmatmul.mubr.bf16.gmra.mrb[0].mxu0 %v8146
        %v10834 = vpop.f32.mrb[0].mxu0
        %v10835 = vadd.f32 %v10674, %v10834
        %v10836 = vpop.f32.mrb[0].mxu0
        %v10837 = vpop.f32.mrb[0].mxu0
        %v10838 = vadd.f32 %v10677, %v10837
        %v10839 = vpop.f32.mrb[0].mxu0
        %10840 = vmatprep.mubr.bf16.mxu0 %v8156
        %10841 = vmatmul.mubr.bf16.gmra.mrb[0].mxu0 %v8155
        %v10842 = vpop.f32.mrb[0].mxu0
        %v10843 = vadd.f32 %v10682, %v10842
        %v10844 = vpop.f32.mrb[0].mxu0
        %v10845 = vpop.f32.mrb[0].mxu0
        %v10846 = vadd.f32 %v10685, %v10845
        %v10847 = vpop.f32.mrb[0].mxu0
        %10848 = vmatprep.mubr.bf16.mxu0 %v8165
        %10849 = vmatmul.mubr.bf16.gmra.mrb[0].mxu0 %v8164
        %v10850 = vpop.f32.mrb[0].mxu0
        %v10851 = vadd.f32 %v10690, %v10850
        %v10852 = vpop.f32.mrb[0].mxu0
        %v10853 = vpop.f32.mrb[0].mxu0
        %v10854 = vadd.f32 %v10693, %v10853
        %v10855 = vpop.f32.mrb[0].mxu0
        %10856 = vmatprep.mubr.bf16.mxu0 %v8174
        %10857 = vmatmul.mubr.bf16.gmra.mrb[0].mxu0 %v8173
        %v10858 = vpop.f32.mrb[0].mxu0
        %v10859 = vadd.f32 %v10698, %v10858
        %v10860 = vpop.f32.mrb[0].mxu0
        %v10861 = vpop.f32.mrb[0].mxu0
        %v10862 = vadd.f32 %v10701, %v10861
        %v10863 = vpop.f32.mrb[0].mxu0
        %10864 = vmatprep.mubr.bf16.mxu0 %v8183
        %10865 = vmatmul.mubr.bf16.gmra.mrb[0].mxu0 %v8182
        %v10866 = vpop.f32.mrb[0].mxu0
        %v10867 = vadd.f32 %v10706, %v10866
        %v10868 = vpop.f32.mrb[0].mxu0
        %v10869 = vpop.f32.mrb[0].mxu0
        %v10870 = vadd.f32 %v10709, %v10869
        %v10871 = vpop.f32.mrb[0].mxu0
        %10872 = vmatprep.mubr.bf16.mxu0 %v8192
        %10873 = vmatmul.mubr.bf16.gmra.mrb[0].mxu0 %v8191
        %v10874 = vpop.f32.mrb[0].mxu0
        %v10875 = vadd.f32 %v10714, %v10874
        %v10876 = vpop.f32.mrb[0].mxu0
        %v10877 = vpop.f32.mrb[0].mxu0
        %v10878 = vadd.f32 %v10717, %v10877
        %v10879 = vpop.f32.mrb[0].mxu0
        %10880 = vmatprep.mubr.bf16.mxu0 %v8201
        %10881 = vmatmul.mubr.bf16.gmra.mrb[0].mxu0 %v8200
        %v10882 = vpop.f32.mrb[0].mxu0
        %v10883 = vadd.f32 %v10722, %v10882
        %v10884 = vpop.f32.mrb[0].mxu0
        %v10885 = vpop.f32.mrb[0].mxu0
        %v10886 = vadd.f32 %v10725, %v10885
        %v10887 = vpop.f32.mrb[0].mxu0
        %10888 = vmatprep.mubr.bf16.mxu0 %v8210
        %10889 = vmatmul.mubr.bf16.gmra.mrb[0].mxu0 %v8209
        %v10890 = vpop.f32.mrb[0].mxu0
        %v10891 = vadd.f32 %v10730, %v10890
        %v10892 = vpop.f32.mrb[0].mxu0
        %v10893 = vpop.f32.mrb[0].mxu0
        %v10894 = vadd.f32 %v10733, %v10893
        %v10895 = vpop.f32.mrb[0].mxu0
        %10896 = vmatprep.mubr.bf16.mxu0 %v8219
        %10897 = vmatmul.mubr.bf16.gmra.mrb[0].mxu0 %v8218
        %v10898 = vpop.f32.mrb[0].mxu0
        %v10899 = vadd.f32 %v10738, %v10898
        %v10900 = vpop.f32.mrb[0].mxu0
        %v10901 = vpop.f32.mrb[0].mxu0
        %v10902 = vadd.f32 %v10741, %v10901
        %v10903 = vpop.f32.mrb[0].mxu0
        %10904 = vdwg.mxu0
        %10905 = vmatprep.subr.bf16.mxu0 0
        %10906 = vmatpush1.bf16.msra.mxu0 %v9748
        %10907 = vmatprep.subr.bf16.mxu0 0
        %10908 = vmatpush1.bf16.msra.mxu0 %v9749
        %10909 = vmatprep.subr.bf16.mxu0 0
        %10910 = vmatpush1.bf16.msra.mxu0 %v9750
        %10911 = vmatprep.subr.bf16.mxu0 0
        %10912 = vmatpush1.bf16.msra.mxu0 %v9751
        %10913 = vmatprep.subr.bf16.mxu0 0
        %10914 = vmatpush1.bf16.msra.mxu0 %v9752
        %10915 = vmatprep.subr.bf16.mxu0 0
        %10916 = vmatpush1.bf16.msra.mxu0 %v9753
        %10917 = vmatprep.subr.bf16.mxu0 0
        %10918 = vmatpush1.bf16.msra.mxu0 %v9754
        %10919 = vmatprep.subr.bf16.mxu0 0
        %10920 = vmatpush1.bf16.msra.mxu0 %v9755
        %10921 = vmatprep.subr.bf16.mxu0 0
        %10922 = vmatpush1.bf16.msra.mxu0 %v9756
        %10923 = vmatprep.subr.bf16.mxu0 0
        %10924 = vmatpush1.bf16.msra.mxu0 %v9757
        %10925 = vmatprep.subr.bf16.mxu0 0
        %10926 = vmatpush1.bf16.msra.mxu0 %v9758
        %10927 = vmatprep.subr.bf16.mxu0 0
        %10928 = vmatpush1.bf16.msra.mxu0 %v9759
        %10929 = vmatprep.subr.bf16.mxu0 0
        %10930 = vmatpush1.bf16.msra.mxu0 %v9760
        %10931 = vmatprep.subr.bf16.mxu0 0
        %10932 = vmatpush1.bf16.msra.mxu0 %v9761
        %10933 = vmatprep.subr.bf16.mxu0 0
        %10934 = vmatpush1.bf16.msra.mxu0 %v9762
        %10935 = vmatprep.subr.bf16.mxu0 0
        %10936 = vmatpush1.bf16.msra.mxu0 %v9763
        %10937 = vmatprep.mubr.bf16.mxu0 %v8086
        %10938 = vmatmul.mubr.bf16.gmra.mrb[0].mxu0 %v8085
        %v10939 = vpop.f32.mrb[0].mxu0
        %v10940 = vadd.f32 %v10779, %v10939
        %v10941 = vpop.f32.mrb[0].mxu0
        %v10942 = vpop.f32.mrb[0].mxu0
        %v10943 = vadd.f32 %v10782, %v10942
        %v10944 = vpop.f32.mrb[0].mxu0
        %10945 = vmatprep.mubr.bf16.mxu0 %v8095
        %10946 = vmatmul.mubr.bf16.gmra.mrb[0].mxu0 %v8094
        %v10947 = vpop.f32.mrb[0].mxu0
        %v10948 = vadd.f32 %v10787, %v10947
        %v10949 = vpop.f32.mrb[0].mxu0
        %v10950 = vpop.f32.mrb[0].mxu0
        %v10951 = vadd.f32 %v10790, %v10950
        %v10952 = vpop.f32.mrb[0].mxu0
        %10953 = vmatprep.mubr.bf16.mxu0 %v8104
        %10954 = vmatmul.mubr.bf16.gmra.mrb[0].mxu0 %v8103
        %v10955 = vpop.f32.mrb[0].mxu0
        %v10956 = vadd.f32 %v10795, %v10955
        %v10957 = vpop.f32.mrb[0].mxu0
        %v10958 = vpop.f32.mrb[0].mxu0
        %v10959 = vadd.f32 %v10798, %v10958
        %v10960 = vpop.f32.mrb[0].mxu0
        %10961 = vmatprep.mubr.bf16.mxu0 %v8113
        %10962 = vmatmul.mubr.bf16.gmra.mrb[0].mxu0 %v8112
        %v10963 = vpop.f32.mrb[0].mxu0
        %v10964 = vadd.f32 %v10803, %v10963
        %v10965 = vpop.f32.mrb[0].mxu0
        %v10966 = vpop.f32.mrb[0].mxu0
        %v10967 = vadd.f32 %v10806, %v10966
        %v10968 = vpop.f32.mrb[0].mxu0
        %10969 = vmatprep.mubr.bf16.mxu0 %v8122
        %10970 = vmatmul.mubr.bf16.gmra.mrb[0].mxu0 %v8121
        %v10971 = vpop.f32.mrb[0].mxu0
        %v10972 = vadd.f32 %v10811, %v10971
        %v10973 = vpop.f32.mrb[0].mxu0
        %v10974 = vpop.f32.mrb[0].mxu0
        %v10975 = vadd.f32 %v10814, %v10974
        %v10976 = vpop.f32.mrb[0].mxu0
        %10977 = vmatprep.mubr.bf16.mxu0 %v8131
        %10978 = vmatmul.mubr.bf16.gmra.mrb[0].mxu0 %v8130
        %v10979 = vpop.f32.mrb[0].mxu0
        %v10980 = vadd.f32 %v10819, %v10979
        %v10981 = vpop.f32.mrb[0].mxu0
        %v10982 = vpop.f32.mrb[0].mxu0
        %v10983 = vadd.f32 %v10822, %v10982
        %v10984 = vpop.f32.mrb[0].mxu0
        %10985 = vmatprep.mubr.bf16.mxu0 %v8140
        %10986 = vmatmul.mubr.bf16.gmra.mrb[0].mxu0 %v8139
        %v10987 = vpop.f32.mrb[0].mxu0
        %v10988 = vadd.f32 %v10827, %v10987
        %v10989 = vpop.f32.mrb[0].mxu0
        %v10990 = vpop.f32.mrb[0].mxu0
        %v10991 = vadd.f32 %v10830, %v10990
        %v10992 = vpop.f32.mrb[0].mxu0
        %10993 = vmatprep.mubr.bf16.mxu0 %v8149
        %10994 = vmatmul.mubr.bf16.gmra.mrb[0].mxu0 %v8148
        %v10995 = vpop.f32.mrb[0].mxu0
        %v10996 = vadd.f32 %v10835, %v10995
        %v10997 = vpop.f32.mrb[0].mxu0
        %v10998 = vpop.f32.mrb[0].mxu0
        %v10999 = vadd.f32 %v10838, %v10998
        %v11000 = vpop.f32.mrb[0].mxu0
        %11001 = vmatprep.mubr.bf16.mxu0 %v8158
        %11002 = vmatmul.mubr.bf16.gmra.mrb[0].mxu0 %v8157
        %v11003 = vpop.f32.mrb[0].mxu0
        %v11004 = vadd.f32 %v10843, %v11003
        %v11005 = vpop.f32.mrb[0].mxu0
        %v11006 = vpop.f32.mrb[0].mxu0
        %v11007 = vadd.f32 %v10846, %v11006
        %v11008 = vpop.f32.mrb[0].mxu0
        %11009 = vmatprep.mubr.bf16.mxu0 %v8167
        %11010 = vmatmul.mubr.bf16.gmra.mrb[0].mxu0 %v8166
        %v11011 = vpop.f32.mrb[0].mxu0
        %v11012 = vadd.f32 %v10851, %v11011
        %v11013 = vpop.f32.mrb[0].mxu0
        %v11014 = vpop.f32.mrb[0].mxu0
        %v11015 = vadd.f32 %v10854, %v11014
        %v11016 = vpop.f32.mrb[0].mxu0
        %11017 = vmatprep.mubr.bf16.mxu0 %v8176
        %11018 = vmatmul.mubr.bf16.gmra.mrb[0].mxu0 %v8175
        %v11019 = vpop.f32.mrb[0].mxu0
        %v11020 = vadd.f32 %v10859, %v11019
        %v11021 = vpop.f32.mrb[0].mxu0
        %v11022 = vpop.f32.mrb[0].mxu0
        %v11023 = vadd.f32 %v10862, %v11022
        %v11024 = vpop.f32.mrb[0].mxu0
        %11025 = vmatprep.mubr.bf16.mxu0 %v8185
        %11026 = vmatmul.mubr.bf16.gmra.mrb[0].mxu0 %v8184
        %v11027 = vpop.f32.mrb[0].mxu0
        %v11028 = vadd.f32 %v10867, %v11027
        %v11029 = vpop.f32.mrb[0].mxu0
        %v11030 = vpop.f32.mrb[0].mxu0
        %v11031 = vadd.f32 %v10870, %v11030
        %v11032 = vpop.f32.mrb[0].mxu0
        %11033 = vmatprep.mubr.bf16.mxu0 %v8194
        %11034 = vmatmul.mubr.bf16.gmra.mrb[0].mxu0 %v8193
        %v11035 = vpop.f32.mrb[0].mxu0
        %v11036 = vadd.f32 %v10875, %v11035
        %v11037 = vpop.f32.mrb[0].mxu0
        %v11038 = vpop.f32.mrb[0].mxu0
        %v11039 = vadd.f32 %v10878, %v11038
        %v11040 = vpop.f32.mrb[0].mxu0
        %11041 = vmatprep.mubr.bf16.mxu0 %v8203
        %11042 = vmatmul.mubr.bf16.gmra.mrb[0].mxu0 %v8202
        %v11043 = vpop.f32.mrb[0].mxu0
        %v11044 = vadd.f32 %v10883, %v11043
        %v11045 = vpop.f32.mrb[0].mxu0
        %v11046 = vpop.f32.mrb[0].mxu0
        %v11047 = vadd.f32 %v10886, %v11046
        %v11048 = vpop.f32.mrb[0].mxu0
        %11049 = vmatprep.mubr.bf16.mxu0 %v8212
        %11050 = vmatmul.mubr.bf16.gmra.mrb[0].mxu0 %v8211
        %v11051 = vpop.f32.mrb[0].mxu0
        %v11052 = vadd.f32 %v10891, %v11051
        %v11053 = vpop.f32.mrb[0].mxu0
        %v11054 = vpop.f32.mrb[0].mxu0
        %v11055 = vadd.f32 %v10894, %v11054
        %v11056 = vpop.f32.mrb[0].mxu0
        %11057 = vmatprep.mubr.bf16.mxu0 %v8221
        %11058 = vmatmul.mubr.bf16.gmra.mrb[0].mxu0 %v8220
        %v11059 = vpop.f32.mrb[0].mxu0
        %v11060 = vadd.f32 %v10899, %v11059
        %v11061 = vpop.f32.mrb[0].mxu0
        %v11062 = vpop.f32.mrb[0].mxu0
        %v11063 = vadd.f32 %v10902, %v11062
        %v11064 = vpop.f32.mrb[0].mxu0
        %11065 = vdwg.mxu0
        %11066 = vmatprep.subr.bf16.mxu0 0
        %11067 = vmatpush1.bf16.msra.mxu0 %v9764
        %11068 = vmatprep.subr.bf16.mxu0 0
        %11069 = vmatpush1.bf16.msra.mxu0 %v9765
        %11070 = vmatprep.subr.bf16.mxu0 0
        %11071 = vmatpush1.bf16.msra.mxu0 %v9766
        %11072 = vmatprep.subr.bf16.mxu0 0
        %11073 = vmatpush1.bf16.msra.mxu0 %v9767
        %11074 = vmatprep.subr.bf16.mxu0 0
        %11075 = vmatpush1.bf16.msra.mxu0 %v9768
        %11076 = vmatprep.subr.bf16.mxu0 0
        %11077 = vmatpush1.bf16.msra.mxu0 %v9769
        %11078 = vmatprep.subr.bf16.mxu0 0
        %11079 = vmatpush1.bf16.msra.mxu0 %v9770
        %11080 = vmatprep.subr.bf16.mxu0 0
        %11081 = vmatpush1.bf16.msra.mxu0 %v9771
        %11082 = vmatprep.subr.bf16.mxu0 0
        %11083 = vmatpush1.bf16.msra.mxu0 %v9772
        %11084 = vmatprep.subr.bf16.mxu0 0
        %11085 = vmatpush1.bf16.msra.mxu0 %v9773
        %11086 = vmatprep.subr.bf16.mxu0 0
        %11087 = vmatpush1.bf16.msra.mxu0 %v9774
        %11088 = vmatprep.subr.bf16.mxu0 0
        %11089 = vmatpush1.bf16.msra.mxu0 %v9775
        %11090 = vmatprep.subr.bf16.mxu0 0
        %11091 = vmatpush1.bf16.msra.mxu0 %v9776
        %11092 = vmatprep.subr.bf16.mxu0 0
        %11093 = vmatpush1.bf16.msra.mxu0 %v9777
        %11094 = vmatprep.subr.bf16.mxu0 0
        %11095 = vmatpush1.bf16.msra.mxu0 %v9778
        %11096 = vmatprep.subr.bf16.mxu0 0
        %11097 = vmatpush1.bf16.msra.mxu0 %v9779
        %11098 = vmatprep.mubr.bf16.mxu0 %v8088
        %11099 = vmatmul.mubr.bf16.gmra.mrb[0].mxu0 %v8087
        %v11100 = vpop.f32.mrb[0].mxu0
        %v11101 = vadd.f32 %v10940, %v11100
        %v11102 = vpop.f32.mrb[0].mxu0
        %v11103 = vpop.f32.mrb[0].mxu0
        %v11104 = vadd.f32 %v10943, %v11103
        %v11105 = vpop.f32.mrb[0].mxu0
        %11106 = vmatprep.mubr.bf16.mxu0 %v8097
        %11107 = vmatmul.mubr.bf16.gmra.mrb[0].mxu0 %v8096
        %v11108 = vpop.f32.mrb[0].mxu0
        %v11109 = vadd.f32 %v10948, %v11108
        %v11110 = vpop.f32.mrb[0].mxu0
        %v11111 = vpop.f32.mrb[0].mxu0
        %v11112 = vadd.f32 %v10951, %v11111
        %v11113 = vpop.f32.mrb[0].mxu0
        %11114 = vmatprep.mubr.bf16.mxu0 %v8106
        %11115 = vmatmul.mubr.bf16.gmra.mrb[0].mxu0 %v8105
        %v11116 = vpop.f32.mrb[0].mxu0
        %v11117 = vadd.f32 %v10956, %v11116
        %v11118 = vpop.f32.mrb[0].mxu0
        %v11119 = vpop.f32.mrb[0].mxu0
        %v11120 = vadd.f32 %v10959, %v11119
        %v11121 = vpop.f32.mrb[0].mxu0
        %11122 = vmatprep.mubr.bf16.mxu0 %v8115
        %11123 = vmatmul.mubr.bf16.gmra.mrb[0].mxu0 %v8114
        %v11124 = vpop.f32.mrb[0].mxu0
        %v11125 = vadd.f32 %v10964, %v11124
        %v11126 = vpop.f32.mrb[0].mxu0
        %v11127 = vpop.f32.mrb[0].mxu0
        %v11128 = vadd.f32 %v10967, %v11127
        %v11129 = vpop.f32.mrb[0].mxu0
        %11130 = vmatprep.mubr.bf16.mxu0 %v8124
        %11131 = vmatmul.mubr.bf16.gmra.mrb[0].mxu0 %v8123
        %v11132 = vpop.f32.mrb[0].mxu0
        %v11133 = vadd.f32 %v10972, %v11132
        %v11134 = vpop.f32.mrb[0].mxu0
        %v11135 = vpop.f32.mrb[0].mxu0
        %v11136 = vadd.f32 %v10975, %v11135
        %v11137 = vpop.f32.mrb[0].mxu0
        %11138 = vmatprep.mubr.bf16.mxu0 %v8133
        %11139 = vmatmul.mubr.bf16.gmra.mrb[0].mxu0 %v8132
        %v11140 = vpop.f32.mrb[0].mxu0
        %v11141 = vadd.f32 %v10980, %v11140
        %v11142 = vpop.f32.mrb[0].mxu0
        %v11143 = vpop.f32.mrb[0].mxu0
        %v11144 = vadd.f32 %v10983, %v11143
        %v11145 = vpop.f32.mrb[0].mxu0
        %11146 = vmatprep.mubr.bf16.mxu0 %v8142
        %11147 = vmatmul.mubr.bf16.gmra.mrb[0].mxu0 %v8141
        %v11148 = vpop.f32.mrb[0].mxu0
        %v11149 = vadd.f32 %v10988, %v11148
        %v11150 = vpop.f32.mrb[0].mxu0
        %v11151 = vpop.f32.mrb[0].mxu0
        %v11152 = vadd.f32 %v10991, %v11151
        %v11153 = vpop.f32.mrb[0].mxu0
        %11154 = vmatprep.mubr.bf16.mxu0 %v8151
        %11155 = vmatmul.mubr.bf16.gmra.mrb[0].mxu0 %v8150
        %v11156 = vpop.f32.mrb[0].mxu0
        %v11157 = vadd.f32 %v10996, %v11156
        %v11158 = vpop.f32.mrb[0].mxu0
        %v11159 = vpop.f32.mrb[0].mxu0
        %v11160 = vadd.f32 %v10999, %v11159
        %v11161 = vpop.f32.mrb[0].mxu0
        %11162 = vmatprep.mubr.bf16.mxu0 %v8160
        %11163 = vmatmul.mubr.bf16.gmra.mrb[0].mxu0 %v8159
        %v11164 = vpop.f32.mrb[0].mxu0
        %v11165 = vadd.f32 %v11004, %v11164
        %v11166 = vpop.f32.mrb[0].mxu0
        %v11167 = vpop.f32.mrb[0].mxu0
        %v11168 = vadd.f32 %v11007, %v11167
        %v11169 = vpop.f32.mrb[0].mxu0
        %11170 = vmatprep.mubr.bf16.mxu0 %v8169
        %11171 = vmatmul.mubr.bf16.gmra.mrb[0].mxu0 %v8168
        %v11172 = vpop.f32.mrb[0].mxu0
        %v11173 = vadd.f32 %v11012, %v11172
        %v11174 = vpop.f32.mrb[0].mxu0
        %v11175 = vpop.f32.mrb[0].mxu0
        %v11176 = vadd.f32 %v11015, %v11175
        %v11177 = vpop.f32.mrb[0].mxu0
        %11178 = vmatprep.mubr.bf16.mxu0 %v8178
        %11179 = vmatmul.mubr.bf16.gmra.mrb[0].mxu0 %v8177
        %v11180 = vpop.f32.mrb[0].mxu0
        %v11181 = vadd.f32 %v11020, %v11180
        %v11182 = vpop.f32.mrb[0].mxu0
        %v11183 = vpop.f32.mrb[0].mxu0
        %v11184 = vadd.f32 %v11023, %v11183
        %v11185 = vpop.f32.mrb[0].mxu0
        %11186 = vmatprep.mubr.bf16.mxu0 %v8187
        %11187 = vmatmul.mubr.bf16.gmra.mrb[0].mxu0 %v8186
        %v11188 = vpop.f32.mrb[0].mxu0
        %v11189 = vadd.f32 %v11028, %v11188
        %v11190 = vpop.f32.mrb[0].mxu0
        %v11191 = vpop.f32.mrb[0].mxu0
        %v11192 = vadd.f32 %v11031, %v11191
        %v11193 = vpop.f32.mrb[0].mxu0
        %11194 = vmatprep.mubr.bf16.mxu0 %v8196
        %11195 = vmatmul.mubr.bf16.gmra.mrb[0].mxu0 %v8195
        %v11196 = vpop.f32.mrb[0].mxu0
        %v11197 = vadd.f32 %v11036, %v11196
        %v11198 = vpop.f32.mrb[0].mxu0
        %v11199 = vpop.f32.mrb[0].mxu0
        %v11200 = vadd.f32 %v11039, %v11199
        %v11201 = vpop.f32.mrb[0].mxu0
        %11202 = vmatprep.mubr.bf16.mxu0 %v8205
        %11203 = vmatmul.mubr.bf16.gmra.mrb[0].mxu0 %v8204
        %v11204 = vpop.f32.mrb[0].mxu0
        %v11205 = vadd.f32 %v11044, %v11204
        %v11206 = vpop.f32.mrb[0].mxu0
        %v11207 = vpop.f32.mrb[0].mxu0
        %v11208 = vadd.f32 %v11047, %v11207
        %v11209 = vpop.f32.mrb[0].mxu0
        %11210 = vmatprep.mubr.bf16.mxu0 %v8214
        %11211 = vmatmul.mubr.bf16.gmra.mrb[0].mxu0 %v8213
        %v11212 = vpop.f32.mrb[0].mxu0
        %v11213 = vadd.f32 %v11052, %v11212
        %v11214 = vpop.f32.mrb[0].mxu0
        %v11215 = vpop.f32.mrb[0].mxu0
        %v11216 = vadd.f32 %v11055, %v11215
        %v11217 = vpop.f32.mrb[0].mxu0
        %11218 = vmatprep.mubr.bf16.mxu0 %v8223
        %11219 = vmatmul.mubr.bf16.gmra.mrb[0].mxu0 %v8222
        %v11220 = vpop.f32.mrb[0].mxu0
        %v11221 = vadd.f32 %v11060, %v11220
        %v11222 = vpop.f32.mrb[0].mxu0
        %v11223 = vpop.f32.mrb[0].mxu0
        %v11224 = vadd.f32 %v11063, %v11223
        %v11225 = vpop.f32.mrb[0].mxu0
        %11226 = vdwg.mxu0
        %11227 = vmatprep.subr.bf16.mxu0 0
        %11228 = vmatpush1.bf16.msra.mxu0 %v9780
        %11229 = vmatprep.subr.bf16.mxu0 0
        %11230 = vmatpush1.bf16.msra.mxu0 %v9781
        %11231 = vmatprep.subr.bf16.mxu0 0
        %11232 = vmatpush1.bf16.msra.mxu0 %v9782
        %11233 = vmatprep.subr.bf16.mxu0 0
        %11234 = vmatpush1.bf16.msra.mxu0 %v9783
        %11235 = vmatprep.subr.bf16.mxu0 0
        %11236 = vmatpush1.bf16.msra.mxu0 %v9784
        %11237 = vmatprep.subr.bf16.mxu0 0
        %11238 = vmatpush1.bf16.msra.mxu0 %v9785
        %11239 = vmatprep.subr.bf16.mxu0 0
        %11240 = vmatpush1.bf16.msra.mxu0 %v9786
        %11241 = vmatprep.subr.bf16.mxu0 0
        %11242 = vmatpush1.bf16.msra.mxu0 %v9787
        %11243 = vmatprep.subr.bf16.mxu0 0
        %11244 = vmatpush1.bf16.msra.mxu0 %v9788
        %11245 = vmatprep.subr.bf16.mxu0 0
        %11246 = vmatpush1.bf16.msra.mxu0 %v9789
        %11247 = vmatprep.subr.bf16.mxu0 0
        %11248 = vmatpush1.bf16.msra.mxu0 %v9790
        %11249 = vmatprep.subr.bf16.mxu0 0
        %11250 = vmatpush1.bf16.msra.mxu0 %v9791
        %11251 = vmatprep.subr.bf16.mxu0 0
        %11252 = vmatpush1.bf16.msra.mxu0 %v9792
        %11253 = vmatprep.subr.bf16.mxu0 0
        %11254 = vmatpush1.bf16.msra.mxu0 %v9793
        %11255 = vmatprep.subr.bf16.mxu0 0
        %11256 = vmatpush1.bf16.msra.mxu0 %v9794
        %11257 = vmatprep.subr.bf16.mxu0 0
        %11258 = vmatpush1.bf16.msra.mxu0 %v9795
        %11259 = vmatprep.mubr.bf16.mxu0 %v8090
        %11260 = vmatmul.mubr.bf16.gmra.mrb[0].mxu0 %v8089
        %v11261 = vpop.f32.mrb[0].mxu0
        %v11262 = vadd.f32 %v11101, %v11261
        %v11263 = vpop.f32.mrb[0].mxu0
        %v11264 = vpop.f32.mrb[0].mxu0
        %v11265 = vadd.f32 %v11104, %v11264
        %v11266 = vpop.f32.mrb[0].mxu0
        %11267 = vmatprep.mubr.bf16.mxu0 %v8099
        %11268 = vmatmul.mubr.bf16.gmra.mrb[0].mxu0 %v8098
        %v11269 = vpop.f32.mrb[0].mxu0
        %v11270 = vadd.f32 %v11109, %v11269
        %v11271 = vpop.f32.mrb[0].mxu0
        %v11272 = vpop.f32.mrb[0].mxu0
        %v11273 = vadd.f32 %v11112, %v11272
        %v11274 = vpop.f32.mrb[0].mxu0
        %11275 = vmatprep.mubr.bf16.mxu0 %v8108
        %11276 = vmatmul.mubr.bf16.gmra.mrb[0].mxu0 %v8107
        %v11277 = vpop.f32.mrb[0].mxu0
        %v11278 = vadd.f32 %v11117, %v11277
        %v11279 = vpop.f32.mrb[0].mxu0
        %v11280 = vpop.f32.mrb[0].mxu0
        %v11281 = vadd.f32 %v11120, %v11280
        %v11282 = vpop.f32.mrb[0].mxu0
        %11283 = vmatprep.mubr.bf16.mxu0 %v8117
        %11284 = vmatmul.mubr.bf16.gmra.mrb[0].mxu0 %v8116
        %v11285 = vpop.f32.mrb[0].mxu0
        %v11286 = vadd.f32 %v11125, %v11285
        %v11287 = vpop.f32.mrb[0].mxu0
        %v11288 = vpop.f32.mrb[0].mxu0
        %v11289 = vadd.f32 %v11128, %v11288
        %v11290 = vpop.f32.mrb[0].mxu0
        %11291 = vmatprep.mubr.bf16.mxu0 %v8126
        %11292 = vmatmul.mubr.bf16.gmra.mrb[0].mxu0 %v8125
        %v11293 = vpop.f32.mrb[0].mxu0
        %v11294 = vadd.f32 %v11133, %v11293
        %v11295 = vpop.f32.mrb[0].mxu0
        %v11296 = vpop.f32.mrb[0].mxu0
        %v11297 = vadd.f32 %v11136, %v11296
        %v11298 = vpop.f32.mrb[0].mxu0
        %11299 = vmatprep.mubr.bf16.mxu0 %v8135
        %11300 = vmatmul.mubr.bf16.gmra.mrb[0].mxu0 %v8134
        %v11301 = vpop.f32.mrb[0].mxu0
        %v11302 = vadd.f32 %v11141, %v11301
        %v11303 = vpop.f32.mrb[0].mxu0
        %v11304 = vpop.f32.mrb[0].mxu0
        %v11305 = vadd.f32 %v11144, %v11304
        %v11306 = vpop.f32.mrb[0].mxu0
        %11307 = vmatprep.mubr.bf16.mxu0 %v8144
        %11308 = vmatmul.mubr.bf16.gmra.mrb[0].mxu0 %v8143
        %v11309 = vpop.f32.mrb[0].mxu0
        %v11310 = vadd.f32 %v11149, %v11309
        %v11311 = vpop.f32.mrb[0].mxu0
        %v11312 = vpop.f32.mrb[0].mxu0
        %v11313 = vadd.f32 %v11152, %v11312
        %v11314 = vpop.f32.mrb[0].mxu0
        %11315 = vmatprep.mubr.bf16.mxu0 %v8153
        %11316 = vmatmul.mubr.bf16.gmra.mrb[0].mxu0 %v8152
        %v11317 = vpop.f32.mrb[0].mxu0
        %v11318 = vadd.f32 %v11157, %v11317
        %v11319 = vpop.f32.mrb[0].mxu0
        %v11320 = vpop.f32.mrb[0].mxu0
        %v11321 = vadd.f32 %v11160, %v11320
        %v11322 = vpop.f32.mrb[0].mxu0
        %11323 = vmatprep.mubr.bf16.mxu0 %v8162
        %11324 = vmatmul.mubr.bf16.gmra.mrb[0].mxu0 %v8161
        %v11325 = vpop.f32.mrb[0].mxu0
        %v11326 = vadd.f32 %v11165, %v11325
        %v11327 = vpop.f32.mrb[0].mxu0
        %v11328 = vpop.f32.mrb[0].mxu0
        %v11329 = vadd.f32 %v11168, %v11328
        %v11330 = vpop.f32.mrb[0].mxu0
        %11331 = vmatprep.mubr.bf16.mxu0 %v8171
        %11332 = vmatmul.mubr.bf16.gmra.mrb[0].mxu0 %v8170
        %v11333 = vpop.f32.mrb[0].mxu0
        %v11334 = vadd.f32 %v11173, %v11333
        %v11335 = vpop.f32.mrb[0].mxu0
        %v11336 = vpop.f32.mrb[0].mxu0
        %v11337 = vadd.f32 %v11176, %v11336
        %v11338 = vpop.f32.mrb[0].mxu0
        %11339 = vmatprep.mubr.bf16.mxu0 %v8180
        %11340 = vmatmul.mubr.bf16.gmra.mrb[0].mxu0 %v8179
        %v11341 = vpop.f32.mrb[0].mxu0
        %v11342 = vadd.f32 %v11181, %v11341
        %v11343 = vpop.f32.mrb[0].mxu0
        %v11344 = vpop.f32.mrb[0].mxu0
        %v11345 = vadd.f32 %v11184, %v11344
        %v11346 = vpop.f32.mrb[0].mxu0
        %11347 = vmatprep.mubr.bf16.mxu0 %v8189
        %11348 = vmatmul.mubr.bf16.gmra.mrb[0].mxu0 %v8188
        %v11349 = vpop.f32.mrb[0].mxu0
        %v11350 = vadd.f32 %v11189, %v11349
        %v11351 = vpop.f32.mrb[0].mxu0
        %v11352 = vpop.f32.mrb[0].mxu0
        %v11353 = vadd.f32 %v11192, %v11352
        %v11354 = vpop.f32.mrb[0].mxu0
        %11355 = vmatprep.mubr.bf16.mxu0 %v8198
        %11356 = vmatmul.mubr.bf16.gmra.mrb[0].mxu0 %v8197
        %v11357 = vpop.f32.mrb[0].mxu0
        %v11358 = vadd.f32 %v11197, %v11357
        %v11359 = vpop.f32.mrb[0].mxu0
        %v11360 = vpop.f32.mrb[0].mxu0
        %v11361 = vadd.f32 %v11200, %v11360
        %v11362 = vpop.f32.mrb[0].mxu0
        %11363 = vmatprep.mubr.bf16.mxu0 %v8207
        %11364 = vmatmul.mubr.bf16.gmra.mrb[0].mxu0 %v8206
        %v11365 = vpop.f32.mrb[0].mxu0
        %v11366 = vadd.f32 %v11205, %v11365
        %v11367 = vpop.f32.mrb[0].mxu0
        %v11368 = vpop.f32.mrb[0].mxu0
        %v11369 = vadd.f32 %v11208, %v11368
        %v11370 = vpop.f32.mrb[0].mxu0
        %11371 = vmatprep.mubr.bf16.mxu0 %v8216
        %11372 = vmatmul.mubr.bf16.gmra.mrb[0].mxu0 %v8215
        %v11373 = vpop.f32.mrb[0].mxu0
        %v11374 = vadd.f32 %v11213, %v11373
        %v11375 = vpop.f32.mrb[0].mxu0
        %v11376 = vpop.f32.mrb[0].mxu0
        %v11377 = vadd.f32 %v11216, %v11376
        %v11378 = vpop.f32.mrb[0].mxu0
        %11379 = vmatprep.mubr.bf16.mxu0 %v8225
        %11380 = vmatmul.mubr.bf16.gmra.mrb[0].mxu0 %v8224
        %v11381 = vpop.f32.mrb[0].mxu0
        %v11382 = vadd.f32 %v11221, %v11381
        %v11383 = vpop.f32.mrb[0].mxu0
        %v11384 = vpop.f32.mrb[0].mxu0
        %v11385 = vadd.f32 %v11224, %v11384
        %v11386 = vpop.f32.mrb[0].mxu0
        %11387 = vdwg.mxu0
        %11388 = vmatprep.subr.bf16.mxu0 0
        %11389 = vmatpush1.bf16.msra.mxu0 %v9796
        %11390 = vmatprep.subr.bf16.mxu0 0
        %11391 = vmatpush1.bf16.msra.mxu0 %v9797
        %11392 = vmatprep.subr.bf16.mxu0 0
        %11393 = vmatpush1.bf16.msra.mxu0 %v9798
        %11394 = vmatprep.subr.bf16.mxu0 0
        %11395 = vmatpush1.bf16.msra.mxu0 %v9799
        %11396 = vmatprep.subr.bf16.mxu0 0
        %11397 = vmatpush1.bf16.msra.mxu0 %v9800
        %11398 = vmatprep.subr.bf16.mxu0 0
        %11399 = vmatpush1.bf16.msra.mxu0 %v9801
        %11400 = vmatprep.subr.bf16.mxu0 0
        %11401 = vmatpush1.bf16.msra.mxu0 %v9802
        %11402 = vmatprep.subr.bf16.mxu0 0
        %11403 = vmatpush1.bf16.msra.mxu0 %v9803
        %11404 = vmatprep.subr.bf16.mxu0 0
        %11405 = vmatpush1.bf16.msra.mxu0 %v9804
        %11406 = vmatprep.subr.bf16.mxu0 0
        %11407 = vmatpush1.bf16.msra.mxu0 %v9805
        %11408 = vmatprep.subr.bf16.mxu0 0
        %11409 = vmatpush1.bf16.msra.mxu0 %v9806
        %11410 = vmatprep.subr.bf16.mxu0 0
        %11411 = vmatpush1.bf16.msra.mxu0 %v9807
        %11412 = vmatprep.subr.bf16.mxu0 0
        %11413 = vmatpush1.bf16.msra.mxu0 %v9808
        %11414 = vmatprep.subr.bf16.mxu0 0
        %11415 = vmatpush1.bf16.msra.mxu0 %v9809
        %11416 = vmatprep.subr.bf16.mxu0 0
        %11417 = vmatpush1.bf16.msra.mxu0 %v9810
        %11418 = vmatprep.subr.bf16.mxu0 0
        %11419 = vmatpush1.bf16.msra.mxu0 %v9811
        %11420 = vmatprep.mubr.bf16.mxu0 %v8092
        %11421 = vmatmul.mubr.bf16.gmra.mrb[0].mxu0 %v8091
        %v11422 = vpop.f32.mrb[0].mxu0
        %v11423 = vadd.f32 %v11262, %v11422
        %v11424 = vpop.f32.mrb[0].mxu0
        %v11425 = vpop.f32.mrb[0].mxu0
        %v11426 = vadd.f32 %v11265, %v11425
        %v11427 = vpop.f32.mrb[0].mxu0
        %11428 = vmatprep.mubr.bf16.mxu0 %v8101
        %11429 = vmatmul.mubr.bf16.gmra.mrb[0].mxu0 %v8100
        %v11430 = vpop.f32.mrb[0].mxu0
        %v11431 = vadd.f32 %v11270, %v11430
        %v11432 = vpop.f32.mrb[0].mxu0
        %v11433 = vpop.f32.mrb[0].mxu0
        %v11434 = vadd.f32 %v11273, %v11433
        %v11435 = vpop.f32.mrb[0].mxu0
        %11436 = vmatprep.mubr.bf16.mxu0 %v8110
        %11437 = vmatmul.mubr.bf16.gmra.mrb[0].mxu0 %v8109
        %v11438 = vpop.f32.mrb[0].mxu0
        %v11439 = vadd.f32 %v11278, %v11438
        %v11440 = vpop.f32.mrb[0].mxu0
        %v11441 = vpop.f32.mrb[0].mxu0
        %v11442 = vadd.f32 %v11281, %v11441
        %v11443 = vpop.f32.mrb[0].mxu0
        %11444 = vmatprep.mubr.bf16.mxu0 %v8119
        %11445 = vmatmul.mubr.bf16.gmra.mrb[0].mxu0 %v8118
        %v11446 = vpop.f32.mrb[0].mxu0
        %v11447 = vadd.f32 %v11286, %v11446
        %v11448 = vpop.f32.mrb[0].mxu0
        %v11449 = vpop.f32.mrb[0].mxu0
        %v11450 = vadd.f32 %v11289, %v11449
        %v11451 = vpop.f32.mrb[0].mxu0
        %11452 = vmatprep.mubr.bf16.mxu0 %v8128
        %11453 = vmatmul.mubr.bf16.gmra.mrb[0].mxu0 %v8127
        %v11454 = vpop.f32.mrb[0].mxu0
        %v11455 = vadd.f32 %v11294, %v11454
        %v11456 = vpop.f32.mrb[0].mxu0
        %v11457 = vpop.f32.mrb[0].mxu0
        %v11458 = vadd.f32 %v11297, %v11457
        %v11459 = vpop.f32.mrb[0].mxu0
        %11460 = vmatprep.mubr.bf16.mxu0 %v8137
        %11461 = vmatmul.mubr.bf16.gmra.mrb[0].mxu0 %v8136
        %v11462 = vpop.f32.mrb[0].mxu0
        %v11463 = vadd.f32 %v11302, %v11462
        %v11464 = vpop.f32.mrb[0].mxu0
        %v11465 = vpop.f32.mrb[0].mxu0
        %v11466 = vadd.f32 %v11305, %v11465
        %v11467 = vpop.f32.mrb[0].mxu0
        %11468 = vmatprep.mubr.bf16.mxu0 %v8146
        %11469 = vmatmul.mubr.bf16.gmra.mrb[0].mxu0 %v8145
        %v11470 = vpop.f32.mrb[0].mxu0
        %v11471 = vadd.f32 %v11310, %v11470
        %v11472 = vpop.f32.mrb[0].mxu0
        %v11473 = vpop.f32.mrb[0].mxu0
        %v11474 = vadd.f32 %v11313, %v11473
        %v11475 = vpop.f32.mrb[0].mxu0
        %11476 = vmatprep.mubr.bf16.mxu0 %v8155
        %11477 = vmatmul.mubr.bf16.gmra.mrb[0].mxu0 %v8154
        %v11478 = vpop.f32.mrb[0].mxu0
        %v11479 = vadd.f32 %v11318, %v11478
        %v11480 = vpop.f32.mrb[0].mxu0
        %v11481 = vpop.f32.mrb[0].mxu0
        %v11482 = vadd.f32 %v11321, %v11481
        %v11483 = vpop.f32.mrb[0].mxu0
        %11484 = vmatprep.mubr.bf16.mxu0 %v8164
        %11485 = vmatmul.mubr.bf16.gmra.mrb[0].mxu0 %v8163
        %v11486 = vpop.f32.mrb[0].mxu0
        %v11487 = vadd.f32 %v11326, %v11486
        %v11488 = vpop.f32.mrb[0].mxu0
        %v11489 = vpop.f32.mrb[0].mxu0
        %v11490 = vadd.f32 %v11329, %v11489
        %v11491 = vpop.f32.mrb[0].mxu0
        %11492 = vmatprep.mubr.bf16.mxu0 %v8173
        %11493 = vmatmul.mubr.bf16.gmra.mrb[0].mxu0 %v8172
        %v11494 = vpop.f32.mrb[0].mxu0
        %v11495 = vadd.f32 %v11334, %v11494
        %v11496 = vpop.f32.mrb[0].mxu0
        %v11497 = vpop.f32.mrb[0].mxu0
        %v11498 = vadd.f32 %v11337, %v11497
        %v11499 = vpop.f32.mrb[0].mxu0
        %11500 = vmatprep.mubr.bf16.mxu0 %v8182
        %11501 = vmatmul.mubr.bf16.gmra.mrb[0].mxu0 %v8181
        %v11502 = vpop.f32.mrb[0].mxu0
        %v11503 = vadd.f32 %v11342, %v11502
        %v11504 = vpop.f32.mrb[0].mxu0
        %v11505 = vpop.f32.mrb[0].mxu0
        %v11506 = vadd.f32 %v11345, %v11505
        %v11507 = vpop.f32.mrb[0].mxu0
        %11508 = vmatprep.mubr.bf16.mxu0 %v8191
        %11509 = vmatmul.mubr.bf16.gmra.mrb[0].mxu0 %v8190
        %v11510 = vpop.f32.mrb[0].mxu0
        %v11511 = vadd.f32 %v11350, %v11510
        %v11512 = vpop.f32.mrb[0].mxu0
        %v11513 = vpop.f32.mrb[0].mxu0
        %v11514 = vadd.f32 %v11353, %v11513
        %v11515 = vpop.f32.mrb[0].mxu0
        %11516 = vmatprep.mubr.bf16.mxu0 %v8200
        %11517 = vmatmul.mubr.bf16.gmra.mrb[0].mxu0 %v8199
        %v11518 = vpop.f32.mrb[0].mxu0
        %v11519 = vadd.f32 %v11358, %v11518
        %v11520 = vpop.f32.mrb[0].mxu0
        %v11521 = vpop.f32.mrb[0].mxu0
        %v11522 = vadd.f32 %v11361, %v11521
        %v11523 = vpop.f32.mrb[0].mxu0
        %11524 = vmatprep.mubr.bf16.mxu0 %v8209
        %11525 = vmatmul.mubr.bf16.gmra.mrb[0].mxu0 %v8208
        %v11526 = vpop.f32.mrb[0].mxu0
        %v11527 = vadd.f32 %v11366, %v11526
        %v11528 = vpop.f32.mrb[0].mxu0
        %v11529 = vpop.f32.mrb[0].mxu0
        %v11530 = vadd.f32 %v11369, %v11529
        %v11531 = vpop.f32.mrb[0].mxu0
        %11532 = vmatprep.mubr.bf16.mxu0 %v8218
        %11533 = vmatmul.mubr.bf16.gmra.mrb[0].mxu0 %v8217
        %v11534 = vpop.f32.mrb[0].mxu0
        %v11535 = vadd.f32 %v11374, %v11534
        %v11536 = vpop.f32.mrb[0].mxu0
        %v11537 = vpop.f32.mrb[0].mxu0
        %v11538 = vadd.f32 %v11377, %v11537
        %v11539 = vpop.f32.mrb[0].mxu0
        %11540 = vmatprep.mubr.bf16.mxu0 %v8227
        %11541 = vmatmul.mubr.bf16.gmra.mrb[0].mxu0 %v8226
        %v11542 = vpop.f32.mrb[0].mxu0
        %v11543 = vadd.f32 %v11382, %v11542
        %v11544 = vpop.f32.mrb[0].mxu0
        %v11545 = vpop.f32.mrb[0].mxu0
        %v11546 = vadd.f32 %v11385, %v11545
        %v11547 = vpop.f32.mrb[0].mxu0
        %11548 = vdwg.mxu0
        %11549 = vmatprep.subr.bf16.mxu0 0
        %11550 = vmatpush1.bf16.msra.mxu0 %v9812
        %11551 = vmatprep.subr.bf16.mxu0 0
        %11552 = vmatpush1.bf16.msra.mxu0 %v9813
        %11553 = vmatprep.subr.bf16.mxu0 0
        %11554 = vmatpush1.bf16.msra.mxu0 %v9814
        %11555 = vmatprep.subr.bf16.mxu0 0
        %11556 = vmatpush1.bf16.msra.mxu0 %v9815
        %11557 = vmatprep.subr.bf16.mxu0 0
        %11558 = vmatpush1.bf16.msra.mxu0 %v9816
        %11559 = vmatprep.subr.bf16.mxu0 0
        %11560 = vmatpush1.bf16.msra.mxu0 %v9817
        %11561 = vmatprep.subr.bf16.mxu0 0
        %11562 = vmatpush1.bf16.msra.mxu0 %v9818
        %11563 = vmatprep.subr.bf16.mxu0 0
        %11564 = vmatpush1.bf16.msra.mxu0 %v9819
        %11565 = vmatprep.subr.bf16.mxu0 0
        %11566 = vmatpush1.bf16.msra.mxu0 %v9820
        %11567 = vmatprep.subr.bf16.mxu0 0
        %11568 = vmatpush1.bf16.msra.mxu0 %v9821
        %11569 = vmatprep.subr.bf16.mxu0 0
        %11570 = vmatpush1.bf16.msra.mxu0 %v9822
        %11571 = vmatprep.subr.bf16.mxu0 0
        %11572 = vmatpush1.bf16.msra.mxu0 %v9823
        %11573 = vmatprep.subr.bf16.mxu0 0
        %11574 = vmatpush1.bf16.msra.mxu0 %v9824
        %11575 = vmatprep.subr.bf16.mxu0 0
        %11576 = vmatpush1.bf16.msra.mxu0 %v9825
        %11577 = vmatprep.subr.bf16.mxu0 0
        %11578 = vmatpush1.bf16.msra.mxu0 %v9826
        %11579 = vmatprep.subr.bf16.mxu0 0
        %11580 = vmatpush1.bf16.msra.mxu0 %v9827
        %11581 = vmatprep.mubr.bf16.mxu0 %v8229
        %11582 = vmatmul.mubr.bf16.gmra.mrb[0].mxu0 %v8228
        %v11583 = vpop.f32.mrb[0].mxu0
        %v11584 = vadd.f32 %v11423, %v11583
        %v11585 = vpop.f32.mrb[0].mxu0
        %v11586 = vpop.f32.mrb[0].mxu0
        %v11587 = vadd.f32 %v11426, %v11586
        %v11588 = vpop.f32.mrb[0].mxu0
        %11589 = vmatprep.mubr.bf16.mxu0 %v8238
        %11590 = vmatmul.mubr.bf16.gmra.mrb[0].mxu0 %v8237
        %v11591 = vpop.f32.mrb[0].mxu0
        %v11592 = vadd.f32 %v11431, %v11591
        %v11593 = vpop.f32.mrb[0].mxu0
        %v11594 = vpop.f32.mrb[0].mxu0
        %v11595 = vadd.f32 %v11434, %v11594
        %v11596 = vpop.f32.mrb[0].mxu0
        %11597 = vmatprep.mubr.bf16.mxu0 %v8247
        %11598 = vmatmul.mubr.bf16.gmra.mrb[0].mxu0 %v8246
        %v11599 = vpop.f32.mrb[0].mxu0
        %v11600 = vadd.f32 %v11439, %v11599
        %v11601 = vpop.f32.mrb[0].mxu0
        %v11602 = vpop.f32.mrb[0].mxu0
        %v11603 = vadd.f32 %v11442, %v11602
        %v11604 = vpop.f32.mrb[0].mxu0
        %11605 = vmatprep.mubr.bf16.mxu0 %v8256
        %11606 = vmatmul.mubr.bf16.gmra.mrb[0].mxu0 %v8255
        %v11607 = vpop.f32.mrb[0].mxu0
        %v11608 = vadd.f32 %v11447, %v11607
        %v11609 = vpop.f32.mrb[0].mxu0
        %v11610 = vpop.f32.mrb[0].mxu0
        %v11611 = vadd.f32 %v11450, %v11610
        %v11612 = vpop.f32.mrb[0].mxu0
        %11613 = vmatprep.mubr.bf16.mxu0 %v8265
        %11614 = vmatmul.mubr.bf16.gmra.mrb[0].mxu0 %v8264
        %v11615 = vpop.f32.mrb[0].mxu0
        %v11616 = vadd.f32 %v11455, %v11615
        %v11617 = vpop.f32.mrb[0].mxu0
        %v11618 = vpop.f32.mrb[0].mxu0
        %v11619 = vadd.f32 %v11458, %v11618
        %v11620 = vpop.f32.mrb[0].mxu0
        %11621 = vmatprep.mubr.bf16.mxu0 %v8274
        %11622 = vmatmul.mubr.bf16.gmra.mrb[0].mxu0 %v8273
        %v11623 = vpop.f32.mrb[0].mxu0
        %v11624 = vadd.f32 %v11463, %v11623
        %v11625 = vpop.f32.mrb[0].mxu0
        %v11626 = vpop.f32.mrb[0].mxu0
        %v11627 = vadd.f32 %v11466, %v11626
        %v11628 = vpop.f32.mrb[0].mxu0
        %11629 = vmatprep.mubr.bf16.mxu0 %v8283
        %11630 = vmatmul.mubr.bf16.gmra.mrb[0].mxu0 %v8282
        %v11631 = vpop.f32.mrb[0].mxu0
        %v11632 = vadd.f32 %v11471, %v11631
        %v11633 = vpop.f32.mrb[0].mxu0
        %v11634 = vpop.f32.mrb[0].mxu0
        %v11635 = vadd.f32 %v11474, %v11634
        %v11636 = vpop.f32.mrb[0].mxu0
        %11637 = vmatprep.mubr.bf16.mxu0 %v8292
        %11638 = vmatmul.mubr.bf16.gmra.mrb[0].mxu0 %v8291
        %v11639 = vpop.f32.mrb[0].mxu0
        %v11640 = vadd.f32 %v11479, %v11639
        %v11641 = vpop.f32.mrb[0].mxu0
        %v11642 = vpop.f32.mrb[0].mxu0
        %v11643 = vadd.f32 %v11482, %v11642
        %v11644 = vpop.f32.mrb[0].mxu0
        %11645 = vmatprep.mubr.bf16.mxu0 %v8301
        %11646 = vmatmul.mubr.bf16.gmra.mrb[0].mxu0 %v8300
        %v11647 = vpop.f32.mrb[0].mxu0
        %v11648 = vadd.f32 %v11487, %v11647
        %v11649 = vpop.f32.mrb[0].mxu0
        %v11650 = vpop.f32.mrb[0].mxu0
        %v11651 = vadd.f32 %v11490, %v11650
        %v11652 = vpop.f32.mrb[0].mxu0
        %11653 = vmatprep.mubr.bf16.mxu0 %v8310
        %11654 = vmatmul.mubr.bf16.gmra.mrb[0].mxu0 %v8309
        %v11655 = vpop.f32.mrb[0].mxu0
        %v11656 = vadd.f32 %v11495, %v11655
        %v11657 = vpop.f32.mrb[0].mxu0
        %v11658 = vpop.f32.mrb[0].mxu0
        %v11659 = vadd.f32 %v11498, %v11658
        %v11660 = vpop.f32.mrb[0].mxu0
        %11661 = vmatprep.mubr.bf16.mxu0 %v8319
        %11662 = vmatmul.mubr.bf16.gmra.mrb[0].mxu0 %v8318
        %v11663 = vpop.f32.mrb[0].mxu0
        %v11664 = vadd.f32 %v11503, %v11663
        %v11665 = vpop.f32.mrb[0].mxu0
        %v11666 = vpop.f32.mrb[0].mxu0
        %v11667 = vadd.f32 %v11506, %v11666
        %v11668 = vpop.f32.mrb[0].mxu0
        %11669 = vmatprep.mubr.bf16.mxu0 %v8328
        %11670 = vmatmul.mubr.bf16.gmra.mrb[0].mxu0 %v8327
        %v11671 = vpop.f32.mrb[0].mxu0
        %v11672 = vadd.f32 %v11511, %v11671
        %v11673 = vpop.f32.mrb[0].mxu0
        %v11674 = vpop.f32.mrb[0].mxu0
        %v11675 = vadd.f32 %v11514, %v11674
        %v11676 = vpop.f32.mrb[0].mxu0
        %11677 = vmatprep.mubr.bf16.mxu0 %v8337
        %11678 = vmatmul.mubr.bf16.gmra.mrb[0].mxu0 %v8336
        %v11679 = vpop.f32.mrb[0].mxu0
        %v11680 = vadd.f32 %v11519, %v11679
        %v11681 = vpop.f32.mrb[0].mxu0
        %v11682 = vpop.f32.mrb[0].mxu0
        %v11683 = vadd.f32 %v11522, %v11682
        %v11684 = vpop.f32.mrb[0].mxu0
        %11685 = vmatprep.mubr.bf16.mxu0 %v8346
        %11686 = vmatmul.mubr.bf16.gmra.mrb[0].mxu0 %v8345
        %v11687 = vpop.f32.mrb[0].mxu0
        %v11688 = vadd.f32 %v11527, %v11687
        %v11689 = vpop.f32.mrb[0].mxu0
        %v11690 = vpop.f32.mrb[0].mxu0
        %v11691 = vadd.f32 %v11530, %v11690
        %v11692 = vpop.f32.mrb[0].mxu0
        %11693 = vmatprep.mubr.bf16.mxu0 %v8355
        %11694 = vmatmul.mubr.bf16.gmra.mrb[0].mxu0 %v8354
        %v11695 = vpop.f32.mrb[0].mxu0
        %v11696 = vadd.f32 %v11535, %v11695
        %v11697 = vpop.f32.mrb[0].mxu0
        %v11698 = vpop.f32.mrb[0].mxu0
        %v11699 = vadd.f32 %v11538, %v11698
        %v11700 = vpop.f32.mrb[0].mxu0
        %11701 = vmatprep.mubr.bf16.mxu0 %v8364
        %11702 = vmatmul.mubr.bf16.gmra.mrb[0].mxu0 %v8363
        %v11703 = vpop.f32.mrb[0].mxu0
        %v11704 = vadd.f32 %v11543, %v11703
        %v11705 = vpop.f32.mrb[0].mxu0
        %v11706 = vpop.f32.mrb[0].mxu0
        %v11707 = vadd.f32 %v11546, %v11706
        %v11708 = vpop.f32.mrb[0].mxu0
        %11709 = vdwg.mxu0
        %11710 = vmatprep.subr.bf16.mxu0 0
        %11711 = vmatpush1.bf16.msra.mxu0 %v9828
        %11712 = vmatprep.subr.bf16.mxu0 0
        %11713 = vmatpush1.bf16.msra.mxu0 %v9829
        %11714 = vmatprep.subr.bf16.mxu0 0
        %11715 = vmatpush1.bf16.msra.mxu0 %v9830
        %11716 = vmatprep.subr.bf16.mxu0 0
        %11717 = vmatpush1.bf16.msra.mxu0 %v9831
        %11718 = vmatprep.subr.bf16.mxu0 0
        %11719 = vmatpush1.bf16.msra.mxu0 %v9832
        %11720 = vmatprep.subr.bf16.mxu0 0
        %11721 = vmatpush1.bf16.msra.mxu0 %v9833
        %11722 = vmatprep.subr.bf16.mxu0 0
        %11723 = vmatpush1.bf16.msra.mxu0 %v9834
        %11724 = vmatprep.subr.bf16.mxu0 0
        %11725 = vmatpush1.bf16.msra.mxu0 %v9835
        %11726 = vmatprep.subr.bf16.mxu0 0
        %11727 = vmatpush1.bf16.msra.mxu0 %v9836
        %11728 = vmatprep.subr.bf16.mxu0 0
        %11729 = vmatpush1.bf16.msra.mxu0 %v9837
        %11730 = vmatprep.subr.bf16.mxu0 0
        %11731 = vmatpush1.bf16.msra.mxu0 %v9838
        %11732 = vmatprep.subr.bf16.mxu0 0
        %11733 = vmatpush1.bf16.msra.mxu0 %v9839
        %11734 = vmatprep.subr.bf16.mxu0 0
        %11735 = vmatpush1.bf16.msra.mxu0 %v9840
        %11736 = vmatprep.subr.bf16.mxu0 0
        %11737 = vmatpush1.bf16.msra.mxu0 %v9841
        %11738 = vmatprep.subr.bf16.mxu0 0
        %11739 = vmatpush1.bf16.msra.mxu0 %v9842
        %11740 = vmatprep.subr.bf16.mxu0 0
        %11741 = vmatpush1.bf16.msra.mxu0 %v9843
        %11742 = vmatprep.mubr.bf16.mxu0 %v8231
        %11743 = vmatmul.mubr.bf16.gmra.mrb[0].mxu0 %v8230
        %v11744 = vpop.f32.mrb[0].mxu0
        %v11745 = vadd.f32 %v11584, %v11744
        %v11746 = vpop.f32.mrb[0].mxu0
        %v11747 = vpop.f32.mrb[0].mxu0
        %v11748 = vadd.f32 %v11587, %v11747
        %v11749 = vpop.f32.mrb[0].mxu0
        %11750 = vmatprep.mubr.bf16.mxu0 %v8240
        %11751 = vmatmul.mubr.bf16.gmra.mrb[0].mxu0 %v8239
        %v11752 = vpop.f32.mrb[0].mxu0
        %v11753 = vadd.f32 %v11592, %v11752
        %v11754 = vpop.f32.mrb[0].mxu0
        %v11755 = vpop.f32.mrb[0].mxu0
        %v11756 = vadd.f32 %v11595, %v11755
        %v11757 = vpop.f32.mrb[0].mxu0
        %11758 = vmatprep.mubr.bf16.mxu0 %v8249
        %11759 = vmatmul.mubr.bf16.gmra.mrb[0].mxu0 %v8248
        %v11760 = vpop.f32.mrb[0].mxu0
        %v11761 = vadd.f32 %v11600, %v11760
        %v11762 = vpop.f32.mrb[0].mxu0
        %v11763 = vpop.f32.mrb[0].mxu0
        %v11764 = vadd.f32 %v11603, %v11763
        %v11765 = vpop.f32.mrb[0].mxu0
        %11766 = vmatprep.mubr.bf16.mxu0 %v8258
        %11767 = vmatmul.mubr.bf16.gmra.mrb[0].mxu0 %v8257
        %v11768 = vpop.f32.mrb[0].mxu0
        %v11769 = vadd.f32 %v11608, %v11768
        %v11770 = vpop.f32.mrb[0].mxu0
        %v11771 = vpop.f32.mrb[0].mxu0
        %v11772 = vadd.f32 %v11611, %v11771
        %v11773 = vpop.f32.mrb[0].mxu0
        %11774 = vmatprep.mubr.bf16.mxu0 %v8267
        %11775 = vmatmul.mubr.bf16.gmra.mrb[0].mxu0 %v8266
        %v11776 = vpop.f32.mrb[0].mxu0
        %v11777 = vadd.f32 %v11616, %v11776
        %v11778 = vpop.f32.mrb[0].mxu0
        %v11779 = vpop.f32.mrb[0].mxu0
        %v11780 = vadd.f32 %v11619, %v11779
        %v11781 = vpop.f32.mrb[0].mxu0
        %11782 = vmatprep.mubr.bf16.mxu0 %v8276
        %11783 = vmatmul.mubr.bf16.gmra.mrb[0].mxu0 %v8275
        %v11784 = vpop.f32.mrb[0].mxu0
        %v11785 = vadd.f32 %v11624, %v11784
        %v11786 = vpop.f32.mrb[0].mxu0
        %v11787 = vpop.f32.mrb[0].mxu0
        %v11788 = vadd.f32 %v11627, %v11787
        %v11789 = vpop.f32.mrb[0].mxu0
        %11790 = vmatprep.mubr.bf16.mxu0 %v8285
        %11791 = vmatmul.mubr.bf16.gmra.mrb[0].mxu0 %v8284
        %v11792 = vpop.f32.mrb[0].mxu0
        %v11793 = vadd.f32 %v11632, %v11792
        %v11794 = vpop.f32.mrb[0].mxu0
        %v11795 = vpop.f32.mrb[0].mxu0
        %v11796 = vadd.f32 %v11635, %v11795
        %v11797 = vpop.f32.mrb[0].mxu0
        %11798 = vmatprep.mubr.bf16.mxu0 %v8294
        %11799 = vmatmul.mubr.bf16.gmra.mrb[0].mxu0 %v8293
        %v11800 = vpop.f32.mrb[0].mxu0
        %v11801 = vadd.f32 %v11640, %v11800
        %v11802 = vpop.f32.mrb[0].mxu0
        %v11803 = vpop.f32.mrb[0].mxu0
        %v11804 = vadd.f32 %v11643, %v11803
        %v11805 = vpop.f32.mrb[0].mxu0
        %11806 = vmatprep.mubr.bf16.mxu0 %v8303
        %11807 = vmatmul.mubr.bf16.gmra.mrb[0].mxu0 %v8302
        %v11808 = vpop.f32.mrb[0].mxu0
        %v11809 = vadd.f32 %v11648, %v11808
        %v11810 = vpop.f32.mrb[0].mxu0
        %v11811 = vpop.f32.mrb[0].mxu0
        %v11812 = vadd.f32 %v11651, %v11811
        %v11813 = vpop.f32.mrb[0].mxu0
        %11814 = vmatprep.mubr.bf16.mxu0 %v8312
        %11815 = vmatmul.mubr.bf16.gmra.mrb[0].mxu0 %v8311
        %v11816 = vpop.f32.mrb[0].mxu0
        %v11817 = vadd.f32 %v11656, %v11816
        %v11818 = vpop.f32.mrb[0].mxu0
        %v11819 = vpop.f32.mrb[0].mxu0
        %v11820 = vadd.f32 %v11659, %v11819
        %v11821 = vpop.f32.mrb[0].mxu0
        %11822 = vmatprep.mubr.bf16.mxu0 %v8321
        %11823 = vmatmul.mubr.bf16.gmra.mrb[0].mxu0 %v8320
        %v11824 = vpop.f32.mrb[0].mxu0
        %v11825 = vadd.f32 %v11664, %v11824
        %v11826 = vpop.f32.mrb[0].mxu0
        %v11827 = vpop.f32.mrb[0].mxu0
        %v11828 = vadd.f32 %v11667, %v11827
        %v11829 = vpop.f32.mrb[0].mxu0
        %11830 = vmatprep.mubr.bf16.mxu0 %v8330
        %11831 = vmatmul.mubr.bf16.gmra.mrb[0].mxu0 %v8329
        %v11832 = vpop.f32.mrb[0].mxu0
        %v11833 = vadd.f32 %v11672, %v11832
        %v11834 = vpop.f32.mrb[0].mxu0
        %v11835 = vpop.f32.mrb[0].mxu0
        %v11836 = vadd.f32 %v11675, %v11835
        %v11837 = vpop.f32.mrb[0].mxu0
        %11838 = vmatprep.mubr.bf16.mxu0 %v8339
        %11839 = vmatmul.mubr.bf16.gmra.mrb[0].mxu0 %v8338
        %v11840 = vpop.f32.mrb[0].mxu0
        %v11841 = vadd.f32 %v11680, %v11840
        %v11842 = vpop.f32.mrb[0].mxu0
        %v11843 = vpop.f32.mrb[0].mxu0
        %v11844 = vadd.f32 %v11683, %v11843
        %v11845 = vpop.f32.mrb[0].mxu0
        %11846 = vmatprep.mubr.bf16.mxu0 %v8348
        %11847 = vmatmul.mubr.bf16.gmra.mrb[0].mxu0 %v8347
        %v11848 = vpop.f32.mrb[0].mxu0
        %v11849 = vadd.f32 %v11688, %v11848
        %v11850 = vpop.f32.mrb[0].mxu0
        %v11851 = vpop.f32.mrb[0].mxu0
        %v11852 = vadd.f32 %v11691, %v11851
        %v11853 = vpop.f32.mrb[0].mxu0
        %11854 = vmatprep.mubr.bf16.mxu0 %v8357
        %11855 = vmatmul.mubr.bf16.gmra.mrb[0].mxu0 %v8356
        %v11856 = vpop.f32.mrb[0].mxu0
        %v11857 = vadd.f32 %v11696, %v11856
        %v11858 = vpop.f32.mrb[0].mxu0
        %v11859 = vpop.f32.mrb[0].mxu0
        %v11860 = vadd.f32 %v11699, %v11859
        %v11861 = vpop.f32.mrb[0].mxu0
        %11862 = vmatprep.mubr.bf16.mxu0 %v8366
        %11863 = vmatmul.mubr.bf16.gmra.mrb[0].mxu0 %v8365
        %v11864 = vpop.f32.mrb[0].mxu0
        %v11865 = vadd.f32 %v11704, %v11864
        %v11866 = vpop.f32.mrb[0].mxu0
        %v11867 = vpop.f32.mrb[0].mxu0
        %v11868 = vadd.f32 %v11707, %v11867
        %v11869 = vpop.f32.mrb[0].mxu0
        %11870 = vdwg.mxu0
        %11871 = vmatprep.subr.bf16.mxu0 0
        %11872 = vmatpush1.bf16.msra.mxu0 %v9844
        %11873 = vmatprep.subr.bf16.mxu0 0
        %11874 = vmatpush1.bf16.msra.mxu0 %v9845
        %11875 = vmatprep.subr.bf16.mxu0 0
        %11876 = vmatpush1.bf16.msra.mxu0 %v9846
        %11877 = vmatprep.subr.bf16.mxu0 0
        %11878 = vmatpush1.bf16.msra.mxu0 %v9847
        %11879 = vmatprep.subr.bf16.mxu0 0
        %11880 = vmatpush1.bf16.msra.mxu0 %v9848
        %11881 = vmatprep.subr.bf16.mxu0 0
        %11882 = vmatpush1.bf16.msra.mxu0 %v9849
        %11883 = vmatprep.subr.bf16.mxu0 0
        %11884 = vmatpush1.bf16.msra.mxu0 %v9850
        %11885 = vmatprep.subr.bf16.mxu0 0
        %11886 = vmatpush1.bf16.msra.mxu0 %v9851
        %11887 = vmatprep.subr.bf16.mxu0 0
        %11888 = vmatpush1.bf16.msra.mxu0 %v9852
        %11889 = vmatprep.subr.bf16.mxu0 0
        %11890 = vmatpush1.bf16.msra.mxu0 %v9853
        %11891 = vmatprep.subr.bf16.mxu0 0
        %11892 = vmatpush1.bf16.msra.mxu0 %v9854
        %11893 = vmatprep.subr.bf16.mxu0 0
        %11894 = vmatpush1.bf16.msra.mxu0 %v9855
        %11895 = vmatprep.subr.bf16.mxu0 0
        %11896 = vmatpush1.bf16.msra.mxu0 %v9856
        %11897 = vmatprep.subr.bf16.mxu0 0
        %11898 = vmatpush1.bf16.msra.mxu0 %v9857
        %11899 = vmatprep.subr.bf16.mxu0 0
        %11900 = vmatpush1.bf16.msra.mxu0 %v9858
        %11901 = vmatprep.subr.bf16.mxu0 0
        %11902 = vmatpush1.bf16.msra.mxu0 %v9859
        %11903 = vmatprep.mubr.bf16.mxu0 %v8233
        %11904 = vmatmul.mubr.bf16.gmra.mrb[0].mxu0 %v8232
        %v11905 = vpop.f32.mrb[0].mxu0
        %v11906 = vadd.f32 %v11745, %v11905
        %v11907 = vpop.f32.mrb[0].mxu0
        %v11908 = vpop.f32.mrb[0].mxu0
        %v11909 = vadd.f32 %v11748, %v11908
        %v11910 = vpop.f32.mrb[0].mxu0
        %11911 = vmatprep.mubr.bf16.mxu0 %v8242
        %11912 = vmatmul.mubr.bf16.gmra.mrb[0].mxu0 %v8241
        %v11913 = vpop.f32.mrb[0].mxu0
        %v11914 = vadd.f32 %v11753, %v11913
        %v11915 = vpop.f32.mrb[0].mxu0
        %v11916 = vpop.f32.mrb[0].mxu0
        %v11917 = vadd.f32 %v11756, %v11916
        %v11918 = vpop.f32.mrb[0].mxu0
        %11919 = vmatprep.mubr.bf16.mxu0 %v8251
        %11920 = vmatmul.mubr.bf16.gmra.mrb[0].mxu0 %v8250
        %v11921 = vpop.f32.mrb[0].mxu0
        %v11922 = vadd.f32 %v11761, %v11921
        %v11923 = vpop.f32.mrb[0].mxu0
        %v11924 = vpop.f32.mrb[0].mxu0
        %v11925 = vadd.f32 %v11764, %v11924
        %v11926 = vpop.f32.mrb[0].mxu0
        %11927 = vmatprep.mubr.bf16.mxu0 %v8260
        %11928 = vmatmul.mubr.bf16.gmra.mrb[0].mxu0 %v8259
        %v11929 = vpop.f32.mrb[0].mxu0
        %v11930 = vadd.f32 %v11769, %v11929
        %v11931 = vpop.f32.mrb[0].mxu0
        %v11932 = vpop.f32.mrb[0].mxu0
        %v11933 = vadd.f32 %v11772, %v11932
        %v11934 = vpop.f32.mrb[0].mxu0
        %11935 = vmatprep.mubr.bf16.mxu0 %v8269
        %11936 = vmatmul.mubr.bf16.gmra.mrb[0].mxu0 %v8268
        %v11937 = vpop.f32.mrb[0].mxu0
        %v11938 = vadd.f32 %v11777, %v11937
        %v11939 = vpop.f32.mrb[0].mxu0
        %v11940 = vpop.f32.mrb[0].mxu0
        %v11941 = vadd.f32 %v11780, %v11940
        %v11942 = vpop.f32.mrb[0].mxu0
        %11943 = vmatprep.mubr.bf16.mxu0 %v8278
        %11944 = vmatmul.mubr.bf16.gmra.mrb[0].mxu0 %v8277
        %v11945 = vpop.f32.mrb[0].mxu0
        %v11946 = vadd.f32 %v11785, %v11945
        %v11947 = vpop.f32.mrb[0].mxu0
        %v11948 = vpop.f32.mrb[0].mxu0
        %v11949 = vadd.f32 %v11788, %v11948
        %v11950 = vpop.f32.mrb[0].mxu0
        %11951 = vmatprep.mubr.bf16.mxu0 %v8287
        %11952 = vmatmul.mubr.bf16.gmra.mrb[0].mxu0 %v8286
        %v11953 = vpop.f32.mrb[0].mxu0
        %v11954 = vadd.f32 %v11793, %v11953
        %v11955 = vpop.f32.mrb[0].mxu0
        %v11956 = vpop.f32.mrb[0].mxu0
        %v11957 = vadd.f32 %v11796, %v11956
        %v11958 = vpop.f32.mrb[0].mxu0
        %11959 = vmatprep.mubr.bf16.mxu0 %v8296
        %11960 = vmatmul.mubr.bf16.gmra.mrb[0].mxu0 %v8295
        %v11961 = vpop.f32.mrb[0].mxu0
        %v11962 = vadd.f32 %v11801, %v11961
        %v11963 = vpop.f32.mrb[0].mxu0
        %v11964 = vpop.f32.mrb[0].mxu0
        %v11965 = vadd.f32 %v11804, %v11964
        %v11966 = vpop.f32.mrb[0].mxu0
        %11967 = vmatprep.mubr.bf16.mxu0 %v8305
        %11968 = vmatmul.mubr.bf16.gmra.mrb[0].mxu0 %v8304
        %v11969 = vpop.f32.mrb[0].mxu0
        %v11970 = vadd.f32 %v11809, %v11969
        %v11971 = vpop.f32.mrb[0].mxu0
        %v11972 = vpop.f32.mrb[0].mxu0
        %v11973 = vadd.f32 %v11812, %v11972
        %v11974 = vpop.f32.mrb[0].mxu0
        %11975 = vmatprep.mubr.bf16.mxu0 %v8314
        %11976 = vmatmul.mubr.bf16.gmra.mrb[0].mxu0 %v8313
        %v11977 = vpop.f32.mrb[0].mxu0
        %v11978 = vadd.f32 %v11817, %v11977
        %v11979 = vpop.f32.mrb[0].mxu0
        %v11980 = vpop.f32.mrb[0].mxu0
        %v11981 = vadd.f32 %v11820, %v11980
        %v11982 = vpop.f32.mrb[0].mxu0
        %11983 = vmatprep.mubr.bf16.mxu0 %v8323
        %11984 = vmatmul.mubr.bf16.gmra.mrb[0].mxu0 %v8322
        %v11985 = vpop.f32.mrb[0].mxu0
        %v11986 = vadd.f32 %v11825, %v11985
        %v11987 = vpop.f32.mrb[0].mxu0
        %v11988 = vpop.f32.mrb[0].mxu0
        %v11989 = vadd.f32 %v11828, %v11988
        %v11990 = vpop.f32.mrb[0].mxu0
        %11991 = vmatprep.mubr.bf16.mxu0 %v8332
        %11992 = vmatmul.mubr.bf16.gmra.mrb[0].mxu0 %v8331
        %v11993 = vpop.f32.mrb[0].mxu0
        %v11994 = vadd.f32 %v11833, %v11993
        %v11995 = vpop.f32.mrb[0].mxu0
        %v11996 = vpop.f32.mrb[0].mxu0
        %v11997 = vadd.f32 %v11836, %v11996
        %v11998 = vpop.f32.mrb[0].mxu0
        %11999 = vmatprep.mubr.bf16.mxu0 %v8341
        %12000 = vmatmul.mubr.bf16.gmra.mrb[0].mxu0 %v8340
        %v12001 = vpop.f32.mrb[0].mxu0
        %v12002 = vadd.f32 %v11841, %v12001
        %v12003 = vpop.f32.mrb[0].mxu0
        %v12004 = vpop.f32.mrb[0].mxu0
        %v12005 = vadd.f32 %v11844, %v12004
        %v12006 = vpop.f32.mrb[0].mxu0
        %12007 = vmatprep.mubr.bf16.mxu0 %v8350
        %12008 = vmatmul.mubr.bf16.gmra.mrb[0].mxu0 %v8349
        %v12009 = vpop.f32.mrb[0].mxu0
        %v12010 = vadd.f32 %v11849, %v12009
        %v12011 = vpop.f32.mrb[0].mxu0
        %v12012 = vpop.f32.mrb[0].mxu0
        %v12013 = vadd.f32 %v11852, %v12012
        %v12014 = vpop.f32.mrb[0].mxu0
        %12015 = vmatprep.mubr.bf16.mxu0 %v8359
        %12016 = vmatmul.mubr.bf16.gmra.mrb[0].mxu0 %v8358
        %v12017 = vpop.f32.mrb[0].mxu0
        %v12018 = vadd.f32 %v11857, %v12017
        %v12019 = vpop.f32.mrb[0].mxu0
        %v12020 = vpop.f32.mrb[0].mxu0
        %v12021 = vadd.f32 %v11860, %v12020
        %v12022 = vpop.f32.mrb[0].mxu0
        %12023 = vmatprep.mubr.bf16.mxu0 %v8368
        %12024 = vmatmul.mubr.bf16.gmra.mrb[0].mxu0 %v8367
        %v12025 = vpop.f32.mrb[0].mxu0
        %v12026 = vadd.f32 %v11865, %v12025
        %v12027 = vpop.f32.mrb[0].mxu0
        %v12028 = vpop.f32.mrb[0].mxu0
        %v12029 = vadd.f32 %v11868, %v12028
        %v12030 = vpop.f32.mrb[0].mxu0
        %12031 = vdwg.mxu0
        %12032 = vmatprep.subr.bf16.mxu0 0
        %12033 = vmatpush1.bf16.msra.mxu0 %v9860
        %12034 = vmatprep.subr.bf16.mxu0 0
        %12035 = vmatpush1.bf16.msra.mxu0 %v9861
        %12036 = vmatprep.subr.bf16.mxu0 0
        %12037 = vmatpush1.bf16.msra.mxu0 %v9862
        %12038 = vmatprep.subr.bf16.mxu0 0
        %12039 = vmatpush1.bf16.msra.mxu0 %v9863
        %12040 = vmatprep.subr.bf16.mxu0 0
        %12041 = vmatpush1.bf16.msra.mxu0 %v9864
        %12042 = vmatprep.subr.bf16.mxu0 0
        %12043 = vmatpush1.bf16.msra.mxu0 %v9865
        %12044 = vmatprep.subr.bf16.mxu0 0
        %12045 = vmatpush1.bf16.msra.mxu0 %v9866
        %12046 = vmatprep.subr.bf16.mxu0 0
        %12047 = vmatpush1.bf16.msra.mxu0 %v9867
        %12048 = vmatprep.subr.bf16.mxu0 0
        %12049 = vmatpush1.bf16.msra.mxu0 %v9868
        %12050 = vmatprep.subr.bf16.mxu0 0
        %12051 = vmatpush1.bf16.msra.mxu0 %v9869
        %12052 = vmatprep.subr.bf16.mxu0 0
        %12053 = vmatpush1.bf16.msra.mxu0 %v9870
        %12054 = vmatprep.subr.bf16.mxu0 0
        %12055 = vmatpush1.bf16.msra.mxu0 %v9871
        %12056 = vmatprep.subr.bf16.mxu0 0
        %12057 = vmatpush1.bf16.msra.mxu0 %v9872
        %12058 = vmatprep.subr.bf16.mxu0 0
        %12059 = vmatpush1.bf16.msra.mxu0 %v9873
        %12060 = vmatprep.subr.bf16.mxu0 0
        %12061 = vmatpush1.bf16.msra.mxu0 %v9874
        %12062 = vmatprep.subr.bf16.mxu0 0
        %12063 = vmatpush1.bf16.msra.mxu0 %v9875
        %12064 = vmatprep.mubr.bf16.mxu0 %v8235
        %12065 = vmatmul.mubr.bf16.gmra.mrb[0].mxu0 %v8234
        %v12066 = vpop.f32.mrb[0].mxu0
        %v12067 = vadd.f32 %v11906, %v12066
        %v12068 = vpop.f32.mrb[0].mxu0
        %v12069 = vpop.f32.mrb[0].mxu0
        %v12070 = vadd.f32 %v11909, %v12069
        %v12071 = vpop.f32.mrb[0].mxu0
        %12072 = vmatprep.mubr.bf16.mxu0 %v8244
        %12073 = vmatmul.mubr.bf16.gmra.mrb[0].mxu0 %v8243
        %v12074 = vpop.f32.mrb[0].mxu0
        %v12075 = vadd.f32 %v11914, %v12074
        %v12076 = vpop.f32.mrb[0].mxu0
        %v12077 = vpop.f32.mrb[0].mxu0
        %v12078 = vadd.f32 %v11917, %v12077
        %v12079 = vpop.f32.mrb[0].mxu0
        %12080 = vmatprep.mubr.bf16.mxu0 %v8253
        %12081 = vmatmul.mubr.bf16.gmra.mrb[0].mxu0 %v8252
        %v12082 = vpop.f32.mrb[0].mxu0
        %v12083 = vadd.f32 %v11922, %v12082
        %v12084 = vpop.f32.mrb[0].mxu0
        %v12085 = vpop.f32.mrb[0].mxu0
        %v12086 = vadd.f32 %v11925, %v12085
        %v12087 = vpop.f32.mrb[0].mxu0
        %12088 = vmatprep.mubr.bf16.mxu0 %v8262
        %12089 = vmatmul.mubr.bf16.gmra.mrb[0].mxu0 %v8261
        %v12090 = vpop.f32.mrb[0].mxu0
        %v12091 = vadd.f32 %v11930, %v12090
        %v12092 = vpop.f32.mrb[0].mxu0
        %v12093 = vpop.f32.mrb[0].mxu0
        %v12094 = vadd.f32 %v11933, %v12093
        %v12095 = vpop.f32.mrb[0].mxu0
        %12096 = vmatprep.mubr.bf16.mxu0 %v8271
        %12097 = vmatmul.mubr.bf16.gmra.mrb[0].mxu0 %v8270
        %v12098 = vpop.f32.mrb[0].mxu0
        %v12099 = vadd.f32 %v11938, %v12098
        %v12100 = vpop.f32.mrb[0].mxu0
        %v12101 = vpop.f32.mrb[0].mxu0
        %v12102 = vadd.f32 %v11941, %v12101
        %v12103 = vpop.f32.mrb[0].mxu0
        %12104 = vmatprep.mubr.bf16.mxu0 %v8280
        %12105 = vmatmul.mubr.bf16.gmra.mrb[0].mxu0 %v8279
        %v12106 = vpop.f32.mrb[0].mxu0
        %v12107 = vadd.f32 %v11946, %v12106
        %v12108 = vpop.f32.mrb[0].mxu0
        %v12109 = vpop.f32.mrb[0].mxu0
        %v12110 = vadd.f32 %v11949, %v12109
        %v12111 = vpop.f32.mrb[0].mxu0
        %12112 = vmatprep.mubr.bf16.mxu0 %v8289
        %12113 = vmatmul.mubr.bf16.gmra.mrb[0].mxu0 %v8288
        %v12114 = vpop.f32.mrb[0].mxu0
        %v12115 = vadd.f32 %v11954, %v12114
        %v12116 = vpop.f32.mrb[0].mxu0
        %v12117 = vpop.f32.mrb[0].mxu0
        %v12118 = vadd.f32 %v11957, %v12117
        %v12119 = vpop.f32.mrb[0].mxu0
        %12120 = vmatprep.mubr.bf16.mxu0 %v8298
        %12121 = vmatmul.mubr.bf16.gmra.mrb[0].mxu0 %v8297
        %v12122 = vpop.f32.mrb[0].mxu0
        %v12123 = vadd.f32 %v11962, %v12122
        %v12124 = vpop.f32.mrb[0].mxu0
        %v12125 = vpop.f32.mrb[0].mxu0
        %v12126 = vadd.f32 %v11965, %v12125
        %v12127 = vpop.f32.mrb[0].mxu0
        %12128 = vmatprep.mubr.bf16.mxu0 %v8307
        %12129 = vmatmul.mubr.bf16.gmra.mrb[0].mxu0 %v8306
        %v12130 = vpop.f32.mrb[0].mxu0
        %v12131 = vadd.f32 %v11970, %v12130
        %v12132 = vpop.f32.mrb[0].mxu0
        %v12133 = vpop.f32.mrb[0].mxu0
        %v12134 = vadd.f32 %v11973, %v12133
        %v12135 = vpop.f32.mrb[0].mxu0
        %12136 = vmatprep.mubr.bf16.mxu0 %v8316
        %12137 = vmatmul.mubr.bf16.gmra.mrb[0].mxu0 %v8315
        %v12138 = vpop.f32.mrb[0].mxu0
        %v12139 = vadd.f32 %v11978, %v12138
        %v12140 = vpop.f32.mrb[0].mxu0
        %v12141 = vpop.f32.mrb[0].mxu0
        %v12142 = vadd.f32 %v11981, %v12141
        %v12143 = vpop.f32.mrb[0].mxu0
        %12144 = vmatprep.mubr.bf16.mxu0 %v8325
        %12145 = vmatmul.mubr.bf16.gmra.mrb[0].mxu0 %v8324
        %v12146 = vpop.f32.mrb[0].mxu0
        %v12147 = vadd.f32 %v11986, %v12146
        %v12148 = vpop.f32.mrb[0].mxu0
        %v12149 = vpop.f32.mrb[0].mxu0
        %v12150 = vadd.f32 %v11989, %v12149
        %v12151 = vpop.f32.mrb[0].mxu0
        %12152 = vmatprep.mubr.bf16.mxu0 %v8334
        %12153 = vmatmul.mubr.bf16.gmra.mrb[0].mxu0 %v8333
        %v12154 = vpop.f32.mrb[0].mxu0
        %v12155 = vadd.f32 %v11994, %v12154
        %v12156 = vpop.f32.mrb[0].mxu0
        %v12157 = vpop.f32.mrb[0].mxu0
        %v12158 = vadd.f32 %v11997, %v12157
        %v12159 = vpop.f32.mrb[0].mxu0
        %12160 = vmatprep.mubr.bf16.mxu0 %v8343
        %12161 = vmatmul.mubr.bf16.gmra.mrb[0].mxu0 %v8342
        %v12162 = vpop.f32.mrb[0].mxu0
        %v12163 = vadd.f32 %v12002, %v12162
        %v12164 = vpop.f32.mrb[0].mxu0
        %v12165 = vpop.f32.mrb[0].mxu0
        %v12166 = vadd.f32 %v12005, %v12165
        %v12167 = vpop.f32.mrb[0].mxu0
        %12168 = vmatprep.mubr.bf16.mxu0 %v8352
        %12169 = vmatmul.mubr.bf16.gmra.mrb[0].mxu0 %v8351
        %v12170 = vpop.f32.mrb[0].mxu0
        %v12171 = vadd.f32 %v12010, %v12170
        %v12172 = vpop.f32.mrb[0].mxu0
        %v12173 = vpop.f32.mrb[0].mxu0
        %v12174 = vadd.f32 %v12013, %v12173
        %v12175 = vpop.f32.mrb[0].mxu0
        %12176 = vmatprep.mubr.bf16.mxu0 %v8361
        %12177 = vmatmul.mubr.bf16.gmra.mrb[0].mxu0 %v8360
        %v12178 = vpop.f32.mrb[0].mxu0
        %v12179 = vadd.f32 %v12018, %v12178
        %v12180 = vpop.f32.mrb[0].mxu0
        %v12181 = vpop.f32.mrb[0].mxu0
        %v12182 = vadd.f32 %v12021, %v12181
        %v12183 = vpop.f32.mrb[0].mxu0
        %12184 = vmatprep.mubr.bf16.mxu0 %v8370
        %12185 = vmatmul.mubr.bf16.gmra.mrb[0].mxu0 %v8369
        %v12186 = vpop.f32.mrb[0].mxu0
        %v12187 = vadd.f32 %v12026, %v12186
        %v12188 = vpop.f32.mrb[0].mxu0
        %v12189 = vpop.f32.mrb[0].mxu0
        %v12190 = vadd.f32 %v12029, %v12189
        %v12191 = vpop.f32.mrb[0].mxu0
        %12192 = vdwg.mxu0
        %12193 = vmatprep.subr.bf16.mxu0 0
        %12194 = vmatpush1.bf16.msra.mxu0 %v9876
        %12195 = vmatprep.subr.bf16.mxu0 0
        %12196 = vmatpush1.bf16.msra.mxu0 %v9877
        %12197 = vmatprep.subr.bf16.mxu0 0
        %12198 = vmatpush1.bf16.msra.mxu0 %v9878
        %12199 = vmatprep.subr.bf16.mxu0 0
        %12200 = vmatpush1.bf16.msra.mxu0 %v9879
        %12201 = vmatprep.subr.bf16.mxu0 0
        %12202 = vmatpush1.bf16.msra.mxu0 %v9880
        %12203 = vmatprep.subr.bf16.mxu0 0
        %12204 = vmatpush1.bf16.msra.mxu0 %v9881
        %12205 = vmatprep.subr.bf16.mxu0 0
        %12206 = vmatpush1.bf16.msra.mxu0 %v9882
        %12207 = vmatprep.subr.bf16.mxu0 0
        %12208 = vmatpush1.bf16.msra.mxu0 %v9883
        %12209 = vmatprep.subr.bf16.mxu0 0
        %12210 = vmatpush1.bf16.msra.mxu0 0
        %12211 = vmatprep.subr.bf16.mxu0 0
        %12212 = vmatpush1.bf16.msra.mxu0 0
        %12213 = vmatprep.subr.bf16.mxu0 0
        %12214 = vmatpush1.bf16.msra.mxu0 0
        %12215 = vmatprep.subr.bf16.mxu0 0
        %12216 = vmatpush1.bf16.msra.mxu0 0
        %12217 = vmatprep.subr.bf16.mxu0 0
        %12218 = vmatpush1.bf16.msra.mxu0 0
        %12219 = vmatprep.subr.bf16.mxu0 0
        %12220 = vmatpush1.bf16.msra.mxu0 0
        %12221 = vmatprep.subr.bf16.mxu0 0
        %12222 = vmatpush1.bf16.msra.mxu0 0
        %12223 = vmatprep.subr.bf16.mxu0 0
        %12224 = vmatpush1.bf16.msra.mxu0 0
        %12225 = vmatprep.mubr.bf16.mxu0 0
        %12226 = vmatmul.mubr.bf16.gmra.mrb[0].mxu0 %v8236
        %v12227 = vpop.f32.mrb[0].mxu0
        %v12228 = vadd.f32 %v12067, %v12227
        %v12229 = vpop.f32.mrb[0].mxu0
        %v12230 = vpop.f32.mrb[0].mxu0
        %v12231 = vadd.f32 %v12070, %v12230
        %v12232 = vpop.f32.mrb[0].mxu0
        %12233 = vmatprep.mubr.bf16.mxu0 0
        %12234 = vmatmul.mubr.bf16.gmra.mrb[0].mxu0 %v8245
        %v12235 = vpop.f32.mrb[0].mxu0
        %v12236 = vadd.f32 %v12075, %v12235
        %v12237 = vpop.f32.mrb[0].mxu0
        %v12238 = vpop.f32.mrb[0].mxu0
        %v12239 = vadd.f32 %v12078, %v12238
        %v12240 = vpop.f32.mrb[0].mxu0
        %12241 = vmatprep.mubr.bf16.mxu0 0
        %12242 = vmatmul.mubr.bf16.gmra.mrb[0].mxu0 %v8254
        %v12243 = vpop.f32.mrb[0].mxu0
        %v12244 = vadd.f32 %v12083, %v12243
        %v12245 = vpop.f32.mrb[0].mxu0
        %v12246 = vpop.f32.mrb[0].mxu0
        %v12247 = vadd.f32 %v12086, %v12246
        %v12248 = vpop.f32.mrb[0].mxu0
        %12249 = vmatprep.mubr.bf16.mxu0 0
        %12250 = vmatmul.mubr.bf16.gmra.mrb[0].mxu0 %v8263
        %v12251 = vpop.f32.mrb[0].mxu0
        %v12252 = vadd.f32 %v12091, %v12251
        %v12253 = vpop.f32.mrb[0].mxu0
        %v12254 = vpop.f32.mrb[0].mxu0
        %v12255 = vadd.f32 %v12094, %v12254
        %v12256 = vpop.f32.mrb[0].mxu0
        %12257 = vmatprep.mubr.bf16.mxu0 0
        %12258 = vmatmul.mubr.bf16.gmra.mrb[0].mxu0 %v8272
        %v12259 = vpop.f32.mrb[0].mxu0
        %v12260 = vadd.f32 %v12099, %v12259
        %v12261 = vpop.f32.mrb[0].mxu0
        %v12262 = vpop.f32.mrb[0].mxu0
        %v12263 = vadd.f32 %v12102, %v12262
        %v12264 = vpop.f32.mrb[0].mxu0
        %12265 = vmatprep.mubr.bf16.mxu0 0
        %12266 = vmatmul.mubr.bf16.gmra.mrb[0].mxu0 %v8281
        %v12267 = vpop.f32.mrb[0].mxu0
        %v12268 = vadd.f32 %v12107, %v12267
        %v12269 = vpop.f32.mrb[0].mxu0
        %v12270 = vpop.f32.mrb[0].mxu0
        %v12271 = vadd.f32 %v12110, %v12270
        %v12272 = vpop.f32.mrb[0].mxu0
        %12273 = vmatprep.mubr.bf16.mxu0 0
        %12274 = vmatmul.mubr.bf16.gmra.mrb[0].mxu0 %v8290
        %v12275 = vpop.f32.mrb[0].mxu0
        %v12276 = vadd.f32 %v12115, %v12275
        %v12277 = vpop.f32.mrb[0].mxu0
        %v12278 = vpop.f32.mrb[0].mxu0
        %v12279 = vadd.f32 %v12118, %v12278
        %v12280 = vpop.f32.mrb[0].mxu0
        %12281 = vmatprep.mubr.bf16.mxu0 0
        %12282 = vmatmul.mubr.bf16.gmra.mrb[0].mxu0 %v8299
        %v12283 = vpop.f32.mrb[0].mxu0
        %v12284 = vadd.f32 %v12123, %v12283
        %v12285 = vpop.f32.mrb[0].mxu0
        %v12286 = vpop.f32.mrb[0].mxu0
        %v12287 = vadd.f32 %v12126, %v12286
        %v12288 = vpop.f32.mrb[0].mxu0
        %12289 = vmatprep.mubr.bf16.mxu0 0
        %12290 = vmatmul.mubr.bf16.gmra.mrb[0].mxu0 %v8308
        %v12291 = vpop.f32.mrb[0].mxu0
        %v12292 = vadd.f32 %v12131, %v12291
        %v12293 = vpop.f32.mrb[0].mxu0
        %v12294 = vpop.f32.mrb[0].mxu0
        %v12295 = vadd.f32 %v12134, %v12294
        %v12296 = vpop.f32.mrb[0].mxu0
        %12297 = vmatprep.mubr.bf16.mxu0 0
        %12298 = vmatmul.mubr.bf16.gmra.mrb[0].mxu0 %v8317
        %v12299 = vpop.f32.mrb[0].mxu0
        %v12300 = vadd.f32 %v12139, %v12299
        %v12301 = vpop.f32.mrb[0].mxu0
        %v12302 = vpop.f32.mrb[0].mxu0
        %v12303 = vadd.f32 %v12142, %v12302
        %v12304 = vpop.f32.mrb[0].mxu0
        %12305 = vmatprep.mubr.bf16.mxu0 0
        %12306 = vmatmul.mubr.bf16.gmra.mrb[0].mxu0 %v8326
        %v12307 = vpop.f32.mrb[0].mxu0
        %v12308 = vadd.f32 %v12147, %v12307
        %v12309 = vpop.f32.mrb[0].mxu0
        %v12310 = vpop.f32.mrb[0].mxu0
        %v12311 = vadd.f32 %v12150, %v12310
        %v12312 = vpop.f32.mrb[0].mxu0
        %12313 = vmatprep.mubr.bf16.mxu0 0
        %12314 = vmatmul.mubr.bf16.gmra.mrb[0].mxu0 %v8335
        %v12315 = vpop.f32.mrb[0].mxu0
        %v12316 = vadd.f32 %v12155, %v12315
        %v12317 = vpop.f32.mrb[0].mxu0
        %v12318 = vpop.f32.mrb[0].mxu0
        %v12319 = vadd.f32 %v12158, %v12318
        %v12320 = vpop.f32.mrb[0].mxu0
        %12321 = vmatprep.mubr.bf16.mxu0 0
        %12322 = vmatmul.mubr.bf16.gmra.mrb[0].mxu0 %v8344
        %v12323 = vpop.f32.mrb[0].mxu0
        %v12324 = vadd.f32 %v12163, %v12323
        %v12325 = vpop.f32.mrb[0].mxu0
        %v12326 = vpop.f32.mrb[0].mxu0
        %v12327 = vadd.f32 %v12166, %v12326
        %v12328 = vpop.f32.mrb[0].mxu0
        %12329 = vmatprep.mubr.bf16.mxu0 0
        %12330 = vmatmul.mubr.bf16.gmra.mrb[0].mxu0 %v8353
        %v12331 = vpop.f32.mrb[0].mxu0
        %v12332 = vadd.f32 %v12171, %v12331
        %v12333 = vpop.f32.mrb[0].mxu0
        %v12334 = vpop.f32.mrb[0].mxu0
        %v12335 = vadd.f32 %v12174, %v12334
        %v12336 = vpop.f32.mrb[0].mxu0
        %12337 = vmatprep.mubr.bf16.mxu0 0
        %12338 = vmatmul.mubr.bf16.gmra.mrb[0].mxu0 %v8362
        %v12339 = vpop.f32.mrb[0].mxu0
        %v12340 = vadd.f32 %v12179, %v12339
        %v12341 = vpop.f32.mrb[0].mxu0
        %v12342 = vpop.f32.mrb[0].mxu0
        %v12343 = vadd.f32 %v12182, %v12342
        %v12344 = vpop.f32.mrb[0].mxu0
        %12345 = vmatprep.mubr.bf16.mxu0 0
        %12346 = vmatmul.mubr.bf16.gmra.mrb[0].mxu0 %v8371
        %v12347 = vpop.f32.mrb[0].mxu0
        %v12348 = vadd.f32 %v12187, %v12347
        %v12349 = vpop.f32.mrb[0].mxu0
        %v12350 = vpop.f32.mrb[0].mxu0
        %v12351 = vadd.f32 %v12190, %v12350
        %v12352 = vpop.f32.mrb[0].mxu0
        %12353 = vdwg.mxu0
        %v12354 = vlaneseq
        %v12355 = vshrl.u32 %v12354, 7
        %v12356 = vsub.s32 3, %v12355
        %v12357 = vrot.slane %v224, %v12356
        %v12358 = vmul.f32 %v12228, %v12357
        %v12359 = vmul.f32 %v12231, %v12357
        %v12360 = vmul.f32 %v12236, %v12357
        %v12361 = vmul.f32 %v12239, %v12357
        %v12362 = vmul.f32 %v12244, %v12357
        %v12363 = vmul.f32 %v12247, %v12357
        %v12364 = vmul.f32 %v12252, %v12357
        %v12365 = vmul.f32 %v12255, %v12357
        %v12366 = vmul.f32 %v12260, %v12357
        %v12367 = vmul.f32 %v12263, %v12357
        %v12368 = vmul.f32 %v12268, %v12357
        %v12369 = vmul.f32 %v12271, %v12357
        %v12370 = vmul.f32 %v12276, %v12357
        %v12371 = vmul.f32 %v12279, %v12357
        %v12372 = vmul.f32 %v12284, %v12357
        %v12373 = vmul.f32 %v12287, %v12357
        %v12374 = vmul.f32 %v12292, %v12357
        %v12375 = vmul.f32 %v12295, %v12357
        %v12376 = vmul.f32 %v12300, %v12357
        %v12377 = vmul.f32 %v12303, %v12357
        %v12378 = vmul.f32 %v12308, %v12357
        %v12379 = vmul.f32 %v12311, %v12357
        %v12380 = vmul.f32 %v12316, %v12357
        %v12381 = vmul.f32 %v12319, %v12357
        %v12382 = vmul.f32 %v12324, %v12357
        %v12383 = vmul.f32 %v12327, %v12357
        %v12384 = vmul.f32 %v12332, %v12357
        %v12385 = vmul.f32 %v12335, %v12357
        %v12386 = vmul.f32 %v12340, %v12357
        %v12387 = vmul.f32 %v12343, %v12357
        %v12388 = vmul.f32 %v12348, %v12357
        %v12389 = vmul.f32 %v12351, %v12357
        %v12390 = vlaneseq
        %v12391 = vshrl.u32 %v12390, 7
        %v12392 = vsub.s32 4, %v12391
        %v12393 = vrot.slane %v224, %v12392
        %v12394 = vadd.f32 %v12358, %v12393
        %v12395 = vadd.f32 %v12359, %v12393
        %v12396 = vadd.f32 %v12360, %v12393
        %v12397 = vadd.f32 %v12361, %v12393
        %v12398 = vadd.f32 %v12362, %v12393
        %v12399 = vadd.f32 %v12363, %v12393
        %v12400 = vadd.f32 %v12364, %v12393
        %v12401 = vadd.f32 %v12365, %v12393
        %v12402 = vadd.f32 %v12366, %v12393
        %v12403 = vadd.f32 %v12367, %v12393
        %v12404 = vadd.f32 %v12368, %v12393
        %v12405 = vadd.f32 %v12369, %v12393
        %v12406 = vadd.f32 %v12370, %v12393
        %v12407 = vadd.f32 %v12371, %v12393
        %v12408 = vadd.f32 %v12372, %v12393
        %v12409 = vadd.f32 %v12373, %v12393
        %v12410 = vadd.f32 %v12374, %v12393
        %v12411 = vadd.f32 %v12375, %v12393
        %v12412 = vadd.f32 %v12376, %v12393
        %v12413 = vadd.f32 %v12377, %v12393
        %v12414 = vadd.f32 %v12378, %v12393
        %v12415 = vadd.f32 %v12379, %v12393
        %v12416 = vadd.f32 %v12380, %v12393
        %v12417 = vadd.f32 %v12381, %v12393
        %v12418 = vadd.f32 %v12382, %v12393
        %v12419 = vadd.f32 %v12383, %v12393
        %v12420 = vadd.f32 %v12384, %v12393
        %v12421 = vadd.f32 %v12385, %v12393
        %v12422 = vadd.f32 %v12386, %v12393
        %v12423 = vadd.f32 %v12387, %v12393
        %v12424 = vadd.f32 %v12388, %v12393
        %v12425 = vadd.f32 %v12389, %v12393
        %v12426 = vmax.f32 %v12394, 0.0
        %v12427 = vmax.f32 %v12395, 0.0
        %v12428 = vmax.f32 %v12396, 0.0
        %v12429 = vmax.f32 %v12397, 0.0
        %v12430 = vmax.f32 %v12398, 0.0
        %v12431 = vmax.f32 %v12399, 0.0
        %v12432 = vmax.f32 %v12400, 0.0
        %v12433 = vmax.f32 %v12401, 0.0
        %v12434 = vmax.f32 %v12402, 0.0
        %v12435 = vmax.f32 %v12403, 0.0
        %v12436 = vmax.f32 %v12404, 0.0
        %v12437 = vmax.f32 %v12405, 0.0
        %v12438 = vmax.f32 %v12406, 0.0
        %v12439 = vmax.f32 %v12407, 0.0
        %v12440 = vmax.f32 %v12408, 0.0
        %v12441 = vmax.f32 %v12409, 0.0
        %v12442 = vmax.f32 %v12410, 0.0
        %v12443 = vmax.f32 %v12411, 0.0
        %v12444 = vmax.f32 %v12412, 0.0
        %v12445 = vmax.f32 %v12413, 0.0
        %v12446 = vmax.f32 %v12414, 0.0
        %v12447 = vmax.f32 %v12415, 0.0
        %v12448 = vmax.f32 %v12416, 0.0
        %v12449 = vmax.f32 %v12417, 0.0
        %v12450 = vmax.f32 %v12418, 0.0
        %v12451 = vmax.f32 %v12419, 0.0
        %v12452 = vmax.f32 %v12420, 0.0
        %v12453 = vmax.f32 %v12421, 0.0
        %v12454 = vmax.f32 %v12422, 0.0
        %v12455 = vmax.f32 %v12423, 0.0
        %v12456 = vmax.f32 %v12424, 0.0
        %v12457 = vmax.f32 %v12425, 0.0
        %12458 = vst [vmem:[%s217] sm:$0xff] %v12426
        %12459 = vst [vmem:[%s217 + $0x8] sm:$0xff] %v12427
        %12460 = vst [vmem:[%s217 + $0x10] sm:$0xff] %v12428
        %12461 = vst [vmem:[%s217 + $0x18] sm:$0xff] %v12429
        %12462 = vst [vmem:[%s217 + $0x20] sm:$0xff] %v12430
        %12463 = vst [vmem:[%s217 + $0x28] sm:$0xff] %v12431
        %12464 = vst [vmem:[%s217 + $0x30] sm:$0xff] %v12432
        %12465 = vst [vmem:[%s217 + $0x38] sm:$0xff] %v12433
        %12466 = vst [vmem:[%s217 + $0x40] sm:$0xff] %v12434
        %12467 = vst [vmem:[%s217 + $0x48] sm:$0xff] %v12435
        %12468 = vst [vmem:[%s217 + $0x50] sm:$0xff] %v12436
        %12469 = vst [vmem:[%s217 + $0x58] sm:$0xff] %v12437
        %12470 = vst [vmem:[%s217 + $0x60] sm:$0xff] %v12438
        %12471 = vst [vmem:[%s217 + $0x68] sm:$0xff] %v12439
        %12472 = vst [vmem:[%s217 + $0x70] sm:$0xff] %v12440
        %12473 = vst [vmem:[%s217 + $0x78] sm:$0xff] %v12441
        %12474 = vst [vmem:[%s217 + $0x80] sm:$0xff] %v12442
        %12475 = vst [vmem:[%s217 + $0x88] sm:$0xff] %v12443
        %12476 = vst [vmem:[%s217 + $0x90] sm:$0xff] %v12444
        %12477 = vst [vmem:[%s217 + $0x98] sm:$0xff] %v12445
        %12478 = vst [vmem:[%s217 + $0xa0] sm:$0xff] %v12446
        %12479 = vst [vmem:[%s217 + $0xa8] sm:$0xff] %v12447
        %12480 = vst [vmem:[%s217 + $0xb0] sm:$0xff] %v12448
        %12481 = vst [vmem:[%s217 + $0xb8] sm:$0xff] %v12449
        %12482 = vst [vmem:[%s217 + $0xc0] sm:$0xff] %v12450
        %12483 = vst [vmem:[%s217 + $0xc8] sm:$0xff] %v12451
        %12484 = vst [vmem:[%s217 + $0xd0] sm:$0xff] %v12452
        %12485 = vst [vmem:[%s217 + $0xd8] sm:$0xff] %v12453
        %12486 = vst [vmem:[%s217 + $0xe0] sm:$0xff] %v12454
        %12487 = vst [vmem:[%s217 + $0xe8] sm:$0xff] %v12455
        %12488 = vst [vmem:[%s217 + $0xf0] sm:$0xff] %v12456
        %12489 = vst [vmem:[%s217 + $0xf8] sm:$0xff] %v12457
        %s12490 = sand.u32 %s137, 1
        %s12491 = scalar_lea.sflag [#allocation4], %s12490
        %s12492 = sand.u32 %s137, 1
        %s12493 = smul.addr %s12492, 256
        %s12494 = scalar_lea.vmem [#allocation3], %s12493
        // Predicated region
        $region41: #{fam_forward.1} parent=39 // pred_check
          %p12495 = pneg %p147
        $region42: #{fam_forward.1} parent=39 // pred_check_branch
          %12497 = sbr.rel (%p12495) target = $region44
        $region43: #{fam_forward.1} parent=39 // pred_region
          %s12499 = ssub.s32 4096, 4096
          %12500 = vsyncadd %s12491, %s12499
          %s12501 = smul.addr %s19, 32
          %s12502 = smul.addr %s12501, 128
          %s12503 = scalar_lea.hbm %s5, %s12502
          %s12504 = sshll.u32 %s12494, 4
          %s12505 = int_to_ptr.vmem [resolvable:$true] %s12504
          %12510 = dma.vmem_to_hbm [thread:$0]  %s12505, 4096, %s12503, %s12491, 128, 128, 8
        $region44: #{fam_forward.1} parent=39 // pred_fallthru
          _
      $region40: #{fam_forward.1} parent=5 // pred_fallthru
        _
      %p12511 = scmp.le.s32.totalorder 2, %s14
      // Predicated region
      $region45: #{fam_forward.1} parent=5 // pred_check
        %p12512 = pneg %p12511
      $region46: #{fam_forward.1} parent=5 // pred_check_branch
        %12514 = sbr.rel (%p12512) target = $region48
      $region47: #{fam_forward.1} parent=5 // pred_region
        %s12515 = ssub.s32 %s14, 2
        // Predicated region
        $region49: #{fam_forward.1} parent=47 // pred_check
          %p12516 = pneg %p153
        $region50: #{fam_forward.1} parent=47 // pred_check_branch
          %12518 = sbr.rel (%p12516) target = $region52
        $region51: #{fam_forward.1} parent=47 // pred_region
          %s12519 = sand.u32 %s138, 1
          %s12520 = scalar_lea.sflag [#allocation4], %s12519
          %s12521 = sand.u32 %s138, 1
          %s12522 = smul.addr %s12521, 256
          %s12523 = scalar_lea.vmem [#allocation3], %s12522
          %12524 = dma.done %s12520, 4096
        $region52: #{fam_forward.1} parent=47 // pred_fallthru
          _
      $region48: #{fam_forward.1} parent=5 // pred_fallthru
        _
    $region6: #{fam_forward.1} parent=1 // loop_footer
      %s18 = sadd.s32 1, %s14
    $region7: #{fam_forward.1} parent=1 // loop_footer_branch
      %13 = sbr.rel target = $region3
    $region8: #{fam_forward.1} parent=1 // loop_exit
      _
    %12525 = vsyncpa [#allocation4], 1
    %s12526 = scalar_lea.sflag [#allocation4], 1
    %12527 = vsyncpa %s12526, 1

</llo_original>
